<compile_context>
chip_gen: v7x
topology: tpu7x:2x2x1
jax: 0.10.0
libtpu: 0.0.40
codegen_flags: <defaults>
</compile_context>

<pallas_src>
import jax
import jax.numpy as jnp
from jax.experimental import pallas as pl
from jax.experimental.pallas import tpu as pltpu


INPUT_SIZE = 28 * 28      # 784 (already a multiple of 16 -> valid bf16 sublane-packed width)
LANE = 128                # lane width (last-dim alignment for hidden/output layers)
MIN_BATCH_TILE = 128      # keep MXU M-dimension reasonably full even for small batches
MAX_BATCH_TILE = 256      # rows per grid step (amortizes ~0.35us step overhead)


def _round_up(x: int, m: int) -> int:
    return (x + m - 1) // m * m


def _compute_layer_sizes(latent_space_size: int, number_of_layers: int):
    """Replicates MNISTAutoencoder.__init__ layer-width bookkeeping exactly."""
    input_size = INPUT_SIZE
    assert input_size > latent_space_size
    reduce_by = (input_size - latent_space_size) // number_of_layers
    reduce_by_rem = (input_size - latent_space_size) / number_of_layers - reduce_by
    prev = input_size
    encoder_out = []
    reminder = 0.0
    for _ in range(number_of_layers - 1):
        r = reduce_by
        reminder += reduce_by_rem
        if reminder >= 1:
            reminder -= 1
            r += 1
        prev = prev - r
        encoder_out.append(prev)
    encoder_out.append(latent_space_size)

    dec = list(reversed(encoder_out))[1:]
    dec.append(input_size)
    return encoder_out, dec


def _choose_batch_tile(B: int):
    """Pick a batch tile: multiple of 16 (bf16 sublanes), floored at 128, capped at 256,
    and split so the grid has >= 2 steps whenever B > 128 (v7x two-TensorCore sharding)."""
    tb = max(MIN_BATCH_TILE, _round_up(B, 16))
    tb = min(tb, MAX_BATCH_TILE)
    if B > MIN_BATCH_TILE:
        half = max(MIN_BATCH_TILE, _round_up((B + 1) // 2, 16))
        tb = min(tb, half)
    b_pad = _round_up(B, tb)
    return tb, b_pad


# ---------------------------------------------------------------------------
# Kernel: whole MLP for one (TB, 784) bf16 tile of rows. Weights are bf16,
# single-buffered and resident in VMEM (constant index_map). f32 MXU accumulation.
# ---------------------------------------------------------------------------
def autoencoder_kernel(x_ref,
                       w1, b1, w2, b2, w3, b3,   # encoder linears (bf16 W, f32 b)
                       w4, b4, w5, b5, w6, b6,   # decoder linears
                       o_ref):
    def layer(h, w_ref, b_ref, relu):
        lhs = h if h.dtype == jnp.bfloat16 else h.astype(jnp.bfloat16)
        y = jnp.dot(lhs, w_ref[...], preferred_element_type=jnp.float32) + b_ref[...]
        return jnp.maximum(y, 0.0) if relu else y

    h = x_ref[...]                       # (TB, 784) bf16
    # --- encoder ---
    h = layer(h, w1, b1, True)
    h = layer(h, w2, b2, True)
    h = layer(h, w3, b3, False)          # latent: latent_space_activation_function is None
    # --- decoder ---
    h = layer(h, w4, b4, True)
    h = layer(h, w5, b5, True)
    h = layer(h, w6, b6, False)          # final decoder Linear: no activation
    o_ref[...] = h.astype(o_ref.dtype)


# ---------------------------------------------------------------------------
# Parameter construction (PyTorch-style init) and padding/casting for the kernel
# ---------------------------------------------------------------------------
def init_params(key, latent_space_size=32, number_of_layers=3):
    """Unpadded f32 params. W stored as (in, out) so y = x @ W + b == x @ W_pt.T + b."""
    enc, dec = _compute_layer_sizes(latent_space_size, number_of_layers)
    widths = []
    prev = INPUT_SIZE
    for o in enc + dec:
        widths.append((prev, o))
        prev = o

    params = []
    for (fan_in, fan_out) in widths:
        key, kw, kb = jax.random.split(key, 3)
        bound = 1.0 / (fan_in ** 0.5)
        w = jax.random.uniform(kw, (fan_in, fan_out), jnp.float32, -bound, bound)
        b = jax.random.uniform(kb, (1, fan_out), jnp.float32, -bound, bound)
        params += [w, b]
    return params


def prepare_params(params):
    """Pad layer widths to multiples of 128 (except the 784-wide input dim of layer 1,
    which stays native so the input tile needs no column padding); cast W to bf16, keep b f32.

    Padded rows/cols are exactly zero, so padded lanes of every activation stay exactly
    zero through the whole network (no leakage into the reconstruction)."""
    padded = []
    n_layers = len(params) // 2
    for i in range(n_layers):
        w, b = params[2 * i], params[2 * i + 1]
        fi, fo = w.shape
        pfi = fi if i == 0 else _round_up(fi, LANE)   # keep 784-native input width for layer 1
        pfo = _round_up(fo, LANE)
        wp = jnp.zeros((pfi, pfo), jnp.float32).at[:fi, :fo].set(w).astype(jnp.bfloat16)
        bp = jnp.zeros((1, pfo), jnp.float32).at[:, :fo].set(b)
        padded += [wp, bp]
    return padded


# ---------------------------------------------------------------------------
# JIT wrapper: Flatten -> bf16 -> batch-tiled pallas_call -> slice -> Unflatten
# ---------------------------------------------------------------------------
@jax.jit
def mnist_autoencoder_forward(x_nchw, *padded_params):
    B = x_nchw.shape[0]
    # nn.Flatten() + bf16 streaming (kernel would cast before the first dot anyway,
    # so this is numerically identical while halving input DMA bytes).
    x_flat = x_nchw.reshape(B, INPUT_SIZE).astype(jnp.bfloat16)

    d_in = padded_params[0].shape[0]      # 784 (native, no column padding)
    d_out = padded_params[-2].shape[1]    # 896 (lane-dense output stores)

    tb, b_pad = _choose_batch_tile(B)
    grid = (b_pad // tb,)

    # Only pad rows (cheap bf16 copy) when B isn't already a whole number of tiles.
    if b_pad == B:
        x_p = x_flat
    else:
        x_p = jnp.zeros((b_pad, d_in), jnp.bfloat16).at[:B].set(x_flat)

    # Weights/biases: full-array blocks, constant index_map, single-buffered ->
    # DMA'd once and resident in VMEM for the whole grid.
    weight_specs = [
        pl.BlockSpec(p.shape, lambda i: (0, 0), pipeline_mode=pl.Buffered(1))
        for p in padded_params
    ]

    n_layers = len(padded_params) // 2
    flops = 2 * b_pad * sum(
        padded_params[2 * k].shape[0] * padded_params[2 * k].shape[1] for k in range(n_layers)
    )
    bytes_accessed = (
        int(x_p.size) * x_p.dtype.itemsize + b_pad * d_out * 4
        + sum(int(p.size) * p.dtype.itemsize for p in padded_params)
    )

    out_flat = pl.pallas_call(
        autoencoder_kernel,
        out_shape=jax.ShapeDtypeStruct((b_pad, d_out), jnp.float32),
        grid=grid,
        in_specs=[pl.BlockSpec((tb, d_in), lambda i: (i, 0))] + weight_specs,
        out_specs=pl.BlockSpec((tb, d_out), lambda i: (i, 0)),
        compiler_params=pltpu.CompilerParams(
            dimension_semantics=("parallel",),       # shard batch tiles across TCs (v7x)
            vmem_limit_bytes=24 * 1024 * 1024,       # ~8 MiB actually needed; ample headroom
        ),
        cost_estimate=pl.CostEstimate(
            flops=flops, transcendentals=0, bytes_accessed=bytes_accessed),
    )(x_p, *padded_params)

    # Slice padded rows/lanes off, then nn.Unflatten(-1, (1, 28, 28)).
    return out_flat[:B, :INPUT_SIZE].reshape(B, 1, 28, 28)


# ---------------------------------------------------------------------------
# Pure-JAX references for correctness checking
# ---------------------------------------------------------------------------
def _reference_forward_f32(x_nchw, *params):
    """Exact f32 semantics of the PyTorch module."""
    B = x_nchw.shape[0]
    h = x_nchw.reshape(B, INPUT_SIZE).astype(jnp.float32)
    n_layers = len(params) // 2
    for i in range(n_layers):
        w, b = params[2 * i], params[2 * i + 1]
        h = h @ w + b
        if i != 2 and i != n_layers - 1:   # ReLU everywhere except latent + final layer
            h = jnp.maximum(h, 0.0)
    return h.reshape(B, 1, 28, 28)


def _reference_forward_bf16(x_nchw, *params):
    """Mirrors the kernel's numerics: bf16 matmul inputs, f32 accumulation, f32 bias."""
    B = x_nchw.shape[0]
    h = x_nchw.reshape(B, INPUT_SIZE).astype(jnp.float32)
    n_layers = len(params) // 2
    for i in range(n_layers):
        w, b = params[2 * i], params[2 * i + 1]
        h = jnp.dot(h.astype(jnp.bfloat16), w.astype(jnp.bfloat16),
                    preferred_element_type=jnp.float32) + b
        if i != 2 and i != n_layers - 1:
            h = jnp.maximum(h, 0.0)
    return h.reshape(B, 1, 28, 28)


if __name__ == "__main__":
    key = jax.random.PRNGKey(0)
    k_x, k_p = jax.random.split(key)

    B = 4
    x = jax.random.uniform(k_x, (B, 1, 28, 28), jnp.float32)   # MNIST-like NCHW input
    params = init_params(k_p, latent_space_size=32, number_of_layers=3)
    padded_params = prepare_params(params)

    out = mnist_autoencoder_forward(x, *padded_params)
    out = jax.block_until_ready(out)
    assert out.shape == (B, 1, 28, 28)

    # Tight check against a reference with identical bf16/f32 numerics.
    ref_bf16 = _reference_forward_bf16(x, *params)
    assert jnp.allclose(out, ref_bf16, atol=1e-3, rtol=1e-3), "mismatch vs bf16-matched reference"

    # Loose check against the exact-f32 module semantics (bound on bf16 weight quantization).
    ref_f32 = _reference_forward_f32(x, *params)
    assert jnp.allclose(out, ref_f32, atol=5e-2, rtol=5e-2), "mismatch vs f32 reference"

    print("KERNEL_OK")
</pallas_src>

<mosaic_0001>
module attributes {stable_mosaic.version = 11 : i64} {
  func.func @autoencoder_kernel(%arg0: i32, %arg1: memref<128x784xbf16, #tpu.memory_space<vmem>>, %arg2: memref<784x640xbf16, #tpu.memory_space<vmem>>, %arg3: memref<1x640xf32, #tpu.memory_space<vmem>>, %arg4: memref<640x384xbf16, #tpu.memory_space<vmem>>, %arg5: memref<1x384xf32, #tpu.memory_space<vmem>>, %arg6: memref<384x128xbf16, #tpu.memory_space<vmem>>, %arg7: memref<1x128xf32, #tpu.memory_space<vmem>>, %arg8: memref<128x384xbf16, #tpu.memory_space<vmem>>, %arg9: memref<1x384xf32, #tpu.memory_space<vmem>>, %arg10: memref<384x640xbf16, #tpu.memory_space<vmem>>, %arg11: memref<1x640xf32, #tpu.memory_space<vmem>>, %arg12: memref<640x896xbf16, #tpu.memory_space<vmem>>, %arg13: memref<1x896xf32, #tpu.memory_space<vmem>>, %arg14: memref<128x896xf32, #tpu.memory_space<vmem>>) attributes {dimension_semantics = [#tpu.dimension_semantics<parallel>], iteration_bounds = array<i64: 1>, scalar_prefetch = 0 : i64, scratch_operands = 0 : i64, tpu.core_type = #tpu.core_type<tc>, window_params = [{transform_indices = @transform_0, window_bounds = array<i64: 128, 784>}, {pipeline_mode = #tpu.pipeline_mode<synchronous>, transform_indices = @transform_1, window_bounds = array<i64: 784, 640>}, {pipeline_mode = #tpu.pipeline_mode<synchronous>, transform_indices = @transform_2, window_bounds = array<i64: 1, 640>}, {pipeline_mode = #tpu.pipeline_mode<synchronous>, transform_indices = @transform_3, window_bounds = array<i64: 640, 384>}, {pipeline_mode = #tpu.pipeline_mode<synchronous>, transform_indices = @transform_4, window_bounds = array<i64: 1, 384>}, {pipeline_mode = #tpu.pipeline_mode<synchronous>, transform_indices = @transform_5, window_bounds = array<i64: 384, 128>}, {pipeline_mode = #tpu.pipeline_mode<synchronous>, transform_indices = @transform_6, window_bounds = array<i64: 1, 128>}, {pipeline_mode = #tpu.pipeline_mode<synchronous>, transform_indices = @transform_7, window_bounds = array<i64: 128, 384>}, {pipeline_mode = #tpu.pipeline_mode<synchronous>, transform_indices = @transform_8, window_bounds = array<i64: 1, 384>}, {pipeline_mode = #tpu.pipeline_mode<synchronous>, transform_indices = @transform_9, window_bounds = array<i64: 384, 640>}, {pipeline_mode = #tpu.pipeline_mode<synchronous>, transform_indices = @transform_10, window_bounds = array<i64: 1, 640>}, {pipeline_mode = #tpu.pipeline_mode<synchronous>, transform_indices = @transform_11, window_bounds = array<i64: 640, 896>}, {pipeline_mode = #tpu.pipeline_mode<synchronous>, transform_indices = @transform_12, window_bounds = array<i64: 1, 896>}, {transform_indices = @transform_13, window_bounds = array<i64: 128, 896>}]} {
    %c0 = arith.constant 0 : index
    %c0_0 = arith.constant 0 : index
    %0 = vector.load %arg1[%c0, %c0_0] : memref<128x784xbf16, #tpu.memory_space<vmem>>, vector<128x784xbf16>
    %c0_1 = arith.constant 0 : index
    %c0_2 = arith.constant 0 : index
    %1 = vector.load %arg2[%c0_1, %c0_2] : memref<784x640xbf16, #tpu.memory_space<vmem>>, vector<784x640xbf16>
    %cst = arith.constant dense<0.000000e+00> : vector<128x640xf32>
    %2 = tpu.matmul %0, %1, %cst {dimension_numbers = #tpu.dot_dimension_numbers<[1], [0], [0], [1], [0, 0, 1, 1], [], []>} : vector<128x784xbf16>, vector<784x640xbf16>, vector<128x640xf32> -> vector<128x640xf32>
    %c0_3 = arith.constant 0 : index
    %c0_4 = arith.constant 0 : index
    %3 = vector.load %arg3[%c0_3, %c0_4] : memref<1x640xf32, #tpu.memory_space<vmem>>, vector<1x640xf32>
    %4 = vector.broadcast %3 : vector<1x640xf32> to vector<128x640xf32>
    %5 = arith.addf %2, %4 : vector<128x640xf32>
    %cst_5 = arith.constant 0.000000e+00 : f32
    %6 = vector.broadcast %cst_5 : f32 to vector<128x640xf32>
    %7 = arith.maximumf %5, %6 : vector<128x640xf32>
    %8 = arith.truncf %7 : vector<128x640xf32> to vector<128x640xbf16>
    %c0_6 = arith.constant 0 : index
    %c0_7 = arith.constant 0 : index
    %9 = vector.load %arg4[%c0_6, %c0_7] : memref<640x384xbf16, #tpu.memory_space<vmem>>, vector<640x384xbf16>
    %cst_8 = arith.constant dense<0.000000e+00> : vector<128x384xf32>
    %10 = tpu.matmul %8, %9, %cst_8 {dimension_numbers = #tpu.dot_dimension_numbers<[1], [0], [0], [1], [0, 0, 1, 1], [], []>} : vector<128x640xbf16>, vector<640x384xbf16>, vector<128x384xf32> -> vector<128x384xf32>
    %c0_9 = arith.constant 0 : index
    %c0_10 = arith.constant 0 : index
    %11 = vector.load %arg5[%c0_9, %c0_10] : memref<1x384xf32, #tpu.memory_space<vmem>>, vector<1x384xf32>
    %12 = vector.broadcast %11 : vector<1x384xf32> to vector<128x384xf32>
    %13 = arith.addf %10, %12 : vector<128x384xf32>
    %cst_11 = arith.constant 0.000000e+00 : f32
    %14 = vector.broadcast %cst_11 : f32 to vector<128x384xf32>
    %15 = arith.maximumf %13, %14 : vector<128x384xf32>
    %16 = arith.truncf %15 : vector<128x384xf32> to vector<128x384xbf16>
    %c0_12 = arith.constant 0 : index
    %c0_13 = arith.constant 0 : index
    %17 = vector.load %arg6[%c0_12, %c0_13] : memref<384x128xbf16, #tpu.memory_space<vmem>>, vector<384x128xbf16>
    %cst_14 = arith.constant dense<0.000000e+00> : vector<128x128xf32>
    %18 = tpu.matmul %16, %17, %cst_14 {dimension_numbers = #tpu.dot_dimension_numbers<[1], [0], [0], [1], [0, 0, 1, 1], [], []>} : vector<128x384xbf16>, vector<384x128xbf16>, vector<128x128xf32> -> vector<128x128xf32>
    %c0_15 = arith.constant 0 : index
    %c0_16 = arith.constant 0 : index
    %19 = vector.load %arg7[%c0_15, %c0_16] : memref<1x128xf32, #tpu.memory_space<vmem>>, vector<1x128xf32>
    %20 = vector.broadcast %19 : vector<1x128xf32> to vector<128x128xf32>
    %21 = arith.addf %18, %20 : vector<128x128xf32>
    %22 = arith.truncf %21 : vector<128x128xf32> to vector<128x128xbf16>
    %c0_17 = arith.constant 0 : index
    %c0_18 = arith.constant 0 : index
    %23 = vector.load %arg8[%c0_17, %c0_18] : memref<128x384xbf16, #tpu.memory_space<vmem>>, vector<128x384xbf16>
    %cst_19 = arith.constant dense<0.000000e+00> : vector<128x384xf32>
    %24 = tpu.matmul %22, %23, %cst_19 {dimension_numbers = #tpu.dot_dimension_numbers<[1], [0], [0], [1], [0, 0, 1, 1], [], []>} : vector<128x128xbf16>, vector<128x384xbf16>, vector<128x384xf32> -> vector<128x384xf32>
    %c0_20 = arith.constant 0 : index
    %c0_21 = arith.constant 0 : index
    %25 = vector.load %arg9[%c0_20, %c0_21] : memref<1x384xf32, #tpu.memory_space<vmem>>, vector<1x384xf32>
    %26 = vector.broadcast %25 : vector<1x384xf32> to vector<128x384xf32>
    %27 = arith.addf %24, %26 : vector<128x384xf32>
    %cst_22 = arith.constant 0.000000e+00 : f32
    %28 = vector.broadcast %cst_22 : f32 to vector<128x384xf32>
    %29 = arith.maximumf %27, %28 : vector<128x384xf32>
    %30 = arith.truncf %29 : vector<128x384xf32> to vector<128x384xbf16>
    %c0_23 = arith.constant 0 : index
    %c0_24 = arith.constant 0 : index
    %31 = vector.load %arg10[%c0_23, %c0_24] : memref<384x640xbf16, #tpu.memory_space<vmem>>, vector<384x640xbf16>
    %cst_25 = arith.constant dense<0.000000e+00> : vector<128x640xf32>
    %32 = tpu.matmul %30, %31, %cst_25 {dimension_numbers = #tpu.dot_dimension_numbers<[1], [0], [0], [1], [0, 0, 1, 1], [], []>} : vector<128x384xbf16>, vector<384x640xbf16>, vector<128x640xf32> -> vector<128x640xf32>
    %c0_26 = arith.constant 0 : index
    %c0_27 = arith.constant 0 : index
    %33 = vector.load %arg11[%c0_26, %c0_27] : memref<1x640xf32, #tpu.memory_space<vmem>>, vector<1x640xf32>
    %34 = vector.broadcast %33 : vector<1x640xf32> to vector<128x640xf32>
    %35 = arith.addf %32, %34 : vector<128x640xf32>
    %cst_28 = arith.constant 0.000000e+00 : f32
    %36 = vector.broadcast %cst_28 : f32 to vector<128x640xf32>
    %37 = arith.maximumf %35, %36 : vector<128x640xf32>
    %38 = arith.truncf %37 : vector<128x640xf32> to vector<128x640xbf16>
    %c0_29 = arith.constant 0 : index
    %c0_30 = arith.constant 0 : index
    %39 = vector.load %arg12[%c0_29, %c0_30] : memref<640x896xbf16, #tpu.memory_space<vmem>>, vector<640x896xbf16>
    %cst_31 = arith.constant dense<0.000000e+00> : vector<128x896xf32>
    %40 = tpu.matmul %38, %39, %cst_31 {dimension_numbers = #tpu.dot_dimension_numbers<[1], [0], [0], [1], [0, 0, 1, 1], [], []>} : vector<128x640xbf16>, vector<640x896xbf16>, vector<128x896xf32> -> vector<128x896xf32>
    %c0_32 = arith.constant 0 : index
    %c0_33 = arith.constant 0 : index
    %41 = vector.load %arg13[%c0_32, %c0_33] : memref<1x896xf32, #tpu.memory_space<vmem>>, vector<1x896xf32>
    %42 = vector.broadcast %41 : vector<1x896xf32> to vector<128x896xf32>
    %43 = arith.addf %40, %42 : vector<128x896xf32>
    %c0_34 = arith.constant 0 : index
    %c0_35 = arith.constant 0 : index
    %44 = vector.load %arg14[%c0_34, %c0_35] : memref<128x896xf32, #tpu.memory_space<vmem>>, vector<128x896xf32>
    tpu.vector_store %arg14[%c0_34, %c0_35], %43 {strides = array<i32>} : memref<128x896xf32, #tpu.memory_space<vmem>>, vector<128x896xf32>,
    return
  }
  func.func @transform_0(%arg0: i32) -> (i32, i32) {
    %c0_i32 = arith.constant 0 : i32
    %c0_i32_0 = arith.constant 0 : i32
    return %arg0, %c0_i32 : i32, i32
  }
  func.func @transform_1(%arg0: i32) -> (i32, i32) {
    %c0_i32 = arith.constant 0 : i32
    %c0_i32_0 = arith.constant 0 : i32
    %c0_i32_1 = arith.constant 0 : i32
    return %c0_i32, %c0_i32_0 : i32, i32
  }
  func.func @transform_2(%arg0: i32) -> (i32, i32) {
    %c0_i32 = arith.constant 0 : i32
    %c0_i32_0 = arith.constant 0 : i32
    %c0_i32_1 = arith.constant 0 : i32
    return %c0_i32, %c0_i32_0 : i32, i32
  }
  func.func @transform_3(%arg0: i32) -> (i32, i32) {
    %c0_i32 = arith.constant 0 : i32
    %c0_i32_0 = arith.constant 0 : i32
    %c0_i32_1 = arith.constant 0 : i32
    return %c0_i32, %c0_i32_0 : i32, i32
  }
  func.func @transform_4(%arg0: i32) -> (i32, i32) {
    %c0_i32 = arith.constant 0 : i32
    %c0_i32_0 = arith.constant 0 : i32
    %c0_i32_1 = arith.constant 0 : i32
    return %c0_i32, %c0_i32_0 : i32, i32
  }
  func.func @transform_5(%arg0: i32) -> (i32, i32) {
    %c0_i32 = arith.constant 0 : i32
    %c0_i32_0 = arith.constant 0 : i32
    %c0_i32_1 = arith.constant 0 : i32
    return %c0_i32, %c0_i32_0 : i32, i32
  }
  func.func @transform_6(%arg0: i32) -> (i32, i32) {
    %c0_i32 = arith.constant 0 : i32
    %c0_i32_0 = arith.constant 0 : i32
    %c0_i32_1 = arith.constant 0 : i32
    return %c0_i32, %c0_i32_0 : i32, i32
  }
  func.func @transform_7(%arg0: i32) -> (i32, i32) {
    %c0_i32 = arith.constant 0 : i32
    %c0_i32_0 = arith.constant 0 : i32
    %c0_i32_1 = arith.constant 0 : i32
    return %c0_i32, %c0_i32_0 : i32, i32
  }
  func.func @transform_8(%arg0: i32) -> (i32, i32) {
    %c0_i32 = arith.constant 0 : i32
    %c0_i32_0 = arith.constant 0 : i32
    %c0_i32_1 = arith.constant 0 : i32
    return %c0_i32, %c0_i32_0 : i32, i32
  }
  func.func @transform_9(%arg0: i32) -> (i32, i32) {
    %c0_i32 = arith.constant 0 : i32
    %c0_i32_0 = arith.constant 0 : i32
    %c0_i32_1 = arith.constant 0 : i32
    return %c0_i32, %c0_i32_0 : i32, i32
  }
  func.func @transform_10(%arg0: i32) -> (i32, i32) {
    %c0_i32 = arith.constant 0 : i32
    %c0_i32_0 = arith.constant 0 : i32
    %c0_i32_1 = arith.constant 0 : i32
    return %c0_i32, %c0_i32_0 : i32, i32
  }
  func.func @transform_11(%arg0: i32) -> (i32, i32) {
    %c0_i32 = arith.constant 0 : i32
    %c0_i32_0 = arith.constant 0 : i32
    %c0_i32_1 = arith.constant 0 : i32
    return %c0_i32, %c0_i32_0 : i32, i32
  }
  func.func @transform_12(%arg0: i32) -> (i32, i32) {
    %c0_i32 = arith.constant 0 : i32
    %c0_i32_0 = arith.constant 0 : i32
    %c0_i32_1 = arith.constant 0 : i32
    return %c0_i32, %c0_i32_0 : i32, i32
  }
  func.func @transform_13(%arg0: i32) -> (i32, i32) {
    %c0_i32 = arith.constant 0 : i32
    %c0_i32_0 = arith.constant 0 : i32
    return %arg0, %c0_i32 : i32, i32
  }
}

</mosaic_0001>

<llo_original>
// kernel: mnist_autoencoder_forward.1
$region0: #{mnist_autoencoder_forward.1}
  #allocation0 [shape = 'u32[]', space=smem, size = 0x4, offset = 0x4, fixed_abs, tag = 'smem constant byte address 0x4 - core index']
  #allocation1 [shape = 'u32[144,128]{1,0:T(1,128)}', space=vmem, size = 0x12000, scoped, tag = 'internal scratch']
  %s0 = inlined_call_operand.vmem [shape: bf16[128,784], index: 0, kind: input, shape index: {}]
  %s1 = inlined_call_operand.hbm [shape: bf16[784,640], index: 1, kind: input, shape index: {}]
  %s2 = inlined_call_operand.hbm [shape: f32[1,640], index: 2, kind: input, shape index: {}]
  %s3 = inlined_call_operand.hbm [shape: bf16[640,384], index: 3, kind: input, shape index: {}]
  %s4 = inlined_call_operand.hbm [shape: f32[1,384], index: 4, kind: input, shape index: {}]
  %s5 = inlined_call_operand.hbm [shape: bf16[384,128], index: 5, kind: input, shape index: {}]
  %s6 = inlined_call_operand.hbm [shape: f32[1,128], index: 6, kind: input, shape index: {}]
  %s7 = inlined_call_operand.hbm [shape: bf16[128,384], index: 7, kind: input, shape index: {}]
  %s8 = inlined_call_operand.hbm [shape: f32[1,384], index: 8, kind: input, shape index: {}]
  %s9 = inlined_call_operand.hbm [shape: bf16[384,640], index: 9, kind: input, shape index: {}]
  %s10 = inlined_call_operand.hbm [shape: f32[1,640], index: 10, kind: input, shape index: {}]
  %s11 = inlined_call_operand.hbm [shape: bf16[640,896], index: 11, kind: input, shape index: {}]
  %s12 = inlined_call_operand.hbm [shape: f32[1,896], index: 12, kind: input, shape index: {}]
  %s13 = inlined_call_operand.vmem [shape: f32[128,896], index: 13, kind: output, shape index: {}]
  %s14 = sld [smem:[#allocation0]]
  $region110: #{mnist_autoencoder_forward.1} parent=0
    _
  %s16 = ssub.s32 1, %s14
  %s17 = scalar_select 0, %s16, %s14
  $region1: #{mnist_autoencoder_forward.1} parent=0
    #allocation2 [shape = 'u8[1003520]{0}', space=vmem, size = 0xf5000, scoped, tag = 'input window, operand 1, single buffered']
    #allocation3 [shape = 's32[1]{0}', space=sflag, size = 0x4, scoped, tag = 'scoped memory for mnist_autoencoder_forward.1']
    #allocation4 [shape = 'u8[2560]{0}', space=vmem, size = 0xc00, scoped, tag = 'input window, operand 2, single buffered']
    #allocation5 [shape = 's32[1]{0}', space=sflag, size = 0x4, scoped, tag = 'scoped memory for mnist_autoencoder_forward.1']
    #allocation6 [shape = 'u8[491520]{0}', space=vmem, size = 0x78000, scoped, tag = 'input window, operand 3, single buffered']
    #allocation7 [shape = 'u8[1536]{0}', space=vmem, size = 0x800, scoped, tag = 'input window, operand 4, single buffered']
    #allocation8 [shape = 's32[1]{0}', space=sflag, size = 0x4, scoped, tag = 'scoped memory for mnist_autoencoder_forward.1']
    #allocation9 [shape = 'u8[98304]{0}', space=vmem, size = 0x18000, scoped, tag = 'input window, operand 5, single buffered']
    #allocation10 [shape = 'u8[512]{0}', space=vmem, size = 0x400, scoped, tag = 'input window, operand 6, single buffered']
    #allocation11 [shape = 's32[1]{0}', space=sflag, size = 0x4, scoped, tag = 'scoped memory for mnist_autoencoder_forward.1']
    #allocation12 [shape = 'u8[98304]{0}', space=vmem, size = 0x18000, scoped, tag = 'input window, operand 7, single buffered']
    #allocation13 [shape = 'u8[1536]{0}', space=vmem, size = 0x800, scoped, tag = 'input window, operand 8, single buffered']
    #allocation14 [shape = 's32[1]{0}', space=sflag, size = 0x4, scoped, tag = 'scoped memory for mnist_autoencoder_forward.1']
    #allocation15 [shape = 'u8[491520]{0}', space=vmem, size = 0x78000, scoped, tag = 'input window, operand 9, single buffered']
    #allocation16 [shape = 'u8[2560]{0}', space=vmem, size = 0xc00, scoped, tag = 'input window, operand 10, single buffered']
    #allocation17 [shape = 's32[1]{0}', space=sflag, size = 0x4, scoped, tag = 'scoped memory for mnist_autoencoder_forward.1']
    #allocation18 [shape = 'u8[1146880]{0}', space=vmem, size = 0x118000, scoped, tag = 'input window, operand 11, single buffered']
    #allocation19 [shape = 'u8[3584]{0}', space=vmem, size = 0x1000, scoped, tag = 'input window, operand 12, single buffered']
    #allocation20 [shape = 's32[1]{0}', space=sflag, size = 0x4, scoped, tag = 'scoped memory for mnist_autoencoder_forward.1']
    %18 = vsyncpa [#allocation3], 0
    %19 = vsyncpa [#allocation5], 0
    %20 = vsyncpa [#allocation8], 0
    %21 = vsyncpa [#allocation11], 0
    %22 = vsyncpa [#allocation14], 0
    %23 = vsyncpa [#allocation17], 0
    %24 = vsyncpa [#allocation20], 0
    // Predicated region
    $region2: #{mnist_autoencoder_forward.1} parent=1 // pred_check
      _
    $region3: #{mnist_autoencoder_forward.1} parent=1 // pred_check_branch
      %26 = sbr.rel (0) target = $region5
    $region4: #{mnist_autoencoder_forward.1} parent=1 // pred_region
      _
    $region5: #{mnist_autoencoder_forward.1} parent=1 // pred_fallthru
      _
    // Predicated region
    $region6: #{mnist_autoencoder_forward.1} parent=1 // pred_check
      _
    $region7: #{mnist_autoencoder_forward.1} parent=1 // pred_check_branch
      %28 = sbr.rel (0) target = $region9
    $region8: #{mnist_autoencoder_forward.1} parent=1 // pred_region
      %s30 = ssub.s32 31360, 31360
      %31 = vsyncadd [#allocation3], %s30
      %s32 = sshll.u32 [#allocation2], 4
      %s33 = int_to_ptr.vmem [resolvable:$true] %s32
      %38 = dma.hbm_to_vmem [thread:$0]  %s1, 31360, %s33, [#allocation3], 320, 320, 20
    $region9: #{mnist_autoencoder_forward.1} parent=1 // pred_fallthru
      _
    // Predicated region
    $region10: #{mnist_autoencoder_forward.1} parent=1 // pred_check
      _
    $region11: #{mnist_autoencoder_forward.1} parent=1 // pred_check_branch
      %40 = sbr.rel (0) target = $region13
    $region12: #{mnist_autoencoder_forward.1} parent=1 // pred_region
      %s42 = ssub.s32 80, 80
      %43 = vsyncadd [#allocation5], %s42
      %s45 = sshll.u32 [#allocation4], 4
      %s46 = int_to_ptr.vmem [resolvable:$true] %s45
      %48 = dma.hbm_to_vmem [thread:$0]  %s2, 80, %s46, [#allocation5]
    $region13: #{mnist_autoencoder_forward.1} parent=1 // pred_fallthru
      _
    // Predicated region
    $region14: #{mnist_autoencoder_forward.1} parent=1 // pred_check
      _
    $region15: #{mnist_autoencoder_forward.1} parent=1 // pred_check_branch
      %50 = sbr.rel (0) target = $region17
    $region16: #{mnist_autoencoder_forward.1} parent=1 // pred_region
      %s52 = ssub.s32 15360, 15360
      %53 = vsyncadd [#allocation5], %s52
      %s54 = sshll.u32 [#allocation6], 4
      %s55 = int_to_ptr.vmem [resolvable:$true] %s54
      %60 = dma.hbm_to_vmem [thread:$0]  %s3, 15360, %s55, [#allocation5], 192, 192, 12
    $region17: #{mnist_autoencoder_forward.1} parent=1 // pred_fallthru
      _
    // Predicated region
    $region18: #{mnist_autoencoder_forward.1} parent=1 // pred_check
      _
    $region19: #{mnist_autoencoder_forward.1} parent=1 // pred_check_branch
      %62 = sbr.rel (0) target = $region21
    $region20: #{mnist_autoencoder_forward.1} parent=1 // pred_region
      %s64 = ssub.s32 48, 48
      %65 = vsyncadd [#allocation8], %s64
      %s67 = sshll.u32 [#allocation7], 4
      %s68 = int_to_ptr.vmem [resolvable:$true] %s67
      %70 = dma.hbm_to_vmem [thread:$0]  %s4, 48, %s68, [#allocation8]
    $region21: #{mnist_autoencoder_forward.1} parent=1 // pred_fallthru
      _
    // Predicated region
    $region22: #{mnist_autoencoder_forward.1} parent=1 // pred_check
      _
    $region23: #{mnist_autoencoder_forward.1} parent=1 // pred_check_branch
      %72 = sbr.rel (0) target = $region25
    $region24: #{mnist_autoencoder_forward.1} parent=1 // pred_region
      %s74 = ssub.s32 3072, 3072
      %75 = vsyncadd [#allocation8], %s74
      %s76 = sshll.u32 [#allocation9], 4
      %s77 = int_to_ptr.vmem [resolvable:$true] %s76
      %82 = dma.hbm_to_vmem [thread:$0]  %s5, 3072, %s77, [#allocation8], 64, 64, 4
    $region25: #{mnist_autoencoder_forward.1} parent=1 // pred_fallthru
      _
    // Predicated region
    $region26: #{mnist_autoencoder_forward.1} parent=1 // pred_check
      _
    $region27: #{mnist_autoencoder_forward.1} parent=1 // pred_check_branch
      %84 = sbr.rel (0) target = $region29
    $region28: #{mnist_autoencoder_forward.1} parent=1 // pred_region
      %s86 = ssub.s32 16, 16
      %87 = vsyncadd [#allocation11], %s86
      %s89 = sshll.u32 [#allocation10], 4
      %s90 = int_to_ptr.vmem [resolvable:$true] %s89
      %92 = dma.hbm_to_vmem [thread:$0]  %s6, 16, %s90, [#allocation11]
    $region29: #{mnist_autoencoder_forward.1} parent=1 // pred_fallthru
      _
    // Predicated region
    $region30: #{mnist_autoencoder_forward.1} parent=1 // pred_check
      _
    $region31: #{mnist_autoencoder_forward.1} parent=1 // pred_check_branch
      %94 = sbr.rel (0) target = $region33
    $region32: #{mnist_autoencoder_forward.1} parent=1 // pred_region
      %s96 = ssub.s32 3072, 3072
      %97 = vsyncadd [#allocation11], %s96
      %s98 = sshll.u32 [#allocation12], 4
      %s99 = int_to_ptr.vmem [resolvable:$true] %s98
      %104 = dma.hbm_to_vmem [thread:$0]  %s7, 3072, %s99, [#allocation11], 192, 192, 12
    $region33: #{mnist_autoencoder_forward.1} parent=1 // pred_fallthru
      _
    // Predicated region
    $region34: #{mnist_autoencoder_forward.1} parent=1 // pred_check
      _
    $region35: #{mnist_autoencoder_forward.1} parent=1 // pred_check_branch
      %106 = sbr.rel (0) target = $region37
    $region36: #{mnist_autoencoder_forward.1} parent=1 // pred_region
      %s108 = ssub.s32 48, 48
      %109 = vsyncadd [#allocation14], %s108
      %s111 = sshll.u32 [#allocation13], 4
      %s112 = int_to_ptr.vmem [resolvable:$true] %s111
      %114 = dma.hbm_to_vmem [thread:$0]  %s8, 48, %s112, [#allocation14]
    $region37: #{mnist_autoencoder_forward.1} parent=1 // pred_fallthru
      _
    // Predicated region
    $region38: #{mnist_autoencoder_forward.1} parent=1 // pred_check
      _
    $region39: #{mnist_autoencoder_forward.1} parent=1 // pred_check_branch
      %116 = sbr.rel (0) target = $region41
    $region40: #{mnist_autoencoder_forward.1} parent=1 // pred_region
      %s118 = ssub.s32 15360, 15360
      %119 = vsyncadd [#allocation14], %s118
      %s120 = sshll.u32 [#allocation15], 4
      %s121 = int_to_ptr.vmem [resolvable:$true] %s120
      %126 = dma.hbm_to_vmem [thread:$0]  %s9, 15360, %s121, [#allocation14], 320, 320, 20
    $region41: #{mnist_autoencoder_forward.1} parent=1 // pred_fallthru
      _
    // Predicated region
    $region42: #{mnist_autoencoder_forward.1} parent=1 // pred_check
      _
    $region43: #{mnist_autoencoder_forward.1} parent=1 // pred_check_branch
      %128 = sbr.rel (0) target = $region45
    $region44: #{mnist_autoencoder_forward.1} parent=1 // pred_region
      %s130 = ssub.s32 80, 80
      %131 = vsyncadd [#allocation17], %s130
      %s133 = sshll.u32 [#allocation16], 4
      %s134 = int_to_ptr.vmem [resolvable:$true] %s133
      %136 = dma.hbm_to_vmem [thread:$0]  %s10, 80, %s134, [#allocation17]
    $region45: #{mnist_autoencoder_forward.1} parent=1 // pred_fallthru
      _
    // Predicated region
    $region46: #{mnist_autoencoder_forward.1} parent=1 // pred_check
      _
    $region47: #{mnist_autoencoder_forward.1} parent=1 // pred_check_branch
      %138 = sbr.rel (0) target = $region49
    $region48: #{mnist_autoencoder_forward.1} parent=1 // pred_region
      %s140 = ssub.s32 35840, 35840
      %141 = vsyncadd [#allocation17], %s140
      %s142 = sshll.u32 [#allocation18], 4
      %s143 = int_to_ptr.vmem [resolvable:$true] %s142
      %148 = dma.hbm_to_vmem [thread:$0]  %s11, 35840, %s143, [#allocation17], 448, 448, 28
    $region49: #{mnist_autoencoder_forward.1} parent=1 // pred_fallthru
      _
    // Predicated region
    $region50: #{mnist_autoencoder_forward.1} parent=1 // pred_check
      _
    $region51: #{mnist_autoencoder_forward.1} parent=1 // pred_check_branch
      %150 = sbr.rel (0) target = $region53
    $region52: #{mnist_autoencoder_forward.1} parent=1 // pred_region
      %s152 = ssub.s32 112, 112
      %153 = vsyncadd [#allocation20], %s152
      %s155 = sshll.u32 [#allocation19], 4
      %s156 = int_to_ptr.vmem [resolvable:$true] %s155
      %158 = dma.hbm_to_vmem [thread:$0]  %s12, 112, %s156, [#allocation20]
    $region53: #{mnist_autoencoder_forward.1} parent=1 // pred_fallthru
      _
    // Predicated region
    $region54: #{mnist_autoencoder_forward.1} parent=1 // pred_check
      _
    $region55: #{mnist_autoencoder_forward.1} parent=1 // pred_check_branch
      %160 = sbr.rel (0) target = $region57
    $region56: #{mnist_autoencoder_forward.1} parent=1 // pred_region
      %161 = dma.done [#allocation3], 31360
    $region57: #{mnist_autoencoder_forward.1} parent=1 // pred_fallthru
      _
    // Predicated region
    $region58: #{mnist_autoencoder_forward.1} parent=1 // pred_check
      _
    $region59: #{mnist_autoencoder_forward.1} parent=1 // pred_check_branch
      %163 = sbr.rel (0) target = $region61
    $region60: #{mnist_autoencoder_forward.1} parent=1 // pred_region
      %164 = dma.done [#allocation5], 80
    $region61: #{mnist_autoencoder_forward.1} parent=1 // pred_fallthru
      _
    // Predicated region
    $region62: #{mnist_autoencoder_forward.1} parent=1 // pred_check
      _
    $region63: #{mnist_autoencoder_forward.1} parent=1 // pred_check_branch
      %166 = sbr.rel (0) target = $region65
    $region64: #{mnist_autoencoder_forward.1} parent=1 // pred_region
      %167 = dma.done [#allocation5], 15360
    $region65: #{mnist_autoencoder_forward.1} parent=1 // pred_fallthru
      _
    // Predicated region
    $region66: #{mnist_autoencoder_forward.1} parent=1 // pred_check
      _
    $region67: #{mnist_autoencoder_forward.1} parent=1 // pred_check_branch
      %169 = sbr.rel (0) target = $region69
    $region68: #{mnist_autoencoder_forward.1} parent=1 // pred_region
      %170 = dma.done [#allocation8], 48
    $region69: #{mnist_autoencoder_forward.1} parent=1 // pred_fallthru
      _
    // Predicated region
    $region70: #{mnist_autoencoder_forward.1} parent=1 // pred_check
      _
    $region71: #{mnist_autoencoder_forward.1} parent=1 // pred_check_branch
      %172 = sbr.rel (0) target = $region73
    $region72: #{mnist_autoencoder_forward.1} parent=1 // pred_region
      %173 = dma.done [#allocation8], 3072
    $region73: #{mnist_autoencoder_forward.1} parent=1 // pred_fallthru
      _
    // Predicated region
    $region74: #{mnist_autoencoder_forward.1} parent=1 // pred_check
      _
    $region75: #{mnist_autoencoder_forward.1} parent=1 // pred_check_branch
      %175 = sbr.rel (0) target = $region77
    $region76: #{mnist_autoencoder_forward.1} parent=1 // pred_region
      %176 = dma.done [#allocation11], 16
    $region77: #{mnist_autoencoder_forward.1} parent=1 // pred_fallthru
      _
    // Predicated region
    $region78: #{mnist_autoencoder_forward.1} parent=1 // pred_check
      _
    $region79: #{mnist_autoencoder_forward.1} parent=1 // pred_check_branch
      %178 = sbr.rel (0) target = $region81
    $region80: #{mnist_autoencoder_forward.1} parent=1 // pred_region
      %179 = dma.done [#allocation11], 3072
    $region81: #{mnist_autoencoder_forward.1} parent=1 // pred_fallthru
      _
    // Predicated region
    $region82: #{mnist_autoencoder_forward.1} parent=1 // pred_check
      _
    $region83: #{mnist_autoencoder_forward.1} parent=1 // pred_check_branch
      %181 = sbr.rel (0) target = $region85
    $region84: #{mnist_autoencoder_forward.1} parent=1 // pred_region
      %182 = dma.done [#allocation14], 48
    $region85: #{mnist_autoencoder_forward.1} parent=1 // pred_fallthru
      _
    // Predicated region
    $region86: #{mnist_autoencoder_forward.1} parent=1 // pred_check
      _
    $region87: #{mnist_autoencoder_forward.1} parent=1 // pred_check_branch
      %184 = sbr.rel (0) target = $region89
    $region88: #{mnist_autoencoder_forward.1} parent=1 // pred_region
      %185 = dma.done [#allocation14], 15360
    $region89: #{mnist_autoencoder_forward.1} parent=1 // pred_fallthru
      _
    // Predicated region
    $region90: #{mnist_autoencoder_forward.1} parent=1 // pred_check
      _
    $region91: #{mnist_autoencoder_forward.1} parent=1 // pred_check_branch
      %187 = sbr.rel (0) target = $region93
    $region92: #{mnist_autoencoder_forward.1} parent=1 // pred_region
      %188 = dma.done [#allocation17], 80
    $region93: #{mnist_autoencoder_forward.1} parent=1 // pred_fallthru
      _
    // Predicated region
    $region94: #{mnist_autoencoder_forward.1} parent=1 // pred_check
      _
    $region95: #{mnist_autoencoder_forward.1} parent=1 // pred_check_branch
      %190 = sbr.rel (0) target = $region97
    $region96: #{mnist_autoencoder_forward.1} parent=1 // pred_region
      %191 = dma.done [#allocation17], 35840
    $region97: #{mnist_autoencoder_forward.1} parent=1 // pred_fallthru
      _
    // Predicated region
    $region98: #{mnist_autoencoder_forward.1} parent=1 // pred_check
      _
    $region99: #{mnist_autoencoder_forward.1} parent=1 // pred_check_branch
      %193 = sbr.rel (0) target = $region101
    $region100: #{mnist_autoencoder_forward.1} parent=1 // pred_region
      %194 = dma.done [#allocation20], 112
    $region101: #{mnist_autoencoder_forward.1} parent=1 // pred_fallthru
      _
    %v196 = vld [vmem:[%s0] sm:$0xff]
    %v197 = vld [vmem:[%s0 + $0x8] sm:$0xff]
    %v198 = vld [vmem:[%s0 + $0x10] sm:$0xff]
    %v199 = vld [vmem:[%s0 + $0x18] sm:$0xf]
    %v200 = vld [vmem:[%s0 + $0x1c] sm:$0xff]
    %v201 = vld [vmem:[%s0 + $0x24] sm:$0xff]
    %v202 = vld [vmem:[%s0 + $0x2c] sm:$0xff]
    %v203 = vld [vmem:[%s0 + $0x34] sm:$0xf]
    %v204 = vld [vmem:[%s0 + $0x38] sm:$0xff]
    %v205 = vld [vmem:[%s0 + $0x40] sm:$0xff]
    %v206 = vld [vmem:[%s0 + $0x48] sm:$0xff]
    %v207 = vld [vmem:[%s0 + $0x50] sm:$0xf]
    %v208 = vld [vmem:[%s0 + $0x54] sm:$0xff]
    %v209 = vld [vmem:[%s0 + $0x5c] sm:$0xff]
    %v210 = vld [vmem:[%s0 + $0x64] sm:$0xff]
    %v211 = vld [vmem:[%s0 + $0x6c] sm:$0xf]
    %v212 = vld [vmem:[%s0 + $0x70] sm:$0xff]
    %v213 = vld [vmem:[%s0 + $0x78] sm:$0xff]
    %v214 = vld [vmem:[%s0 + $0x80] sm:$0xff]
    %v215 = vld [vmem:[%s0 + $0x88] sm:$0xf]
    %v216 = vld [vmem:[%s0 + $0x8c] sm:$0xff]
    %v217 = vld [vmem:[%s0 + $0x94] sm:$0xff]
    %v218 = vld [vmem:[%s0 + $0x9c] sm:$0xff]
    %v219 = vld [vmem:[%s0 + $0xa4] sm:$0xf]
    %v220 = vld [vmem:[%s0 + $0xa8] sm:$0xff]
    %v221 = vld [vmem:[%s0 + $0xb0] sm:$0xff]
    %v222 = vld [vmem:[%s0 + $0xb8] sm:$0xff]
    %v223 = vld [vmem:[%s0 + $0xc0] sm:$0xf]
    %v224 = vld [vmem:[%s0 + $0xc4] sm:$0xff]
    %v225 = vld [vmem:[%s0 + $0xcc] sm:$0xff]
    %v226 = vld [vmem:[%s0 + $0xd4] sm:$0xff]
    %v227 = vld [vmem:[%s0 + $0xdc] sm:$0xf]
    %v228 = vld [vmem:[%s0 + $0xe0] sm:$0xff]
    %v229 = vld [vmem:[%s0 + $0xe8] sm:$0xff]
    %v230 = vld [vmem:[%s0 + $0xf0] sm:$0xff]
    %v231 = vld [vmem:[%s0 + $0xf8] sm:$0xf]
    %v232 = vld [vmem:[%s0 + $0xfc] sm:$0xff]
    %v233 = vld [vmem:[%s0 + $0x104] sm:$0xff]
    %v234 = vld [vmem:[%s0 + $0x10c] sm:$0xff]
    %v235 = vld [vmem:[%s0 + $0x114] sm:$0xf]
    %v236 = vld [vmem:[%s0 + $0x118] sm:$0xff]
    %v237 = vld [vmem:[%s0 + $0x120] sm:$0xff]
    %v238 = vld [vmem:[%s0 + $0x128] sm:$0xff]
    %v239 = vld [vmem:[%s0 + $0x130] sm:$0xf]
    %v240 = vld [vmem:[%s0 + $0x134] sm:$0xff]
    %v241 = vld [vmem:[%s0 + $0x13c] sm:$0xff]
    %v242 = vld [vmem:[%s0 + $0x144] sm:$0xff]
    %v243 = vld [vmem:[%s0 + $0x14c] sm:$0xf]
    %v244 = vld [vmem:[%s0 + $0x150] sm:$0xff]
    %v245 = vld [vmem:[%s0 + $0x158] sm:$0xff]
    %v246 = vld [vmem:[%s0 + $0x160] sm:$0xff]
    %v247 = vld [vmem:[%s0 + $0x168] sm:$0xf]
    %v248 = vld [vmem:[%s0 + $0x16c] sm:$0xff]
    %v249 = vld [vmem:[%s0 + $0x174] sm:$0xff]
    %v250 = vld [vmem:[%s0 + $0x17c] sm:$0xff]
    %v251 = vld [vmem:[%s0 + $0x184] sm:$0xf]
    %v252 = vld [vmem:[%s0 + $0x188] sm:$0xff]
    %v253 = vld [vmem:[%s0 + $0x190] sm:$0xff]
    %v254 = vld [vmem:[%s0 + $0x198] sm:$0xff]
    %v255 = vld [vmem:[%s0 + $0x1a0] sm:$0xf]
    %v256 = vld [vmem:[%s0 + $0x1a4] sm:$0xff]
    %v257 = vld [vmem:[%s0 + $0x1ac] sm:$0xff]
    %v258 = vld [vmem:[%s0 + $0x1b4] sm:$0xff]
    %v259 = vld [vmem:[%s0 + $0x1bc] sm:$0xf]
    %v260 = vld [vmem:[#allocation2] sm:$0xff]
    %v261 = vld [vmem:[#allocation2 + $0x8] sm:$0xff]
    %v262 = vld [vmem:[#allocation2 + $0x10] sm:$0xf]
    %v263 = vld [vmem:[#allocation2 + $0x14] sm:$0xff]
    %v264 = vld [vmem:[#allocation2 + $0x1c] sm:$0xff]
    %v265 = vld [vmem:[#allocation2 + $0x24] sm:$0xf]
    %v266 = vld [vmem:[#allocation2 + $0x28] sm:$0xff]
    %v267 = vld [vmem:[#allocation2 + $0x30] sm:$0xff]
    %v268 = vld [vmem:[#allocation2 + $0x38] sm:$0xf]
    %v269 = vld [vmem:[#allocation2 + $0x3c] sm:$0xff]
    %v270 = vld [vmem:[#allocation2 + $0x44] sm:$0xff]
    %v271 = vld [vmem:[#allocation2 + $0x4c] sm:$0xf]
    %v272 = vld [vmem:[#allocation2 + $0x50] sm:$0xff]
    %v273 = vld [vmem:[#allocation2 + $0x58] sm:$0xff]
    %v274 = vld [vmem:[#allocation2 + $0x60] sm:$0xf]
    %v275 = vld [vmem:[#allocation2 + $0x64] sm:$0xff]
    %v276 = vld [vmem:[#allocation2 + $0x6c] sm:$0xff]
    %v277 = vld [vmem:[#allocation2 + $0x74] sm:$0xf]
    %v278 = vld [vmem:[#allocation2 + $0x78] sm:$0xff]
    %v279 = vld [vmem:[#allocation2 + $0x80] sm:$0xff]
    %v280 = vld [vmem:[#allocation2 + $0x88] sm:$0xf]
    %v281 = vld [vmem:[#allocation2 + $0x8c] sm:$0xff]
    %v282 = vld [vmem:[#allocation2 + $0x94] sm:$0xff]
    %v283 = vld [vmem:[#allocation2 + $0x9c] sm:$0xf]
    %v284 = vld [vmem:[#allocation2 + $0xa0] sm:$0xff]
    %v285 = vld [vmem:[#allocation2 + $0xa8] sm:$0xff]
    %v286 = vld [vmem:[#allocation2 + $0xb0] sm:$0xf]
    %v287 = vld [vmem:[#allocation2 + $0xb4] sm:$0xff]
    %v288 = vld [vmem:[#allocation2 + $0xbc] sm:$0xff]
    %v289 = vld [vmem:[#allocation2 + $0xc4] sm:$0xf]
    %v290 = vld [vmem:[#allocation2 + $0xc8] sm:$0xff]
    %v291 = vld [vmem:[#allocation2 + $0xd0] sm:$0xff]
    %v292 = vld [vmem:[#allocation2 + $0xd8] sm:$0xf]
    %v293 = vld [vmem:[#allocation2 + $0xdc] sm:$0xff]
    %v294 = vld [vmem:[#allocation2 + $0xe4] sm:$0xff]
    %v295 = vld [vmem:[#allocation2 + $0xec] sm:$0xf]
    %v296 = vld [vmem:[#allocation2 + $0xf0] sm:$0xff]
    %v297 = vld [vmem:[#allocation2 + $0xf8] sm:$0xff]
    %v298 = vld [vmem:[#allocation2 + $0x100] sm:$0xf]
    %v299 = vld [vmem:[#allocation2 + $0x104] sm:$0xff]
    %v300 = vld [vmem:[#allocation2 + $0x10c] sm:$0xff]
    %v301 = vld [vmem:[#allocation2 + $0x114] sm:$0xf]
    %v302 = vld [vmem:[#allocation2 + $0x118] sm:$0xff]
    %v303 = vld [vmem:[#allocation2 + $0x120] sm:$0xff]
    %v304 = vld [vmem:[#allocation2 + $0x128] sm:$0xf]
    %v305 = vld [vmem:[#allocation2 + $0x12c] sm:$0xff]
    %v306 = vld [vmem:[#allocation2 + $0x134] sm:$0xff]
    %v307 = vld [vmem:[#allocation2 + $0x13c] sm:$0xf]
    %v308 = vld [vmem:[#allocation2 + $0x140] sm:$0xff]
    %v309 = vld [vmem:[#allocation2 + $0x148] sm:$0xff]
    %v310 = vld [vmem:[#allocation2 + $0x150] sm:$0xf]
    %v311 = vld [vmem:[#allocation2 + $0x154] sm:$0xff]
    %v312 = vld [vmem:[#allocation2 + $0x15c] sm:$0xff]
    %v313 = vld [vmem:[#allocation2 + $0x164] sm:$0xf]
    %v314 = vld [vmem:[#allocation2 + $0x168] sm:$0xff]
    %v315 = vld [vmem:[#allocation2 + $0x170] sm:$0xff]
    %v316 = vld [vmem:[#allocation2 + $0x178] sm:$0xf]
    %v317 = vld [vmem:[#allocation2 + $0x17c] sm:$0xff]
    %v318 = vld [vmem:[#allocation2 + $0x184] sm:$0xff]
    %v319 = vld [vmem:[#allocation2 + $0x18c] sm:$0xf]
    %v320 = vld [vmem:[#allocation2 + $0x190] sm:$0xff]
    %v321 = vld [vmem:[#allocation2 + $0x198] sm:$0xff]
    %v322 = vld [vmem:[#allocation2 + $0x1a0] sm:$0xf]
    %v323 = vld [vmem:[#allocation2 + $0x1a4] sm:$0xff]
    %v324 = vld [vmem:[#allocation2 + $0x1ac] sm:$0xff]
    %v325 = vld [vmem:[#allocation2 + $0x1b4] sm:$0xf]
    %v326 = vld [vmem:[#allocation2 + $0x1b8] sm:$0xff]
    %v327 = vld [vmem:[#allocation2 + $0x1c0] sm:$0xff]
    %v328 = vld [vmem:[#allocation2 + $0x1c8] sm:$0xf]
    %v329 = vld [vmem:[#allocation2 + $0x1cc] sm:$0xff]
    %v330 = vld [vmem:[#allocation2 + $0x1d4] sm:$0xff]
    %v331 = vld [vmem:[#allocation2 + $0x1dc] sm:$0xf]
    %v332 = vld [vmem:[#allocation2 + $0x1e0] sm:$0xff]
    %v333 = vld [vmem:[#allocation2 + $0x1e8] sm:$0xff]
    %v334 = vld [vmem:[#allocation2 + $0x1f0] sm:$0xf]
    %v335 = vld [vmem:[#allocation2 + $0x1f4] sm:$0xff]
    %v336 = vld [vmem:[#allocation2 + $0x1fc] sm:$0xff]
    %v337 = vld [vmem:[#allocation2 + $0x204] sm:$0xf]
    %v338 = vld [vmem:[#allocation2 + $0x208] sm:$0xff]
    %v339 = vld [vmem:[#allocation2 + $0x210] sm:$0xff]
    %v340 = vld [vmem:[#allocation2 + $0x218] sm:$0xf]
    %v341 = vld [vmem:[#allocation2 + $0x21c] sm:$0xff]
    %v342 = vld [vmem:[#allocation2 + $0x224] sm:$0xff]
    %v343 = vld [vmem:[#allocation2 + $0x22c] sm:$0xf]
    %v344 = vld [vmem:[#allocation2 + $0x230] sm:$0xff]
    %v345 = vld [vmem:[#allocation2 + $0x238] sm:$0xff]
    %v346 = vld [vmem:[#allocation2 + $0x240] sm:$0xf]
    %v347 = vld [vmem:[#allocation2 + $0x244] sm:$0xff]
    %v348 = vld [vmem:[#allocation2 + $0x24c] sm:$0xff]
    %v349 = vld [vmem:[#allocation2 + $0x254] sm:$0xf]
    %v350 = vld [vmem:[#allocation2 + $0x258] sm:$0xff]
    %v351 = vld [vmem:[#allocation2 + $0x260] sm:$0xff]
    %v352 = vld [vmem:[#allocation2 + $0x268] sm:$0xf]
    %v353 = vld [vmem:[#allocation2 + $0x26c] sm:$0xff]
    %v354 = vld [vmem:[#allocation2 + $0x274] sm:$0xff]
    %v355 = vld [vmem:[#allocation2 + $0x27c] sm:$0xf]
    %v356 = vld [vmem:[#allocation2 + $0x280] sm:$0xff]
    %v357 = vld [vmem:[#allocation2 + $0x288] sm:$0xff]
    %v358 = vld [vmem:[#allocation2 + $0x290] sm:$0xf]
    %v359 = vld [vmem:[#allocation2 + $0x294] sm:$0xff]
    %v360 = vld [vmem:[#allocation2 + $0x29c] sm:$0xff]
    %v361 = vld [vmem:[#allocation2 + $0x2a4] sm:$0xf]
    %v362 = vld [vmem:[#allocation2 + $0x2a8] sm:$0xff]
    %v363 = vld [vmem:[#allocation2 + $0x2b0] sm:$0xff]
    %v364 = vld [vmem:[#allocation2 + $0x2b8] sm:$0xf]
    %v365 = vld [vmem:[#allocation2 + $0x2bc] sm:$0xff]
    %v366 = vld [vmem:[#allocation2 + $0x2c4] sm:$0xff]
    %v367 = vld [vmem:[#allocation2 + $0x2cc] sm:$0xf]
    %v368 = vld [vmem:[#allocation2 + $0x2d0] sm:$0xff]
    %v369 = vld [vmem:[#allocation2 + $0x2d8] sm:$0xff]
    %v370 = vld [vmem:[#allocation2 + $0x2e0] sm:$0xf]
    %v371 = vld [vmem:[#allocation2 + $0x2e4] sm:$0xff]
    %v372 = vld [vmem:[#allocation2 + $0x2ec] sm:$0xff]
    %v373 = vld [vmem:[#allocation2 + $0x2f4] sm:$0xf]
    %v374 = vld [vmem:[#allocation2 + $0x2f8] sm:$0xff]
    %v375 = vld [vmem:[#allocation2 + $0x300] sm:$0xff]
    %v376 = vld [vmem:[#allocation2 + $0x308] sm:$0xf]
    %v377 = vld [vmem:[#allocation2 + $0x30c] sm:$0xff]
    %v378 = vld [vmem:[#allocation2 + $0x314] sm:$0xff]
    %v379 = vld [vmem:[#allocation2 + $0x31c] sm:$0xf]
    %v380 = vld [vmem:[#allocation2 + $0x320] sm:$0xff]
    %v381 = vld [vmem:[#allocation2 + $0x328] sm:$0xff]
    %v382 = vld [vmem:[#allocation2 + $0x330] sm:$0xf]
    %v383 = vld [vmem:[#allocation2 + $0x334] sm:$0xff]
    %v384 = vld [vmem:[#allocation2 + $0x33c] sm:$0xff]
    %v385 = vld [vmem:[#allocation2 + $0x344] sm:$0xf]
    %v386 = vld [vmem:[#allocation2 + $0x348] sm:$0xff]
    %v387 = vld [vmem:[#allocation2 + $0x350] sm:$0xff]
    %v388 = vld [vmem:[#allocation2 + $0x358] sm:$0xf]
    %v389 = vld [vmem:[#allocation2 + $0x35c] sm:$0xff]
    %v390 = vld [vmem:[#allocation2 + $0x364] sm:$0xff]
    %v391 = vld [vmem:[#allocation2 + $0x36c] sm:$0xf]
    %v392 = vld [vmem:[#allocation2 + $0x370] sm:$0xff]
    %v393 = vld [vmem:[#allocation2 + $0x378] sm:$0xff]
    %v394 = vld [vmem:[#allocation2 + $0x380] sm:$0xf]
    %v395 = vld [vmem:[#allocation2 + $0x384] sm:$0xff]
    %v396 = vld [vmem:[#allocation2 + $0x38c] sm:$0xff]
    %v397 = vld [vmem:[#allocation2 + $0x394] sm:$0xf]
    %v398 = vld [vmem:[#allocation2 + $0x398] sm:$0xff]
    %v399 = vld [vmem:[#allocation2 + $0x3a0] sm:$0xff]
    %v400 = vld [vmem:[#allocation2 + $0x3a8] sm:$0xf]
    %v401 = vld [vmem:[#allocation2 + $0x3ac] sm:$0xff]
    %v402 = vld [vmem:[#allocation2 + $0x3b4] sm:$0xff]
    %v403 = vld [vmem:[#allocation2 + $0x3bc] sm:$0xf]
    %v404 = vld [vmem:[#allocation2 + $0x3c0] sm:$0xff]
    %v405 = vld [vmem:[#allocation2 + $0x3c8] sm:$0xff]
    %v406 = vld [vmem:[#allocation2 + $0x3d0] sm:$0xf]
    %v407 = vld [vmem:[#allocation2 + $0x3d4] sm:$0xff]
    %v408 = vld [vmem:[#allocation2 + $0x3dc] sm:$0xff]
    %v409 = vld [vmem:[#allocation2 + $0x3e4] sm:$0xf]
    %v410 = vld [vmem:[#allocation2 + $0x3e8] sm:$0xff]
    %v411 = vld [vmem:[#allocation2 + $0x3f0] sm:$0xff]
    %v412 = vld [vmem:[#allocation2 + $0x3f8] sm:$0xf]
    %v413 = vld [vmem:[#allocation2 + $0x3fc] sm:$0xff]
    %v414 = vld [vmem:[#allocation2 + $0x404] sm:$0xff]
    %v415 = vld [vmem:[#allocation2 + $0x40c] sm:$0xf]
    %v416 = vld [vmem:[#allocation2 + $0x410] sm:$0xff]
    %v417 = vld [vmem:[#allocation2 + $0x418] sm:$0xff]
    %v418 = vld [vmem:[#allocation2 + $0x420] sm:$0xf]
    %v419 = vld [vmem:[#allocation2 + $0x424] sm:$0xff]
    %v420 = vld [vmem:[#allocation2 + $0x42c] sm:$0xff]
    %v421 = vld [vmem:[#allocation2 + $0x434] sm:$0xf]
    %v422 = vld [vmem:[#allocation2 + $0x438] sm:$0xff]
    %v423 = vld [vmem:[#allocation2 + $0x440] sm:$0xff]
    %v424 = vld [vmem:[#allocation2 + $0x448] sm:$0xf]
    %v425 = vld [vmem:[#allocation2 + $0x44c] sm:$0xff]
    %v426 = vld [vmem:[#allocation2 + $0x454] sm:$0xff]
    %v427 = vld [vmem:[#allocation2 + $0x45c] sm:$0xf]
    %v428 = vld [vmem:[#allocation2 + $0x460] sm:$0xff]
    %v429 = vld [vmem:[#allocation2 + $0x468] sm:$0xff]
    %v430 = vld [vmem:[#allocation2 + $0x470] sm:$0xf]
    %v431 = vld [vmem:[#allocation2 + $0x474] sm:$0xff]
    %v432 = vld [vmem:[#allocation2 + $0x47c] sm:$0xff]
    %v433 = vld [vmem:[#allocation2 + $0x484] sm:$0xf]
    %v434 = vld [vmem:[#allocation2 + $0x488] sm:$0xff]
    %v435 = vld [vmem:[#allocation2 + $0x490] sm:$0xff]
    %v436 = vld [vmem:[#allocation2 + $0x498] sm:$0xf]
    %v437 = vld [vmem:[#allocation2 + $0x49c] sm:$0xff]
    %v438 = vld [vmem:[#allocation2 + $0x4a4] sm:$0xff]
    %v439 = vld [vmem:[#allocation2 + $0x4ac] sm:$0xf]
    %v440 = vld [vmem:[#allocation2 + $0x4b0] sm:$0xff]
    %v441 = vld [vmem:[#allocation2 + $0x4b8] sm:$0xff]
    %v442 = vld [vmem:[#allocation2 + $0x4c0] sm:$0xf]
    %v443 = vld [vmem:[#allocation2 + $0x4c4] sm:$0xff]
    %v444 = vld [vmem:[#allocation2 + $0x4cc] sm:$0xff]
    %v445 = vld [vmem:[#allocation2 + $0x4d4] sm:$0xf]
    %v446 = vld [vmem:[#allocation2 + $0x4d8] sm:$0xff]
    %v447 = vld [vmem:[#allocation2 + $0x4e0] sm:$0xff]
    %v448 = vld [vmem:[#allocation2 + $0x4e8] sm:$0xf]
    %v449 = vld [vmem:[#allocation2 + $0x4ec] sm:$0xff]
    %v450 = vld [vmem:[#allocation2 + $0x4f4] sm:$0xff]
    %v451 = vld [vmem:[#allocation2 + $0x4fc] sm:$0xf]
    %v452 = vld [vmem:[#allocation2 + $0x500] sm:$0xff]
    %v453 = vld [vmem:[#allocation2 + $0x508] sm:$0xff]
    %v454 = vld [vmem:[#allocation2 + $0x510] sm:$0xf]
    %v455 = vld [vmem:[#allocation2 + $0x514] sm:$0xff]
    %v456 = vld [vmem:[#allocation2 + $0x51c] sm:$0xff]
    %v457 = vld [vmem:[#allocation2 + $0x524] sm:$0xf]
    %v458 = vld [vmem:[#allocation2 + $0x528] sm:$0xff]
    %v459 = vld [vmem:[#allocation2 + $0x530] sm:$0xff]
    %v460 = vld [vmem:[#allocation2 + $0x538] sm:$0xf]
    %v461 = vld [vmem:[#allocation2 + $0x53c] sm:$0xff]
    %v462 = vld [vmem:[#allocation2 + $0x544] sm:$0xff]
    %v463 = vld [vmem:[#allocation2 + $0x54c] sm:$0xf]
    %v464 = vld [vmem:[#allocation2 + $0x550] sm:$0xff]
    %v465 = vld [vmem:[#allocation2 + $0x558] sm:$0xff]
    %v466 = vld [vmem:[#allocation2 + $0x560] sm:$0xf]
    %v467 = vld [vmem:[#allocation2 + $0x564] sm:$0xff]
    %v468 = vld [vmem:[#allocation2 + $0x56c] sm:$0xff]
    %v469 = vld [vmem:[#allocation2 + $0x574] sm:$0xf]
    %v470 = vld [vmem:[#allocation2 + $0x578] sm:$0xff]
    %v471 = vld [vmem:[#allocation2 + $0x580] sm:$0xff]
    %v472 = vld [vmem:[#allocation2 + $0x588] sm:$0xf]
    %v473 = vld [vmem:[#allocation2 + $0x58c] sm:$0xff]
    %v474 = vld [vmem:[#allocation2 + $0x594] sm:$0xff]
    %v475 = vld [vmem:[#allocation2 + $0x59c] sm:$0xf]
    %v476 = vld [vmem:[#allocation2 + $0x5a0] sm:$0xff]
    %v477 = vld [vmem:[#allocation2 + $0x5a8] sm:$0xff]
    %v478 = vld [vmem:[#allocation2 + $0x5b0] sm:$0xf]
    %v479 = vld [vmem:[#allocation2 + $0x5b4] sm:$0xff]
    %v480 = vld [vmem:[#allocation2 + $0x5bc] sm:$0xff]
    %v481 = vld [vmem:[#allocation2 + $0x5c4] sm:$0xf]
    %v482 = vld [vmem:[#allocation2 + $0x5c8] sm:$0xff]
    %v483 = vld [vmem:[#allocation2 + $0x5d0] sm:$0xff]
    %v484 = vld [vmem:[#allocation2 + $0x5d8] sm:$0xf]
    %v485 = vld [vmem:[#allocation2 + $0x5dc] sm:$0xff]
    %v486 = vld [vmem:[#allocation2 + $0x5e4] sm:$0xff]
    %v487 = vld [vmem:[#allocation2 + $0x5ec] sm:$0xf]
    %v488 = vld [vmem:[#allocation2 + $0x5f0] sm:$0xff]
    %v489 = vld [vmem:[#allocation2 + $0x5f8] sm:$0xff]
    %v490 = vld [vmem:[#allocation2 + $0x600] sm:$0xf]
    %v491 = vld [vmem:[#allocation2 + $0x604] sm:$0xff]
    %v492 = vld [vmem:[#allocation2 + $0x60c] sm:$0xff]
    %v493 = vld [vmem:[#allocation2 + $0x614] sm:$0xf]
    %v494 = vld [vmem:[#allocation2 + $0x618] sm:$0xff]
    %v495 = vld [vmem:[#allocation2 + $0x620] sm:$0xff]
    %v496 = vld [vmem:[#allocation2 + $0x628] sm:$0xf]
    %v497 = vld [vmem:[#allocation2 + $0x62c] sm:$0xff]
    %v498 = vld [vmem:[#allocation2 + $0x634] sm:$0xff]
    %v499 = vld [vmem:[#allocation2 + $0x63c] sm:$0xf]
    %v500 = vld [vmem:[#allocation2 + $0x640] sm:$0xff]
    %v501 = vld [vmem:[#allocation2 + $0x648] sm:$0xff]
    %v502 = vld [vmem:[#allocation2 + $0x650] sm:$0xf]
    %v503 = vld [vmem:[#allocation2 + $0x654] sm:$0xff]
    %v504 = vld [vmem:[#allocation2 + $0x65c] sm:$0xff]
    %v505 = vld [vmem:[#allocation2 + $0x664] sm:$0xf]
    %v506 = vld [vmem:[#allocation2 + $0x668] sm:$0xff]
    %v507 = vld [vmem:[#allocation2 + $0x670] sm:$0xff]
    %v508 = vld [vmem:[#allocation2 + $0x678] sm:$0xf]
    %v509 = vld [vmem:[#allocation2 + $0x67c] sm:$0xff]
    %v510 = vld [vmem:[#allocation2 + $0x684] sm:$0xff]
    %v511 = vld [vmem:[#allocation2 + $0x68c] sm:$0xf]
    %v512 = vld [vmem:[#allocation2 + $0x690] sm:$0xff]
    %v513 = vld [vmem:[#allocation2 + $0x698] sm:$0xff]
    %v514 = vld [vmem:[#allocation2 + $0x6a0] sm:$0xf]
    %v515 = vld [vmem:[#allocation2 + $0x6a4] sm:$0xff]
    %v516 = vld [vmem:[#allocation2 + $0x6ac] sm:$0xff]
    %v517 = vld [vmem:[#allocation2 + $0x6b4] sm:$0xf]
    %v518 = vld [vmem:[#allocation2 + $0x6b8] sm:$0xff]
    %v519 = vld [vmem:[#allocation2 + $0x6c0] sm:$0xff]
    %v520 = vld [vmem:[#allocation2 + $0x6c8] sm:$0xf]
    %v521 = vld [vmem:[#allocation2 + $0x6cc] sm:$0xff]
    %v522 = vld [vmem:[#allocation2 + $0x6d4] sm:$0xff]
    %v523 = vld [vmem:[#allocation2 + $0x6dc] sm:$0xf]
    %v524 = vld [vmem:[#allocation2 + $0x6e0] sm:$0xff]
    %v525 = vld [vmem:[#allocation2 + $0x6e8] sm:$0xff]
    %v526 = vld [vmem:[#allocation2 + $0x6f0] sm:$0xf]
    %v527 = vld [vmem:[#allocation2 + $0x6f4] sm:$0xff]
    %v528 = vld [vmem:[#allocation2 + $0x6fc] sm:$0xff]
    %v529 = vld [vmem:[#allocation2 + $0x704] sm:$0xf]
    %v530 = vld [vmem:[#allocation2 + $0x708] sm:$0xff]
    %v531 = vld [vmem:[#allocation2 + $0x710] sm:$0xff]
    %v532 = vld [vmem:[#allocation2 + $0x718] sm:$0xf]
    %v533 = vld [vmem:[#allocation2 + $0x71c] sm:$0xff]
    %v534 = vld [vmem:[#allocation2 + $0x724] sm:$0xff]
    %v535 = vld [vmem:[#allocation2 + $0x72c] sm:$0xf]
    %v536 = vld [vmem:[#allocation2 + $0x730] sm:$0xff]
    %v537 = vld [vmem:[#allocation2 + $0x738] sm:$0xff]
    %v538 = vld [vmem:[#allocation2 + $0x740] sm:$0xf]
    %v539 = vld [vmem:[#allocation2 + $0x744] sm:$0xff]
    %v540 = vld [vmem:[#allocation2 + $0x74c] sm:$0xff]
    %v541 = vld [vmem:[#allocation2 + $0x754] sm:$0xf]
    %v542 = vld [vmem:[#allocation2 + $0x758] sm:$0xff]
    %v543 = vld [vmem:[#allocation2 + $0x760] sm:$0xff]
    %v544 = vld [vmem:[#allocation2 + $0x768] sm:$0xf]
    %v545 = vld [vmem:[#allocation2 + $0x76c] sm:$0xff]
    %v546 = vld [vmem:[#allocation2 + $0x774] sm:$0xff]
    %v547 = vld [vmem:[#allocation2 + $0x77c] sm:$0xf]
    %v548 = vld [vmem:[#allocation2 + $0x780] sm:$0xff]
    %v549 = vld [vmem:[#allocation2 + $0x788] sm:$0xff]
    %v550 = vld [vmem:[#allocation2 + $0x790] sm:$0xf]
    %v551 = vld [vmem:[#allocation2 + $0x794] sm:$0xff]
    %v552 = vld [vmem:[#allocation2 + $0x79c] sm:$0xff]
    %v553 = vld [vmem:[#allocation2 + $0x7a4] sm:$0xf]
    %v554 = vld [vmem:[#allocation4] sm:$0x1f]
    %v556 = vlaneseq
    %v557 = vshrl.u32 %v556, 7
    %v558 = vsub.s32 0, %v557
    %v559 = vrot.slane %v554, %v558
    %v560 = vlaneseq
    %v561 = vshrl.u32 %v560, 7
    %v562 = vsub.s32 1, %v561
    %v563 = vrot.slane %v554, %v562
    %v564 = vlaneseq
    %v565 = vshrl.u32 %v564, 7
    %v566 = vsub.s32 2, %v565
    %v567 = vrot.slane %v554, %v566
    %v568 = vlaneseq
    %v569 = vshrl.u32 %v568, 7
    %v570 = vsub.s32 3, %v569
    %v571 = vrot.slane %v554, %v570
    %v572 = vlaneseq
    %v573 = vshrl.u32 %v572, 7
    %v574 = vsub.s32 4, %v573
    %v575 = vrot.slane %v554, %v574
    %v645 = vunpack.c.l.b16 %v196
    %v646 = vunpack.c.h.b16 %v196
    %v647 = vunpack.c.l.b16 %v197
    %v648 = vunpack.c.h.b16 %v197
    %v649 = vunpack.c.l.b16 %v198
    %v650 = vunpack.c.h.b16 %v198
    %v651 = vunpack.c.l.b16 %v199
    %v652 = vunpack.c.l.b16 %v200
    %v653 = vunpack.c.h.b16 %v200
    %v654 = vunpack.c.l.b16 %v201
    %v655 = vunpack.c.h.b16 %v201
    %v656 = vunpack.c.l.b16 %v202
    %v657 = vunpack.c.h.b16 %v202
    %v658 = vunpack.c.l.b16 %v203
    %v659 = vunpack.c.l.b16 %v204
    %v660 = vunpack.c.h.b16 %v204
    %v661 = vunpack.c.l.b16 %v205
    %v662 = vunpack.c.h.b16 %v205
    %v663 = vunpack.c.l.b16 %v206
    %v664 = vunpack.c.h.b16 %v206
    %v665 = vunpack.c.l.b16 %v207
    %v666 = vunpack.c.l.b16 %v208
    %v667 = vunpack.c.h.b16 %v208
    %v668 = vunpack.c.l.b16 %v209
    %v669 = vunpack.c.h.b16 %v209
    %v670 = vunpack.c.l.b16 %v210
    %v671 = vunpack.c.h.b16 %v210
    %v672 = vunpack.c.l.b16 %v211
    %v673 = vunpack.c.l.b16 %v212
    %v674 = vunpack.c.h.b16 %v212
    %v675 = vunpack.c.l.b16 %v213
    %v676 = vunpack.c.h.b16 %v213
    %v677 = vunpack.c.l.b16 %v214
    %v678 = vunpack.c.h.b16 %v214
    %v679 = vunpack.c.l.b16 %v215
    %v680 = vunpack.c.l.b16 %v216
    %v681 = vunpack.c.h.b16 %v216
    %v682 = vunpack.c.l.b16 %v217
    %v683 = vunpack.c.h.b16 %v217
    %v684 = vunpack.c.l.b16 %v218
    %v685 = vunpack.c.h.b16 %v218
    %v686 = vunpack.c.l.b16 %v219
    %v687 = vunpack.c.l.b16 %v220
    %v688 = vunpack.c.h.b16 %v220
    %v689 = vunpack.c.l.b16 %v221
    %v690 = vunpack.c.h.b16 %v221
    %v691 = vunpack.c.l.b16 %v222
    %v692 = vunpack.c.h.b16 %v222
    %v693 = vunpack.c.l.b16 %v223
    %v694 = vunpack.c.l.b16 %v224
    %v695 = vunpack.c.h.b16 %v224
    %v696 = vunpack.c.l.b16 %v225
    %v697 = vunpack.c.h.b16 %v225
    %v698 = vunpack.c.l.b16 %v226
    %v699 = vunpack.c.h.b16 %v226
    %v700 = vunpack.c.l.b16 %v227
    %v701 = vunpack.c.l.b16 %v228
    %v702 = vunpack.c.h.b16 %v228
    %v703 = vunpack.c.l.b16 %v229
    %v704 = vunpack.c.h.b16 %v229
    %v705 = vunpack.c.l.b16 %v230
    %v706 = vunpack.c.h.b16 %v230
    %v707 = vunpack.c.l.b16 %v231
    %v708 = vunpack.c.l.b16 %v232
    %v709 = vunpack.c.h.b16 %v232
    %v710 = vunpack.c.l.b16 %v233
    %v711 = vunpack.c.h.b16 %v233
    %v712 = vunpack.c.l.b16 %v234
    %v713 = vunpack.c.h.b16 %v234
    %v714 = vunpack.c.l.b16 %v235
    %v715 = vunpack.c.l.b16 %v236
    %v716 = vunpack.c.h.b16 %v236
    %v717 = vunpack.c.l.b16 %v237
    %v718 = vunpack.c.h.b16 %v237
    %v719 = vunpack.c.l.b16 %v238
    %v720 = vunpack.c.h.b16 %v238
    %v721 = vunpack.c.l.b16 %v239
    %v722 = vunpack.c.l.b16 %v240
    %v723 = vunpack.c.h.b16 %v240
    %v724 = vunpack.c.l.b16 %v241
    %v725 = vunpack.c.h.b16 %v241
    %v726 = vunpack.c.l.b16 %v242
    %v727 = vunpack.c.h.b16 %v242
    %v728 = vunpack.c.l.b16 %v243
    %v729 = vunpack.c.l.b16 %v244
    %v730 = vunpack.c.h.b16 %v244
    %v731 = vunpack.c.l.b16 %v245
    %v732 = vunpack.c.h.b16 %v245
    %v733 = vunpack.c.l.b16 %v246
    %v734 = vunpack.c.h.b16 %v246
    %v735 = vunpack.c.l.b16 %v247
    %v736 = vunpack.c.l.b16 %v248
    %v737 = vunpack.c.h.b16 %v248
    %v738 = vunpack.c.l.b16 %v249
    %v739 = vunpack.c.h.b16 %v249
    %v740 = vunpack.c.l.b16 %v250
    %v741 = vunpack.c.h.b16 %v250
    %v742 = vunpack.c.l.b16 %v251
    %v743 = vunpack.c.l.b16 %v252
    %v744 = vunpack.c.h.b16 %v252
    %v745 = vunpack.c.l.b16 %v253
    %v746 = vunpack.c.h.b16 %v253
    %v747 = vunpack.c.l.b16 %v254
    %v748 = vunpack.c.h.b16 %v254
    %v749 = vunpack.c.l.b16 %v255
    %v750 = vunpack.c.l.b16 %v256
    %v751 = vunpack.c.h.b16 %v256
    %v752 = vunpack.c.l.b16 %v257
    %v753 = vunpack.c.h.b16 %v257
    %v754 = vunpack.c.l.b16 %v258
    %v755 = vunpack.c.h.b16 %v258
    %v756 = vunpack.c.l.b16 %v259
    %v757 = vpack.c.b16 %v652, %v645
    %v758 = vpack.c.b16 %v653, %v646
    %v759 = vpack.c.b16 %v654, %v647
    %v760 = vpack.c.b16 %v655, %v648
    %v761 = vpack.c.b16 %v656, %v649
    %v762 = vpack.c.b16 %v657, %v650
    %v763 = vpack.c.b16 %v658, %v651
    %v764 = vpack.c.b16 %v666, %v659
    %v765 = vpack.c.b16 %v667, %v660
    %v766 = vpack.c.b16 %v668, %v661
    %v767 = vpack.c.b16 %v669, %v662
    %v768 = vpack.c.b16 %v670, %v663
    %v769 = vpack.c.b16 %v671, %v664
    %v770 = vpack.c.b16 %v672, %v665
    %v771 = vpack.c.b16 %v680, %v673
    %v772 = vpack.c.b16 %v681, %v674
    %v773 = vpack.c.b16 %v682, %v675
    %v774 = vpack.c.b16 %v683, %v676
    %v775 = vpack.c.b16 %v684, %v677
    %v776 = vpack.c.b16 %v685, %v678
    %v777 = vpack.c.b16 %v686, %v679
    %v778 = vpack.c.b16 %v694, %v687
    %v779 = vpack.c.b16 %v695, %v688
    %v780 = vpack.c.b16 %v696, %v689
    %v781 = vpack.c.b16 %v697, %v690
    %v782 = vpack.c.b16 %v698, %v691
    %v783 = vpack.c.b16 %v699, %v692
    %v784 = vpack.c.b16 %v700, %v693
    %v785 = vpack.c.b16 %v708, %v701
    %v786 = vpack.c.b16 %v709, %v702
    %v787 = vpack.c.b16 %v710, %v703
    %v788 = vpack.c.b16 %v711, %v704
    %v789 = vpack.c.b16 %v712, %v705
    %v790 = vpack.c.b16 %v713, %v706
    %v791 = vpack.c.b16 %v714, %v707
    %v792 = vpack.c.b16 %v722, %v715
    %v793 = vpack.c.b16 %v723, %v716
    %v794 = vpack.c.b16 %v724, %v717
    %v795 = vpack.c.b16 %v725, %v718
    %v796 = vpack.c.b16 %v726, %v719
    %v797 = vpack.c.b16 %v727, %v720
    %v798 = vpack.c.b16 %v728, %v721
    %v799 = vpack.c.b16 %v736, %v729
    %v800 = vpack.c.b16 %v737, %v730
    %v801 = vpack.c.b16 %v738, %v731
    %v802 = vpack.c.b16 %v739, %v732
    %v803 = vpack.c.b16 %v740, %v733
    %v804 = vpack.c.b16 %v741, %v734
    %v805 = vpack.c.b16 %v742, %v735
    %v806 = vpack.c.b16 %v750, %v743
    %v807 = vpack.c.b16 %v751, %v744
    %v808 = vpack.c.b16 %v752, %v745
    %v809 = vpack.c.b16 %v753, %v746
    %v810 = vpack.c.b16 %v754, %v747
    %v811 = vpack.c.b16 %v755, %v748
    %v812 = vpack.c.b16 %v756, %v749
    %v1155 = vunpack.c.l.b16 %v260
    %v1156 = vunpack.c.h.b16 %v260
    %v1157 = vunpack.c.l.b16 %v261
    %v1158 = vunpack.c.h.b16 %v261
    %v1159 = vunpack.c.l.b16 %v262
    %v1160 = vunpack.c.l.b16 %v263
    %v1161 = vunpack.c.h.b16 %v263
    %v1162 = vunpack.c.l.b16 %v264
    %v1163 = vunpack.c.h.b16 %v264
    %v1164 = vunpack.c.l.b16 %v265
    %v1165 = vunpack.c.l.b16 %v266
    %v1166 = vunpack.c.h.b16 %v266
    %v1167 = vunpack.c.l.b16 %v267
    %v1168 = vunpack.c.h.b16 %v267
    %v1169 = vunpack.c.l.b16 %v268
    %v1170 = vunpack.c.l.b16 %v269
    %v1171 = vunpack.c.h.b16 %v269
    %v1172 = vunpack.c.l.b16 %v270
    %v1173 = vunpack.c.h.b16 %v270
    %v1174 = vunpack.c.l.b16 %v271
    %v1175 = vunpack.c.l.b16 %v272
    %v1176 = vunpack.c.h.b16 %v272
    %v1177 = vunpack.c.l.b16 %v273
    %v1178 = vunpack.c.h.b16 %v273
    %v1179 = vunpack.c.l.b16 %v274
    %v1180 = vunpack.c.l.b16 %v275
    %v1181 = vunpack.c.h.b16 %v275
    %v1182 = vunpack.c.l.b16 %v276
    %v1183 = vunpack.c.h.b16 %v276
    %v1184 = vunpack.c.l.b16 %v277
    %v1185 = vunpack.c.l.b16 %v278
    %v1186 = vunpack.c.h.b16 %v278
    %v1187 = vunpack.c.l.b16 %v279
    %v1188 = vunpack.c.h.b16 %v279
    %v1189 = vunpack.c.l.b16 %v280
    %v1190 = vunpack.c.l.b16 %v281
    %v1191 = vunpack.c.h.b16 %v281
    %v1192 = vunpack.c.l.b16 %v282
    %v1193 = vunpack.c.h.b16 %v282
    %v1194 = vunpack.c.l.b16 %v283
    %v1195 = vunpack.c.l.b16 %v284
    %v1196 = vunpack.c.h.b16 %v284
    %v1197 = vunpack.c.l.b16 %v285
    %v1198 = vunpack.c.h.b16 %v285
    %v1199 = vunpack.c.l.b16 %v286
    %v1200 = vunpack.c.l.b16 %v287
    %v1201 = vunpack.c.h.b16 %v287
    %v1202 = vunpack.c.l.b16 %v288
    %v1203 = vunpack.c.h.b16 %v288
    %v1204 = vunpack.c.l.b16 %v289
    %v1205 = vunpack.c.l.b16 %v290
    %v1206 = vunpack.c.h.b16 %v290
    %v1207 = vunpack.c.l.b16 %v291
    %v1208 = vunpack.c.h.b16 %v291
    %v1209 = vunpack.c.l.b16 %v292
    %v1210 = vunpack.c.l.b16 %v293
    %v1211 = vunpack.c.h.b16 %v293
    %v1212 = vunpack.c.l.b16 %v294
    %v1213 = vunpack.c.h.b16 %v294
    %v1214 = vunpack.c.l.b16 %v295
    %v1215 = vunpack.c.l.b16 %v296
    %v1216 = vunpack.c.h.b16 %v296
    %v1217 = vunpack.c.l.b16 %v297
    %v1218 = vunpack.c.h.b16 %v297
    %v1219 = vunpack.c.l.b16 %v298
    %v1220 = vunpack.c.l.b16 %v299
    %v1221 = vunpack.c.h.b16 %v299
    %v1222 = vunpack.c.l.b16 %v300
    %v1223 = vunpack.c.h.b16 %v300
    %v1224 = vunpack.c.l.b16 %v301
    %v1225 = vunpack.c.l.b16 %v302
    %v1226 = vunpack.c.h.b16 %v302
    %v1227 = vunpack.c.l.b16 %v303
    %v1228 = vunpack.c.h.b16 %v303
    %v1229 = vunpack.c.l.b16 %v304
    %v1230 = vunpack.c.l.b16 %v305
    %v1231 = vunpack.c.h.b16 %v305
    %v1232 = vunpack.c.l.b16 %v306
    %v1233 = vunpack.c.h.b16 %v306
    %v1234 = vunpack.c.l.b16 %v307
    %v1235 = vunpack.c.l.b16 %v308
    %v1236 = vunpack.c.h.b16 %v308
    %v1237 = vunpack.c.l.b16 %v309
    %v1238 = vunpack.c.h.b16 %v309
    %v1239 = vunpack.c.l.b16 %v310
    %v1240 = vunpack.c.l.b16 %v311
    %v1241 = vunpack.c.h.b16 %v311
    %v1242 = vunpack.c.l.b16 %v312
    %v1243 = vunpack.c.h.b16 %v312
    %v1244 = vunpack.c.l.b16 %v313
    %v1245 = vunpack.c.l.b16 %v314
    %v1246 = vunpack.c.h.b16 %v314
    %v1247 = vunpack.c.l.b16 %v315
    %v1248 = vunpack.c.h.b16 %v315
    %v1249 = vunpack.c.l.b16 %v316
    %v1250 = vunpack.c.l.b16 %v317
    %v1251 = vunpack.c.h.b16 %v317
    %v1252 = vunpack.c.l.b16 %v318
    %v1253 = vunpack.c.h.b16 %v318
    %v1254 = vunpack.c.l.b16 %v319
    %v1255 = vunpack.c.l.b16 %v320
    %v1256 = vunpack.c.h.b16 %v320
    %v1257 = vunpack.c.l.b16 %v321
    %v1258 = vunpack.c.h.b16 %v321
    %v1259 = vunpack.c.l.b16 %v322
    %v1260 = vunpack.c.l.b16 %v323
    %v1261 = vunpack.c.h.b16 %v323
    %v1262 = vunpack.c.l.b16 %v324
    %v1263 = vunpack.c.h.b16 %v324
    %v1264 = vunpack.c.l.b16 %v325
    %v1265 = vunpack.c.l.b16 %v326
    %v1266 = vunpack.c.h.b16 %v326
    %v1267 = vunpack.c.l.b16 %v327
    %v1268 = vunpack.c.h.b16 %v327
    %v1269 = vunpack.c.l.b16 %v328
    %v1270 = vunpack.c.l.b16 %v329
    %v1271 = vunpack.c.h.b16 %v329
    %v1272 = vunpack.c.l.b16 %v330
    %v1273 = vunpack.c.h.b16 %v330
    %v1274 = vunpack.c.l.b16 %v331
    %v1275 = vunpack.c.l.b16 %v332
    %v1276 = vunpack.c.h.b16 %v332
    %v1277 = vunpack.c.l.b16 %v333
    %v1278 = vunpack.c.h.b16 %v333
    %v1279 = vunpack.c.l.b16 %v334
    %v1280 = vunpack.c.l.b16 %v335
    %v1281 = vunpack.c.h.b16 %v335
    %v1282 = vunpack.c.l.b16 %v336
    %v1283 = vunpack.c.h.b16 %v336
    %v1284 = vunpack.c.l.b16 %v337
    %v1285 = vunpack.c.l.b16 %v338
    %v1286 = vunpack.c.h.b16 %v338
    %v1287 = vunpack.c.l.b16 %v339
    %v1288 = vunpack.c.h.b16 %v339
    %v1289 = vunpack.c.l.b16 %v340
    %v1290 = vunpack.c.l.b16 %v341
    %v1291 = vunpack.c.h.b16 %v341
    %v1292 = vunpack.c.l.b16 %v342
    %v1293 = vunpack.c.h.b16 %v342
    %v1294 = vunpack.c.l.b16 %v343
    %v1295 = vunpack.c.l.b16 %v344
    %v1296 = vunpack.c.h.b16 %v344
    %v1297 = vunpack.c.l.b16 %v345
    %v1298 = vunpack.c.h.b16 %v345
    %v1299 = vunpack.c.l.b16 %v346
    %v1300 = vunpack.c.l.b16 %v347
    %v1301 = vunpack.c.h.b16 %v347
    %v1302 = vunpack.c.l.b16 %v348
    %v1303 = vunpack.c.h.b16 %v348
    %v1304 = vunpack.c.l.b16 %v349
    %v1305 = vunpack.c.l.b16 %v350
    %v1306 = vunpack.c.h.b16 %v350
    %v1307 = vunpack.c.l.b16 %v351
    %v1308 = vunpack.c.h.b16 %v351
    %v1309 = vunpack.c.l.b16 %v352
    %v1310 = vunpack.c.l.b16 %v353
    %v1311 = vunpack.c.h.b16 %v353
    %v1312 = vunpack.c.l.b16 %v354
    %v1313 = vunpack.c.h.b16 %v354
    %v1314 = vunpack.c.l.b16 %v355
    %v1315 = vunpack.c.l.b16 %v356
    %v1316 = vunpack.c.h.b16 %v356
    %v1317 = vunpack.c.l.b16 %v357
    %v1318 = vunpack.c.h.b16 %v357
    %v1319 = vunpack.c.l.b16 %v358
    %v1320 = vunpack.c.l.b16 %v359
    %v1321 = vunpack.c.h.b16 %v359
    %v1322 = vunpack.c.l.b16 %v360
    %v1323 = vunpack.c.h.b16 %v360
    %v1324 = vunpack.c.l.b16 %v361
    %v1325 = vunpack.c.l.b16 %v362
    %v1326 = vunpack.c.h.b16 %v362
    %v1327 = vunpack.c.l.b16 %v363
    %v1328 = vunpack.c.h.b16 %v363
    %v1329 = vunpack.c.l.b16 %v364
    %v1330 = vunpack.c.l.b16 %v365
    %v1331 = vunpack.c.h.b16 %v365
    %v1332 = vunpack.c.l.b16 %v366
    %v1333 = vunpack.c.h.b16 %v366
    %v1334 = vunpack.c.l.b16 %v367
    %v1335 = vunpack.c.l.b16 %v368
    %v1336 = vunpack.c.h.b16 %v368
    %v1337 = vunpack.c.l.b16 %v369
    %v1338 = vunpack.c.h.b16 %v369
    %v1339 = vunpack.c.l.b16 %v370
    %v1340 = vunpack.c.l.b16 %v371
    %v1341 = vunpack.c.h.b16 %v371
    %v1342 = vunpack.c.l.b16 %v372
    %v1343 = vunpack.c.h.b16 %v372
    %v1344 = vunpack.c.l.b16 %v373
    %v1345 = vunpack.c.l.b16 %v374
    %v1346 = vunpack.c.h.b16 %v374
    %v1347 = vunpack.c.l.b16 %v375
    %v1348 = vunpack.c.h.b16 %v375
    %v1349 = vunpack.c.l.b16 %v376
    %v1350 = vunpack.c.l.b16 %v377
    %v1351 = vunpack.c.h.b16 %v377
    %v1352 = vunpack.c.l.b16 %v378
    %v1353 = vunpack.c.h.b16 %v378
    %v1354 = vunpack.c.l.b16 %v379
    %v1355 = vunpack.c.l.b16 %v380
    %v1356 = vunpack.c.h.b16 %v380
    %v1357 = vunpack.c.l.b16 %v381
    %v1358 = vunpack.c.h.b16 %v381
    %v1359 = vunpack.c.l.b16 %v382
    %v1360 = vunpack.c.l.b16 %v383
    %v1361 = vunpack.c.h.b16 %v383
    %v1362 = vunpack.c.l.b16 %v384
    %v1363 = vunpack.c.h.b16 %v384
    %v1364 = vunpack.c.l.b16 %v385
    %v1365 = vunpack.c.l.b16 %v386
    %v1366 = vunpack.c.h.b16 %v386
    %v1367 = vunpack.c.l.b16 %v387
    %v1368 = vunpack.c.h.b16 %v387
    %v1369 = vunpack.c.l.b16 %v388
    %v1370 = vunpack.c.l.b16 %v389
    %v1371 = vunpack.c.h.b16 %v389
    %v1372 = vunpack.c.l.b16 %v390
    %v1373 = vunpack.c.h.b16 %v390
    %v1374 = vunpack.c.l.b16 %v391
    %v1375 = vunpack.c.l.b16 %v392
    %v1376 = vunpack.c.h.b16 %v392
    %v1377 = vunpack.c.l.b16 %v393
    %v1378 = vunpack.c.h.b16 %v393
    %v1379 = vunpack.c.l.b16 %v394
    %v1380 = vunpack.c.l.b16 %v395
    %v1381 = vunpack.c.h.b16 %v395
    %v1382 = vunpack.c.l.b16 %v396
    %v1383 = vunpack.c.h.b16 %v396
    %v1384 = vunpack.c.l.b16 %v397
    %v1385 = vunpack.c.l.b16 %v398
    %v1386 = vunpack.c.h.b16 %v398
    %v1387 = vunpack.c.l.b16 %v399
    %v1388 = vunpack.c.h.b16 %v399
    %v1389 = vunpack.c.l.b16 %v400
    %v1390 = vunpack.c.l.b16 %v401
    %v1391 = vunpack.c.h.b16 %v401
    %v1392 = vunpack.c.l.b16 %v402
    %v1393 = vunpack.c.h.b16 %v402
    %v1394 = vunpack.c.l.b16 %v403
    %v1395 = vunpack.c.l.b16 %v404
    %v1396 = vunpack.c.h.b16 %v404
    %v1397 = vunpack.c.l.b16 %v405
    %v1398 = vunpack.c.h.b16 %v405
    %v1399 = vunpack.c.l.b16 %v406
    %v1400 = vunpack.c.l.b16 %v407
    %v1401 = vunpack.c.h.b16 %v407
    %v1402 = vunpack.c.l.b16 %v408
    %v1403 = vunpack.c.h.b16 %v408
    %v1404 = vunpack.c.l.b16 %v409
    %v1405 = vunpack.c.l.b16 %v410
    %v1406 = vunpack.c.h.b16 %v410
    %v1407 = vunpack.c.l.b16 %v411
    %v1408 = vunpack.c.h.b16 %v411
    %v1409 = vunpack.c.l.b16 %v412
    %v1410 = vunpack.c.l.b16 %v413
    %v1411 = vunpack.c.h.b16 %v413
    %v1412 = vunpack.c.l.b16 %v414
    %v1413 = vunpack.c.h.b16 %v414
    %v1414 = vunpack.c.l.b16 %v415
    %v1415 = vunpack.c.l.b16 %v416
    %v1416 = vunpack.c.h.b16 %v416
    %v1417 = vunpack.c.l.b16 %v417
    %v1418 = vunpack.c.h.b16 %v417
    %v1419 = vunpack.c.l.b16 %v418
    %v1420 = vunpack.c.l.b16 %v419
    %v1421 = vunpack.c.h.b16 %v419
    %v1422 = vunpack.c.l.b16 %v420
    %v1423 = vunpack.c.h.b16 %v420
    %v1424 = vunpack.c.l.b16 %v421
    %v1425 = vunpack.c.l.b16 %v422
    %v1426 = vunpack.c.h.b16 %v422
    %v1427 = vunpack.c.l.b16 %v423
    %v1428 = vunpack.c.h.b16 %v423
    %v1429 = vunpack.c.l.b16 %v424
    %v1430 = vunpack.c.l.b16 %v425
    %v1431 = vunpack.c.h.b16 %v425
    %v1432 = vunpack.c.l.b16 %v426
    %v1433 = vunpack.c.h.b16 %v426
    %v1434 = vunpack.c.l.b16 %v427
    %v1435 = vunpack.c.l.b16 %v428
    %v1436 = vunpack.c.h.b16 %v428
    %v1437 = vunpack.c.l.b16 %v429
    %v1438 = vunpack.c.h.b16 %v429
    %v1439 = vunpack.c.l.b16 %v430
    %v1440 = vunpack.c.l.b16 %v431
    %v1441 = vunpack.c.h.b16 %v431
    %v1442 = vunpack.c.l.b16 %v432
    %v1443 = vunpack.c.h.b16 %v432
    %v1444 = vunpack.c.l.b16 %v433
    %v1445 = vunpack.c.l.b16 %v434
    %v1446 = vunpack.c.h.b16 %v434
    %v1447 = vunpack.c.l.b16 %v435
    %v1448 = vunpack.c.h.b16 %v435
    %v1449 = vunpack.c.l.b16 %v436
    %v1450 = vunpack.c.l.b16 %v437
    %v1451 = vunpack.c.h.b16 %v437
    %v1452 = vunpack.c.l.b16 %v438
    %v1453 = vunpack.c.h.b16 %v438
    %v1454 = vunpack.c.l.b16 %v439
    %v1455 = vunpack.c.l.b16 %v440
    %v1456 = vunpack.c.h.b16 %v440
    %v1457 = vunpack.c.l.b16 %v441
    %v1458 = vunpack.c.h.b16 %v441
    %v1459 = vunpack.c.l.b16 %v442
    %v1460 = vunpack.c.l.b16 %v443
    %v1461 = vunpack.c.h.b16 %v443
    %v1462 = vunpack.c.l.b16 %v444
    %v1463 = vunpack.c.h.b16 %v444
    %v1464 = vunpack.c.l.b16 %v445
    %v1465 = vunpack.c.l.b16 %v446
    %v1466 = vunpack.c.h.b16 %v446
    %v1467 = vunpack.c.l.b16 %v447
    %v1468 = vunpack.c.h.b16 %v447
    %v1469 = vunpack.c.l.b16 %v448
    %v1470 = vunpack.c.l.b16 %v449
    %v1471 = vunpack.c.h.b16 %v449
    %v1472 = vunpack.c.l.b16 %v450
    %v1473 = vunpack.c.h.b16 %v450
    %v1474 = vunpack.c.l.b16 %v451
    %v1475 = vunpack.c.l.b16 %v452
    %v1476 = vunpack.c.h.b16 %v452
    %v1477 = vunpack.c.l.b16 %v453
    %v1478 = vunpack.c.h.b16 %v453
    %v1479 = vunpack.c.l.b16 %v454
    %v1480 = vunpack.c.l.b16 %v455
    %v1481 = vunpack.c.h.b16 %v455
    %v1482 = vunpack.c.l.b16 %v456
    %v1483 = vunpack.c.h.b16 %v456
    %v1484 = vunpack.c.l.b16 %v457
    %v1485 = vunpack.c.l.b16 %v458
    %v1486 = vunpack.c.h.b16 %v458
    %v1487 = vunpack.c.l.b16 %v459
    %v1488 = vunpack.c.h.b16 %v459
    %v1489 = vunpack.c.l.b16 %v460
    %v1490 = vunpack.c.l.b16 %v461
    %v1491 = vunpack.c.h.b16 %v461
    %v1492 = vunpack.c.l.b16 %v462
    %v1493 = vunpack.c.h.b16 %v462
    %v1494 = vunpack.c.l.b16 %v463
    %v1495 = vunpack.c.l.b16 %v464
    %v1496 = vunpack.c.h.b16 %v464
    %v1497 = vunpack.c.l.b16 %v465
    %v1498 = vunpack.c.h.b16 %v465
    %v1499 = vunpack.c.l.b16 %v466
    %v1500 = vunpack.c.l.b16 %v467
    %v1501 = vunpack.c.h.b16 %v467
    %v1502 = vunpack.c.l.b16 %v468
    %v1503 = vunpack.c.h.b16 %v468
    %v1504 = vunpack.c.l.b16 %v469
    %v1505 = vunpack.c.l.b16 %v470
    %v1506 = vunpack.c.h.b16 %v470
    %v1507 = vunpack.c.l.b16 %v471
    %v1508 = vunpack.c.h.b16 %v471
    %v1509 = vunpack.c.l.b16 %v472
    %v1510 = vunpack.c.l.b16 %v473
    %v1511 = vunpack.c.h.b16 %v473
    %v1512 = vunpack.c.l.b16 %v474
    %v1513 = vunpack.c.h.b16 %v474
    %v1514 = vunpack.c.l.b16 %v475
    %v1515 = vunpack.c.l.b16 %v476
    %v1516 = vunpack.c.h.b16 %v476
    %v1517 = vunpack.c.l.b16 %v477
    %v1518 = vunpack.c.h.b16 %v477
    %v1519 = vunpack.c.l.b16 %v478
    %v1520 = vunpack.c.l.b16 %v479
    %v1521 = vunpack.c.h.b16 %v479
    %v1522 = vunpack.c.l.b16 %v480
    %v1523 = vunpack.c.h.b16 %v480
    %v1524 = vunpack.c.l.b16 %v481
    %v1525 = vunpack.c.l.b16 %v482
    %v1526 = vunpack.c.h.b16 %v482
    %v1527 = vunpack.c.l.b16 %v483
    %v1528 = vunpack.c.h.b16 %v483
    %v1529 = vunpack.c.l.b16 %v484
    %v1530 = vunpack.c.l.b16 %v485
    %v1531 = vunpack.c.h.b16 %v485
    %v1532 = vunpack.c.l.b16 %v486
    %v1533 = vunpack.c.h.b16 %v486
    %v1534 = vunpack.c.l.b16 %v487
    %v1535 = vunpack.c.l.b16 %v488
    %v1536 = vunpack.c.h.b16 %v488
    %v1537 = vunpack.c.l.b16 %v489
    %v1538 = vunpack.c.h.b16 %v489
    %v1539 = vunpack.c.l.b16 %v490
    %v1540 = vunpack.c.l.b16 %v491
    %v1541 = vunpack.c.h.b16 %v491
    %v1542 = vunpack.c.l.b16 %v492
    %v1543 = vunpack.c.h.b16 %v492
    %v1544 = vunpack.c.l.b16 %v493
    %v1545 = vunpack.c.l.b16 %v494
    %v1546 = vunpack.c.h.b16 %v494
    %v1547 = vunpack.c.l.b16 %v495
    %v1548 = vunpack.c.h.b16 %v495
    %v1549 = vunpack.c.l.b16 %v496
    %v1550 = vunpack.c.l.b16 %v497
    %v1551 = vunpack.c.h.b16 %v497
    %v1552 = vunpack.c.l.b16 %v498
    %v1553 = vunpack.c.h.b16 %v498
    %v1554 = vunpack.c.l.b16 %v499
    %v1555 = vunpack.c.l.b16 %v500
    %v1556 = vunpack.c.h.b16 %v500
    %v1557 = vunpack.c.l.b16 %v501
    %v1558 = vunpack.c.h.b16 %v501
    %v1559 = vunpack.c.l.b16 %v502
    %v1560 = vunpack.c.l.b16 %v503
    %v1561 = vunpack.c.h.b16 %v503
    %v1562 = vunpack.c.l.b16 %v504
    %v1563 = vunpack.c.h.b16 %v504
    %v1564 = vunpack.c.l.b16 %v505
    %v1565 = vunpack.c.l.b16 %v506
    %v1566 = vunpack.c.h.b16 %v506
    %v1567 = vunpack.c.l.b16 %v507
    %v1568 = vunpack.c.h.b16 %v507
    %v1569 = vunpack.c.l.b16 %v508
    %v1570 = vunpack.c.l.b16 %v509
    %v1571 = vunpack.c.h.b16 %v509
    %v1572 = vunpack.c.l.b16 %v510
    %v1573 = vunpack.c.h.b16 %v510
    %v1574 = vunpack.c.l.b16 %v511
    %v1575 = vunpack.c.l.b16 %v512
    %v1576 = vunpack.c.h.b16 %v512
    %v1577 = vunpack.c.l.b16 %v513
    %v1578 = vunpack.c.h.b16 %v513
    %v1579 = vunpack.c.l.b16 %v514
    %v1580 = vunpack.c.l.b16 %v515
    %v1581 = vunpack.c.h.b16 %v515
    %v1582 = vunpack.c.l.b16 %v516
    %v1583 = vunpack.c.h.b16 %v516
    %v1584 = vunpack.c.l.b16 %v517
    %v1585 = vunpack.c.l.b16 %v518
    %v1586 = vunpack.c.h.b16 %v518
    %v1587 = vunpack.c.l.b16 %v519
    %v1588 = vunpack.c.h.b16 %v519
    %v1589 = vunpack.c.l.b16 %v520
    %v1590 = vunpack.c.l.b16 %v521
    %v1591 = vunpack.c.h.b16 %v521
    %v1592 = vunpack.c.l.b16 %v522
    %v1593 = vunpack.c.h.b16 %v522
    %v1594 = vunpack.c.l.b16 %v523
    %v1595 = vunpack.c.l.b16 %v524
    %v1596 = vunpack.c.h.b16 %v524
    %v1597 = vunpack.c.l.b16 %v525
    %v1598 = vunpack.c.h.b16 %v525
    %v1599 = vunpack.c.l.b16 %v526
    %v1600 = vunpack.c.l.b16 %v527
    %v1601 = vunpack.c.h.b16 %v527
    %v1602 = vunpack.c.l.b16 %v528
    %v1603 = vunpack.c.h.b16 %v528
    %v1604 = vunpack.c.l.b16 %v529
    %v1605 = vunpack.c.l.b16 %v530
    %v1606 = vunpack.c.h.b16 %v530
    %v1607 = vunpack.c.l.b16 %v531
    %v1608 = vunpack.c.h.b16 %v531
    %v1609 = vunpack.c.l.b16 %v532
    %v1610 = vunpack.c.l.b16 %v533
    %v1611 = vunpack.c.h.b16 %v533
    %v1612 = vunpack.c.l.b16 %v534
    %v1613 = vunpack.c.h.b16 %v534
    %v1614 = vunpack.c.l.b16 %v535
    %v1615 = vunpack.c.l.b16 %v536
    %v1616 = vunpack.c.h.b16 %v536
    %v1617 = vunpack.c.l.b16 %v537
    %v1618 = vunpack.c.h.b16 %v537
    %v1619 = vunpack.c.l.b16 %v538
    %v1620 = vunpack.c.l.b16 %v539
    %v1621 = vunpack.c.h.b16 %v539
    %v1622 = vunpack.c.l.b16 %v540
    %v1623 = vunpack.c.h.b16 %v540
    %v1624 = vunpack.c.l.b16 %v541
    %v1625 = vunpack.c.l.b16 %v542
    %v1626 = vunpack.c.h.b16 %v542
    %v1627 = vunpack.c.l.b16 %v543
    %v1628 = vunpack.c.h.b16 %v543
    %v1629 = vunpack.c.l.b16 %v544
    %v1630 = vunpack.c.l.b16 %v545
    %v1631 = vunpack.c.h.b16 %v545
    %v1632 = vunpack.c.l.b16 %v546
    %v1633 = vunpack.c.h.b16 %v546
    %v1634 = vunpack.c.l.b16 %v547
    %v1635 = vunpack.c.l.b16 %v548
    %v1636 = vunpack.c.h.b16 %v548
    %v1637 = vunpack.c.l.b16 %v549
    %v1638 = vunpack.c.h.b16 %v549
    %v1639 = vunpack.c.l.b16 %v550
    %v1640 = vunpack.c.l.b16 %v551
    %v1641 = vunpack.c.h.b16 %v551
    %v1642 = vunpack.c.l.b16 %v552
    %v1643 = vunpack.c.h.b16 %v552
    %v1644 = vunpack.c.l.b16 %v553
    %v1645 = vpack.c.b16 %v1160, %v1155
    %v1646 = vpack.c.b16 %v1161, %v1156
    %v1647 = vpack.c.b16 %v1162, %v1157
    %v1648 = vpack.c.b16 %v1163, %v1158
    %v1649 = vpack.c.b16 %v1164, %v1159
    %v1650 = vpack.c.b16 %v1170, %v1165
    %v1651 = vpack.c.b16 %v1171, %v1166
    %v1652 = vpack.c.b16 %v1172, %v1167
    %v1653 = vpack.c.b16 %v1173, %v1168
    %v1654 = vpack.c.b16 %v1174, %v1169
    %v1655 = vpack.c.b16 %v1180, %v1175
    %v1656 = vpack.c.b16 %v1181, %v1176
    %v1657 = vpack.c.b16 %v1182, %v1177
    %v1658 = vpack.c.b16 %v1183, %v1178
    %v1659 = vpack.c.b16 %v1184, %v1179
    %v1660 = vpack.c.b16 %v1190, %v1185
    %v1661 = vpack.c.b16 %v1191, %v1186
    %v1662 = vpack.c.b16 %v1192, %v1187
    %v1663 = vpack.c.b16 %v1193, %v1188
    %v1664 = vpack.c.b16 %v1194, %v1189
    %v1665 = vpack.c.b16 %v1200, %v1195
    %v1666 = vpack.c.b16 %v1201, %v1196
    %v1667 = vpack.c.b16 %v1202, %v1197
    %v1668 = vpack.c.b16 %v1203, %v1198
    %v1669 = vpack.c.b16 %v1204, %v1199
    %v1670 = vpack.c.b16 %v1210, %v1205
    %v1671 = vpack.c.b16 %v1211, %v1206
    %v1672 = vpack.c.b16 %v1212, %v1207
    %v1673 = vpack.c.b16 %v1213, %v1208
    %v1674 = vpack.c.b16 %v1214, %v1209
    %v1675 = vpack.c.b16 %v1220, %v1215
    %v1676 = vpack.c.b16 %v1221, %v1216
    %v1677 = vpack.c.b16 %v1222, %v1217
    %v1678 = vpack.c.b16 %v1223, %v1218
    %v1679 = vpack.c.b16 %v1224, %v1219
    %v1680 = vpack.c.b16 %v1230, %v1225
    %v1681 = vpack.c.b16 %v1231, %v1226
    %v1682 = vpack.c.b16 %v1232, %v1227
    %v1683 = vpack.c.b16 %v1233, %v1228
    %v1684 = vpack.c.b16 %v1234, %v1229
    %v1685 = vpack.c.b16 %v1240, %v1235
    %v1686 = vpack.c.b16 %v1241, %v1236
    %v1687 = vpack.c.b16 %v1242, %v1237
    %v1688 = vpack.c.b16 %v1243, %v1238
    %v1689 = vpack.c.b16 %v1244, %v1239
    %v1690 = vpack.c.b16 %v1250, %v1245
    %v1691 = vpack.c.b16 %v1251, %v1246
    %v1692 = vpack.c.b16 %v1252, %v1247
    %v1693 = vpack.c.b16 %v1253, %v1248
    %v1694 = vpack.c.b16 %v1254, %v1249
    %v1695 = vpack.c.b16 %v1260, %v1255
    %v1696 = vpack.c.b16 %v1261, %v1256
    %v1697 = vpack.c.b16 %v1262, %v1257
    %v1698 = vpack.c.b16 %v1263, %v1258
    %v1699 = vpack.c.b16 %v1264, %v1259
    %v1700 = vpack.c.b16 %v1270, %v1265
    %v1701 = vpack.c.b16 %v1271, %v1266
    %v1702 = vpack.c.b16 %v1272, %v1267
    %v1703 = vpack.c.b16 %v1273, %v1268
    %v1704 = vpack.c.b16 %v1274, %v1269
    %v1705 = vpack.c.b16 %v1280, %v1275
    %v1706 = vpack.c.b16 %v1281, %v1276
    %v1707 = vpack.c.b16 %v1282, %v1277
    %v1708 = vpack.c.b16 %v1283, %v1278
    %v1709 = vpack.c.b16 %v1284, %v1279
    %v1710 = vpack.c.b16 %v1290, %v1285
    %v1711 = vpack.c.b16 %v1291, %v1286
    %v1712 = vpack.c.b16 %v1292, %v1287
    %v1713 = vpack.c.b16 %v1293, %v1288
    %v1714 = vpack.c.b16 %v1294, %v1289
    %v1715 = vpack.c.b16 %v1300, %v1295
    %v1716 = vpack.c.b16 %v1301, %v1296
    %v1717 = vpack.c.b16 %v1302, %v1297
    %v1718 = vpack.c.b16 %v1303, %v1298
    %v1719 = vpack.c.b16 %v1304, %v1299
    %v1720 = vpack.c.b16 %v1310, %v1305
    %v1721 = vpack.c.b16 %v1311, %v1306
    %v1722 = vpack.c.b16 %v1312, %v1307
    %v1723 = vpack.c.b16 %v1313, %v1308
    %v1724 = vpack.c.b16 %v1314, %v1309
    %v1725 = vpack.c.b16 %v1320, %v1315
    %v1726 = vpack.c.b16 %v1321, %v1316
    %v1727 = vpack.c.b16 %v1322, %v1317
    %v1728 = vpack.c.b16 %v1323, %v1318
    %v1729 = vpack.c.b16 %v1324, %v1319
    %v1730 = vpack.c.b16 %v1330, %v1325
    %v1731 = vpack.c.b16 %v1331, %v1326
    %v1732 = vpack.c.b16 %v1332, %v1327
    %v1733 = vpack.c.b16 %v1333, %v1328
    %v1734 = vpack.c.b16 %v1334, %v1329
    %v1735 = vpack.c.b16 %v1340, %v1335
    %v1736 = vpack.c.b16 %v1341, %v1336
    %v1737 = vpack.c.b16 %v1342, %v1337
    %v1738 = vpack.c.b16 %v1343, %v1338
    %v1739 = vpack.c.b16 %v1344, %v1339
    %v1740 = vpack.c.b16 %v1350, %v1345
    %v1741 = vpack.c.b16 %v1351, %v1346
    %v1742 = vpack.c.b16 %v1352, %v1347
    %v1743 = vpack.c.b16 %v1353, %v1348
    %v1744 = vpack.c.b16 %v1354, %v1349
    %v1745 = vpack.c.b16 %v1360, %v1355
    %v1746 = vpack.c.b16 %v1361, %v1356
    %v1747 = vpack.c.b16 %v1362, %v1357
    %v1748 = vpack.c.b16 %v1363, %v1358
    %v1749 = vpack.c.b16 %v1364, %v1359
    %v1750 = vpack.c.b16 %v1370, %v1365
    %v1751 = vpack.c.b16 %v1371, %v1366
    %v1752 = vpack.c.b16 %v1372, %v1367
    %v1753 = vpack.c.b16 %v1373, %v1368
    %v1754 = vpack.c.b16 %v1374, %v1369
    %v1755 = vpack.c.b16 %v1380, %v1375
    %v1756 = vpack.c.b16 %v1381, %v1376
    %v1757 = vpack.c.b16 %v1382, %v1377
    %v1758 = vpack.c.b16 %v1383, %v1378
    %v1759 = vpack.c.b16 %v1384, %v1379
    %v1760 = vpack.c.b16 %v1390, %v1385
    %v1761 = vpack.c.b16 %v1391, %v1386
    %v1762 = vpack.c.b16 %v1392, %v1387
    %v1763 = vpack.c.b16 %v1393, %v1388
    %v1764 = vpack.c.b16 %v1394, %v1389
    %v1765 = vpack.c.b16 %v1400, %v1395
    %v1766 = vpack.c.b16 %v1401, %v1396
    %v1767 = vpack.c.b16 %v1402, %v1397
    %v1768 = vpack.c.b16 %v1403, %v1398
    %v1769 = vpack.c.b16 %v1404, %v1399
    %v1770 = vpack.c.b16 %v1410, %v1405
    %v1771 = vpack.c.b16 %v1411, %v1406
    %v1772 = vpack.c.b16 %v1412, %v1407
    %v1773 = vpack.c.b16 %v1413, %v1408
    %v1774 = vpack.c.b16 %v1414, %v1409
    %v1775 = vpack.c.b16 %v1420, %v1415
    %v1776 = vpack.c.b16 %v1421, %v1416
    %v1777 = vpack.c.b16 %v1422, %v1417
    %v1778 = vpack.c.b16 %v1423, %v1418
    %v1779 = vpack.c.b16 %v1424, %v1419
    %v1780 = vpack.c.b16 %v1430, %v1425
    %v1781 = vpack.c.b16 %v1431, %v1426
    %v1782 = vpack.c.b16 %v1432, %v1427
    %v1783 = vpack.c.b16 %v1433, %v1428
    %v1784 = vpack.c.b16 %v1434, %v1429
    %v1785 = vpack.c.b16 %v1440, %v1435
    %v1786 = vpack.c.b16 %v1441, %v1436
    %v1787 = vpack.c.b16 %v1442, %v1437
    %v1788 = vpack.c.b16 %v1443, %v1438
    %v1789 = vpack.c.b16 %v1444, %v1439
    %v1790 = vpack.c.b16 %v1450, %v1445
    %v1791 = vpack.c.b16 %v1451, %v1446
    %v1792 = vpack.c.b16 %v1452, %v1447
    %v1793 = vpack.c.b16 %v1453, %v1448
    %v1794 = vpack.c.b16 %v1454, %v1449
    %v1795 = vpack.c.b16 %v1460, %v1455
    %v1796 = vpack.c.b16 %v1461, %v1456
    %v1797 = vpack.c.b16 %v1462, %v1457
    %v1798 = vpack.c.b16 %v1463, %v1458
    %v1799 = vpack.c.b16 %v1464, %v1459
    %v1800 = vpack.c.b16 %v1470, %v1465
    %v1801 = vpack.c.b16 %v1471, %v1466
    %v1802 = vpack.c.b16 %v1472, %v1467
    %v1803 = vpack.c.b16 %v1473, %v1468
    %v1804 = vpack.c.b16 %v1474, %v1469
    %v1805 = vpack.c.b16 %v1480, %v1475
    %v1806 = vpack.c.b16 %v1481, %v1476
    %v1807 = vpack.c.b16 %v1482, %v1477
    %v1808 = vpack.c.b16 %v1483, %v1478
    %v1809 = vpack.c.b16 %v1484, %v1479
    %v1810 = vpack.c.b16 %v1490, %v1485
    %v1811 = vpack.c.b16 %v1491, %v1486
    %v1812 = vpack.c.b16 %v1492, %v1487
    %v1813 = vpack.c.b16 %v1493, %v1488
    %v1814 = vpack.c.b16 %v1494, %v1489
    %v1815 = vpack.c.b16 %v1500, %v1495
    %v1816 = vpack.c.b16 %v1501, %v1496
    %v1817 = vpack.c.b16 %v1502, %v1497
    %v1818 = vpack.c.b16 %v1503, %v1498
    %v1819 = vpack.c.b16 %v1504, %v1499
    %v1820 = vpack.c.b16 %v1510, %v1505
    %v1821 = vpack.c.b16 %v1511, %v1506
    %v1822 = vpack.c.b16 %v1512, %v1507
    %v1823 = vpack.c.b16 %v1513, %v1508
    %v1824 = vpack.c.b16 %v1514, %v1509
    %v1825 = vpack.c.b16 %v1520, %v1515
    %v1826 = vpack.c.b16 %v1521, %v1516
    %v1827 = vpack.c.b16 %v1522, %v1517
    %v1828 = vpack.c.b16 %v1523, %v1518
    %v1829 = vpack.c.b16 %v1524, %v1519
    %v1830 = vpack.c.b16 %v1530, %v1525
    %v1831 = vpack.c.b16 %v1531, %v1526
    %v1832 = vpack.c.b16 %v1532, %v1527
    %v1833 = vpack.c.b16 %v1533, %v1528
    %v1834 = vpack.c.b16 %v1534, %v1529
    %v1835 = vpack.c.b16 %v1540, %v1535
    %v1836 = vpack.c.b16 %v1541, %v1536
    %v1837 = vpack.c.b16 %v1542, %v1537
    %v1838 = vpack.c.b16 %v1543, %v1538
    %v1839 = vpack.c.b16 %v1544, %v1539
    %v1840 = vpack.c.b16 %v1550, %v1545
    %v1841 = vpack.c.b16 %v1551, %v1546
    %v1842 = vpack.c.b16 %v1552, %v1547
    %v1843 = vpack.c.b16 %v1553, %v1548
    %v1844 = vpack.c.b16 %v1554, %v1549
    %v1845 = vpack.c.b16 %v1560, %v1555
    %v1846 = vpack.c.b16 %v1561, %v1556
    %v1847 = vpack.c.b16 %v1562, %v1557
    %v1848 = vpack.c.b16 %v1563, %v1558
    %v1849 = vpack.c.b16 %v1564, %v1559
    %v1850 = vpack.c.b16 %v1570, %v1565
    %v1851 = vpack.c.b16 %v1571, %v1566
    %v1852 = vpack.c.b16 %v1572, %v1567
    %v1853 = vpack.c.b16 %v1573, %v1568
    %v1854 = vpack.c.b16 %v1574, %v1569
    %v1855 = vpack.c.b16 %v1580, %v1575
    %v1856 = vpack.c.b16 %v1581, %v1576
    %v1857 = vpack.c.b16 %v1582, %v1577
    %v1858 = vpack.c.b16 %v1583, %v1578
    %v1859 = vpack.c.b16 %v1584, %v1579
    %v1860 = vpack.c.b16 %v1590, %v1585
    %v1861 = vpack.c.b16 %v1591, %v1586
    %v1862 = vpack.c.b16 %v1592, %v1587
    %v1863 = vpack.c.b16 %v1593, %v1588
    %v1864 = vpack.c.b16 %v1594, %v1589
    %v1865 = vpack.c.b16 %v1600, %v1595
    %v1866 = vpack.c.b16 %v1601, %v1596
    %v1867 = vpack.c.b16 %v1602, %v1597
    %v1868 = vpack.c.b16 %v1603, %v1598
    %v1869 = vpack.c.b16 %v1604, %v1599
    %v1870 = vpack.c.b16 %v1610, %v1605
    %v1871 = vpack.c.b16 %v1611, %v1606
    %v1872 = vpack.c.b16 %v1612, %v1607
    %v1873 = vpack.c.b16 %v1613, %v1608
    %v1874 = vpack.c.b16 %v1614, %v1609
    %v1875 = vpack.c.b16 %v1620, %v1615
    %v1876 = vpack.c.b16 %v1621, %v1616
    %v1877 = vpack.c.b16 %v1622, %v1617
    %v1878 = vpack.c.b16 %v1623, %v1618
    %v1879 = vpack.c.b16 %v1624, %v1619
    %v1880 = vpack.c.b16 %v1630, %v1625
    %v1881 = vpack.c.b16 %v1631, %v1626
    %v1882 = vpack.c.b16 %v1632, %v1627
    %v1883 = vpack.c.b16 %v1633, %v1628
    %v1884 = vpack.c.b16 %v1634, %v1629
    %v1885 = vpack.c.b16 %v1640, %v1635
    %v1886 = vpack.c.b16 %v1641, %v1636
    %v1887 = vpack.c.b16 %v1642, %v1637
    %v1888 = vpack.c.b16 %v1643, %v1638
    %v1889 = vpack.c.b16 %v1644, %v1639
    %vm2135 = vcmask 130048
    %v2137 = vsel %vm2135, %v763, 0
    %v2140 = vsel %vm2135, %v770, 0
    %v2143 = vsel %vm2135, %v777, 0
    %v2146 = vsel %vm2135, %v784, 0
    %v2149 = vsel %vm2135, %v791, 0
    %v2152 = vsel %vm2135, %v798, 0
    %v2155 = vsel %vm2135, %v805, 0
    %v2158 = vsel %vm2135, %v812, 0
    %2160 = vmatprep.subr.bf16.mxu0 %v1646
    %2161 = vmatpush1.bf16.msra.mxu0 %v1645
    %2162 = vmatprep.subr.bf16.mxu0 %v1651
    %2163 = vmatpush1.bf16.msra.mxu0 %v1650
    %2164 = vmatprep.subr.bf16.mxu0 %v1656
    %2165 = vmatpush1.bf16.msra.mxu0 %v1655
    %2166 = vmatprep.subr.bf16.mxu0 %v1661
    %2167 = vmatpush1.bf16.msra.mxu0 %v1660
    %2168 = vmatprep.subr.bf16.mxu0 %v1666
    %2169 = vmatpush1.bf16.msra.mxu0 %v1665
    %2170 = vmatprep.subr.bf16.mxu0 %v1671
    %2171 = vmatpush1.bf16.msra.mxu0 %v1670
    %2172 = vmatprep.subr.bf16.mxu0 %v1676
    %2173 = vmatpush1.bf16.msra.mxu0 %v1675
    %2174 = vmatprep.subr.bf16.mxu0 %v1681
    %2175 = vmatpush1.bf16.msra.mxu0 %v1680
    %2176 = vmatprep.subr.bf16.mxu0 %v1686
    %2177 = vmatpush1.bf16.msra.mxu0 %v1685
    %2178 = vmatprep.subr.bf16.mxu0 %v1691
    %2179 = vmatpush1.bf16.msra.mxu0 %v1690
    %2180 = vmatprep.subr.bf16.mxu0 %v1696
    %2181 = vmatpush1.bf16.msra.mxu0 %v1695
    %2182 = vmatprep.subr.bf16.mxu0 %v1701
    %2183 = vmatpush1.bf16.msra.mxu0 %v1700
    %2184 = vmatprep.subr.bf16.mxu0 %v1706
    %2185 = vmatpush1.bf16.msra.mxu0 %v1705
    %2186 = vmatprep.subr.bf16.mxu0 %v1711
    %2187 = vmatpush1.bf16.msra.mxu0 %v1710
    %2188 = vmatprep.subr.bf16.mxu0 %v1716
    %2189 = vmatpush1.bf16.msra.mxu0 %v1715
    %2190 = vmatprep.subr.bf16.mxu0 %v1721
    %2191 = vmatpush1.bf16.msra.mxu0 %v1720
    %2192 = vmatprep.mubr.bf16.mxu0 %v758
    %2193 = vmatmul.mubr.bf16.gmra.mrb[0].mxu0 %v757
    %v2194 = vpop.f32.mrb[0].mxu0
    %v2195 = vadd.f32 %v559, %v2194
    %v2196 = vpop.f32.mrb[0].mxu0
    %v2197 = vadd.f32 %v563, %v2196
    %v2198 = vpop.f32.mrb[0].mxu0
    %v2199 = vadd.f32 %v559, %v2198
    %v2200 = vpop.f32.mrb[0].mxu0
    %v2201 = vadd.f32 %v563, %v2200
    %2202 = vmatprep.mubr.bf16.mxu0 %v765
    %2203 = vmatmul.mubr.bf16.gmra.mrb[0].mxu0 %v764
    %v2204 = vpop.f32.mrb[0].mxu0
    %v2205 = vadd.f32 %v559, %v2204
    %v2206 = vpop.f32.mrb[0].mxu0
    %v2207 = vadd.f32 %v563, %v2206
    %v2208 = vpop.f32.mrb[0].mxu0
    %v2209 = vadd.f32 %v559, %v2208
    %v2210 = vpop.f32.mrb[0].mxu0
    %v2211 = vadd.f32 %v563, %v2210
    %2212 = vmatprep.mubr.bf16.mxu0 %v772
    %2213 = vmatmul.mubr.bf16.gmra.mrb[0].mxu0 %v771
    %v2214 = vpop.f32.mrb[0].mxu0
    %v2215 = vadd.f32 %v559, %v2214
    %v2216 = vpop.f32.mrb[0].mxu0
    %v2217 = vadd.f32 %v563, %v2216
    %v2218 = vpop.f32.mrb[0].mxu0
    %v2219 = vadd.f32 %v559, %v2218
    %v2220 = vpop.f32.mrb[0].mxu0
    %v2221 = vadd.f32 %v563, %v2220
    %2222 = vmatprep.mubr.bf16.mxu0 %v779
    %2223 = vmatmul.mubr.bf16.gmra.mrb[0].mxu0 %v778
    %v2224 = vpop.f32.mrb[0].mxu0
    %v2225 = vadd.f32 %v559, %v2224
    %v2226 = vpop.f32.mrb[0].mxu0
    %v2227 = vadd.f32 %v563, %v2226
    %v2228 = vpop.f32.mrb[0].mxu0
    %v2229 = vadd.f32 %v559, %v2228
    %v2230 = vpop.f32.mrb[0].mxu0
    %v2231 = vadd.f32 %v563, %v2230
    %2232 = vmatprep.mubr.bf16.mxu0 %v786
    %2233 = vmatmul.mubr.bf16.gmra.mrb[0].mxu0 %v785
    %v2234 = vpop.f32.mrb[0].mxu0
    %v2235 = vadd.f32 %v559, %v2234
    %v2236 = vpop.f32.mrb[0].mxu0
    %v2237 = vadd.f32 %v563, %v2236
    %v2238 = vpop.f32.mrb[0].mxu0
    %v2239 = vadd.f32 %v559, %v2238
    %v2240 = vpop.f32.mrb[0].mxu0
    %v2241 = vadd.f32 %v563, %v2240
    %2242 = vmatprep.mubr.bf16.mxu0 %v793
    %2243 = vmatmul.mubr.bf16.gmra.mrb[0].mxu0 %v792
    %v2244 = vpop.f32.mrb[0].mxu0
    %v2245 = vadd.f32 %v559, %v2244
    %v2246 = vpop.f32.mrb[0].mxu0
    %v2247 = vadd.f32 %v563, %v2246
    %v2248 = vpop.f32.mrb[0].mxu0
    %v2249 = vadd.f32 %v559, %v2248
    %v2250 = vpop.f32.mrb[0].mxu0
    %v2251 = vadd.f32 %v563, %v2250
    %2252 = vmatprep.mubr.bf16.mxu0 %v800
    %2253 = vmatmul.mubr.bf16.gmra.mrb[0].mxu0 %v799
    %v2254 = vpop.f32.mrb[0].mxu0
    %v2255 = vadd.f32 %v559, %v2254
    %v2256 = vpop.f32.mrb[0].mxu0
    %v2257 = vadd.f32 %v563, %v2256
    %v2258 = vpop.f32.mrb[0].mxu0
    %v2259 = vadd.f32 %v559, %v2258
    %v2260 = vpop.f32.mrb[0].mxu0
    %v2261 = vadd.f32 %v563, %v2260
    %2262 = vmatprep.mubr.bf16.mxu0 %v807
    %2263 = vmatmul.mubr.bf16.gmra.mrb[0].mxu0 %v806
    %v2264 = vpop.f32.mrb[0].mxu0
    %v2265 = vadd.f32 %v559, %v2264
    %v2266 = vpop.f32.mrb[0].mxu0
    %v2267 = vadd.f32 %v563, %v2266
    %v2268 = vpop.f32.mrb[0].mxu0
    %v2269 = vadd.f32 %v559, %v2268
    %v2270 = vpop.f32.mrb[0].mxu0
    %v2271 = vadd.f32 %v563, %v2270
    %2272 = vdwg.mxu0
    %2273 = vmatprep.subr.bf16.mxu0 %v1726
    %2274 = vmatpush1.bf16.msra.mxu0 %v1725
    %2275 = vmatprep.subr.bf16.mxu0 %v1731
    %2276 = vmatpush1.bf16.msra.mxu0 %v1730
    %2277 = vmatprep.subr.bf16.mxu0 %v1736
    %2278 = vmatpush1.bf16.msra.mxu0 %v1735
    %2279 = vmatprep.subr.bf16.mxu0 %v1741
    %2280 = vmatpush1.bf16.msra.mxu0 %v1740
    %2281 = vmatprep.subr.bf16.mxu0 %v1746
    %2282 = vmatpush1.bf16.msra.mxu0 %v1745
    %2283 = vmatprep.subr.bf16.mxu0 %v1751
    %2284 = vmatpush1.bf16.msra.mxu0 %v1750
    %2285 = vmatprep.subr.bf16.mxu0 %v1756
    %2286 = vmatpush1.bf16.msra.mxu0 %v1755
    %2287 = vmatprep.subr.bf16.mxu0 %v1761
    %2288 = vmatpush1.bf16.msra.mxu0 %v1760
    %2289 = vmatprep.subr.bf16.mxu0 %v1766
    %2290 = vmatpush1.bf16.msra.mxu0 %v1765
    %2291 = vmatprep.subr.bf16.mxu0 %v1771
    %2292 = vmatpush1.bf16.msra.mxu0 %v1770
    %2293 = vmatprep.subr.bf16.mxu0 %v1776
    %2294 = vmatpush1.bf16.msra.mxu0 %v1775
    %2295 = vmatprep.subr.bf16.mxu0 %v1781
    %2296 = vmatpush1.bf16.msra.mxu0 %v1780
    %2297 = vmatprep.subr.bf16.mxu0 %v1786
    %2298 = vmatpush1.bf16.msra.mxu0 %v1785
    %2299 = vmatprep.subr.bf16.mxu0 %v1791
    %2300 = vmatpush1.bf16.msra.mxu0 %v1790
    %2301 = vmatprep.subr.bf16.mxu0 %v1796
    %2302 = vmatpush1.bf16.msra.mxu0 %v1795
    %2303 = vmatprep.subr.bf16.mxu0 %v1801
    %2304 = vmatpush1.bf16.msra.mxu0 %v1800
    %2305 = vmatprep.mubr.bf16.mxu0 %v760
    %2306 = vmatmul.mubr.bf16.gmra.mrb[0].mxu0 %v759
    %v2307 = vpop.f32.mrb[0].mxu0
    %v2308 = vadd.f32 %v2195, %v2307
    %v2309 = vpop.f32.mrb[0].mxu0
    %v2310 = vadd.f32 %v2197, %v2309
    %v2311 = vpop.f32.mrb[0].mxu0
    %v2312 = vadd.f32 %v2199, %v2311
    %v2313 = vpop.f32.mrb[0].mxu0
    %v2314 = vadd.f32 %v2201, %v2313
    %2315 = vmatprep.mubr.bf16.mxu0 %v767
    %2316 = vmatmul.mubr.bf16.gmra.mrb[0].mxu0 %v766
    %v2317 = vpop.f32.mrb[0].mxu0
    %v2318 = vadd.f32 %v2205, %v2317
    %v2319 = vpop.f32.mrb[0].mxu0
    %v2320 = vadd.f32 %v2207, %v2319
    %v2321 = vpop.f32.mrb[0].mxu0
    %v2322 = vadd.f32 %v2209, %v2321
    %v2323 = vpop.f32.mrb[0].mxu0
    %v2324 = vadd.f32 %v2211, %v2323
    %2325 = vmatprep.mubr.bf16.mxu0 %v774
    %2326 = vmatmul.mubr.bf16.gmra.mrb[0].mxu0 %v773
    %v2327 = vpop.f32.mrb[0].mxu0
    %v2328 = vadd.f32 %v2215, %v2327
    %v2329 = vpop.f32.mrb[0].mxu0
    %v2330 = vadd.f32 %v2217, %v2329
    %v2331 = vpop.f32.mrb[0].mxu0
    %v2332 = vadd.f32 %v2219, %v2331
    %v2333 = vpop.f32.mrb[0].mxu0
    %v2334 = vadd.f32 %v2221, %v2333
    %2335 = vmatprep.mubr.bf16.mxu0 %v781
    %2336 = vmatmul.mubr.bf16.gmra.mrb[0].mxu0 %v780
    %v2337 = vpop.f32.mrb[0].mxu0
    %v2338 = vadd.f32 %v2225, %v2337
    %v2339 = vpop.f32.mrb[0].mxu0
    %v2340 = vadd.f32 %v2227, %v2339
    %v2341 = vpop.f32.mrb[0].mxu0
    %v2342 = vadd.f32 %v2229, %v2341
    %v2343 = vpop.f32.mrb[0].mxu0
    %v2344 = vadd.f32 %v2231, %v2343
    %2345 = vmatprep.mubr.bf16.mxu0 %v788
    %2346 = vmatmul.mubr.bf16.gmra.mrb[0].mxu0 %v787
    %v2347 = vpop.f32.mrb[0].mxu0
    %v2348 = vadd.f32 %v2235, %v2347
    %v2349 = vpop.f32.mrb[0].mxu0
    %v2350 = vadd.f32 %v2237, %v2349
    %v2351 = vpop.f32.mrb[0].mxu0
    %v2352 = vadd.f32 %v2239, %v2351
    %v2353 = vpop.f32.mrb[0].mxu0
    %v2354 = vadd.f32 %v2241, %v2353
    %2355 = vmatprep.mubr.bf16.mxu0 %v795
    %2356 = vmatmul.mubr.bf16.gmra.mrb[0].mxu0 %v794
    %v2357 = vpop.f32.mrb[0].mxu0
    %v2358 = vadd.f32 %v2245, %v2357
    %v2359 = vpop.f32.mrb[0].mxu0
    %v2360 = vadd.f32 %v2247, %v2359
    %v2361 = vpop.f32.mrb[0].mxu0
    %v2362 = vadd.f32 %v2249, %v2361
    %v2363 = vpop.f32.mrb[0].mxu0
    %v2364 = vadd.f32 %v2251, %v2363
    %2365 = vmatprep.mubr.bf16.mxu0 %v802
    %2366 = vmatmul.mubr.bf16.gmra.mrb[0].mxu0 %v801
    %v2367 = vpop.f32.mrb[0].mxu0
    %v2368 = vadd.f32 %v2255, %v2367
    %v2369 = vpop.f32.mrb[0].mxu0
    %v2370 = vadd.f32 %v2257, %v2369
    %v2371 = vpop.f32.mrb[0].mxu0
    %v2372 = vadd.f32 %v2259, %v2371
    %v2373 = vpop.f32.mrb[0].mxu0
    %v2374 = vadd.f32 %v2261, %v2373
    %2375 = vmatprep.mubr.bf16.mxu0 %v809
    %2376 = vmatmul.mubr.bf16.gmra.mrb[0].mxu0 %v808
    %v2377 = vpop.f32.mrb[0].mxu0
    %v2378 = vadd.f32 %v2265, %v2377
    %v2379 = vpop.f32.mrb[0].mxu0
    %v2380 = vadd.f32 %v2267, %v2379
    %v2381 = vpop.f32.mrb[0].mxu0
    %v2382 = vadd.f32 %v2269, %v2381
    %v2383 = vpop.f32.mrb[0].mxu0
    %v2384 = vadd.f32 %v2271, %v2383
    %2385 = vdwg.mxu0
    %2386 = vmatprep.subr.bf16.mxu0 %v1806
    %2387 = vmatpush1.bf16.msra.mxu0 %v1805
    %2388 = vmatprep.subr.bf16.mxu0 %v1811
    %2389 = vmatpush1.bf16.msra.mxu0 %v1810
    %2390 = vmatprep.subr.bf16.mxu0 %v1816
    %2391 = vmatpush1.bf16.msra.mxu0 %v1815
    %2392 = vmatprep.subr.bf16.mxu0 %v1821
    %2393 = vmatpush1.bf16.msra.mxu0 %v1820
    %2394 = vmatprep.subr.bf16.mxu0 %v1826
    %2395 = vmatpush1.bf16.msra.mxu0 %v1825
    %2396 = vmatprep.subr.bf16.mxu0 %v1831
    %2397 = vmatpush1.bf16.msra.mxu0 %v1830
    %2398 = vmatprep.subr.bf16.mxu0 %v1836
    %2399 = vmatpush1.bf16.msra.mxu0 %v1835
    %2400 = vmatprep.subr.bf16.mxu0 %v1841
    %2401 = vmatpush1.bf16.msra.mxu0 %v1840
    %2402 = vmatprep.subr.bf16.mxu0 %v1846
    %2403 = vmatpush1.bf16.msra.mxu0 %v1845
    %2404 = vmatprep.subr.bf16.mxu0 %v1851
    %2405 = vmatpush1.bf16.msra.mxu0 %v1850
    %2406 = vmatprep.subr.bf16.mxu0 %v1856
    %2407 = vmatpush1.bf16.msra.mxu0 %v1855
    %2408 = vmatprep.subr.bf16.mxu0 %v1861
    %2409 = vmatpush1.bf16.msra.mxu0 %v1860
    %2410 = vmatprep.subr.bf16.mxu0 %v1866
    %2411 = vmatpush1.bf16.msra.mxu0 %v1865
    %2412 = vmatprep.subr.bf16.mxu0 %v1871
    %2413 = vmatpush1.bf16.msra.mxu0 %v1870
    %2414 = vmatprep.subr.bf16.mxu0 %v1876
    %2415 = vmatpush1.bf16.msra.mxu0 %v1875
    %2416 = vmatprep.subr.bf16.mxu0 %v1881
    %2417 = vmatpush1.bf16.msra.mxu0 %v1880
    %2418 = vmatprep.mubr.bf16.mxu0 %v762
    %2419 = vmatmul.mubr.bf16.gmra.mrb[0].mxu0 %v761
    %v2420 = vpop.f32.mrb[0].mxu0
    %v2421 = vadd.f32 %v2308, %v2420
    %v2422 = vpop.f32.mrb[0].mxu0
    %v2423 = vadd.f32 %v2310, %v2422
    %v2424 = vpop.f32.mrb[0].mxu0
    %v2425 = vadd.f32 %v2312, %v2424
    %v2426 = vpop.f32.mrb[0].mxu0
    %v2427 = vadd.f32 %v2314, %v2426
    %2428 = vmatprep.mubr.bf16.mxu0 %v769
    %2429 = vmatmul.mubr.bf16.gmra.mrb[0].mxu0 %v768
    %v2430 = vpop.f32.mrb[0].mxu0
    %v2431 = vadd.f32 %v2318, %v2430
    %v2432 = vpop.f32.mrb[0].mxu0
    %v2433 = vadd.f32 %v2320, %v2432
    %v2434 = vpop.f32.mrb[0].mxu0
    %v2435 = vadd.f32 %v2322, %v2434
    %v2436 = vpop.f32.mrb[0].mxu0
    %v2437 = vadd.f32 %v2324, %v2436
    %2438 = vmatprep.mubr.bf16.mxu0 %v776
    %2439 = vmatmul.mubr.bf16.gmra.mrb[0].mxu0 %v775
    %v2440 = vpop.f32.mrb[0].mxu0
    %v2441 = vadd.f32 %v2328, %v2440
    %v2442 = vpop.f32.mrb[0].mxu0
    %v2443 = vadd.f32 %v2330, %v2442
    %v2444 = vpop.f32.mrb[0].mxu0
    %v2445 = vadd.f32 %v2332, %v2444
    %v2446 = vpop.f32.mrb[0].mxu0
    %v2447 = vadd.f32 %v2334, %v2446
    %2448 = vmatprep.mubr.bf16.mxu0 %v783
    %2449 = vmatmul.mubr.bf16.gmra.mrb[0].mxu0 %v782
    %v2450 = vpop.f32.mrb[0].mxu0
    %v2451 = vadd.f32 %v2338, %v2450
    %v2452 = vpop.f32.mrb[0].mxu0
    %v2453 = vadd.f32 %v2340, %v2452
    %v2454 = vpop.f32.mrb[0].mxu0
    %v2455 = vadd.f32 %v2342, %v2454
    %v2456 = vpop.f32.mrb[0].mxu0
    %v2457 = vadd.f32 %v2344, %v2456
    %2458 = vmatprep.mubr.bf16.mxu0 %v790
    %2459 = vmatmul.mubr.bf16.gmra.mrb[0].mxu0 %v789
    %v2460 = vpop.f32.mrb[0].mxu0
    %v2461 = vadd.f32 %v2348, %v2460
    %v2462 = vpop.f32.mrb[0].mxu0
    %v2463 = vadd.f32 %v2350, %v2462
    %v2464 = vpop.f32.mrb[0].mxu0
    %v2465 = vadd.f32 %v2352, %v2464
    %v2466 = vpop.f32.mrb[0].mxu0
    %v2467 = vadd.f32 %v2354, %v2466
    %2468 = vmatprep.mubr.bf16.mxu0 %v797
    %2469 = vmatmul.mubr.bf16.gmra.mrb[0].mxu0 %v796
    %v2470 = vpop.f32.mrb[0].mxu0
    %v2471 = vadd.f32 %v2358, %v2470
    %v2472 = vpop.f32.mrb[0].mxu0
    %v2473 = vadd.f32 %v2360, %v2472
    %v2474 = vpop.f32.mrb[0].mxu0
    %v2475 = vadd.f32 %v2362, %v2474
    %v2476 = vpop.f32.mrb[0].mxu0
    %v2477 = vadd.f32 %v2364, %v2476
    %2478 = vmatprep.mubr.bf16.mxu0 %v804
    %2479 = vmatmul.mubr.bf16.gmra.mrb[0].mxu0 %v803
    %v2480 = vpop.f32.mrb[0].mxu0
    %v2481 = vadd.f32 %v2368, %v2480
    %v2482 = vpop.f32.mrb[0].mxu0
    %v2483 = vadd.f32 %v2370, %v2482
    %v2484 = vpop.f32.mrb[0].mxu0
    %v2485 = vadd.f32 %v2372, %v2484
    %v2486 = vpop.f32.mrb[0].mxu0
    %v2487 = vadd.f32 %v2374, %v2486
    %2488 = vmatprep.mubr.bf16.mxu0 %v811
    %2489 = vmatmul.mubr.bf16.gmra.mrb[0].mxu0 %v810
    %v2490 = vpop.f32.mrb[0].mxu0
    %v2491 = vadd.f32 %v2378, %v2490
    %v2492 = vpop.f32.mrb[0].mxu0
    %v2493 = vadd.f32 %v2380, %v2492
    %v2494 = vpop.f32.mrb[0].mxu0
    %v2495 = vadd.f32 %v2382, %v2494
    %v2496 = vpop.f32.mrb[0].mxu0
    %v2497 = vadd.f32 %v2384, %v2496
    %2498 = vdwg.mxu0
    %2499 = vmatprep.subr.bf16.mxu0 %v1886
    %2500 = vmatpush1.bf16.msra.mxu0 %v1885
    %2501 = vmatprep.subr.bf16.mxu0 0
    %2502 = vmatpush1.bf16.msra.mxu0 0
    %2503 = vmatprep.subr.bf16.mxu0 0
    %2504 = vmatpush1.bf16.msra.mxu0 0
    %2505 = vmatprep.subr.bf16.mxu0 0
    %2506 = vmatpush1.bf16.msra.mxu0 0
    %2507 = vmatprep.subr.bf16.mxu0 0
    %2508 = vmatpush1.bf16.msra.mxu0 0
    %2509 = vmatprep.subr.bf16.mxu0 0
    %2510 = vmatpush1.bf16.msra.mxu0 0
    %2511 = vmatprep.subr.bf16.mxu0 0
    %2512 = vmatpush1.bf16.msra.mxu0 0
    %2513 = vmatprep.subr.bf16.mxu0 0
    %2514 = vmatpush1.bf16.msra.mxu0 0
    %2515 = vmatprep.subr.bf16.mxu0 0
    %2516 = vmatpush1.bf16.msra.mxu0 0
    %2517 = vmatprep.subr.bf16.mxu0 0
    %2518 = vmatpush1.bf16.msra.mxu0 0
    %2519 = vmatprep.subr.bf16.mxu0 0
    %2520 = vmatpush1.bf16.msra.mxu0 0
    %2521 = vmatprep.subr.bf16.mxu0 0
    %2522 = vmatpush1.bf16.msra.mxu0 0
    %2523 = vmatprep.subr.bf16.mxu0 0
    %2524 = vmatpush1.bf16.msra.mxu0 0
    %2525 = vmatprep.subr.bf16.mxu0 0
    %2526 = vmatpush1.bf16.msra.mxu0 0
    %2527 = vmatprep.subr.bf16.mxu0 0
    %2528 = vmatpush1.bf16.msra.mxu0 0
    %2529 = vmatprep.subr.bf16.mxu0 0
    %2530 = vmatpush1.bf16.msra.mxu0 0
    %2531 = vmatprep.mubr.bf16.mxu0 0
    %2532 = vmatmul.mubr.bf16.gmra.mrb[0].mxu0 %v2137
    %v2533 = vpop.f32.mrb[0].mxu0
    %v2534 = vadd.f32 %v2421, %v2533
    %v2535 = vpop.f32.mrb[0].mxu0
    %v2536 = vadd.f32 %v2423, %v2535
    %v2537 = vpop.f32.mrb[0].mxu0
    %v2538 = vadd.f32 %v2425, %v2537
    %v2539 = vpop.f32.mrb[0].mxu0
    %v2540 = vadd.f32 %v2427, %v2539
    %2541 = vmatprep.mubr.bf16.mxu0 0
    %2542 = vmatmul.mubr.bf16.gmra.mrb[0].mxu0 %v2140
    %v2543 = vpop.f32.mrb[0].mxu0
    %v2544 = vadd.f32 %v2431, %v2543
    %v2545 = vpop.f32.mrb[0].mxu0
    %v2546 = vadd.f32 %v2433, %v2545
    %v2547 = vpop.f32.mrb[0].mxu0
    %v2548 = vadd.f32 %v2435, %v2547
    %v2549 = vpop.f32.mrb[0].mxu0
    %v2550 = vadd.f32 %v2437, %v2549
    %2551 = vmatprep.mubr.bf16.mxu0 0
    %2552 = vmatmul.mubr.bf16.gmra.mrb[0].mxu0 %v2143
    %v2553 = vpop.f32.mrb[0].mxu0
    %v2554 = vadd.f32 %v2441, %v2553
    %v2555 = vpop.f32.mrb[0].mxu0
    %v2556 = vadd.f32 %v2443, %v2555
    %v2557 = vpop.f32.mrb[0].mxu0
    %v2558 = vadd.f32 %v2445, %v2557
    %v2559 = vpop.f32.mrb[0].mxu0
    %v2560 = vadd.f32 %v2447, %v2559
    %2561 = vmatprep.mubr.bf16.mxu0 0
    %2562 = vmatmul.mubr.bf16.gmra.mrb[0].mxu0 %v2146
    %v2563 = vpop.f32.mrb[0].mxu0
    %v2564 = vadd.f32 %v2451, %v2563
    %v2565 = vpop.f32.mrb[0].mxu0
    %v2566 = vadd.f32 %v2453, %v2565
    %v2567 = vpop.f32.mrb[0].mxu0
    %v2568 = vadd.f32 %v2455, %v2567
    %v2569 = vpop.f32.mrb[0].mxu0
    %v2570 = vadd.f32 %v2457, %v2569
    %2571 = vmatprep.mubr.bf16.mxu0 0
    %2572 = vmatmul.mubr.bf16.gmra.mrb[0].mxu0 %v2149
    %v2573 = vpop.f32.mrb[0].mxu0
    %v2574 = vadd.f32 %v2461, %v2573
    %v2575 = vpop.f32.mrb[0].mxu0
    %v2576 = vadd.f32 %v2463, %v2575
    %v2577 = vpop.f32.mrb[0].mxu0
    %v2578 = vadd.f32 %v2465, %v2577
    %v2579 = vpop.f32.mrb[0].mxu0
    %v2580 = vadd.f32 %v2467, %v2579
    %2581 = vmatprep.mubr.bf16.mxu0 0
    %2582 = vmatmul.mubr.bf16.gmra.mrb[0].mxu0 %v2152
    %v2583 = vpop.f32.mrb[0].mxu0
    %v2584 = vadd.f32 %v2471, %v2583
    %v2585 = vpop.f32.mrb[0].mxu0
    %v2586 = vadd.f32 %v2473, %v2585
    %v2587 = vpop.f32.mrb[0].mxu0
    %v2588 = vadd.f32 %v2475, %v2587
    %v2589 = vpop.f32.mrb[0].mxu0
    %v2590 = vadd.f32 %v2477, %v2589
    %2591 = vmatprep.mubr.bf16.mxu0 0
    %2592 = vmatmul.mubr.bf16.gmra.mrb[0].mxu0 %v2155
    %v2593 = vpop.f32.mrb[0].mxu0
    %v2594 = vadd.f32 %v2481, %v2593
    %v2595 = vpop.f32.mrb[0].mxu0
    %v2596 = vadd.f32 %v2483, %v2595
    %v2597 = vpop.f32.mrb[0].mxu0
    %v2598 = vadd.f32 %v2485, %v2597
    %v2599 = vpop.f32.mrb[0].mxu0
    %v2600 = vadd.f32 %v2487, %v2599
    %2601 = vmatprep.mubr.bf16.mxu0 0
    %2602 = vmatmul.mubr.bf16.gmra.mrb[0].mxu0 %v2158
    %v2603 = vpop.f32.mrb[0].mxu0
    %v2604 = vadd.f32 %v2491, %v2603
    %v2605 = vpop.f32.mrb[0].mxu0
    %v2606 = vadd.f32 %v2493, %v2605
    %v2607 = vpop.f32.mrb[0].mxu0
    %v2608 = vadd.f32 %v2495, %v2607
    %v2609 = vpop.f32.mrb[0].mxu0
    %v2610 = vadd.f32 %v2497, %v2609
    %2611 = vdwg.mxu0
    %2612 = vmatprep.subr.bf16.mxu0 %v1648
    %2613 = vmatpush1.bf16.msra.mxu0 %v1647
    %2614 = vmatprep.subr.bf16.mxu0 %v1653
    %2615 = vmatpush1.bf16.msra.mxu0 %v1652
    %2616 = vmatprep.subr.bf16.mxu0 %v1658
    %2617 = vmatpush1.bf16.msra.mxu0 %v1657
    %2618 = vmatprep.subr.bf16.mxu0 %v1663
    %2619 = vmatpush1.bf16.msra.mxu0 %v1662
    %2620 = vmatprep.subr.bf16.mxu0 %v1668
    %2621 = vmatpush1.bf16.msra.mxu0 %v1667
    %2622 = vmatprep.subr.bf16.mxu0 %v1673
    %2623 = vmatpush1.bf16.msra.mxu0 %v1672
    %2624 = vmatprep.subr.bf16.mxu0 %v1678
    %2625 = vmatpush1.bf16.msra.mxu0 %v1677
    %2626 = vmatprep.subr.bf16.mxu0 %v1683
    %2627 = vmatpush1.bf16.msra.mxu0 %v1682
    %2628 = vmatprep.subr.bf16.mxu0 %v1688
    %2629 = vmatpush1.bf16.msra.mxu0 %v1687
    %2630 = vmatprep.subr.bf16.mxu0 %v1693
    %2631 = vmatpush1.bf16.msra.mxu0 %v1692
    %2632 = vmatprep.subr.bf16.mxu0 %v1698
    %2633 = vmatpush1.bf16.msra.mxu0 %v1697
    %2634 = vmatprep.subr.bf16.mxu0 %v1703
    %2635 = vmatpush1.bf16.msra.mxu0 %v1702
    %2636 = vmatprep.subr.bf16.mxu0 %v1708
    %2637 = vmatpush1.bf16.msra.mxu0 %v1707
    %2638 = vmatprep.subr.bf16.mxu0 %v1713
    %2639 = vmatpush1.bf16.msra.mxu0 %v1712
    %2640 = vmatprep.subr.bf16.mxu0 %v1718
    %2641 = vmatpush1.bf16.msra.mxu0 %v1717
    %2642 = vmatprep.subr.bf16.mxu0 %v1723
    %2643 = vmatpush1.bf16.msra.mxu0 %v1722
    %2644 = vmatprep.mubr.bf16.mxu0 %v758
    %2645 = vmatmul.mubr.bf16.gmra.mrb[0].mxu0 %v757
    %v2646 = vpop.f32.mrb[0].mxu0
    %v2647 = vadd.f32 %v567, %v2646
    %v2648 = vpop.f32.mrb[0].mxu0
    %v2649 = vadd.f32 %v571, %v2648
    %v2650 = vpop.f32.mrb[0].mxu0
    %v2651 = vadd.f32 %v567, %v2650
    %v2652 = vpop.f32.mrb[0].mxu0
    %v2653 = vadd.f32 %v571, %v2652
    %2654 = vmatprep.mubr.bf16.mxu0 %v765
    %2655 = vmatmul.mubr.bf16.gmra.mrb[0].mxu0 %v764
    %v2656 = vpop.f32.mrb[0].mxu0
    %v2657 = vadd.f32 %v567, %v2656
    %v2658 = vpop.f32.mrb[0].mxu0
    %v2659 = vadd.f32 %v571, %v2658
    %v2660 = vpop.f32.mrb[0].mxu0
    %v2661 = vadd.f32 %v567, %v2660
    %v2662 = vpop.f32.mrb[0].mxu0
    %v2663 = vadd.f32 %v571, %v2662
    %2664 = vmatprep.mubr.bf16.mxu0 %v772
    %2665 = vmatmul.mubr.bf16.gmra.mrb[0].mxu0 %v771
    %v2666 = vpop.f32.mrb[0].mxu0
    %v2667 = vadd.f32 %v567, %v2666
    %v2668 = vpop.f32.mrb[0].mxu0
    %v2669 = vadd.f32 %v571, %v2668
    %v2670 = vpop.f32.mrb[0].mxu0
    %v2671 = vadd.f32 %v567, %v2670
    %v2672 = vpop.f32.mrb[0].mxu0
    %v2673 = vadd.f32 %v571, %v2672
    %2674 = vmatprep.mubr.bf16.mxu0 %v779
    %2675 = vmatmul.mubr.bf16.gmra.mrb[0].mxu0 %v778
    %v2676 = vpop.f32.mrb[0].mxu0
    %v2677 = vadd.f32 %v567, %v2676
    %v2678 = vpop.f32.mrb[0].mxu0
    %v2679 = vadd.f32 %v571, %v2678
    %v2680 = vpop.f32.mrb[0].mxu0
    %v2681 = vadd.f32 %v567, %v2680
    %v2682 = vpop.f32.mrb[0].mxu0
    %v2683 = vadd.f32 %v571, %v2682
    %2684 = vmatprep.mubr.bf16.mxu0 %v786
    %2685 = vmatmul.mubr.bf16.gmra.mrb[0].mxu0 %v785
    %v2686 = vpop.f32.mrb[0].mxu0
    %v2687 = vadd.f32 %v567, %v2686
    %v2688 = vpop.f32.mrb[0].mxu0
    %v2689 = vadd.f32 %v571, %v2688
    %v2690 = vpop.f32.mrb[0].mxu0
    %v2691 = vadd.f32 %v567, %v2690
    %v2692 = vpop.f32.mrb[0].mxu0
    %v2693 = vadd.f32 %v571, %v2692
    %2694 = vmatprep.mubr.bf16.mxu0 %v793
    %2695 = vmatmul.mubr.bf16.gmra.mrb[0].mxu0 %v792
    %v2696 = vpop.f32.mrb[0].mxu0
    %v2697 = vadd.f32 %v567, %v2696
    %v2698 = vpop.f32.mrb[0].mxu0
    %v2699 = vadd.f32 %v571, %v2698
    %v2700 = vpop.f32.mrb[0].mxu0
    %v2701 = vadd.f32 %v567, %v2700
    %v2702 = vpop.f32.mrb[0].mxu0
    %v2703 = vadd.f32 %v571, %v2702
    %2704 = vmatprep.mubr.bf16.mxu0 %v800
    %2705 = vmatmul.mubr.bf16.gmra.mrb[0].mxu0 %v799
    %v2706 = vpop.f32.mrb[0].mxu0
    %v2707 = vadd.f32 %v567, %v2706
    %v2708 = vpop.f32.mrb[0].mxu0
    %v2709 = vadd.f32 %v571, %v2708
    %v2710 = vpop.f32.mrb[0].mxu0
    %v2711 = vadd.f32 %v567, %v2710
    %v2712 = vpop.f32.mrb[0].mxu0
    %v2713 = vadd.f32 %v571, %v2712
    %2714 = vmatprep.mubr.bf16.mxu0 %v807
    %2715 = vmatmul.mubr.bf16.gmra.mrb[0].mxu0 %v806
    %v2716 = vpop.f32.mrb[0].mxu0
    %v2717 = vadd.f32 %v567, %v2716
    %v2718 = vpop.f32.mrb[0].mxu0
    %v2719 = vadd.f32 %v571, %v2718
    %v2720 = vpop.f32.mrb[0].mxu0
    %v2721 = vadd.f32 %v567, %v2720
    %v2722 = vpop.f32.mrb[0].mxu0
    %v2723 = vadd.f32 %v571, %v2722
    %2724 = vdwg.mxu0
    %2725 = vmatprep.subr.bf16.mxu0 %v1728
    %2726 = vmatpush1.bf16.msra.mxu0 %v1727
    %2727 = vmatprep.subr.bf16.mxu0 %v1733
    %2728 = vmatpush1.bf16.msra.mxu0 %v1732
    %2729 = vmatprep.subr.bf16.mxu0 %v1738
    %2730 = vmatpush1.bf16.msra.mxu0 %v1737
    %2731 = vmatprep.subr.bf16.mxu0 %v1743
    %2732 = vmatpush1.bf16.msra.mxu0 %v1742
    %2733 = vmatprep.subr.bf16.mxu0 %v1748
    %2734 = vmatpush1.bf16.msra.mxu0 %v1747
    %2735 = vmatprep.subr.bf16.mxu0 %v1753
    %2736 = vmatpush1.bf16.msra.mxu0 %v1752
    %2737 = vmatprep.subr.bf16.mxu0 %v1758
    %2738 = vmatpush1.bf16.msra.mxu0 %v1757
    %2739 = vmatprep.subr.bf16.mxu0 %v1763
    %2740 = vmatpush1.bf16.msra.mxu0 %v1762
    %2741 = vmatprep.subr.bf16.mxu0 %v1768
    %2742 = vmatpush1.bf16.msra.mxu0 %v1767
    %2743 = vmatprep.subr.bf16.mxu0 %v1773
    %2744 = vmatpush1.bf16.msra.mxu0 %v1772
    %2745 = vmatprep.subr.bf16.mxu0 %v1778
    %2746 = vmatpush1.bf16.msra.mxu0 %v1777
    %2747 = vmatprep.subr.bf16.mxu0 %v1783
    %2748 = vmatpush1.bf16.msra.mxu0 %v1782
    %2749 = vmatprep.subr.bf16.mxu0 %v1788
    %2750 = vmatpush1.bf16.msra.mxu0 %v1787
    %2751 = vmatprep.subr.bf16.mxu0 %v1793
    %2752 = vmatpush1.bf16.msra.mxu0 %v1792
    %2753 = vmatprep.subr.bf16.mxu0 %v1798
    %2754 = vmatpush1.bf16.msra.mxu0 %v1797
    %2755 = vmatprep.subr.bf16.mxu0 %v1803
    %2756 = vmatpush1.bf16.msra.mxu0 %v1802
    %2757 = vmatprep.mubr.bf16.mxu0 %v760
    %2758 = vmatmul.mubr.bf16.gmra.mrb[0].mxu0 %v759
    %v2759 = vpop.f32.mrb[0].mxu0
    %v2760 = vadd.f32 %v2647, %v2759
    %v2761 = vpop.f32.mrb[0].mxu0
    %v2762 = vadd.f32 %v2649, %v2761
    %v2763 = vpop.f32.mrb[0].mxu0
    %v2764 = vadd.f32 %v2651, %v2763
    %v2765 = vpop.f32.mrb[0].mxu0
    %v2766 = vadd.f32 %v2653, %v2765
    %2767 = vmatprep.mubr.bf16.mxu0 %v767
    %2768 = vmatmul.mubr.bf16.gmra.mrb[0].mxu0 %v766
    %v2769 = vpop.f32.mrb[0].mxu0
    %v2770 = vadd.f32 %v2657, %v2769
    %v2771 = vpop.f32.mrb[0].mxu0
    %v2772 = vadd.f32 %v2659, %v2771
    %v2773 = vpop.f32.mrb[0].mxu0
    %v2774 = vadd.f32 %v2661, %v2773
    %v2775 = vpop.f32.mrb[0].mxu0
    %v2776 = vadd.f32 %v2663, %v2775
    %2777 = vmatprep.mubr.bf16.mxu0 %v774
    %2778 = vmatmul.mubr.bf16.gmra.mrb[0].mxu0 %v773
    %v2779 = vpop.f32.mrb[0].mxu0
    %v2780 = vadd.f32 %v2667, %v2779
    %v2781 = vpop.f32.mrb[0].mxu0
    %v2782 = vadd.f32 %v2669, %v2781
    %v2783 = vpop.f32.mrb[0].mxu0
    %v2784 = vadd.f32 %v2671, %v2783
    %v2785 = vpop.f32.mrb[0].mxu0
    %v2786 = vadd.f32 %v2673, %v2785
    %2787 = vmatprep.mubr.bf16.mxu0 %v781
    %2788 = vmatmul.mubr.bf16.gmra.mrb[0].mxu0 %v780
    %v2789 = vpop.f32.mrb[0].mxu0
    %v2790 = vadd.f32 %v2677, %v2789
    %v2791 = vpop.f32.mrb[0].mxu0
    %v2792 = vadd.f32 %v2679, %v2791
    %v2793 = vpop.f32.mrb[0].mxu0
    %v2794 = vadd.f32 %v2681, %v2793
    %v2795 = vpop.f32.mrb[0].mxu0
    %v2796 = vadd.f32 %v2683, %v2795
    %2797 = vmatprep.mubr.bf16.mxu0 %v788
    %2798 = vmatmul.mubr.bf16.gmra.mrb[0].mxu0 %v787
    %v2799 = vpop.f32.mrb[0].mxu0
    %v2800 = vadd.f32 %v2687, %v2799
    %v2801 = vpop.f32.mrb[0].mxu0
    %v2802 = vadd.f32 %v2689, %v2801
    %v2803 = vpop.f32.mrb[0].mxu0
    %v2804 = vadd.f32 %v2691, %v2803
    %v2805 = vpop.f32.mrb[0].mxu0
    %v2806 = vadd.f32 %v2693, %v2805
    %2807 = vmatprep.mubr.bf16.mxu0 %v795
    %2808 = vmatmul.mubr.bf16.gmra.mrb[0].mxu0 %v794
    %v2809 = vpop.f32.mrb[0].mxu0
    %v2810 = vadd.f32 %v2697, %v2809
    %v2811 = vpop.f32.mrb[0].mxu0
    %v2812 = vadd.f32 %v2699, %v2811
    %v2813 = vpop.f32.mrb[0].mxu0
    %v2814 = vadd.f32 %v2701, %v2813
    %v2815 = vpop.f32.mrb[0].mxu0
    %v2816 = vadd.f32 %v2703, %v2815
    %2817 = vmatprep.mubr.bf16.mxu0 %v802
    %2818 = vmatmul.mubr.bf16.gmra.mrb[0].mxu0 %v801
    %v2819 = vpop.f32.mrb[0].mxu0
    %v2820 = vadd.f32 %v2707, %v2819
    %v2821 = vpop.f32.mrb[0].mxu0
    %v2822 = vadd.f32 %v2709, %v2821
    %v2823 = vpop.f32.mrb[0].mxu0
    %v2824 = vadd.f32 %v2711, %v2823
    %v2825 = vpop.f32.mrb[0].mxu0
    %v2826 = vadd.f32 %v2713, %v2825
    %2827 = vmatprep.mubr.bf16.mxu0 %v809
    %2828 = vmatmul.mubr.bf16.gmra.mrb[0].mxu0 %v808
    %v2829 = vpop.f32.mrb[0].mxu0
    %v2830 = vadd.f32 %v2717, %v2829
    %v2831 = vpop.f32.mrb[0].mxu0
    %v2832 = vadd.f32 %v2719, %v2831
    %v2833 = vpop.f32.mrb[0].mxu0
    %v2834 = vadd.f32 %v2721, %v2833
    %v2835 = vpop.f32.mrb[0].mxu0
    %v2836 = vadd.f32 %v2723, %v2835
    %2837 = vdwg.mxu0
    %2838 = vmatprep.subr.bf16.mxu0 %v1808
    %2839 = vmatpush1.bf16.msra.mxu0 %v1807
    %2840 = vmatprep.subr.bf16.mxu0 %v1813
    %2841 = vmatpush1.bf16.msra.mxu0 %v1812
    %2842 = vmatprep.subr.bf16.mxu0 %v1818
    %2843 = vmatpush1.bf16.msra.mxu0 %v1817
    %2844 = vmatprep.subr.bf16.mxu0 %v1823
    %2845 = vmatpush1.bf16.msra.mxu0 %v1822
    %2846 = vmatprep.subr.bf16.mxu0 %v1828
    %2847 = vmatpush1.bf16.msra.mxu0 %v1827
    %2848 = vmatprep.subr.bf16.mxu0 %v1833
    %2849 = vmatpush1.bf16.msra.mxu0 %v1832
    %2850 = vmatprep.subr.bf16.mxu0 %v1838
    %2851 = vmatpush1.bf16.msra.mxu0 %v1837
    %2852 = vmatprep.subr.bf16.mxu0 %v1843
    %2853 = vmatpush1.bf16.msra.mxu0 %v1842
    %2854 = vmatprep.subr.bf16.mxu0 %v1848
    %2855 = vmatpush1.bf16.msra.mxu0 %v1847
    %2856 = vmatprep.subr.bf16.mxu0 %v1853
    %2857 = vmatpush1.bf16.msra.mxu0 %v1852
    %2858 = vmatprep.subr.bf16.mxu0 %v1858
    %2859 = vmatpush1.bf16.msra.mxu0 %v1857
    %2860 = vmatprep.subr.bf16.mxu0 %v1863
    %2861 = vmatpush1.bf16.msra.mxu0 %v1862
    %2862 = vmatprep.subr.bf16.mxu0 %v1868
    %2863 = vmatpush1.bf16.msra.mxu0 %v1867
    %2864 = vmatprep.subr.bf16.mxu0 %v1873
    %2865 = vmatpush1.bf16.msra.mxu0 %v1872
    %2866 = vmatprep.subr.bf16.mxu0 %v1878
    %2867 = vmatpush1.bf16.msra.mxu0 %v1877
    %2868 = vmatprep.subr.bf16.mxu0 %v1883
    %2869 = vmatpush1.bf16.msra.mxu0 %v1882
    %2870 = vmatprep.mubr.bf16.mxu0 %v762
    %2871 = vmatmul.mubr.bf16.gmra.mrb[0].mxu0 %v761
    %v2872 = vpop.f32.mrb[0].mxu0
    %v2873 = vadd.f32 %v2760, %v2872
    %v2874 = vpop.f32.mrb[0].mxu0
    %v2875 = vadd.f32 %v2762, %v2874
    %v2876 = vpop.f32.mrb[0].mxu0
    %v2877 = vadd.f32 %v2764, %v2876
    %v2878 = vpop.f32.mrb[0].mxu0
    %v2879 = vadd.f32 %v2766, %v2878
    %2880 = vmatprep.mubr.bf16.mxu0 %v769
    %2881 = vmatmul.mubr.bf16.gmra.mrb[0].mxu0 %v768
    %v2882 = vpop.f32.mrb[0].mxu0
    %v2883 = vadd.f32 %v2770, %v2882
    %v2884 = vpop.f32.mrb[0].mxu0
    %v2885 = vadd.f32 %v2772, %v2884
    %v2886 = vpop.f32.mrb[0].mxu0
    %v2887 = vadd.f32 %v2774, %v2886
    %v2888 = vpop.f32.mrb[0].mxu0
    %v2889 = vadd.f32 %v2776, %v2888
    %2890 = vmatprep.mubr.bf16.mxu0 %v776
    %2891 = vmatmul.mubr.bf16.gmra.mrb[0].mxu0 %v775
    %v2892 = vpop.f32.mrb[0].mxu0
    %v2893 = vadd.f32 %v2780, %v2892
    %v2894 = vpop.f32.mrb[0].mxu0
    %v2895 = vadd.f32 %v2782, %v2894
    %v2896 = vpop.f32.mrb[0].mxu0
    %v2897 = vadd.f32 %v2784, %v2896
    %v2898 = vpop.f32.mrb[0].mxu0
    %v2899 = vadd.f32 %v2786, %v2898
    %2900 = vmatprep.mubr.bf16.mxu0 %v783
    %2901 = vmatmul.mubr.bf16.gmra.mrb[0].mxu0 %v782
    %v2902 = vpop.f32.mrb[0].mxu0
    %v2903 = vadd.f32 %v2790, %v2902
    %v2904 = vpop.f32.mrb[0].mxu0
    %v2905 = vadd.f32 %v2792, %v2904
    %v2906 = vpop.f32.mrb[0].mxu0
    %v2907 = vadd.f32 %v2794, %v2906
    %v2908 = vpop.f32.mrb[0].mxu0
    %v2909 = vadd.f32 %v2796, %v2908
    %2910 = vmatprep.mubr.bf16.mxu0 %v790
    %2911 = vmatmul.mubr.bf16.gmra.mrb[0].mxu0 %v789
    %v2912 = vpop.f32.mrb[0].mxu0
    %v2913 = vadd.f32 %v2800, %v2912
    %v2914 = vpop.f32.mrb[0].mxu0
    %v2915 = vadd.f32 %v2802, %v2914
    %v2916 = vpop.f32.mrb[0].mxu0
    %v2917 = vadd.f32 %v2804, %v2916
    %v2918 = vpop.f32.mrb[0].mxu0
    %v2919 = vadd.f32 %v2806, %v2918
    %2920 = vmatprep.mubr.bf16.mxu0 %v797
    %2921 = vmatmul.mubr.bf16.gmra.mrb[0].mxu0 %v796
    %v2922 = vpop.f32.mrb[0].mxu0
    %v2923 = vadd.f32 %v2810, %v2922
    %v2924 = vpop.f32.mrb[0].mxu0
    %v2925 = vadd.f32 %v2812, %v2924
    %v2926 = vpop.f32.mrb[0].mxu0
    %v2927 = vadd.f32 %v2814, %v2926
    %v2928 = vpop.f32.mrb[0].mxu0
    %v2929 = vadd.f32 %v2816, %v2928
    %2930 = vmatprep.mubr.bf16.mxu0 %v804
    %2931 = vmatmul.mubr.bf16.gmra.mrb[0].mxu0 %v803
    %v2932 = vpop.f32.mrb[0].mxu0
    %v2933 = vadd.f32 %v2820, %v2932
    %v2934 = vpop.f32.mrb[0].mxu0
    %v2935 = vadd.f32 %v2822, %v2934
    %v2936 = vpop.f32.mrb[0].mxu0
    %v2937 = vadd.f32 %v2824, %v2936
    %v2938 = vpop.f32.mrb[0].mxu0
    %v2939 = vadd.f32 %v2826, %v2938
    %2940 = vmatprep.mubr.bf16.mxu0 %v811
    %2941 = vmatmul.mubr.bf16.gmra.mrb[0].mxu0 %v810
    %v2942 = vpop.f32.mrb[0].mxu0
    %v2943 = vadd.f32 %v2830, %v2942
    %v2944 = vpop.f32.mrb[0].mxu0
    %v2945 = vadd.f32 %v2832, %v2944
    %v2946 = vpop.f32.mrb[0].mxu0
    %v2947 = vadd.f32 %v2834, %v2946
    %v2948 = vpop.f32.mrb[0].mxu0
    %v2949 = vadd.f32 %v2836, %v2948
    %2950 = vdwg.mxu0
    %2951 = vmatprep.subr.bf16.mxu0 %v1888
    %2952 = vmatpush1.bf16.msra.mxu0 %v1887
    %2953 = vmatprep.subr.bf16.mxu0 0
    %2954 = vmatpush1.bf16.msra.mxu0 0
    %2955 = vmatprep.subr.bf16.mxu0 0
    %2956 = vmatpush1.bf16.msra.mxu0 0
    %2957 = vmatprep.subr.bf16.mxu0 0
    %2958 = vmatpush1.bf16.msra.mxu0 0
    %2959 = vmatprep.subr.bf16.mxu0 0
    %2960 = vmatpush1.bf16.msra.mxu0 0
    %2961 = vmatprep.subr.bf16.mxu0 0
    %2962 = vmatpush1.bf16.msra.mxu0 0
    %2963 = vmatprep.subr.bf16.mxu0 0
    %2964 = vmatpush1.bf16.msra.mxu0 0
    %2965 = vmatprep.subr.bf16.mxu0 0
    %2966 = vmatpush1.bf16.msra.mxu0 0
    %2967 = vmatprep.subr.bf16.mxu0 0
    %2968 = vmatpush1.bf16.msra.mxu0 0
    %2969 = vmatprep.subr.bf16.mxu0 0
    %2970 = vmatpush1.bf16.msra.mxu0 0
    %2971 = vmatprep.subr.bf16.mxu0 0
    %2972 = vmatpush1.bf16.msra.mxu0 0
    %2973 = vmatprep.subr.bf16.mxu0 0
    %2974 = vmatpush1.bf16.msra.mxu0 0
    %2975 = vmatprep.subr.bf16.mxu0 0
    %2976 = vmatpush1.bf16.msra.mxu0 0
    %2977 = vmatprep.subr.bf16.mxu0 0
    %2978 = vmatpush1.bf16.msra.mxu0 0
    %2979 = vmatprep.subr.bf16.mxu0 0
    %2980 = vmatpush1.bf16.msra.mxu0 0
    %2981 = vmatprep.subr.bf16.mxu0 0
    %2982 = vmatpush1.bf16.msra.mxu0 0
    %2983 = vmatprep.mubr.bf16.mxu0 0
    %2984 = vmatmul.mubr.bf16.gmra.mrb[0].mxu0 %v2137
    %v2985 = vpop.f32.mrb[0].mxu0
    %v2986 = vadd.f32 %v2873, %v2985
    %v2987 = vpop.f32.mrb[0].mxu0
    %v2988 = vadd.f32 %v2875, %v2987
    %v2989 = vpop.f32.mrb[0].mxu0
    %v2990 = vadd.f32 %v2877, %v2989
    %v2991 = vpop.f32.mrb[0].mxu0
    %v2992 = vadd.f32 %v2879, %v2991
    %2993 = vmatprep.mubr.bf16.mxu0 0
    %2994 = vmatmul.mubr.bf16.gmra.mrb[0].mxu0 %v2140
    %v2995 = vpop.f32.mrb[0].mxu0
    %v2996 = vadd.f32 %v2883, %v2995
    %v2997 = vpop.f32.mrb[0].mxu0
    %v2998 = vadd.f32 %v2885, %v2997
    %v2999 = vpop.f32.mrb[0].mxu0
    %v3000 = vadd.f32 %v2887, %v2999
    %v3001 = vpop.f32.mrb[0].mxu0
    %v3002 = vadd.f32 %v2889, %v3001
    %3003 = vmatprep.mubr.bf16.mxu0 0
    %3004 = vmatmul.mubr.bf16.gmra.mrb[0].mxu0 %v2143
    %v3005 = vpop.f32.mrb[0].mxu0
    %v3006 = vadd.f32 %v2893, %v3005
    %v3007 = vpop.f32.mrb[0].mxu0
    %v3008 = vadd.f32 %v2895, %v3007
    %v3009 = vpop.f32.mrb[0].mxu0
    %v3010 = vadd.f32 %v2897, %v3009
    %v3011 = vpop.f32.mrb[0].mxu0
    %v3012 = vadd.f32 %v2899, %v3011
    %3013 = vmatprep.mubr.bf16.mxu0 0
    %3014 = vmatmul.mubr.bf16.gmra.mrb[0].mxu0 %v2146
    %v3015 = vpop.f32.mrb[0].mxu0
    %v3016 = vadd.f32 %v2903, %v3015
    %v3017 = vpop.f32.mrb[0].mxu0
    %v3018 = vadd.f32 %v2905, %v3017
    %v3019 = vpop.f32.mrb[0].mxu0
    %v3020 = vadd.f32 %v2907, %v3019
    %v3021 = vpop.f32.mrb[0].mxu0
    %v3022 = vadd.f32 %v2909, %v3021
    %3023 = vmatprep.mubr.bf16.mxu0 0
    %3024 = vmatmul.mubr.bf16.gmra.mrb[0].mxu0 %v2149
    %v3025 = vpop.f32.mrb[0].mxu0
    %v3026 = vadd.f32 %v2913, %v3025
    %v3027 = vpop.f32.mrb[0].mxu0
    %v3028 = vadd.f32 %v2915, %v3027
    %v3029 = vpop.f32.mrb[0].mxu0
    %v3030 = vadd.f32 %v2917, %v3029
    %v3031 = vpop.f32.mrb[0].mxu0
    %v3032 = vadd.f32 %v2919, %v3031
    %3033 = vmatprep.mubr.bf16.mxu0 0
    %3034 = vmatmul.mubr.bf16.gmra.mrb[0].mxu0 %v2152
    %v3035 = vpop.f32.mrb[0].mxu0
    %v3036 = vadd.f32 %v2923, %v3035
    %v3037 = vpop.f32.mrb[0].mxu0
    %v3038 = vadd.f32 %v2925, %v3037
    %v3039 = vpop.f32.mrb[0].mxu0
    %v3040 = vadd.f32 %v2927, %v3039
    %v3041 = vpop.f32.mrb[0].mxu0
    %v3042 = vadd.f32 %v2929, %v3041
    %3043 = vmatprep.mubr.bf16.mxu0 0
    %3044 = vmatmul.mubr.bf16.gmra.mrb[0].mxu0 %v2155
    %v3045 = vpop.f32.mrb[0].mxu0
    %v3046 = vadd.f32 %v2933, %v3045
    %v3047 = vpop.f32.mrb[0].mxu0
    %v3048 = vadd.f32 %v2935, %v3047
    %v3049 = vpop.f32.mrb[0].mxu0
    %v3050 = vadd.f32 %v2937, %v3049
    %v3051 = vpop.f32.mrb[0].mxu0
    %v3052 = vadd.f32 %v2939, %v3051
    %3053 = vmatprep.mubr.bf16.mxu0 0
    %3054 = vmatmul.mubr.bf16.gmra.mrb[0].mxu0 %v2158
    %v3055 = vpop.f32.mrb[0].mxu0
    %v3056 = vadd.f32 %v2943, %v3055
    %v3057 = vpop.f32.mrb[0].mxu0
    %v3058 = vadd.f32 %v2945, %v3057
    %v3059 = vpop.f32.mrb[0].mxu0
    %v3060 = vadd.f32 %v2947, %v3059
    %v3061 = vpop.f32.mrb[0].mxu0
    %v3062 = vadd.f32 %v2949, %v3061
    %3063 = vdwg.mxu0
    %3064 = vmatprep.subr.bf16.mxu0 0
    %3065 = vmatpush1.bf16.msra.mxu0 %v1649
    %3066 = vmatprep.subr.bf16.mxu0 0
    %3067 = vmatpush1.bf16.msra.mxu0 %v1654
    %3068 = vmatprep.subr.bf16.mxu0 0
    %3069 = vmatpush1.bf16.msra.mxu0 %v1659
    %3070 = vmatprep.subr.bf16.mxu0 0
    %3071 = vmatpush1.bf16.msra.mxu0 %v1664
    %3072 = vmatprep.subr.bf16.mxu0 0
    %3073 = vmatpush1.bf16.msra.mxu0 %v1669
    %3074 = vmatprep.subr.bf16.mxu0 0
    %3075 = vmatpush1.bf16.msra.mxu0 %v1674
    %3076 = vmatprep.subr.bf16.mxu0 0
    %3077 = vmatpush1.bf16.msra.mxu0 %v1679
    %3078 = vmatprep.subr.bf16.mxu0 0
    %3079 = vmatpush1.bf16.msra.mxu0 %v1684
    %3080 = vmatprep.subr.bf16.mxu0 0
    %3081 = vmatpush1.bf16.msra.mxu0 %v1689
    %3082 = vmatprep.subr.bf16.mxu0 0
    %3083 = vmatpush1.bf16.msra.mxu0 %v1694
    %3084 = vmatprep.subr.bf16.mxu0 0
    %3085 = vmatpush1.bf16.msra.mxu0 %v1699
    %3086 = vmatprep.subr.bf16.mxu0 0
    %3087 = vmatpush1.bf16.msra.mxu0 %v1704
    %3088 = vmatprep.subr.bf16.mxu0 0
    %3089 = vmatpush1.bf16.msra.mxu0 %v1709
    %3090 = vmatprep.subr.bf16.mxu0 0
    %3091 = vmatpush1.bf16.msra.mxu0 %v1714
    %3092 = vmatprep.subr.bf16.mxu0 0
    %3093 = vmatpush1.bf16.msra.mxu0 %v1719
    %3094 = vmatprep.subr.bf16.mxu0 0
    %3095 = vmatpush1.bf16.msra.mxu0 %v1724
    %3096 = vmatprep.mubr.bf16.mxu0 %v758
    %3097 = vmatmul.mubr.bf16.gmra.mrb[0].mxu0 %v757
    %v3098 = vpop.f32.mrb[0].mxu0
    %v3099 = vadd.f32 %v575, %v3098
    %v3100 = vpop.f32.mrb[0].mxu0
    %v3101 = vpop.f32.mrb[0].mxu0
    %v3102 = vadd.f32 %v575, %v3101
    %v3103 = vpop.f32.mrb[0].mxu0
    %3104 = vmatprep.mubr.bf16.mxu0 %v765
    %3105 = vmatmul.mubr.bf16.gmra.mrb[0].mxu0 %v764
    %v3106 = vpop.f32.mrb[0].mxu0
    %v3107 = vadd.f32 %v575, %v3106
    %v3108 = vpop.f32.mrb[0].mxu0
    %v3109 = vpop.f32.mrb[0].mxu0
    %v3110 = vadd.f32 %v575, %v3109
    %v3111 = vpop.f32.mrb[0].mxu0
    %3112 = vmatprep.mubr.bf16.mxu0 %v772
    %3113 = vmatmul.mubr.bf16.gmra.mrb[0].mxu0 %v771
    %v3114 = vpop.f32.mrb[0].mxu0
    %v3115 = vadd.f32 %v575, %v3114
    %v3116 = vpop.f32.mrb[0].mxu0
    %v3117 = vpop.f32.mrb[0].mxu0
    %v3118 = vadd.f32 %v575, %v3117
    %v3119 = vpop.f32.mrb[0].mxu0
    %3120 = vmatprep.mubr.bf16.mxu0 %v779
    %3121 = vmatmul.mubr.bf16.gmra.mrb[0].mxu0 %v778
    %v3122 = vpop.f32.mrb[0].mxu0
    %v3123 = vadd.f32 %v575, %v3122
    %v3124 = vpop.f32.mrb[0].mxu0
    %v3125 = vpop.f32.mrb[0].mxu0
    %v3126 = vadd.f32 %v575, %v3125
    %v3127 = vpop.f32.mrb[0].mxu0
    %3128 = vmatprep.mubr.bf16.mxu0 %v786
    %3129 = vmatmul.mubr.bf16.gmra.mrb[0].mxu0 %v785
    %v3130 = vpop.f32.mrb[0].mxu0
    %v3131 = vadd.f32 %v575, %v3130
    %v3132 = vpop.f32.mrb[0].mxu0
    %v3133 = vpop.f32.mrb[0].mxu0
    %v3134 = vadd.f32 %v575, %v3133
    %v3135 = vpop.f32.mrb[0].mxu0
    %3136 = vmatprep.mubr.bf16.mxu0 %v793
    %3137 = vmatmul.mubr.bf16.gmra.mrb[0].mxu0 %v792
    %v3138 = vpop.f32.mrb[0].mxu0
    %v3139 = vadd.f32 %v575, %v3138
    %v3140 = vpop.f32.mrb[0].mxu0
    %v3141 = vpop.f32.mrb[0].mxu0
    %v3142 = vadd.f32 %v575, %v3141
    %v3143 = vpop.f32.mrb[0].mxu0
    %3144 = vmatprep.mubr.bf16.mxu0 %v800
    %3145 = vmatmul.mubr.bf16.gmra.mrb[0].mxu0 %v799
    %v3146 = vpop.f32.mrb[0].mxu0
    %v3147 = vadd.f32 %v575, %v3146
    %v3148 = vpop.f32.mrb[0].mxu0
    %v3149 = vpop.f32.mrb[0].mxu0
    %v3150 = vadd.f32 %v575, %v3149
    %v3151 = vpop.f32.mrb[0].mxu0
    %3152 = vmatprep.mubr.bf16.mxu0 %v807
    %3153 = vmatmul.mubr.bf16.gmra.mrb[0].mxu0 %v806
    %v3154 = vpop.f32.mrb[0].mxu0
    %v3155 = vadd.f32 %v575, %v3154
    %v3156 = vpop.f32.mrb[0].mxu0
    %v3157 = vpop.f32.mrb[0].mxu0
    %v3158 = vadd.f32 %v575, %v3157
    %v3159 = vpop.f32.mrb[0].mxu0
    %3160 = vdwg.mxu0
    %3161 = vmatprep.subr.bf16.mxu0 0
    %3162 = vmatpush1.bf16.msra.mxu0 %v1729
    %3163 = vmatprep.subr.bf16.mxu0 0
    %3164 = vmatpush1.bf16.msra.mxu0 %v1734
    %3165 = vmatprep.subr.bf16.mxu0 0
    %3166 = vmatpush1.bf16.msra.mxu0 %v1739
    %3167 = vmatprep.subr.bf16.mxu0 0
    %3168 = vmatpush1.bf16.msra.mxu0 %v1744
    %3169 = vmatprep.subr.bf16.mxu0 0
    %3170 = vmatpush1.bf16.msra.mxu0 %v1749
    %3171 = vmatprep.subr.bf16.mxu0 0
    %3172 = vmatpush1.bf16.msra.mxu0 %v1754
    %3173 = vmatprep.subr.bf16.mxu0 0
    %3174 = vmatpush1.bf16.msra.mxu0 %v1759
    %3175 = vmatprep.subr.bf16.mxu0 0
    %3176 = vmatpush1.bf16.msra.mxu0 %v1764
    %3177 = vmatprep.subr.bf16.mxu0 0
    %3178 = vmatpush1.bf16.msra.mxu0 %v1769
    %3179 = vmatprep.subr.bf16.mxu0 0
    %3180 = vmatpush1.bf16.msra.mxu0 %v1774
    %3181 = vmatprep.subr.bf16.mxu0 0
    %3182 = vmatpush1.bf16.msra.mxu0 %v1779
    %3183 = vmatprep.subr.bf16.mxu0 0
    %3184 = vmatpush1.bf16.msra.mxu0 %v1784
    %3185 = vmatprep.subr.bf16.mxu0 0
    %3186 = vmatpush1.bf16.msra.mxu0 %v1789
    %3187 = vmatprep.subr.bf16.mxu0 0
    %3188 = vmatpush1.bf16.msra.mxu0 %v1794
    %3189 = vmatprep.subr.bf16.mxu0 0
    %3190 = vmatpush1.bf16.msra.mxu0 %v1799
    %3191 = vmatprep.subr.bf16.mxu0 0
    %3192 = vmatpush1.bf16.msra.mxu0 %v1804
    %3193 = vmatprep.mubr.bf16.mxu0 %v760
    %3194 = vmatmul.mubr.bf16.gmra.mrb[0].mxu0 %v759
    %v3195 = vpop.f32.mrb[0].mxu0
    %v3196 = vadd.f32 %v3099, %v3195
    %v3197 = vpop.f32.mrb[0].mxu0
    %v3198 = vpop.f32.mrb[0].mxu0
    %v3199 = vadd.f32 %v3102, %v3198
    %v3200 = vpop.f32.mrb[0].mxu0
    %3201 = vmatprep.mubr.bf16.mxu0 %v767
    %3202 = vmatmul.mubr.bf16.gmra.mrb[0].mxu0 %v766
    %v3203 = vpop.f32.mrb[0].mxu0
    %v3204 = vadd.f32 %v3107, %v3203
    %v3205 = vpop.f32.mrb[0].mxu0
    %v3206 = vpop.f32.mrb[0].mxu0
    %v3207 = vadd.f32 %v3110, %v3206
    %v3208 = vpop.f32.mrb[0].mxu0
    %3209 = vmatprep.mubr.bf16.mxu0 %v774
    %3210 = vmatmul.mubr.bf16.gmra.mrb[0].mxu0 %v773
    %v3211 = vpop.f32.mrb[0].mxu0
    %v3212 = vadd.f32 %v3115, %v3211
    %v3213 = vpop.f32.mrb[0].mxu0
    %v3214 = vpop.f32.mrb[0].mxu0
    %v3215 = vadd.f32 %v3118, %v3214
    %v3216 = vpop.f32.mrb[0].mxu0
    %3217 = vmatprep.mubr.bf16.mxu0 %v781
    %3218 = vmatmul.mubr.bf16.gmra.mrb[0].mxu0 %v780
    %v3219 = vpop.f32.mrb[0].mxu0
    %v3220 = vadd.f32 %v3123, %v3219
    %v3221 = vpop.f32.mrb[0].mxu0
    %v3222 = vpop.f32.mrb[0].mxu0
    %v3223 = vadd.f32 %v3126, %v3222
    %v3224 = vpop.f32.mrb[0].mxu0
    %3225 = vmatprep.mubr.bf16.mxu0 %v788
    %3226 = vmatmul.mubr.bf16.gmra.mrb[0].mxu0 %v787
    %v3227 = vpop.f32.mrb[0].mxu0
    %v3228 = vadd.f32 %v3131, %v3227
    %v3229 = vpop.f32.mrb[0].mxu0
    %v3230 = vpop.f32.mrb[0].mxu0
    %v3231 = vadd.f32 %v3134, %v3230
    %v3232 = vpop.f32.mrb[0].mxu0
    %3233 = vmatprep.mubr.bf16.mxu0 %v795
    %3234 = vmatmul.mubr.bf16.gmra.mrb[0].mxu0 %v794
    %v3235 = vpop.f32.mrb[0].mxu0
    %v3236 = vadd.f32 %v3139, %v3235
    %v3237 = vpop.f32.mrb[0].mxu0
    %v3238 = vpop.f32.mrb[0].mxu0
    %v3239 = vadd.f32 %v3142, %v3238
    %v3240 = vpop.f32.mrb[0].mxu0
    %3241 = vmatprep.mubr.bf16.mxu0 %v802
    %3242 = vmatmul.mubr.bf16.gmra.mrb[0].mxu0 %v801
    %v3243 = vpop.f32.mrb[0].mxu0
    %v3244 = vadd.f32 %v3147, %v3243
    %v3245 = vpop.f32.mrb[0].mxu0
    %v3246 = vpop.f32.mrb[0].mxu0
    %v3247 = vadd.f32 %v3150, %v3246
    %v3248 = vpop.f32.mrb[0].mxu0
    %3249 = vmatprep.mubr.bf16.mxu0 %v809
    %3250 = vmatmul.mubr.bf16.gmra.mrb[0].mxu0 %v808
    %v3251 = vpop.f32.mrb[0].mxu0
    %v3252 = vadd.f32 %v3155, %v3251
    %v3253 = vpop.f32.mrb[0].mxu0
    %v3254 = vpop.f32.mrb[0].mxu0
    %v3255 = vadd.f32 %v3158, %v3254
    %v3256 = vpop.f32.mrb[0].mxu0
    %3257 = vdwg.mxu0
    %3258 = vmatprep.subr.bf16.mxu0 0
    %3259 = vmatpush1.bf16.msra.mxu0 %v1809
    %3260 = vmatprep.subr.bf16.mxu0 0
    %3261 = vmatpush1.bf16.msra.mxu0 %v1814
    %3262 = vmatprep.subr.bf16.mxu0 0
    %3263 = vmatpush1.bf16.msra.mxu0 %v1819
    %3264 = vmatprep.subr.bf16.mxu0 0
    %3265 = vmatpush1.bf16.msra.mxu0 %v1824
    %3266 = vmatprep.subr.bf16.mxu0 0
    %3267 = vmatpush1.bf16.msra.mxu0 %v1829
    %3268 = vmatprep.subr.bf16.mxu0 0
    %3269 = vmatpush1.bf16.msra.mxu0 %v1834
    %3270 = vmatprep.subr.bf16.mxu0 0
    %3271 = vmatpush1.bf16.msra.mxu0 %v1839
    %3272 = vmatprep.subr.bf16.mxu0 0
    %3273 = vmatpush1.bf16.msra.mxu0 %v1844
    %3274 = vmatprep.subr.bf16.mxu0 0
    %3275 = vmatpush1.bf16.msra.mxu0 %v1849
    %3276 = vmatprep.subr.bf16.mxu0 0
    %3277 = vmatpush1.bf16.msra.mxu0 %v1854
    %3278 = vmatprep.subr.bf16.mxu0 0
    %3279 = vmatpush1.bf16.msra.mxu0 %v1859
    %3280 = vmatprep.subr.bf16.mxu0 0
    %3281 = vmatpush1.bf16.msra.mxu0 %v1864
    %3282 = vmatprep.subr.bf16.mxu0 0
    %3283 = vmatpush1.bf16.msra.mxu0 %v1869
    %3284 = vmatprep.subr.bf16.mxu0 0
    %3285 = vmatpush1.bf16.msra.mxu0 %v1874
    %3286 = vmatprep.subr.bf16.mxu0 0
    %3287 = vmatpush1.bf16.msra.mxu0 %v1879
    %3288 = vmatprep.subr.bf16.mxu0 0
    %3289 = vmatpush1.bf16.msra.mxu0 %v1884
    %3290 = vmatprep.mubr.bf16.mxu0 %v762
    %3291 = vmatmul.mubr.bf16.gmra.mrb[0].mxu0 %v761
    %v3292 = vpop.f32.mrb[0].mxu0
    %v3293 = vadd.f32 %v3196, %v3292
    %v3294 = vpop.f32.mrb[0].mxu0
    %v3295 = vpop.f32.mrb[0].mxu0
    %v3296 = vadd.f32 %v3199, %v3295
    %v3297 = vpop.f32.mrb[0].mxu0
    %3298 = vmatprep.mubr.bf16.mxu0 %v769
    %3299 = vmatmul.mubr.bf16.gmra.mrb[0].mxu0 %v768
    %v3300 = vpop.f32.mrb[0].mxu0
    %v3301 = vadd.f32 %v3204, %v3300
    %v3302 = vpop.f32.mrb[0].mxu0
    %v3303 = vpop.f32.mrb[0].mxu0
    %v3304 = vadd.f32 %v3207, %v3303
    %v3305 = vpop.f32.mrb[0].mxu0
    %3306 = vmatprep.mubr.bf16.mxu0 %v776
    %3307 = vmatmul.mubr.bf16.gmra.mrb[0].mxu0 %v775
    %v3308 = vpop.f32.mrb[0].mxu0
    %v3309 = vadd.f32 %v3212, %v3308
    %v3310 = vpop.f32.mrb[0].mxu0
    %v3311 = vpop.f32.mrb[0].mxu0
    %v3312 = vadd.f32 %v3215, %v3311
    %v3313 = vpop.f32.mrb[0].mxu0
    %3314 = vmatprep.mubr.bf16.mxu0 %v783
    %3315 = vmatmul.mubr.bf16.gmra.mrb[0].mxu0 %v782
    %v3316 = vpop.f32.mrb[0].mxu0
    %v3317 = vadd.f32 %v3220, %v3316
    %v3318 = vpop.f32.mrb[0].mxu0
    %v3319 = vpop.f32.mrb[0].mxu0
    %v3320 = vadd.f32 %v3223, %v3319
    %v3321 = vpop.f32.mrb[0].mxu0
    %3322 = vmatprep.mubr.bf16.mxu0 %v790
    %3323 = vmatmul.mubr.bf16.gmra.mrb[0].mxu0 %v789
    %v3324 = vpop.f32.mrb[0].mxu0
    %v3325 = vadd.f32 %v3228, %v3324
    %v3326 = vpop.f32.mrb[0].mxu0
    %v3327 = vpop.f32.mrb[0].mxu0
    %v3328 = vadd.f32 %v3231, %v3327
    %v3329 = vpop.f32.mrb[0].mxu0
    %3330 = vmatprep.mubr.bf16.mxu0 %v797
    %3331 = vmatmul.mubr.bf16.gmra.mrb[0].mxu0 %v796
    %v3332 = vpop.f32.mrb[0].mxu0
    %v3333 = vadd.f32 %v3236, %v3332
    %v3334 = vpop.f32.mrb[0].mxu0
    %v3335 = vpop.f32.mrb[0].mxu0
    %v3336 = vadd.f32 %v3239, %v3335
    %v3337 = vpop.f32.mrb[0].mxu0
    %3338 = vmatprep.mubr.bf16.mxu0 %v804
    %3339 = vmatmul.mubr.bf16.gmra.mrb[0].mxu0 %v803
    %v3340 = vpop.f32.mrb[0].mxu0
    %v3341 = vadd.f32 %v3244, %v3340
    %v3342 = vpop.f32.mrb[0].mxu0
    %v3343 = vpop.f32.mrb[0].mxu0
    %v3344 = vadd.f32 %v3247, %v3343
    %v3345 = vpop.f32.mrb[0].mxu0
    %3346 = vmatprep.mubr.bf16.mxu0 %v811
    %3347 = vmatmul.mubr.bf16.gmra.mrb[0].mxu0 %v810
    %v3348 = vpop.f32.mrb[0].mxu0
    %v3349 = vadd.f32 %v3252, %v3348
    %v3350 = vpop.f32.mrb[0].mxu0
    %v3351 = vpop.f32.mrb[0].mxu0
    %v3352 = vadd.f32 %v3255, %v3351
    %v3353 = vpop.f32.mrb[0].mxu0
    %3354 = vdwg.mxu0
    %3355 = vmatprep.subr.bf16.mxu0 0
    %3356 = vmatpush1.bf16.msra.mxu0 %v1889
    %3357 = vmatprep.subr.bf16.mxu0 0
    %3358 = vmatpush1.bf16.msra.mxu0 0
    %3359 = vmatprep.subr.bf16.mxu0 0
    %3360 = vmatpush1.bf16.msra.mxu0 0
    %3361 = vmatprep.subr.bf16.mxu0 0
    %3362 = vmatpush1.bf16.msra.mxu0 0
    %3363 = vmatprep.subr.bf16.mxu0 0
    %3364 = vmatpush1.bf16.msra.mxu0 0
    %3365 = vmatprep.subr.bf16.mxu0 0
    %3366 = vmatpush1.bf16.msra.mxu0 0
    %3367 = vmatprep.subr.bf16.mxu0 0
    %3368 = vmatpush1.bf16.msra.mxu0 0
    %3369 = vmatprep.subr.bf16.mxu0 0
    %3370 = vmatpush1.bf16.msra.mxu0 0
    %3371 = vmatprep.subr.bf16.mxu0 0
    %3372 = vmatpush1.bf16.msra.mxu0 0
    %3373 = vmatprep.subr.bf16.mxu0 0
    %3374 = vmatpush1.bf16.msra.mxu0 0
    %3375 = vmatprep.subr.bf16.mxu0 0
    %3376 = vmatpush1.bf16.msra.mxu0 0
    %3377 = vmatprep.subr.bf16.mxu0 0
    %3378 = vmatpush1.bf16.msra.mxu0 0
    %3379 = vmatprep.subr.bf16.mxu0 0
    %3380 = vmatpush1.bf16.msra.mxu0 0
    %3381 = vmatprep.subr.bf16.mxu0 0
    %3382 = vmatpush1.bf16.msra.mxu0 0
    %3383 = vmatprep.subr.bf16.mxu0 0
    %3384 = vmatpush1.bf16.msra.mxu0 0
    %3385 = vmatprep.subr.bf16.mxu0 0
    %3386 = vmatpush1.bf16.msra.mxu0 0
    %3387 = vmatprep.mubr.bf16.mxu0 0
    %3388 = vmatmul.mubr.bf16.gmra.mrb[0].mxu0 %v2137
    %v3389 = vpop.f32.mrb[0].mxu0
    %v3390 = vadd.f32 %v3293, %v3389
    %v3391 = vpop.f32.mrb[0].mxu0
    %v3392 = vpop.f32.mrb[0].mxu0
    %v3393 = vadd.f32 %v3296, %v3392
    %v3394 = vpop.f32.mrb[0].mxu0
    %3395 = vmatprep.mubr.bf16.mxu0 0
    %3396 = vmatmul.mubr.bf16.gmra.mrb[0].mxu0 %v2140
    %v3397 = vpop.f32.mrb[0].mxu0
    %v3398 = vadd.f32 %v3301, %v3397
    %v3399 = vpop.f32.mrb[0].mxu0
    %v3400 = vpop.f32.mrb[0].mxu0
    %v3401 = vadd.f32 %v3304, %v3400
    %v3402 = vpop.f32.mrb[0].mxu0
    %3403 = vmatprep.mubr.bf16.mxu0 0
    %3404 = vmatmul.mubr.bf16.gmra.mrb[0].mxu0 %v2143
    %v3405 = vpop.f32.mrb[0].mxu0
    %v3406 = vadd.f32 %v3309, %v3405
    %v3407 = vpop.f32.mrb[0].mxu0
    %v3408 = vpop.f32.mrb[0].mxu0
    %v3409 = vadd.f32 %v3312, %v3408
    %v3410 = vpop.f32.mrb[0].mxu0
    %3411 = vmatprep.mubr.bf16.mxu0 0
    %3412 = vmatmul.mubr.bf16.gmra.mrb[0].mxu0 %v2146
    %v3413 = vpop.f32.mrb[0].mxu0
    %v3414 = vadd.f32 %v3317, %v3413
    %v3415 = vpop.f32.mrb[0].mxu0
    %v3416 = vpop.f32.mrb[0].mxu0
    %v3417 = vadd.f32 %v3320, %v3416
    %v3418 = vpop.f32.mrb[0].mxu0
    %3419 = vmatprep.mubr.bf16.mxu0 0
    %3420 = vmatmul.mubr.bf16.gmra.mrb[0].mxu0 %v2149
    %v3421 = vpop.f32.mrb[0].mxu0
    %v3422 = vadd.f32 %v3325, %v3421
    %v3423 = vpop.f32.mrb[0].mxu0
    %v3424 = vpop.f32.mrb[0].mxu0
    %v3425 = vadd.f32 %v3328, %v3424
    %v3426 = vpop.f32.mrb[0].mxu0
    %3427 = vmatprep.mubr.bf16.mxu0 0
    %3428 = vmatmul.mubr.bf16.gmra.mrb[0].mxu0 %v2152
    %v3429 = vpop.f32.mrb[0].mxu0
    %v3430 = vadd.f32 %v3333, %v3429
    %v3431 = vpop.f32.mrb[0].mxu0
    %v3432 = vpop.f32.mrb[0].mxu0
    %v3433 = vadd.f32 %v3336, %v3432
    %v3434 = vpop.f32.mrb[0].mxu0
    %3435 = vmatprep.mubr.bf16.mxu0 0
    %3436 = vmatmul.mubr.bf16.gmra.mrb[0].mxu0 %v2155
    %v3437 = vpop.f32.mrb[0].mxu0
    %v3438 = vadd.f32 %v3341, %v3437
    %v3439 = vpop.f32.mrb[0].mxu0
    %v3440 = vpop.f32.mrb[0].mxu0
    %v3441 = vadd.f32 %v3344, %v3440
    %v3442 = vpop.f32.mrb[0].mxu0
    %3443 = vmatprep.mubr.bf16.mxu0 0
    %3444 = vmatmul.mubr.bf16.gmra.mrb[0].mxu0 %v2158
    %v3445 = vpop.f32.mrb[0].mxu0
    %v3446 = vadd.f32 %v3349, %v3445
    %v3447 = vpop.f32.mrb[0].mxu0
    %v3448 = vpop.f32.mrb[0].mxu0
    %v3449 = vadd.f32 %v3352, %v3448
    %v3450 = vpop.f32.mrb[0].mxu0
    %3451 = vdwg.mxu0
    %v3452 = vmax.f32 %v2534, 0.0
    %v3453 = vmax.f32 %v2536, 0.0
    %v3454 = vmax.f32 %v2986, 0.0
    %v3455 = vmax.f32 %v2988, 0.0
    %v3456 = vmax.f32 %v3390, 0.0
    %v3457 = vmax.f32 %v2538, 0.0
    %v3458 = vmax.f32 %v2540, 0.0
    %v3459 = vmax.f32 %v2990, 0.0
    %v3460 = vmax.f32 %v2992, 0.0
    %v3461 = vmax.f32 %v3393, 0.0
    %v3462 = vmax.f32 %v2544, 0.0
    %v3463 = vmax.f32 %v2546, 0.0
    %v3464 = vmax.f32 %v2996, 0.0
    %v3465 = vmax.f32 %v2998, 0.0
    %v3466 = vmax.f32 %v3398, 0.0
    %v3467 = vmax.f32 %v2548, 0.0
    %v3468 = vmax.f32 %v2550, 0.0
    %v3469 = vmax.f32 %v3000, 0.0
    %v3470 = vmax.f32 %v3002, 0.0
    %v3471 = vmax.f32 %v3401, 0.0
    %v3472 = vmax.f32 %v2554, 0.0
    %v3473 = vmax.f32 %v2556, 0.0
    %v3474 = vmax.f32 %v3006, 0.0
    %v3475 = vmax.f32 %v3008, 0.0
    %v3476 = vmax.f32 %v3406, 0.0
    %v3477 = vmax.f32 %v2558, 0.0
    %v3478 = vmax.f32 %v2560, 0.0
    %v3479 = vmax.f32 %v3010, 0.0
    %v3480 = vmax.f32 %v3012, 0.0
    %v3481 = vmax.f32 %v3409, 0.0
    %v3482 = vmax.f32 %v2564, 0.0
    %v3483 = vmax.f32 %v2566, 0.0
    %v3484 = vmax.f32 %v3016, 0.0
    %v3485 = vmax.f32 %v3018, 0.0
    %v3486 = vmax.f32 %v3414, 0.0
    %v3487 = vmax.f32 %v2568, 0.0
    %v3488 = vmax.f32 %v2570, 0.0
    %v3489 = vmax.f32 %v3020, 0.0
    %v3490 = vmax.f32 %v3022, 0.0
    %v3491 = vmax.f32 %v3417, 0.0
    %v3492 = vmax.f32 %v2574, 0.0
    %v3493 = vmax.f32 %v2576, 0.0
    %v3494 = vmax.f32 %v3026, 0.0
    %v3495 = vmax.f32 %v3028, 0.0
    %v3496 = vmax.f32 %v3422, 0.0
    %v3497 = vmax.f32 %v2578, 0.0
    %v3498 = vmax.f32 %v2580, 0.0
    %v3499 = vmax.f32 %v3030, 0.0
    %v3500 = vmax.f32 %v3032, 0.0
    %v3501 = vmax.f32 %v3425, 0.0
    %v3502 = vmax.f32 %v2584, 0.0
    %v3503 = vmax.f32 %v2586, 0.0
    %v3504 = vmax.f32 %v3036, 0.0
    %v3505 = vmax.f32 %v3038, 0.0
    %v3506 = vmax.f32 %v3430, 0.0
    %v3507 = vmax.f32 %v2588, 0.0
    %v3508 = vmax.f32 %v2590, 0.0
    %v3509 = vmax.f32 %v3040, 0.0
    %v3510 = vmax.f32 %v3042, 0.0
    %v3511 = vmax.f32 %v3433, 0.0
    %v3512 = vmax.f32 %v2594, 0.0
    %v3513 = vmax.f32 %v2596, 0.0
    %v3514 = vmax.f32 %v3046, 0.0
    %v3515 = vmax.f32 %v3048, 0.0
    %v3516 = vmax.f32 %v3438, 0.0
    %v3517 = vmax.f32 %v2598, 0.0
    %v3518 = vmax.f32 %v2600, 0.0
    %v3519 = vmax.f32 %v3050, 0.0
    %v3520 = vmax.f32 %v3052, 0.0
    %v3521 = vmax.f32 %v3441, 0.0
    %v3522 = vmax.f32 %v2604, 0.0
    %v3523 = vmax.f32 %v2606, 0.0
    %v3524 = vmax.f32 %v3056, 0.0
    %v3525 = vmax.f32 %v3058, 0.0
    %v3526 = vmax.f32 %v3446, 0.0
    %v3527 = vmax.f32 %v2608, 0.0
    %v3528 = vmax.f32 %v2610, 0.0
    %v3529 = vmax.f32 %v3060, 0.0
    %v3530 = vmax.f32 %v3062, 0.0
    %v3531 = vmax.f32 %v3449, 0.0
    %v3532 = vpack.c.bf16 %v3457, %v3452
    %v3533 = vpack.c.bf16 %v3458, %v3453
    %v3534 = vpack.c.bf16 %v3459, %v3454
    %v3535 = vpack.c.bf16 %v3460, %v3455
    %v3536 = vpack.c.bf16 %v3461, %v3456
    %v3537 = vpack.c.bf16 %v3467, %v3462
    %v3538 = vpack.c.bf16 %v3468, %v3463
    %v3539 = vpack.c.bf16 %v3469, %v3464
    %v3540 = vpack.c.bf16 %v3470, %v3465
    %v3541 = vpack.c.bf16 %v3471, %v3466
    %v3542 = vpack.c.bf16 %v3477, %v3472
    %v3543 = vpack.c.bf16 %v3478, %v3473
    %v3544 = vpack.c.bf16 %v3479, %v3474
    %v3545 = vpack.c.bf16 %v3480, %v3475
    %v3546 = vpack.c.bf16 %v3481, %v3476
    %v3547 = vpack.c.bf16 %v3487, %v3482
    %v3548 = vpack.c.bf16 %v3488, %v3483
    %v3549 = vpack.c.bf16 %v3489, %v3484
    %v3550 = vpack.c.bf16 %v3490, %v3485
    %v3551 = vpack.c.bf16 %v3491, %v3486
    %v3552 = vpack.c.bf16 %v3497, %v3492
    %v3553 = vpack.c.bf16 %v3498, %v3493
    %v3554 = vpack.c.bf16 %v3499, %v3494
    %v3555 = vpack.c.bf16 %v3500, %v3495
    %v3556 = vpack.c.bf16 %v3501, %v3496
    %v3557 = vpack.c.bf16 %v3507, %v3502
    %v3558 = vpack.c.bf16 %v3508, %v3503
    %v3559 = vpack.c.bf16 %v3509, %v3504
    %v3560 = vpack.c.bf16 %v3510, %v3505
    %v3561 = vpack.c.bf16 %v3511, %v3506
    %v3562 = vpack.c.bf16 %v3517, %v3512
    %v3563 = vpack.c.bf16 %v3518, %v3513
    %v3564 = vpack.c.bf16 %v3519, %v3514
    %v3565 = vpack.c.bf16 %v3520, %v3515
    %v3566 = vpack.c.bf16 %v3521, %v3516
    %v3567 = vpack.c.bf16 %v3527, %v3522
    %v3568 = vpack.c.bf16 %v3528, %v3523
    %v3569 = vpack.c.bf16 %v3529, %v3524
    %v3570 = vpack.c.bf16 %v3530, %v3525
    %v3571 = vpack.c.bf16 %v3531, %v3526
    %v3572 = vld [vmem:[#allocation6] sm:$0xff]
    %v3573 = vld [vmem:[#allocation6 + $0x8] sm:$0xf]
    %v3574 = vld [vmem:[#allocation6 + $0xc] sm:$0xff]
    %v3575 = vld [vmem:[#allocation6 + $0x14] sm:$0xf]
    %v3576 = vld [vmem:[#allocation6 + $0x18] sm:$0xff]
    %v3577 = vld [vmem:[#allocation6 + $0x20] sm:$0xf]
    %v3578 = vld [vmem:[#allocation6 + $0x24] sm:$0xff]
    %v3579 = vld [vmem:[#allocation6 + $0x2c] sm:$0xf]
    %v3580 = vld [vmem:[#allocation6 + $0x30] sm:$0xff]
    %v3581 = vld [vmem:[#allocation6 + $0x38] sm:$0xf]
    %v3582 = vld [vmem:[#allocation6 + $0x3c] sm:$0xff]
    %v3583 = vld [vmem:[#allocation6 + $0x44] sm:$0xf]
    %v3584 = vld [vmem:[#allocation6 + $0x48] sm:$0xff]
    %v3585 = vld [vmem:[#allocation6 + $0x50] sm:$0xf]
    %v3586 = vld [vmem:[#allocation6 + $0x54] sm:$0xff]
    %v3587 = vld [vmem:[#allocation6 + $0x5c] sm:$0xf]
    %v3588 = vld [vmem:[#allocation6 + $0x60] sm:$0xff]
    %v3589 = vld [vmem:[#allocation6 + $0x68] sm:$0xf]
    %v3590 = vld [vmem:[#allocation6 + $0x6c] sm:$0xff]
    %v3591 = vld [vmem:[#allocation6 + $0x74] sm:$0xf]
    %v3592 = vld [vmem:[#allocation6 + $0x78] sm:$0xff]
    %v3593 = vld [vmem:[#allocation6 + $0x80] sm:$0xf]
    %v3594 = vld [vmem:[#allocation6 + $0x84] sm:$0xff]
    %v3595 = vld [vmem:[#allocation6 + $0x8c] sm:$0xf]
    %v3596 = vld [vmem:[#allocation6 + $0x90] sm:$0xff]
    %v3597 = vld [vmem:[#allocation6 + $0x98] sm:$0xf]
    %v3598 = vld [vmem:[#allocation6 + $0x9c] sm:$0xff]
    %v3599 = vld [vmem:[#allocation6 + $0xa4] sm:$0xf]
    %v3600 = vld [vmem:[#allocation6 + $0xa8] sm:$0xff]
    %v3601 = vld [vmem:[#allocation6 + $0xb0] sm:$0xf]
    %v3602 = vld [vmem:[#allocation6 + $0xb4] sm:$0xff]
    %v3603 = vld [vmem:[#allocation6 + $0xbc] sm:$0xf]
    %v3604 = vld [vmem:[#allocation6 + $0xc0] sm:$0xff]
    %v3605 = vld [vmem:[#allocation6 + $0xc8] sm:$0xf]
    %v3606 = vld [vmem:[#allocation6 + $0xcc] sm:$0xff]
    %v3607 = vld [vmem:[#allocation6 + $0xd4] sm:$0xf]
    %v3608 = vld [vmem:[#allocation6 + $0xd8] sm:$0xff]
    %v3609 = vld [vmem:[#allocation6 + $0xe0] sm:$0xf]
    %v3610 = vld [vmem:[#allocation6 + $0xe4] sm:$0xff]
    %v3611 = vld [vmem:[#allocation6 + $0xec] sm:$0xf]
    %v3612 = vld [vmem:[#allocation6 + $0xf0] sm:$0xff]
    %v3613 = vld [vmem:[#allocation6 + $0xf8] sm:$0xf]
    %v3614 = vld [vmem:[#allocation6 + $0xfc] sm:$0xff]
    %v3615 = vld [vmem:[#allocation6 + $0x104] sm:$0xf]
    %v3616 = vld [vmem:[#allocation6 + $0x108] sm:$0xff]
    %v3617 = vld [vmem:[#allocation6 + $0x110] sm:$0xf]
    %v3618 = vld [vmem:[#allocation6 + $0x114] sm:$0xff]
    %v3619 = vld [vmem:[#allocation6 + $0x11c] sm:$0xf]
    %v3620 = vld [vmem:[#allocation6 + $0x120] sm:$0xff]
    %v3621 = vld [vmem:[#allocation6 + $0x128] sm:$0xf]
    %v3622 = vld [vmem:[#allocation6 + $0x12c] sm:$0xff]
    %v3623 = vld [vmem:[#allocation6 + $0x134] sm:$0xf]
    %v3624 = vld [vmem:[#allocation6 + $0x138] sm:$0xff]
    %v3625 = vld [vmem:[#allocation6 + $0x140] sm:$0xf]
    %v3626 = vld [vmem:[#allocation6 + $0x144] sm:$0xff]
    %v3627 = vld [vmem:[#allocation6 + $0x14c] sm:$0xf]
    %v3628 = vld [vmem:[#allocation6 + $0x150] sm:$0xff]
    %v3629 = vld [vmem:[#allocation6 + $0x158] sm:$0xf]
    %v3630 = vld [vmem:[#allocation6 + $0x15c] sm:$0xff]
    %v3631 = vld [vmem:[#allocation6 + $0x164] sm:$0xf]
    %v3632 = vld [vmem:[#allocation6 + $0x168] sm:$0xff]
    %v3633 = vld [vmem:[#allocation6 + $0x170] sm:$0xf]
    %v3634 = vld [vmem:[#allocation6 + $0x174] sm:$0xff]
    %v3635 = vld [vmem:[#allocation6 + $0x17c] sm:$0xf]
    %v3636 = vld [vmem:[#allocation6 + $0x180] sm:$0xff]
    %v3637 = vld [vmem:[#allocation6 + $0x188] sm:$0xf]
    %v3638 = vld [vmem:[#allocation6 + $0x18c] sm:$0xff]
    %v3639 = vld [vmem:[#allocation6 + $0x194] sm:$0xf]
    %v3640 = vld [vmem:[#allocation6 + $0x198] sm:$0xff]
    %v3641 = vld [vmem:[#allocation6 + $0x1a0] sm:$0xf]
    %v3642 = vld [vmem:[#allocation6 + $0x1a4] sm:$0xff]
    %v3643 = vld [vmem:[#allocation6 + $0x1ac] sm:$0xf]
    %v3644 = vld [vmem:[#allocation6 + $0x1b0] sm:$0xff]
    %v3645 = vld [vmem:[#allocation6 + $0x1b8] sm:$0xf]
    %v3646 = vld [vmem:[#allocation6 + $0x1bc] sm:$0xff]
    %v3647 = vld [vmem:[#allocation6 + $0x1c4] sm:$0xf]
    %v3648 = vld [vmem:[#allocation6 + $0x1c8] sm:$0xff]
    %v3649 = vld [vmem:[#allocation6 + $0x1d0] sm:$0xf]
    %v3650 = vld [vmem:[#allocation6 + $0x1d4] sm:$0xff]
    %v3651 = vld [vmem:[#allocation6 + $0x1dc] sm:$0xf]
    %v3652 = vld [vmem:[#allocation6 + $0x1e0] sm:$0xff]
    %v3653 = vld [vmem:[#allocation6 + $0x1e8] sm:$0xf]
    %v3654 = vld [vmem:[#allocation6 + $0x1ec] sm:$0xff]
    %v3655 = vld [vmem:[#allocation6 + $0x1f4] sm:$0xf]
    %v3656 = vld [vmem:[#allocation6 + $0x1f8] sm:$0xff]
    %v3657 = vld [vmem:[#allocation6 + $0x200] sm:$0xf]
    %v3658 = vld [vmem:[#allocation6 + $0x204] sm:$0xff]
    %v3659 = vld [vmem:[#allocation6 + $0x20c] sm:$0xf]
    %v3660 = vld [vmem:[#allocation6 + $0x210] sm:$0xff]
    %v3661 = vld [vmem:[#allocation6 + $0x218] sm:$0xf]
    %v3662 = vld [vmem:[#allocation6 + $0x21c] sm:$0xff]
    %v3663 = vld [vmem:[#allocation6 + $0x224] sm:$0xf]
    %v3664 = vld [vmem:[#allocation6 + $0x228] sm:$0xff]
    %v3665 = vld [vmem:[#allocation6 + $0x230] sm:$0xf]
    %v3666 = vld [vmem:[#allocation6 + $0x234] sm:$0xff]
    %v3667 = vld [vmem:[#allocation6 + $0x23c] sm:$0xf]
    %v3668 = vld [vmem:[#allocation6 + $0x240] sm:$0xff]
    %v3669 = vld [vmem:[#allocation6 + $0x248] sm:$0xf]
    %v3670 = vld [vmem:[#allocation6 + $0x24c] sm:$0xff]
    %v3671 = vld [vmem:[#allocation6 + $0x254] sm:$0xf]
    %v3672 = vld [vmem:[#allocation6 + $0x258] sm:$0xff]
    %v3673 = vld [vmem:[#allocation6 + $0x260] sm:$0xf]
    %v3674 = vld [vmem:[#allocation6 + $0x264] sm:$0xff]
    %v3675 = vld [vmem:[#allocation6 + $0x26c] sm:$0xf]
    %v3676 = vld [vmem:[#allocation6 + $0x270] sm:$0xff]
    %v3677 = vld [vmem:[#allocation6 + $0x278] sm:$0xf]
    %v3678 = vld [vmem:[#allocation6 + $0x27c] sm:$0xff]
    %v3679 = vld [vmem:[#allocation6 + $0x284] sm:$0xf]
    %v3680 = vld [vmem:[#allocation6 + $0x288] sm:$0xff]
    %v3681 = vld [vmem:[#allocation6 + $0x290] sm:$0xf]
    %v3682 = vld [vmem:[#allocation6 + $0x294] sm:$0xff]
    %v3683 = vld [vmem:[#allocation6 + $0x29c] sm:$0xf]
    %v3684 = vld [vmem:[#allocation6 + $0x2a0] sm:$0xff]
    %v3685 = vld [vmem:[#allocation6 + $0x2a8] sm:$0xf]
    %v3686 = vld [vmem:[#allocation6 + $0x2ac] sm:$0xff]
    %v3687 = vld [vmem:[#allocation6 + $0x2b4] sm:$0xf]
    %v3688 = vld [vmem:[#allocation6 + $0x2b8] sm:$0xff]
    %v3689 = vld [vmem:[#allocation6 + $0x2c0] sm:$0xf]
    %v3690 = vld [vmem:[#allocation6 + $0x2c4] sm:$0xff]
    %v3691 = vld [vmem:[#allocation6 + $0x2cc] sm:$0xf]
    %v3692 = vld [vmem:[#allocation6 + $0x2d0] sm:$0xff]
    %v3693 = vld [vmem:[#allocation6 + $0x2d8] sm:$0xf]
    %v3694 = vld [vmem:[#allocation6 + $0x2dc] sm:$0xff]
    %v3695 = vld [vmem:[#allocation6 + $0x2e4] sm:$0xf]
    %v3696 = vld [vmem:[#allocation6 + $0x2e8] sm:$0xff]
    %v3697 = vld [vmem:[#allocation6 + $0x2f0] sm:$0xf]
    %v3698 = vld [vmem:[#allocation6 + $0x2f4] sm:$0xff]
    %v3699 = vld [vmem:[#allocation6 + $0x2fc] sm:$0xf]
    %v3700 = vld [vmem:[#allocation6 + $0x300] sm:$0xff]
    %v3701 = vld [vmem:[#allocation6 + $0x308] sm:$0xf]
    %v3702 = vld [vmem:[#allocation6 + $0x30c] sm:$0xff]
    %v3703 = vld [vmem:[#allocation6 + $0x314] sm:$0xf]
    %v3704 = vld [vmem:[#allocation6 + $0x318] sm:$0xff]
    %v3705 = vld [vmem:[#allocation6 + $0x320] sm:$0xf]
    %v3706 = vld [vmem:[#allocation6 + $0x324] sm:$0xff]
    %v3707 = vld [vmem:[#allocation6 + $0x32c] sm:$0xf]
    %v3708 = vld [vmem:[#allocation6 + $0x330] sm:$0xff]
    %v3709 = vld [vmem:[#allocation6 + $0x338] sm:$0xf]
    %v3710 = vld [vmem:[#allocation6 + $0x33c] sm:$0xff]
    %v3711 = vld [vmem:[#allocation6 + $0x344] sm:$0xf]
    %v3712 = vld [vmem:[#allocation6 + $0x348] sm:$0xff]
    %v3713 = vld [vmem:[#allocation6 + $0x350] sm:$0xf]
    %v3714 = vld [vmem:[#allocation6 + $0x354] sm:$0xff]
    %v3715 = vld [vmem:[#allocation6 + $0x35c] sm:$0xf]
    %v3716 = vld [vmem:[#allocation6 + $0x360] sm:$0xff]
    %v3717 = vld [vmem:[#allocation6 + $0x368] sm:$0xf]
    %v3718 = vld [vmem:[#allocation6 + $0x36c] sm:$0xff]
    %v3719 = vld [vmem:[#allocation6 + $0x374] sm:$0xf]
    %v3720 = vld [vmem:[#allocation6 + $0x378] sm:$0xff]
    %v3721 = vld [vmem:[#allocation6 + $0x380] sm:$0xf]
    %v3722 = vld [vmem:[#allocation6 + $0x384] sm:$0xff]
    %v3723 = vld [vmem:[#allocation6 + $0x38c] sm:$0xf]
    %v3724 = vld [vmem:[#allocation6 + $0x390] sm:$0xff]
    %v3725 = vld [vmem:[#allocation6 + $0x398] sm:$0xf]
    %v3726 = vld [vmem:[#allocation6 + $0x39c] sm:$0xff]
    %v3727 = vld [vmem:[#allocation6 + $0x3a4] sm:$0xf]
    %v3728 = vld [vmem:[#allocation6 + $0x3a8] sm:$0xff]
    %v3729 = vld [vmem:[#allocation6 + $0x3b0] sm:$0xf]
    %v3730 = vld [vmem:[#allocation6 + $0x3b4] sm:$0xff]
    %v3731 = vld [vmem:[#allocation6 + $0x3bc] sm:$0xf]
    %v3732 = vld [vmem:[#allocation7] sm:$0x7]
    %v3734 = vlaneseq
    %v3735 = vshrl.u32 %v3734, 7
    %v3736 = vsub.s32 0, %v3735
    %v3737 = vrot.slane %v3732, %v3736
    %v3738 = vlaneseq
    %v3739 = vshrl.u32 %v3738, 7
    %v3740 = vsub.s32 1, %v3739
    %v3741 = vrot.slane %v3732, %v3740
    %v3742 = vlaneseq
    %v3743 = vshrl.u32 %v3742, 7
    %v3744 = vsub.s32 2, %v3743
    %v3745 = vrot.slane %v3732, %v3744
    %v3909 = vunpack.c.l.b16 %v3572
    %v3910 = vunpack.c.h.b16 %v3572
    %v3911 = vunpack.c.l.b16 %v3573
    %v3912 = vunpack.c.l.b16 %v3574
    %v3913 = vunpack.c.h.b16 %v3574
    %v3914 = vunpack.c.l.b16 %v3575
    %v3915 = vunpack.c.l.b16 %v3576
    %v3916 = vunpack.c.h.b16 %v3576
    %v3917 = vunpack.c.l.b16 %v3577
    %v3918 = vunpack.c.l.b16 %v3578
    %v3919 = vunpack.c.h.b16 %v3578
    %v3920 = vunpack.c.l.b16 %v3579
    %v3921 = vunpack.c.l.b16 %v3580
    %v3922 = vunpack.c.h.b16 %v3580
    %v3923 = vunpack.c.l.b16 %v3581
    %v3924 = vunpack.c.l.b16 %v3582
    %v3925 = vunpack.c.h.b16 %v3582
    %v3926 = vunpack.c.l.b16 %v3583
    %v3927 = vunpack.c.l.b16 %v3584
    %v3928 = vunpack.c.h.b16 %v3584
    %v3929 = vunpack.c.l.b16 %v3585
    %v3930 = vunpack.c.l.b16 %v3586
    %v3931 = vunpack.c.h.b16 %v3586
    %v3932 = vunpack.c.l.b16 %v3587
    %v3933 = vunpack.c.l.b16 %v3588
    %v3934 = vunpack.c.h.b16 %v3588
    %v3935 = vunpack.c.l.b16 %v3589
    %v3936 = vunpack.c.l.b16 %v3590
    %v3937 = vunpack.c.h.b16 %v3590
    %v3938 = vunpack.c.l.b16 %v3591
    %v3939 = vunpack.c.l.b16 %v3592
    %v3940 = vunpack.c.h.b16 %v3592
    %v3941 = vunpack.c.l.b16 %v3593
    %v3942 = vunpack.c.l.b16 %v3594
    %v3943 = vunpack.c.h.b16 %v3594
    %v3944 = vunpack.c.l.b16 %v3595
    %v3945 = vunpack.c.l.b16 %v3596
    %v3946 = vunpack.c.h.b16 %v3596
    %v3947 = vunpack.c.l.b16 %v3597
    %v3948 = vunpack.c.l.b16 %v3598
    %v3949 = vunpack.c.h.b16 %v3598
    %v3950 = vunpack.c.l.b16 %v3599
    %v3951 = vunpack.c.l.b16 %v3600
    %v3952 = vunpack.c.h.b16 %v3600
    %v3953 = vunpack.c.l.b16 %v3601
    %v3954 = vunpack.c.l.b16 %v3602
    %v3955 = vunpack.c.h.b16 %v3602
    %v3956 = vunpack.c.l.b16 %v3603
    %v3957 = vunpack.c.l.b16 %v3604
    %v3958 = vunpack.c.h.b16 %v3604
    %v3959 = vunpack.c.l.b16 %v3605
    %v3960 = vunpack.c.l.b16 %v3606
    %v3961 = vunpack.c.h.b16 %v3606
    %v3962 = vunpack.c.l.b16 %v3607
    %v3963 = vunpack.c.l.b16 %v3608
    %v3964 = vunpack.c.h.b16 %v3608
    %v3965 = vunpack.c.l.b16 %v3609
    %v3966 = vunpack.c.l.b16 %v3610
    %v3967 = vunpack.c.h.b16 %v3610
    %v3968 = vunpack.c.l.b16 %v3611
    %v3969 = vunpack.c.l.b16 %v3612
    %v3970 = vunpack.c.h.b16 %v3612
    %v3971 = vunpack.c.l.b16 %v3613
    %v3972 = vunpack.c.l.b16 %v3614
    %v3973 = vunpack.c.h.b16 %v3614
    %v3974 = vunpack.c.l.b16 %v3615
    %v3975 = vunpack.c.l.b16 %v3616
    %v3976 = vunpack.c.h.b16 %v3616
    %v3977 = vunpack.c.l.b16 %v3617
    %v3978 = vunpack.c.l.b16 %v3618
    %v3979 = vunpack.c.h.b16 %v3618
    %v3980 = vunpack.c.l.b16 %v3619
    %v3981 = vunpack.c.l.b16 %v3620
    %v3982 = vunpack.c.h.b16 %v3620
    %v3983 = vunpack.c.l.b16 %v3621
    %v3984 = vunpack.c.l.b16 %v3622
    %v3985 = vunpack.c.h.b16 %v3622
    %v3986 = vunpack.c.l.b16 %v3623
    %v3987 = vunpack.c.l.b16 %v3624
    %v3988 = vunpack.c.h.b16 %v3624
    %v3989 = vunpack.c.l.b16 %v3625
    %v3990 = vunpack.c.l.b16 %v3626
    %v3991 = vunpack.c.h.b16 %v3626
    %v3992 = vunpack.c.l.b16 %v3627
    %v3993 = vunpack.c.l.b16 %v3628
    %v3994 = vunpack.c.h.b16 %v3628
    %v3995 = vunpack.c.l.b16 %v3629
    %v3996 = vunpack.c.l.b16 %v3630
    %v3997 = vunpack.c.h.b16 %v3630
    %v3998 = vunpack.c.l.b16 %v3631
    %v3999 = vunpack.c.l.b16 %v3632
    %v4000 = vunpack.c.h.b16 %v3632
    %v4001 = vunpack.c.l.b16 %v3633
    %v4002 = vunpack.c.l.b16 %v3634
    %v4003 = vunpack.c.h.b16 %v3634
    %v4004 = vunpack.c.l.b16 %v3635
    %v4005 = vunpack.c.l.b16 %v3636
    %v4006 = vunpack.c.h.b16 %v3636
    %v4007 = vunpack.c.l.b16 %v3637
    %v4008 = vunpack.c.l.b16 %v3638
    %v4009 = vunpack.c.h.b16 %v3638
    %v4010 = vunpack.c.l.b16 %v3639
    %v4011 = vunpack.c.l.b16 %v3640
    %v4012 = vunpack.c.h.b16 %v3640
    %v4013 = vunpack.c.l.b16 %v3641
    %v4014 = vunpack.c.l.b16 %v3642
    %v4015 = vunpack.c.h.b16 %v3642
    %v4016 = vunpack.c.l.b16 %v3643
    %v4017 = vunpack.c.l.b16 %v3644
    %v4018 = vunpack.c.h.b16 %v3644
    %v4019 = vunpack.c.l.b16 %v3645
    %v4020 = vunpack.c.l.b16 %v3646
    %v4021 = vunpack.c.h.b16 %v3646
    %v4022 = vunpack.c.l.b16 %v3647
    %v4023 = vunpack.c.l.b16 %v3648
    %v4024 = vunpack.c.h.b16 %v3648
    %v4025 = vunpack.c.l.b16 %v3649
    %v4026 = vunpack.c.l.b16 %v3650
    %v4027 = vunpack.c.h.b16 %v3650
    %v4028 = vunpack.c.l.b16 %v3651
    %v4029 = vunpack.c.l.b16 %v3652
    %v4030 = vunpack.c.h.b16 %v3652
    %v4031 = vunpack.c.l.b16 %v3653
    %v4032 = vunpack.c.l.b16 %v3654
    %v4033 = vunpack.c.h.b16 %v3654
    %v4034 = vunpack.c.l.b16 %v3655
    %v4035 = vunpack.c.l.b16 %v3656
    %v4036 = vunpack.c.h.b16 %v3656
    %v4037 = vunpack.c.l.b16 %v3657
    %v4038 = vunpack.c.l.b16 %v3658
    %v4039 = vunpack.c.h.b16 %v3658
    %v4040 = vunpack.c.l.b16 %v3659
    %v4041 = vunpack.c.l.b16 %v3660
    %v4042 = vunpack.c.h.b16 %v3660
    %v4043 = vunpack.c.l.b16 %v3661
    %v4044 = vunpack.c.l.b16 %v3662
    %v4045 = vunpack.c.h.b16 %v3662
    %v4046 = vunpack.c.l.b16 %v3663
    %v4047 = vunpack.c.l.b16 %v3664
    %v4048 = vunpack.c.h.b16 %v3664
    %v4049 = vunpack.c.l.b16 %v3665
    %v4050 = vunpack.c.l.b16 %v3666
    %v4051 = vunpack.c.h.b16 %v3666
    %v4052 = vunpack.c.l.b16 %v3667
    %v4053 = vunpack.c.l.b16 %v3668
    %v4054 = vunpack.c.h.b16 %v3668
    %v4055 = vunpack.c.l.b16 %v3669
    %v4056 = vunpack.c.l.b16 %v3670
    %v4057 = vunpack.c.h.b16 %v3670
    %v4058 = vunpack.c.l.b16 %v3671
    %v4059 = vunpack.c.l.b16 %v3672
    %v4060 = vunpack.c.h.b16 %v3672
    %v4061 = vunpack.c.l.b16 %v3673
    %v4062 = vunpack.c.l.b16 %v3674
    %v4063 = vunpack.c.h.b16 %v3674
    %v4064 = vunpack.c.l.b16 %v3675
    %v4065 = vunpack.c.l.b16 %v3676
    %v4066 = vunpack.c.h.b16 %v3676
    %v4067 = vunpack.c.l.b16 %v3677
    %v4068 = vunpack.c.l.b16 %v3678
    %v4069 = vunpack.c.h.b16 %v3678
    %v4070 = vunpack.c.l.b16 %v3679
    %v4071 = vunpack.c.l.b16 %v3680
    %v4072 = vunpack.c.h.b16 %v3680
    %v4073 = vunpack.c.l.b16 %v3681
    %v4074 = vunpack.c.l.b16 %v3682
    %v4075 = vunpack.c.h.b16 %v3682
    %v4076 = vunpack.c.l.b16 %v3683
    %v4077 = vunpack.c.l.b16 %v3684
    %v4078 = vunpack.c.h.b16 %v3684
    %v4079 = vunpack.c.l.b16 %v3685
    %v4080 = vunpack.c.l.b16 %v3686
    %v4081 = vunpack.c.h.b16 %v3686
    %v4082 = vunpack.c.l.b16 %v3687
    %v4083 = vunpack.c.l.b16 %v3688
    %v4084 = vunpack.c.h.b16 %v3688
    %v4085 = vunpack.c.l.b16 %v3689
    %v4086 = vunpack.c.l.b16 %v3690
    %v4087 = vunpack.c.h.b16 %v3690
    %v4088 = vunpack.c.l.b16 %v3691
    %v4089 = vunpack.c.l.b16 %v3692
    %v4090 = vunpack.c.h.b16 %v3692
    %v4091 = vunpack.c.l.b16 %v3693
    %v4092 = vunpack.c.l.b16 %v3694
    %v4093 = vunpack.c.h.b16 %v3694
    %v4094 = vunpack.c.l.b16 %v3695
    %v4095 = vunpack.c.l.b16 %v3696
    %v4096 = vunpack.c.h.b16 %v3696
    %v4097 = vunpack.c.l.b16 %v3697
    %v4098 = vunpack.c.l.b16 %v3698
    %v4099 = vunpack.c.h.b16 %v3698
    %v4100 = vunpack.c.l.b16 %v3699
    %v4101 = vunpack.c.l.b16 %v3700
    %v4102 = vunpack.c.h.b16 %v3700
    %v4103 = vunpack.c.l.b16 %v3701
    %v4104 = vunpack.c.l.b16 %v3702
    %v4105 = vunpack.c.h.b16 %v3702
    %v4106 = vunpack.c.l.b16 %v3703
    %v4107 = vunpack.c.l.b16 %v3704
    %v4108 = vunpack.c.h.b16 %v3704
    %v4109 = vunpack.c.l.b16 %v3705
    %v4110 = vunpack.c.l.b16 %v3706
    %v4111 = vunpack.c.h.b16 %v3706
    %v4112 = vunpack.c.l.b16 %v3707
    %v4113 = vunpack.c.l.b16 %v3708
    %v4114 = vunpack.c.h.b16 %v3708
    %v4115 = vunpack.c.l.b16 %v3709
    %v4116 = vunpack.c.l.b16 %v3710
    %v4117 = vunpack.c.h.b16 %v3710
    %v4118 = vunpack.c.l.b16 %v3711
    %v4119 = vunpack.c.l.b16 %v3712
    %v4120 = vunpack.c.h.b16 %v3712
    %v4121 = vunpack.c.l.b16 %v3713
    %v4122 = vunpack.c.l.b16 %v3714
    %v4123 = vunpack.c.h.b16 %v3714
    %v4124 = vunpack.c.l.b16 %v3715
    %v4125 = vunpack.c.l.b16 %v3716
    %v4126 = vunpack.c.h.b16 %v3716
    %v4127 = vunpack.c.l.b16 %v3717
    %v4128 = vunpack.c.l.b16 %v3718
    %v4129 = vunpack.c.h.b16 %v3718
    %v4130 = vunpack.c.l.b16 %v3719
    %v4131 = vunpack.c.l.b16 %v3720
    %v4132 = vunpack.c.h.b16 %v3720
    %v4133 = vunpack.c.l.b16 %v3721
    %v4134 = vunpack.c.l.b16 %v3722
    %v4135 = vunpack.c.h.b16 %v3722
    %v4136 = vunpack.c.l.b16 %v3723
    %v4137 = vunpack.c.l.b16 %v3724
    %v4138 = vunpack.c.h.b16 %v3724
    %v4139 = vunpack.c.l.b16 %v3725
    %v4140 = vunpack.c.l.b16 %v3726
    %v4141 = vunpack.c.h.b16 %v3726
    %v4142 = vunpack.c.l.b16 %v3727
    %v4143 = vunpack.c.l.b16 %v3728
    %v4144 = vunpack.c.h.b16 %v3728
    %v4145 = vunpack.c.l.b16 %v3729
    %v4146 = vunpack.c.l.b16 %v3730
    %v4147 = vunpack.c.h.b16 %v3730
    %v4148 = vunpack.c.l.b16 %v3731
    %v4149 = vpack.c.b16 %v3912, %v3909
    %v4150 = vpack.c.b16 %v3913, %v3910
    %v4151 = vpack.c.b16 %v3914, %v3911
    %v4152 = vpack.c.b16 %v3918, %v3915
    %v4153 = vpack.c.b16 %v3919, %v3916
    %v4154 = vpack.c.b16 %v3920, %v3917
    %v4155 = vpack.c.b16 %v3924, %v3921
    %v4156 = vpack.c.b16 %v3925, %v3922
    %v4157 = vpack.c.b16 %v3926, %v3923
    %v4158 = vpack.c.b16 %v3930, %v3927
    %v4159 = vpack.c.b16 %v3931, %v3928
    %v4160 = vpack.c.b16 %v3932, %v3929
    %v4161 = vpack.c.b16 %v3936, %v3933
    %v4162 = vpack.c.b16 %v3937, %v3934
    %v4163 = vpack.c.b16 %v3938, %v3935
    %v4164 = vpack.c.b16 %v3942, %v3939
    %v4165 = vpack.c.b16 %v3943, %v3940
    %v4166 = vpack.c.b16 %v3944, %v3941
    %v4167 = vpack.c.b16 %v3948, %v3945
    %v4168 = vpack.c.b16 %v3949, %v3946
    %v4169 = vpack.c.b16 %v3950, %v3947
    %v4170 = vpack.c.b16 %v3954, %v3951
    %v4171 = vpack.c.b16 %v3955, %v3952
    %v4172 = vpack.c.b16 %v3956, %v3953
    %v4173 = vpack.c.b16 %v3960, %v3957
    %v4174 = vpack.c.b16 %v3961, %v3958
    %v4175 = vpack.c.b16 %v3962, %v3959
    %v4176 = vpack.c.b16 %v3966, %v3963
    %v4177 = vpack.c.b16 %v3967, %v3964
    %v4178 = vpack.c.b16 %v3968, %v3965
    %v4179 = vpack.c.b16 %v3972, %v3969
    %v4180 = vpack.c.b16 %v3973, %v3970
    %v4181 = vpack.c.b16 %v3974, %v3971
    %v4182 = vpack.c.b16 %v3978, %v3975
    %v4183 = vpack.c.b16 %v3979, %v3976
    %v4184 = vpack.c.b16 %v3980, %v3977
    %v4185 = vpack.c.b16 %v3984, %v3981
    %v4186 = vpack.c.b16 %v3985, %v3982
    %v4187 = vpack.c.b16 %v3986, %v3983
    %v4188 = vpack.c.b16 %v3990, %v3987
    %v4189 = vpack.c.b16 %v3991, %v3988
    %v4190 = vpack.c.b16 %v3992, %v3989
    %v4191 = vpack.c.b16 %v3996, %v3993
    %v4192 = vpack.c.b16 %v3997, %v3994
    %v4193 = vpack.c.b16 %v3998, %v3995
    %v4194 = vpack.c.b16 %v4002, %v3999
    %v4195 = vpack.c.b16 %v4003, %v4000
    %v4196 = vpack.c.b16 %v4004, %v4001
    %v4197 = vpack.c.b16 %v4008, %v4005
    %v4198 = vpack.c.b16 %v4009, %v4006
    %v4199 = vpack.c.b16 %v4010, %v4007
    %v4200 = vpack.c.b16 %v4014, %v4011
    %v4201 = vpack.c.b16 %v4015, %v4012
    %v4202 = vpack.c.b16 %v4016, %v4013
    %v4203 = vpack.c.b16 %v4020, %v4017
    %v4204 = vpack.c.b16 %v4021, %v4018
    %v4205 = vpack.c.b16 %v4022, %v4019
    %v4206 = vpack.c.b16 %v4026, %v4023
    %v4207 = vpack.c.b16 %v4027, %v4024
    %v4208 = vpack.c.b16 %v4028, %v4025
    %v4209 = vpack.c.b16 %v4032, %v4029
    %v4210 = vpack.c.b16 %v4033, %v4030
    %v4211 = vpack.c.b16 %v4034, %v4031
    %v4212 = vpack.c.b16 %v4038, %v4035
    %v4213 = vpack.c.b16 %v4039, %v4036
    %v4214 = vpack.c.b16 %v4040, %v4037
    %v4215 = vpack.c.b16 %v4044, %v4041
    %v4216 = vpack.c.b16 %v4045, %v4042
    %v4217 = vpack.c.b16 %v4046, %v4043
    %v4218 = vpack.c.b16 %v4050, %v4047
    %v4219 = vpack.c.b16 %v4051, %v4048
    %v4220 = vpack.c.b16 %v4052, %v4049
    %v4221 = vpack.c.b16 %v4056, %v4053
    %v4222 = vpack.c.b16 %v4057, %v4054
    %v4223 = vpack.c.b16 %v4058, %v4055
    %v4224 = vpack.c.b16 %v4062, %v4059
    %v4225 = vpack.c.b16 %v4063, %v4060
    %v4226 = vpack.c.b16 %v4064, %v4061
    %v4227 = vpack.c.b16 %v4068, %v4065
    %v4228 = vpack.c.b16 %v4069, %v4066
    %v4229 = vpack.c.b16 %v4070, %v4067
    %v4230 = vpack.c.b16 %v4074, %v4071
    %v4231 = vpack.c.b16 %v4075, %v4072
    %v4232 = vpack.c.b16 %v4076, %v4073
    %v4233 = vpack.c.b16 %v4080, %v4077
    %v4234 = vpack.c.b16 %v4081, %v4078
    %v4235 = vpack.c.b16 %v4082, %v4079
    %v4236 = vpack.c.b16 %v4086, %v4083
    %v4237 = vpack.c.b16 %v4087, %v4084
    %v4238 = vpack.c.b16 %v4088, %v4085
    %v4239 = vpack.c.b16 %v4092, %v4089
    %v4240 = vpack.c.b16 %v4093, %v4090
    %v4241 = vpack.c.b16 %v4094, %v4091
    %v4242 = vpack.c.b16 %v4098, %v4095
    %v4243 = vpack.c.b16 %v4099, %v4096
    %v4244 = vpack.c.b16 %v4100, %v4097
    %v4245 = vpack.c.b16 %v4104, %v4101
    %v4246 = vpack.c.b16 %v4105, %v4102
    %v4247 = vpack.c.b16 %v4106, %v4103
    %v4248 = vpack.c.b16 %v4110, %v4107
    %v4249 = vpack.c.b16 %v4111, %v4108
    %v4250 = vpack.c.b16 %v4112, %v4109
    %v4251 = vpack.c.b16 %v4116, %v4113
    %v4252 = vpack.c.b16 %v4117, %v4114
    %v4253 = vpack.c.b16 %v4118, %v4115
    %v4254 = vpack.c.b16 %v4122, %v4119
    %v4255 = vpack.c.b16 %v4123, %v4120
    %v4256 = vpack.c.b16 %v4124, %v4121
    %v4257 = vpack.c.b16 %v4128, %v4125
    %v4258 = vpack.c.b16 %v4129, %v4126
    %v4259 = vpack.c.b16 %v4130, %v4127
    %v4260 = vpack.c.b16 %v4134, %v4131
    %v4261 = vpack.c.b16 %v4135, %v4132
    %v4262 = vpack.c.b16 %v4136, %v4133
    %v4263 = vpack.c.b16 %v4140, %v4137
    %v4264 = vpack.c.b16 %v4141, %v4138
    %v4265 = vpack.c.b16 %v4142, %v4139
    %v4266 = vpack.c.b16 %v4146, %v4143
    %v4267 = vpack.c.b16 %v4147, %v4144
    %v4268 = vpack.c.b16 %v4148, %v4145
    %4389 = vmatprep.subr.bf16.mxu0 %v4150
    %4390 = vmatpush1.bf16.msra.mxu0 %v4149
    %4391 = vmatprep.subr.bf16.mxu0 %v4153
    %4392 = vmatpush1.bf16.msra.mxu0 %v4152
    %4393 = vmatprep.subr.bf16.mxu0 %v4156
    %4394 = vmatpush1.bf16.msra.mxu0 %v4155
    %4395 = vmatprep.subr.bf16.mxu0 %v4159
    %4396 = vmatpush1.bf16.msra.mxu0 %v4158
    %4397 = vmatprep.subr.bf16.mxu0 %v4162
    %4398 = vmatpush1.bf16.msra.mxu0 %v4161
    %4399 = vmatprep.subr.bf16.mxu0 %v4165
    %4400 = vmatpush1.bf16.msra.mxu0 %v4164
    %4401 = vmatprep.subr.bf16.mxu0 %v4168
    %4402 = vmatpush1.bf16.msra.mxu0 %v4167
    %4403 = vmatprep.subr.bf16.mxu0 %v4171
    %4404 = vmatpush1.bf16.msra.mxu0 %v4170
    %4405 = vmatprep.subr.bf16.mxu0 %v4174
    %4406 = vmatpush1.bf16.msra.mxu0 %v4173
    %4407 = vmatprep.subr.bf16.mxu0 %v4177
    %4408 = vmatpush1.bf16.msra.mxu0 %v4176
    %4409 = vmatprep.subr.bf16.mxu0 %v4180
    %4410 = vmatpush1.bf16.msra.mxu0 %v4179
    %4411 = vmatprep.subr.bf16.mxu0 %v4183
    %4412 = vmatpush1.bf16.msra.mxu0 %v4182
    %4413 = vmatprep.subr.bf16.mxu0 %v4186
    %4414 = vmatpush1.bf16.msra.mxu0 %v4185
    %4415 = vmatprep.subr.bf16.mxu0 %v4189
    %4416 = vmatpush1.bf16.msra.mxu0 %v4188
    %4417 = vmatprep.subr.bf16.mxu0 %v4192
    %4418 = vmatpush1.bf16.msra.mxu0 %v4191
    %4419 = vmatprep.subr.bf16.mxu0 %v4195
    %4420 = vmatpush1.bf16.msra.mxu0 %v4194
    %4421 = vmatprep.mubr.bf16.mxu0 %v3533
    %4422 = vmatmul.mubr.bf16.gmra.mrb[0].mxu0 %v3532
    %v4423 = vpop.f32.mrb[0].mxu0
    %v4424 = vadd.f32 %v3737, %v4423
    %v4425 = vpop.f32.mrb[0].mxu0
    %v4426 = vadd.f32 %v3741, %v4425
    %v4427 = vpop.f32.mrb[0].mxu0
    %v4428 = vadd.f32 %v3737, %v4427
    %v4429 = vpop.f32.mrb[0].mxu0
    %v4430 = vadd.f32 %v3741, %v4429
    %4431 = vmatprep.mubr.bf16.mxu0 %v3538
    %4432 = vmatmul.mubr.bf16.gmra.mrb[0].mxu0 %v3537
    %v4433 = vpop.f32.mrb[0].mxu0
    %v4434 = vadd.f32 %v3737, %v4433
    %v4435 = vpop.f32.mrb[0].mxu0
    %v4436 = vadd.f32 %v3741, %v4435
    %v4437 = vpop.f32.mrb[0].mxu0
    %v4438 = vadd.f32 %v3737, %v4437
    %v4439 = vpop.f32.mrb[0].mxu0
    %v4440 = vadd.f32 %v3741, %v4439
    %4441 = vmatprep.mubr.bf16.mxu0 %v3543
    %4442 = vmatmul.mubr.bf16.gmra.mrb[0].mxu0 %v3542
    %v4443 = vpop.f32.mrb[0].mxu0
    %v4444 = vadd.f32 %v3737, %v4443
    %v4445 = vpop.f32.mrb[0].mxu0
    %v4446 = vadd.f32 %v3741, %v4445
    %v4447 = vpop.f32.mrb[0].mxu0
    %v4448 = vadd.f32 %v3737, %v4447
    %v4449 = vpop.f32.mrb[0].mxu0
    %v4450 = vadd.f32 %v3741, %v4449
    %4451 = vmatprep.mubr.bf16.mxu0 %v3548
    %4452 = vmatmul.mubr.bf16.gmra.mrb[0].mxu0 %v3547
    %v4453 = vpop.f32.mrb[0].mxu0
    %v4454 = vadd.f32 %v3737, %v4453
    %v4455 = vpop.f32.mrb[0].mxu0
    %v4456 = vadd.f32 %v3741, %v4455
    %v4457 = vpop.f32.mrb[0].mxu0
    %v4458 = vadd.f32 %v3737, %v4457
    %v4459 = vpop.f32.mrb[0].mxu0
    %v4460 = vadd.f32 %v3741, %v4459
    %4461 = vmatprep.mubr.bf16.mxu0 %v3553
    %4462 = vmatmul.mubr.bf16.gmra.mrb[0].mxu0 %v3552
    %v4463 = vpop.f32.mrb[0].mxu0
    %v4464 = vadd.f32 %v3737, %v4463
    %v4465 = vpop.f32.mrb[0].mxu0
    %v4466 = vadd.f32 %v3741, %v4465
    %v4467 = vpop.f32.mrb[0].mxu0
    %v4468 = vadd.f32 %v3737, %v4467
    %v4469 = vpop.f32.mrb[0].mxu0
    %v4470 = vadd.f32 %v3741, %v4469
    %4471 = vmatprep.mubr.bf16.mxu0 %v3558
    %4472 = vmatmul.mubr.bf16.gmra.mrb[0].mxu0 %v3557
    %v4473 = vpop.f32.mrb[0].mxu0
    %v4474 = vadd.f32 %v3737, %v4473
    %v4475 = vpop.f32.mrb[0].mxu0
    %v4476 = vadd.f32 %v3741, %v4475
    %v4477 = vpop.f32.mrb[0].mxu0
    %v4478 = vadd.f32 %v3737, %v4477
    %v4479 = vpop.f32.mrb[0].mxu0
    %v4480 = vadd.f32 %v3741, %v4479
    %4481 = vmatprep.mubr.bf16.mxu0 %v3563
    %4482 = vmatmul.mubr.bf16.gmra.mrb[0].mxu0 %v3562
    %v4483 = vpop.f32.mrb[0].mxu0
    %v4484 = vadd.f32 %v3737, %v4483
    %v4485 = vpop.f32.mrb[0].mxu0
    %v4486 = vadd.f32 %v3741, %v4485
    %v4487 = vpop.f32.mrb[0].mxu0
    %v4488 = vadd.f32 %v3737, %v4487
    %v4489 = vpop.f32.mrb[0].mxu0
    %v4490 = vadd.f32 %v3741, %v4489
    %4491 = vmatprep.mubr.bf16.mxu0 %v3568
    %4492 = vmatmul.mubr.bf16.gmra.mrb[0].mxu0 %v3567
    %v4493 = vpop.f32.mrb[0].mxu0
    %v4494 = vadd.f32 %v3737, %v4493
    %v4495 = vpop.f32.mrb[0].mxu0
    %v4496 = vadd.f32 %v3741, %v4495
    %v4497 = vpop.f32.mrb[0].mxu0
    %v4498 = vadd.f32 %v3737, %v4497
    %v4499 = vpop.f32.mrb[0].mxu0
    %v4500 = vadd.f32 %v3741, %v4499
    %4501 = vdwg.mxu0
    %4502 = vmatprep.subr.bf16.mxu0 %v4198
    %4503 = vmatpush1.bf16.msra.mxu0 %v4197
    %4504 = vmatprep.subr.bf16.mxu0 %v4201
    %4505 = vmatpush1.bf16.msra.mxu0 %v4200
    %4506 = vmatprep.subr.bf16.mxu0 %v4204
    %4507 = vmatpush1.bf16.msra.mxu0 %v4203
    %4508 = vmatprep.subr.bf16.mxu0 %v4207
    %4509 = vmatpush1.bf16.msra.mxu0 %v4206
    %4510 = vmatprep.subr.bf16.mxu0 %v4210
    %4511 = vmatpush1.bf16.msra.mxu0 %v4209
    %4512 = vmatprep.subr.bf16.mxu0 %v4213
    %4513 = vmatpush1.bf16.msra.mxu0 %v4212
    %4514 = vmatprep.subr.bf16.mxu0 %v4216
    %4515 = vmatpush1.bf16.msra.mxu0 %v4215
    %4516 = vmatprep.subr.bf16.mxu0 %v4219
    %4517 = vmatpush1.bf16.msra.mxu0 %v4218
    %4518 = vmatprep.subr.bf16.mxu0 %v4222
    %4519 = vmatpush1.bf16.msra.mxu0 %v4221
    %4520 = vmatprep.subr.bf16.mxu0 %v4225
    %4521 = vmatpush1.bf16.msra.mxu0 %v4224
    %4522 = vmatprep.subr.bf16.mxu0 %v4228
    %4523 = vmatpush1.bf16.msra.mxu0 %v4227
    %4524 = vmatprep.subr.bf16.mxu0 %v4231
    %4525 = vmatpush1.bf16.msra.mxu0 %v4230
    %4526 = vmatprep.subr.bf16.mxu0 %v4234
    %4527 = vmatpush1.bf16.msra.mxu0 %v4233
    %4528 = vmatprep.subr.bf16.mxu0 %v4237
    %4529 = vmatpush1.bf16.msra.mxu0 %v4236
    %4530 = vmatprep.subr.bf16.mxu0 %v4240
    %4531 = vmatpush1.bf16.msra.mxu0 %v4239
    %4532 = vmatprep.subr.bf16.mxu0 %v4243
    %4533 = vmatpush1.bf16.msra.mxu0 %v4242
    %4534 = vmatprep.mubr.bf16.mxu0 %v3535
    %4535 = vmatmul.mubr.bf16.gmra.mrb[0].mxu0 %v3534
    %v4536 = vpop.f32.mrb[0].mxu0
    %v4537 = vadd.f32 %v4424, %v4536
    %v4538 = vpop.f32.mrb[0].mxu0
    %v4539 = vadd.f32 %v4426, %v4538
    %v4540 = vpop.f32.mrb[0].mxu0
    %v4541 = vadd.f32 %v4428, %v4540
    %v4542 = vpop.f32.mrb[0].mxu0
    %v4543 = vadd.f32 %v4430, %v4542
    %4544 = vmatprep.mubr.bf16.mxu0 %v3540
    %4545 = vmatmul.mubr.bf16.gmra.mrb[0].mxu0 %v3539
    %v4546 = vpop.f32.mrb[0].mxu0
    %v4547 = vadd.f32 %v4434, %v4546
    %v4548 = vpop.f32.mrb[0].mxu0
    %v4549 = vadd.f32 %v4436, %v4548
    %v4550 = vpop.f32.mrb[0].mxu0
    %v4551 = vadd.f32 %v4438, %v4550
    %v4552 = vpop.f32.mrb[0].mxu0
    %v4553 = vadd.f32 %v4440, %v4552
    %4554 = vmatprep.mubr.bf16.mxu0 %v3545
    %4555 = vmatmul.mubr.bf16.gmra.mrb[0].mxu0 %v3544
    %v4556 = vpop.f32.mrb[0].mxu0
    %v4557 = vadd.f32 %v4444, %v4556
    %v4558 = vpop.f32.mrb[0].mxu0
    %v4559 = vadd.f32 %v4446, %v4558
    %v4560 = vpop.f32.mrb[0].mxu0
    %v4561 = vadd.f32 %v4448, %v4560
    %v4562 = vpop.f32.mrb[0].mxu0
    %v4563 = vadd.f32 %v4450, %v4562
    %4564 = vmatprep.mubr.bf16.mxu0 %v3550
    %4565 = vmatmul.mubr.bf16.gmra.mrb[0].mxu0 %v3549
    %v4566 = vpop.f32.mrb[0].mxu0
    %v4567 = vadd.f32 %v4454, %v4566
    %v4568 = vpop.f32.mrb[0].mxu0
    %v4569 = vadd.f32 %v4456, %v4568
    %v4570 = vpop.f32.mrb[0].mxu0
    %v4571 = vadd.f32 %v4458, %v4570
    %v4572 = vpop.f32.mrb[0].mxu0
    %v4573 = vadd.f32 %v4460, %v4572
    %4574 = vmatprep.mubr.bf16.mxu0 %v3555
    %4575 = vmatmul.mubr.bf16.gmra.mrb[0].mxu0 %v3554
    %v4576 = vpop.f32.mrb[0].mxu0
    %v4577 = vadd.f32 %v4464, %v4576
    %v4578 = vpop.f32.mrb[0].mxu0
    %v4579 = vadd.f32 %v4466, %v4578
    %v4580 = vpop.f32.mrb[0].mxu0
    %v4581 = vadd.f32 %v4468, %v4580
    %v4582 = vpop.f32.mrb[0].mxu0
    %v4583 = vadd.f32 %v4470, %v4582
    %4584 = vmatprep.mubr.bf16.mxu0 %v3560
    %4585 = vmatmul.mubr.bf16.gmra.mrb[0].mxu0 %v3559
    %v4586 = vpop.f32.mrb[0].mxu0
    %v4587 = vadd.f32 %v4474, %v4586
    %v4588 = vpop.f32.mrb[0].mxu0
    %v4589 = vadd.f32 %v4476, %v4588
    %v4590 = vpop.f32.mrb[0].mxu0
    %v4591 = vadd.f32 %v4478, %v4590
    %v4592 = vpop.f32.mrb[0].mxu0
    %v4593 = vadd.f32 %v4480, %v4592
    %4594 = vmatprep.mubr.bf16.mxu0 %v3565
    %4595 = vmatmul.mubr.bf16.gmra.mrb[0].mxu0 %v3564
    %v4596 = vpop.f32.mrb[0].mxu0
    %v4597 = vadd.f32 %v4484, %v4596
    %v4598 = vpop.f32.mrb[0].mxu0
    %v4599 = vadd.f32 %v4486, %v4598
    %v4600 = vpop.f32.mrb[0].mxu0
    %v4601 = vadd.f32 %v4488, %v4600
    %v4602 = vpop.f32.mrb[0].mxu0
    %v4603 = vadd.f32 %v4490, %v4602
    %4604 = vmatprep.mubr.bf16.mxu0 %v3570
    %4605 = vmatmul.mubr.bf16.gmra.mrb[0].mxu0 %v3569
    %v4606 = vpop.f32.mrb[0].mxu0
    %v4607 = vadd.f32 %v4494, %v4606
    %v4608 = vpop.f32.mrb[0].mxu0
    %v4609 = vadd.f32 %v4496, %v4608
    %v4610 = vpop.f32.mrb[0].mxu0
    %v4611 = vadd.f32 %v4498, %v4610
    %v4612 = vpop.f32.mrb[0].mxu0
    %v4613 = vadd.f32 %v4500, %v4612
    %4614 = vdwg.mxu0
    %4615 = vmatprep.subr.bf16.mxu0 %v4246
    %4616 = vmatpush1.bf16.msra.mxu0 %v4245
    %4617 = vmatprep.subr.bf16.mxu0 %v4249
    %4618 = vmatpush1.bf16.msra.mxu0 %v4248
    %4619 = vmatprep.subr.bf16.mxu0 %v4252
    %4620 = vmatpush1.bf16.msra.mxu0 %v4251
    %4621 = vmatprep.subr.bf16.mxu0 %v4255
    %4622 = vmatpush1.bf16.msra.mxu0 %v4254
    %4623 = vmatprep.subr.bf16.mxu0 %v4258
    %4624 = vmatpush1.bf16.msra.mxu0 %v4257
    %4625 = vmatprep.subr.bf16.mxu0 %v4261
    %4626 = vmatpush1.bf16.msra.mxu0 %v4260
    %4627 = vmatprep.subr.bf16.mxu0 %v4264
    %4628 = vmatpush1.bf16.msra.mxu0 %v4263
    %4629 = vmatprep.subr.bf16.mxu0 %v4267
    %4630 = vmatpush1.bf16.msra.mxu0 %v4266
    %4631 = vmatprep.subr.bf16.mxu0 0
    %4632 = vmatpush1.bf16.msra.mxu0 0
    %4633 = vmatprep.subr.bf16.mxu0 0
    %4634 = vmatpush1.bf16.msra.mxu0 0
    %4635 = vmatprep.subr.bf16.mxu0 0
    %4636 = vmatpush1.bf16.msra.mxu0 0
    %4637 = vmatprep.subr.bf16.mxu0 0
    %4638 = vmatpush1.bf16.msra.mxu0 0
    %4639 = vmatprep.subr.bf16.mxu0 0
    %4640 = vmatpush1.bf16.msra.mxu0 0
    %4641 = vmatprep.subr.bf16.mxu0 0
    %4642 = vmatpush1.bf16.msra.mxu0 0
    %4643 = vmatprep.subr.bf16.mxu0 0
    %4644 = vmatpush1.bf16.msra.mxu0 0
    %4645 = vmatprep.subr.bf16.mxu0 0
    %4646 = vmatpush1.bf16.msra.mxu0 0
    %4647 = vmatprep.mubr.bf16.mxu0 0
    %4648 = vmatmul.mubr.bf16.gmra.mrb[0].mxu0 %v3536
    %v4649 = vpop.f32.mrb[0].mxu0
    %v4650 = vadd.f32 %v4537, %v4649
    %v4651 = vpop.f32.mrb[0].mxu0
    %v4652 = vadd.f32 %v4539, %v4651
    %v4653 = vpop.f32.mrb[0].mxu0
    %v4654 = vadd.f32 %v4541, %v4653
    %v4655 = vpop.f32.mrb[0].mxu0
    %v4656 = vadd.f32 %v4543, %v4655
    %4657 = vmatprep.mubr.bf16.mxu0 0
    %4658 = vmatmul.mubr.bf16.gmra.mrb[0].mxu0 %v3541
    %v4659 = vpop.f32.mrb[0].mxu0
    %v4660 = vadd.f32 %v4547, %v4659
    %v4661 = vpop.f32.mrb[0].mxu0
    %v4662 = vadd.f32 %v4549, %v4661
    %v4663 = vpop.f32.mrb[0].mxu0
    %v4664 = vadd.f32 %v4551, %v4663
    %v4665 = vpop.f32.mrb[0].mxu0
    %v4666 = vadd.f32 %v4553, %v4665
    %4667 = vmatprep.mubr.bf16.mxu0 0
    %4668 = vmatmul.mubr.bf16.gmra.mrb[0].mxu0 %v3546
    %v4669 = vpop.f32.mrb[0].mxu0
    %v4670 = vadd.f32 %v4557, %v4669
    %v4671 = vpop.f32.mrb[0].mxu0
    %v4672 = vadd.f32 %v4559, %v4671
    %v4673 = vpop.f32.mrb[0].mxu0
    %v4674 = vadd.f32 %v4561, %v4673
    %v4675 = vpop.f32.mrb[0].mxu0
    %v4676 = vadd.f32 %v4563, %v4675
    %4677 = vmatprep.mubr.bf16.mxu0 0
    %4678 = vmatmul.mubr.bf16.gmra.mrb[0].mxu0 %v3551
    %v4679 = vpop.f32.mrb[0].mxu0
    %v4680 = vadd.f32 %v4567, %v4679
    %v4681 = vpop.f32.mrb[0].mxu0
    %v4682 = vadd.f32 %v4569, %v4681
    %v4683 = vpop.f32.mrb[0].mxu0
    %v4684 = vadd.f32 %v4571, %v4683
    %v4685 = vpop.f32.mrb[0].mxu0
    %v4686 = vadd.f32 %v4573, %v4685
    %4687 = vmatprep.mubr.bf16.mxu0 0
    %4688 = vmatmul.mubr.bf16.gmra.mrb[0].mxu0 %v3556
    %v4689 = vpop.f32.mrb[0].mxu0
    %v4690 = vadd.f32 %v4577, %v4689
    %v4691 = vpop.f32.mrb[0].mxu0
    %v4692 = vadd.f32 %v4579, %v4691
    %v4693 = vpop.f32.mrb[0].mxu0
    %v4694 = vadd.f32 %v4581, %v4693
    %v4695 = vpop.f32.mrb[0].mxu0
    %v4696 = vadd.f32 %v4583, %v4695
    %4697 = vmatprep.mubr.bf16.mxu0 0
    %4698 = vmatmul.mubr.bf16.gmra.mrb[0].mxu0 %v3561
    %v4699 = vpop.f32.mrb[0].mxu0
    %v4700 = vadd.f32 %v4587, %v4699
    %v4701 = vpop.f32.mrb[0].mxu0
    %v4702 = vadd.f32 %v4589, %v4701
    %v4703 = vpop.f32.mrb[0].mxu0
    %v4704 = vadd.f32 %v4591, %v4703
    %v4705 = vpop.f32.mrb[0].mxu0
    %v4706 = vadd.f32 %v4593, %v4705
    %4707 = vmatprep.mubr.bf16.mxu0 0
    %4708 = vmatmul.mubr.bf16.gmra.mrb[0].mxu0 %v3566
    %v4709 = vpop.f32.mrb[0].mxu0
    %v4710 = vadd.f32 %v4597, %v4709
    %v4711 = vpop.f32.mrb[0].mxu0
    %v4712 = vadd.f32 %v4599, %v4711
    %v4713 = vpop.f32.mrb[0].mxu0
    %v4714 = vadd.f32 %v4601, %v4713
    %v4715 = vpop.f32.mrb[0].mxu0
    %v4716 = vadd.f32 %v4603, %v4715
    %4717 = vmatprep.mubr.bf16.mxu0 0
    %4718 = vmatmul.mubr.bf16.gmra.mrb[0].mxu0 %v3571
    %v4719 = vpop.f32.mrb[0].mxu0
    %v4720 = vadd.f32 %v4607, %v4719
    %v4721 = vpop.f32.mrb[0].mxu0
    %v4722 = vadd.f32 %v4609, %v4721
    %v4723 = vpop.f32.mrb[0].mxu0
    %v4724 = vadd.f32 %v4611, %v4723
    %v4725 = vpop.f32.mrb[0].mxu0
    %v4726 = vadd.f32 %v4613, %v4725
    %4727 = vdwg.mxu0
    %4728 = vmatprep.subr.bf16.mxu0 0
    %4729 = vmatpush1.bf16.msra.mxu0 %v4151
    %4730 = vmatprep.subr.bf16.mxu0 0
    %4731 = vmatpush1.bf16.msra.mxu0 %v4154
    %4732 = vmatprep.subr.bf16.mxu0 0
    %4733 = vmatpush1.bf16.msra.mxu0 %v4157
    %4734 = vmatprep.subr.bf16.mxu0 0
    %4735 = vmatpush1.bf16.msra.mxu0 %v4160
    %4736 = vmatprep.subr.bf16.mxu0 0
    %4737 = vmatpush1.bf16.msra.mxu0 %v4163
    %4738 = vmatprep.subr.bf16.mxu0 0
    %4739 = vmatpush1.bf16.msra.mxu0 %v4166
    %4740 = vmatprep.subr.bf16.mxu0 0
    %4741 = vmatpush1.bf16.msra.mxu0 %v4169
    %4742 = vmatprep.subr.bf16.mxu0 0
    %4743 = vmatpush1.bf16.msra.mxu0 %v4172
    %4744 = vmatprep.subr.bf16.mxu0 0
    %4745 = vmatpush1.bf16.msra.mxu0 %v4175
    %4746 = vmatprep.subr.bf16.mxu0 0
    %4747 = vmatpush1.bf16.msra.mxu0 %v4178
    %4748 = vmatprep.subr.bf16.mxu0 0
    %4749 = vmatpush1.bf16.msra.mxu0 %v4181
    %4750 = vmatprep.subr.bf16.mxu0 0
    %4751 = vmatpush1.bf16.msra.mxu0 %v4184
    %4752 = vmatprep.subr.bf16.mxu0 0
    %4753 = vmatpush1.bf16.msra.mxu0 %v4187
    %4754 = vmatprep.subr.bf16.mxu0 0
    %4755 = vmatpush1.bf16.msra.mxu0 %v4190
    %4756 = vmatprep.subr.bf16.mxu0 0
    %4757 = vmatpush1.bf16.msra.mxu0 %v4193
    %4758 = vmatprep.subr.bf16.mxu0 0
    %4759 = vmatpush1.bf16.msra.mxu0 %v4196
    %4760 = vmatprep.mubr.bf16.mxu0 %v3533
    %4761 = vmatmul.mubr.bf16.gmra.mrb[0].mxu0 %v3532
    %v4762 = vpop.f32.mrb[0].mxu0
    %v4763 = vadd.f32 %v3745, %v4762
    %v4764 = vpop.f32.mrb[0].mxu0
    %v4765 = vpop.f32.mrb[0].mxu0
    %v4766 = vadd.f32 %v3745, %v4765
    %v4767 = vpop.f32.mrb[0].mxu0
    %4768 = vmatprep.mubr.bf16.mxu0 %v3538
    %4769 = vmatmul.mubr.bf16.gmra.mrb[0].mxu0 %v3537
    %v4770 = vpop.f32.mrb[0].mxu0
    %v4771 = vadd.f32 %v3745, %v4770
    %v4772 = vpop.f32.mrb[0].mxu0
    %v4773 = vpop.f32.mrb[0].mxu0
    %v4774 = vadd.f32 %v3745, %v4773
    %v4775 = vpop.f32.mrb[0].mxu0
    %4776 = vmatprep.mubr.bf16.mxu0 %v3543
    %4777 = vmatmul.mubr.bf16.gmra.mrb[0].mxu0 %v3542
    %v4778 = vpop.f32.mrb[0].mxu0
    %v4779 = vadd.f32 %v3745, %v4778
    %v4780 = vpop.f32.mrb[0].mxu0
    %v4781 = vpop.f32.mrb[0].mxu0
    %v4782 = vadd.f32 %v3745, %v4781
    %v4783 = vpop.f32.mrb[0].mxu0
    %4784 = vmatprep.mubr.bf16.mxu0 %v3548
    %4785 = vmatmul.mubr.bf16.gmra.mrb[0].mxu0 %v3547
    %v4786 = vpop.f32.mrb[0].mxu0
    %v4787 = vadd.f32 %v3745, %v4786
    %v4788 = vpop.f32.mrb[0].mxu0
    %v4789 = vpop.f32.mrb[0].mxu0
    %v4790 = vadd.f32 %v3745, %v4789
    %v4791 = vpop.f32.mrb[0].mxu0
    %4792 = vmatprep.mubr.bf16.mxu0 %v3553
    %4793 = vmatmul.mubr.bf16.gmra.mrb[0].mxu0 %v3552
    %v4794 = vpop.f32.mrb[0].mxu0
    %v4795 = vadd.f32 %v3745, %v4794
    %v4796 = vpop.f32.mrb[0].mxu0
    %v4797 = vpop.f32.mrb[0].mxu0
    %v4798 = vadd.f32 %v3745, %v4797
    %v4799 = vpop.f32.mrb[0].mxu0
    %4800 = vmatprep.mubr.bf16.mxu0 %v3558
    %4801 = vmatmul.mubr.bf16.gmra.mrb[0].mxu0 %v3557
    %v4802 = vpop.f32.mrb[0].mxu0
    %v4803 = vadd.f32 %v3745, %v4802
    %v4804 = vpop.f32.mrb[0].mxu0
    %v4805 = vpop.f32.mrb[0].mxu0
    %v4806 = vadd.f32 %v3745, %v4805
    %v4807 = vpop.f32.mrb[0].mxu0
    %4808 = vmatprep.mubr.bf16.mxu0 %v3563
    %4809 = vmatmul.mubr.bf16.gmra.mrb[0].mxu0 %v3562
    %v4810 = vpop.f32.mrb[0].mxu0
    %v4811 = vadd.f32 %v3745, %v4810
    %v4812 = vpop.f32.mrb[0].mxu0
    %v4813 = vpop.f32.mrb[0].mxu0
    %v4814 = vadd.f32 %v3745, %v4813
    %v4815 = vpop.f32.mrb[0].mxu0
    %4816 = vmatprep.mubr.bf16.mxu0 %v3568
    %4817 = vmatmul.mubr.bf16.gmra.mrb[0].mxu0 %v3567
    %v4818 = vpop.f32.mrb[0].mxu0
    %v4819 = vadd.f32 %v3745, %v4818
    %v4820 = vpop.f32.mrb[0].mxu0
    %v4821 = vpop.f32.mrb[0].mxu0
    %v4822 = vadd.f32 %v3745, %v4821
    %v4823 = vpop.f32.mrb[0].mxu0
    %4824 = vdwg.mxu0
    %4825 = vmatprep.subr.bf16.mxu0 0
    %4826 = vmatpush1.bf16.msra.mxu0 %v4199
    %4827 = vmatprep.subr.bf16.mxu0 0
    %4828 = vmatpush1.bf16.msra.mxu0 %v4202
    %4829 = vmatprep.subr.bf16.mxu0 0
    %4830 = vmatpush1.bf16.msra.mxu0 %v4205
    %4831 = vmatprep.subr.bf16.mxu0 0
    %4832 = vmatpush1.bf16.msra.mxu0 %v4208
    %4833 = vmatprep.subr.bf16.mxu0 0
    %4834 = vmatpush1.bf16.msra.mxu0 %v4211
    %4835 = vmatprep.subr.bf16.mxu0 0
    %4836 = vmatpush1.bf16.msra.mxu0 %v4214
    %4837 = vmatprep.subr.bf16.mxu0 0
    %4838 = vmatpush1.bf16.msra.mxu0 %v4217
    %4839 = vmatprep.subr.bf16.mxu0 0
    %4840 = vmatpush1.bf16.msra.mxu0 %v4220
    %4841 = vmatprep.subr.bf16.mxu0 0
    %4842 = vmatpush1.bf16.msra.mxu0 %v4223
    %4843 = vmatprep.subr.bf16.mxu0 0
    %4844 = vmatpush1.bf16.msra.mxu0 %v4226
    %4845 = vmatprep.subr.bf16.mxu0 0
    %4846 = vmatpush1.bf16.msra.mxu0 %v4229
    %4847 = vmatprep.subr.bf16.mxu0 0
    %4848 = vmatpush1.bf16.msra.mxu0 %v4232
    %4849 = vmatprep.subr.bf16.mxu0 0
    %4850 = vmatpush1.bf16.msra.mxu0 %v4235
    %4851 = vmatprep.subr.bf16.mxu0 0
    %4852 = vmatpush1.bf16.msra.mxu0 %v4238
    %4853 = vmatprep.subr.bf16.mxu0 0
    %4854 = vmatpush1.bf16.msra.mxu0 %v4241
    %4855 = vmatprep.subr.bf16.mxu0 0
    %4856 = vmatpush1.bf16.msra.mxu0 %v4244
    %4857 = vmatprep.mubr.bf16.mxu0 %v3535
    %4858 = vmatmul.mubr.bf16.gmra.mrb[0].mxu0 %v3534
    %v4859 = vpop.f32.mrb[0].mxu0
    %v4860 = vadd.f32 %v4763, %v4859
    %v4861 = vpop.f32.mrb[0].mxu0
    %v4862 = vpop.f32.mrb[0].mxu0
    %v4863 = vadd.f32 %v4766, %v4862
    %v4864 = vpop.f32.mrb[0].mxu0
    %4865 = vmatprep.mubr.bf16.mxu0 %v3540
    %4866 = vmatmul.mubr.bf16.gmra.mrb[0].mxu0 %v3539
    %v4867 = vpop.f32.mrb[0].mxu0
    %v4868 = vadd.f32 %v4771, %v4867
    %v4869 = vpop.f32.mrb[0].mxu0
    %v4870 = vpop.f32.mrb[0].mxu0
    %v4871 = vadd.f32 %v4774, %v4870
    %v4872 = vpop.f32.mrb[0].mxu0
    %4873 = vmatprep.mubr.bf16.mxu0 %v3545
    %4874 = vmatmul.mubr.bf16.gmra.mrb[0].mxu0 %v3544
    %v4875 = vpop.f32.mrb[0].mxu0
    %v4876 = vadd.f32 %v4779, %v4875
    %v4877 = vpop.f32.mrb[0].mxu0
    %v4878 = vpop.f32.mrb[0].mxu0
    %v4879 = vadd.f32 %v4782, %v4878
    %v4880 = vpop.f32.mrb[0].mxu0
    %4881 = vmatprep.mubr.bf16.mxu0 %v3550
    %4882 = vmatmul.mubr.bf16.gmra.mrb[0].mxu0 %v3549
    %v4883 = vpop.f32.mrb[0].mxu0
    %v4884 = vadd.f32 %v4787, %v4883
    %v4885 = vpop.f32.mrb[0].mxu0
    %v4886 = vpop.f32.mrb[0].mxu0
    %v4887 = vadd.f32 %v4790, %v4886
    %v4888 = vpop.f32.mrb[0].mxu0
    %4889 = vmatprep.mubr.bf16.mxu0 %v3555
    %4890 = vmatmul.mubr.bf16.gmra.mrb[0].mxu0 %v3554
    %v4891 = vpop.f32.mrb[0].mxu0
    %v4892 = vadd.f32 %v4795, %v4891
    %v4893 = vpop.f32.mrb[0].mxu0
    %v4894 = vpop.f32.mrb[0].mxu0
    %v4895 = vadd.f32 %v4798, %v4894
    %v4896 = vpop.f32.mrb[0].mxu0
    %4897 = vmatprep.mubr.bf16.mxu0 %v3560
    %4898 = vmatmul.mubr.bf16.gmra.mrb[0].mxu0 %v3559
    %v4899 = vpop.f32.mrb[0].mxu0
    %v4900 = vadd.f32 %v4803, %v4899
    %v4901 = vpop.f32.mrb[0].mxu0
    %v4902 = vpop.f32.mrb[0].mxu0
    %v4903 = vadd.f32 %v4806, %v4902
    %v4904 = vpop.f32.mrb[0].mxu0
    %4905 = vmatprep.mubr.bf16.mxu0 %v3565
    %4906 = vmatmul.mubr.bf16.gmra.mrb[0].mxu0 %v3564
    %v4907 = vpop.f32.mrb[0].mxu0
    %v4908 = vadd.f32 %v4811, %v4907
    %v4909 = vpop.f32.mrb[0].mxu0
    %v4910 = vpop.f32.mrb[0].mxu0
    %v4911 = vadd.f32 %v4814, %v4910
    %v4912 = vpop.f32.mrb[0].mxu0
    %4913 = vmatprep.mubr.bf16.mxu0 %v3570
    %4914 = vmatmul.mubr.bf16.gmra.mrb[0].mxu0 %v3569
    %v4915 = vpop.f32.mrb[0].mxu0
    %v4916 = vadd.f32 %v4819, %v4915
    %v4917 = vpop.f32.mrb[0].mxu0
    %v4918 = vpop.f32.mrb[0].mxu0
    %v4919 = vadd.f32 %v4822, %v4918
    %v4920 = vpop.f32.mrb[0].mxu0
    %4921 = vdwg.mxu0
    %4922 = vmatprep.subr.bf16.mxu0 0
    %4923 = vmatpush1.bf16.msra.mxu0 %v4247
    %4924 = vmatprep.subr.bf16.mxu0 0
    %4925 = vmatpush1.bf16.msra.mxu0 %v4250
    %4926 = vmatprep.subr.bf16.mxu0 0
    %4927 = vmatpush1.bf16.msra.mxu0 %v4253
    %4928 = vmatprep.subr.bf16.mxu0 0
    %4929 = vmatpush1.bf16.msra.mxu0 %v4256
    %4930 = vmatprep.subr.bf16.mxu0 0
    %4931 = vmatpush1.bf16.msra.mxu0 %v4259
    %4932 = vmatprep.subr.bf16.mxu0 0
    %4933 = vmatpush1.bf16.msra.mxu0 %v4262
    %4934 = vmatprep.subr.bf16.mxu0 0
    %4935 = vmatpush1.bf16.msra.mxu0 %v4265
    %4936 = vmatprep.subr.bf16.mxu0 0
    %4937 = vmatpush1.bf16.msra.mxu0 %v4268
    %4938 = vmatprep.subr.bf16.mxu0 0
    %4939 = vmatpush1.bf16.msra.mxu0 0
    %4940 = vmatprep.subr.bf16.mxu0 0
    %4941 = vmatpush1.bf16.msra.mxu0 0
    %4942 = vmatprep.subr.bf16.mxu0 0
    %4943 = vmatpush1.bf16.msra.mxu0 0
    %4944 = vmatprep.subr.bf16.mxu0 0
    %4945 = vmatpush1.bf16.msra.mxu0 0
    %4946 = vmatprep.subr.bf16.mxu0 0
    %4947 = vmatpush1.bf16.msra.mxu0 0
    %4948 = vmatprep.subr.bf16.mxu0 0
    %4949 = vmatpush1.bf16.msra.mxu0 0
    %4950 = vmatprep.subr.bf16.mxu0 0
    %4951 = vmatpush1.bf16.msra.mxu0 0
    %4952 = vmatprep.subr.bf16.mxu0 0
    %4953 = vmatpush1.bf16.msra.mxu0 0
    %4954 = vmatprep.mubr.bf16.mxu0 0
    %4955 = vmatmul.mubr.bf16.gmra.mrb[0].mxu0 %v3536
    %v4956 = vpop.f32.mrb[0].mxu0
    %v4957 = vadd.f32 %v4860, %v4956
    %v4958 = vpop.f32.mrb[0].mxu0
    %v4959 = vpop.f32.mrb[0].mxu0
    %v4960 = vadd.f32 %v4863, %v4959
    %v4961 = vpop.f32.mrb[0].mxu0
    %4962 = vmatprep.mubr.bf16.mxu0 0
    %4963 = vmatmul.mubr.bf16.gmra.mrb[0].mxu0 %v3541
    %v4964 = vpop.f32.mrb[0].mxu0
    %v4965 = vadd.f32 %v4868, %v4964
    %v4966 = vpop.f32.mrb[0].mxu0
    %v4967 = vpop.f32.mrb[0].mxu0
    %v4968 = vadd.f32 %v4871, %v4967
    %v4969 = vpop.f32.mrb[0].mxu0
    %4970 = vmatprep.mubr.bf16.mxu0 0
    %4971 = vmatmul.mubr.bf16.gmra.mrb[0].mxu0 %v3546
    %v4972 = vpop.f32.mrb[0].mxu0
    %v4973 = vadd.f32 %v4876, %v4972
    %v4974 = vpop.f32.mrb[0].mxu0
    %v4975 = vpop.f32.mrb[0].mxu0
    %v4976 = vadd.f32 %v4879, %v4975
    %v4977 = vpop.f32.mrb[0].mxu0
    %4978 = vmatprep.mubr.bf16.mxu0 0
    %4979 = vmatmul.mubr.bf16.gmra.mrb[0].mxu0 %v3551
    %v4980 = vpop.f32.mrb[0].mxu0
    %v4981 = vadd.f32 %v4884, %v4980
    %v4982 = vpop.f32.mrb[0].mxu0
    %v4983 = vpop.f32.mrb[0].mxu0
    %v4984 = vadd.f32 %v4887, %v4983
    %v4985 = vpop.f32.mrb[0].mxu0
    %4986 = vmatprep.mubr.bf16.mxu0 0
    %4987 = vmatmul.mubr.bf16.gmra.mrb[0].mxu0 %v3556
    %v4988 = vpop.f32.mrb[0].mxu0
    %v4989 = vadd.f32 %v4892, %v4988
    %v4990 = vpop.f32.mrb[0].mxu0
    %v4991 = vpop.f32.mrb[0].mxu0
    %v4992 = vadd.f32 %v4895, %v4991
    %v4993 = vpop.f32.mrb[0].mxu0
    %4994 = vmatprep.mubr.bf16.mxu0 0
    %4995 = vmatmul.mubr.bf16.gmra.mrb[0].mxu0 %v3561
    %v4996 = vpop.f32.mrb[0].mxu0
    %v4997 = vadd.f32 %v4900, %v4996
    %v4998 = vpop.f32.mrb[0].mxu0
    %v4999 = vpop.f32.mrb[0].mxu0
    %v5000 = vadd.f32 %v4903, %v4999
    %v5001 = vpop.f32.mrb[0].mxu0
    %5002 = vmatprep.mubr.bf16.mxu0 0
    %5003 = vmatmul.mubr.bf16.gmra.mrb[0].mxu0 %v3566
    %v5004 = vpop.f32.mrb[0].mxu0
    %v5005 = vadd.f32 %v4908, %v5004
    %v5006 = vpop.f32.mrb[0].mxu0
    %v5007 = vpop.f32.mrb[0].mxu0
    %v5008 = vadd.f32 %v4911, %v5007
    %v5009 = vpop.f32.mrb[0].mxu0
    %5010 = vmatprep.mubr.bf16.mxu0 0
    %5011 = vmatmul.mubr.bf16.gmra.mrb[0].mxu0 %v3571
    %v5012 = vpop.f32.mrb[0].mxu0
    %v5013 = vadd.f32 %v4916, %v5012
    %v5014 = vpop.f32.mrb[0].mxu0
    %v5015 = vpop.f32.mrb[0].mxu0
    %v5016 = vadd.f32 %v4919, %v5015
    %v5017 = vpop.f32.mrb[0].mxu0
    %5018 = vdwg.mxu0
    %v5019 = vmax.f32 %v4650, 0.0
    %v5020 = vmax.f32 %v4652, 0.0
    %v5021 = vmax.f32 %v4957, 0.0
    %v5022 = vmax.f32 %v4654, 0.0
    %v5023 = vmax.f32 %v4656, 0.0
    %v5024 = vmax.f32 %v4960, 0.0
    %v5025 = vmax.f32 %v4660, 0.0
    %v5026 = vmax.f32 %v4662, 0.0
    %v5027 = vmax.f32 %v4965, 0.0
    %v5028 = vmax.f32 %v4664, 0.0
    %v5029 = vmax.f32 %v4666, 0.0
    %v5030 = vmax.f32 %v4968, 0.0
    %v5031 = vmax.f32 %v4670, 0.0
    %v5032 = vmax.f32 %v4672, 0.0
    %v5033 = vmax.f32 %v4973, 0.0
    %v5034 = vmax.f32 %v4674, 0.0
    %v5035 = vmax.f32 %v4676, 0.0
    %v5036 = vmax.f32 %v4976, 0.0
    %v5037 = vmax.f32 %v4680, 0.0
    %v5038 = vmax.f32 %v4682, 0.0
    %v5039 = vmax.f32 %v4981, 0.0
    %v5040 = vmax.f32 %v4684, 0.0
    %v5041 = vmax.f32 %v4686, 0.0
    %v5042 = vmax.f32 %v4984, 0.0
    %v5043 = vmax.f32 %v4690, 0.0
    %v5044 = vmax.f32 %v4692, 0.0
    %v5045 = vmax.f32 %v4989, 0.0
    %v5046 = vmax.f32 %v4694, 0.0
    %v5047 = vmax.f32 %v4696, 0.0
    %v5048 = vmax.f32 %v4992, 0.0
    %v5049 = vmax.f32 %v4700, 0.0
    %v5050 = vmax.f32 %v4702, 0.0
    %v5051 = vmax.f32 %v4997, 0.0
    %v5052 = vmax.f32 %v4704, 0.0
    %v5053 = vmax.f32 %v4706, 0.0
    %v5054 = vmax.f32 %v5000, 0.0
    %v5055 = vmax.f32 %v4710, 0.0
    %v5056 = vmax.f32 %v4712, 0.0
    %v5057 = vmax.f32 %v5005, 0.0
    %v5058 = vmax.f32 %v4714, 0.0
    %v5059 = vmax.f32 %v4716, 0.0
    %v5060 = vmax.f32 %v5008, 0.0
    %v5061 = vmax.f32 %v4720, 0.0
    %v5062 = vmax.f32 %v4722, 0.0
    %v5063 = vmax.f32 %v5013, 0.0
    %v5064 = vmax.f32 %v4724, 0.0
    %v5065 = vmax.f32 %v4726, 0.0
    %v5066 = vmax.f32 %v5016, 0.0
    %v5067 = vpack.c.bf16 %v5022, %v5019
    %v5068 = vpack.c.bf16 %v5023, %v5020
    %v5069 = vpack.c.bf16 %v5024, %v5021
    %v5070 = vpack.c.bf16 %v5028, %v5025
    %v5071 = vpack.c.bf16 %v5029, %v5026
    %v5072 = vpack.c.bf16 %v5030, %v5027
    %v5073 = vpack.c.bf16 %v5034, %v5031
    %v5074 = vpack.c.bf16 %v5035, %v5032
    %v5075 = vpack.c.bf16 %v5036, %v5033
    %v5076 = vpack.c.bf16 %v5040, %v5037
    %v5077 = vpack.c.bf16 %v5041, %v5038
    %v5078 = vpack.c.bf16 %v5042, %v5039
    %v5079 = vpack.c.bf16 %v5046, %v5043
    %v5080 = vpack.c.bf16 %v5047, %v5044
    %v5081 = vpack.c.bf16 %v5048, %v5045
    %v5082 = vpack.c.bf16 %v5052, %v5049
    %v5083 = vpack.c.bf16 %v5053, %v5050
    %v5084 = vpack.c.bf16 %v5054, %v5051
    %v5085 = vpack.c.bf16 %v5058, %v5055
    %v5086 = vpack.c.bf16 %v5059, %v5056
    %v5087 = vpack.c.bf16 %v5060, %v5057
    %v5088 = vpack.c.bf16 %v5064, %v5061
    %v5089 = vpack.c.bf16 %v5065, %v5062
    %v5090 = vpack.c.bf16 %v5066, %v5063
    %v5091 = vld [vmem:[#allocation9] sm:$0xf]
    %v5092 = vld [vmem:[#allocation9 + $0x4] sm:$0xf]
    %v5093 = vld [vmem:[#allocation9 + $0x8] sm:$0xf]
    %v5094 = vld [vmem:[#allocation9 + $0xc] sm:$0xf]
    %v5095 = vld [vmem:[#allocation9 + $0x10] sm:$0xf]
    %v5096 = vld [vmem:[#allocation9 + $0x14] sm:$0xf]
    %v5097 = vld [vmem:[#allocation9 + $0x18] sm:$0xf]
    %v5098 = vld [vmem:[#allocation9 + $0x1c] sm:$0xf]
    %v5099 = vld [vmem:[#allocation9 + $0x20] sm:$0xf]
    %v5100 = vld [vmem:[#allocation9 + $0x24] sm:$0xf]
    %v5101 = vld [vmem:[#allocation9 + $0x28] sm:$0xf]
    %v5102 = vld [vmem:[#allocation9 + $0x2c] sm:$0xf]
    %v5103 = vld [vmem:[#allocation9 + $0x30] sm:$0xf]
    %v5104 = vld [vmem:[#allocation9 + $0x34] sm:$0xf]
    %v5105 = vld [vmem:[#allocation9 + $0x38] sm:$0xf]
    %v5106 = vld [vmem:[#allocation9 + $0x3c] sm:$0xf]
    %v5107 = vld [vmem:[#allocation9 + $0x40] sm:$0xf]
    %v5108 = vld [vmem:[#allocation9 + $0x44] sm:$0xf]
    %v5109 = vld [vmem:[#allocation9 + $0x48] sm:$0xf]
    %v5110 = vld [vmem:[#allocation9 + $0x4c] sm:$0xf]
    %v5111 = vld [vmem:[#allocation9 + $0x50] sm:$0xf]
    %v5112 = vld [vmem:[#allocation9 + $0x54] sm:$0xf]
    %v5113 = vld [vmem:[#allocation9 + $0x58] sm:$0xf]
    %v5114 = vld [vmem:[#allocation9 + $0x5c] sm:$0xf]
    %v5115 = vld [vmem:[#allocation9 + $0x60] sm:$0xf]
    %v5116 = vld [vmem:[#allocation9 + $0x64] sm:$0xf]
    %v5117 = vld [vmem:[#allocation9 + $0x68] sm:$0xf]
    %v5118 = vld [vmem:[#allocation9 + $0x6c] sm:$0xf]
    %v5119 = vld [vmem:[#allocation9 + $0x70] sm:$0xf]
    %v5120 = vld [vmem:[#allocation9 + $0x74] sm:$0xf]
    %v5121 = vld [vmem:[#allocation9 + $0x78] sm:$0xf]
    %v5122 = vld [vmem:[#allocation9 + $0x7c] sm:$0xf]
    %v5123 = vld [vmem:[#allocation9 + $0x80] sm:$0xf]
    %v5124 = vld [vmem:[#allocation9 + $0x84] sm:$0xf]
    %v5125 = vld [vmem:[#allocation9 + $0x88] sm:$0xf]
    %v5126 = vld [vmem:[#allocation9 + $0x8c] sm:$0xf]
    %v5127 = vld [vmem:[#allocation9 + $0x90] sm:$0xf]
    %v5128 = vld [vmem:[#allocation9 + $0x94] sm:$0xf]
    %v5129 = vld [vmem:[#allocation9 + $0x98] sm:$0xf]
    %v5130 = vld [vmem:[#allocation9 + $0x9c] sm:$0xf]
    %v5131 = vld [vmem:[#allocation9 + $0xa0] sm:$0xf]
    %v5132 = vld [vmem:[#allocation9 + $0xa4] sm:$0xf]
    %v5133 = vld [vmem:[#allocation9 + $0xa8] sm:$0xf]
    %v5134 = vld [vmem:[#allocation9 + $0xac] sm:$0xf]
    %v5135 = vld [vmem:[#allocation9 + $0xb0] sm:$0xf]
    %v5136 = vld [vmem:[#allocation9 + $0xb4] sm:$0xf]
    %v5137 = vld [vmem:[#allocation9 + $0xb8] sm:$0xf]
    %v5138 = vld [vmem:[#allocation9 + $0xbc] sm:$0xf]
    %v5139 = vld [vmem:[#allocation10] sm:$0x1]
    %v5141 = vlaneseq
    %v5142 = vshrl.u32 %v5141, 7
    %v5143 = vsub.s32 0, %v5142
    %v5144 = vrot.slane %v5139, %v5143
    %v5194 = vunpack.c.l.b16 %v5091
    %v5195 = vunpack.c.l.b16 %v5092
    %v5196 = vunpack.c.l.b16 %v5093
    %v5197 = vunpack.c.l.b16 %v5094
    %v5198 = vunpack.c.l.b16 %v5095
    %v5199 = vunpack.c.l.b16 %v5096
    %v5200 = vunpack.c.l.b16 %v5097
    %v5201 = vunpack.c.l.b16 %v5098
    %v5202 = vunpack.c.l.b16 %v5099
    %v5203 = vunpack.c.l.b16 %v5100
    %v5204 = vunpack.c.l.b16 %v5101
    %v5205 = vunpack.c.l.b16 %v5102
    %v5206 = vunpack.c.l.b16 %v5103
    %v5207 = vunpack.c.l.b16 %v5104
    %v5208 = vunpack.c.l.b16 %v5105
    %v5209 = vunpack.c.l.b16 %v5106
    %v5210 = vunpack.c.l.b16 %v5107
    %v5211 = vunpack.c.l.b16 %v5108
    %v5212 = vunpack.c.l.b16 %v5109
    %v5213 = vunpack.c.l.b16 %v5110
    %v5214 = vunpack.c.l.b16 %v5111
    %v5215 = vunpack.c.l.b16 %v5112
    %v5216 = vunpack.c.l.b16 %v5113
    %v5217 = vunpack.c.l.b16 %v5114
    %v5218 = vunpack.c.l.b16 %v5115
    %v5219 = vunpack.c.l.b16 %v5116
    %v5220 = vunpack.c.l.b16 %v5117
    %v5221 = vunpack.c.l.b16 %v5118
    %v5222 = vunpack.c.l.b16 %v5119
    %v5223 = vunpack.c.l.b16 %v5120
    %v5224 = vunpack.c.l.b16 %v5121
    %v5225 = vunpack.c.l.b16 %v5122
    %v5226 = vunpack.c.l.b16 %v5123
    %v5227 = vunpack.c.l.b16 %v5124
    %v5228 = vunpack.c.l.b16 %v5125
    %v5229 = vunpack.c.l.b16 %v5126
    %v5230 = vunpack.c.l.b16 %v5127
    %v5231 = vunpack.c.l.b16 %v5128
    %v5232 = vunpack.c.l.b16 %v5129
    %v5233 = vunpack.c.l.b16 %v5130
    %v5234 = vunpack.c.l.b16 %v5131
    %v5235 = vunpack.c.l.b16 %v5132
    %v5236 = vunpack.c.l.b16 %v5133
    %v5237 = vunpack.c.l.b16 %v5134
    %v5238 = vunpack.c.l.b16 %v5135
    %v5239 = vunpack.c.l.b16 %v5136
    %v5240 = vunpack.c.l.b16 %v5137
    %v5241 = vunpack.c.l.b16 %v5138
    %v5242 = vpack.c.b16 %v5195, %v5194
    %v5243 = vpack.c.b16 %v5197, %v5196
    %v5244 = vpack.c.b16 %v5199, %v5198
    %v5245 = vpack.c.b16 %v5201, %v5200
    %v5246 = vpack.c.b16 %v5203, %v5202
    %v5247 = vpack.c.b16 %v5205, %v5204
    %v5248 = vpack.c.b16 %v5207, %v5206
    %v5249 = vpack.c.b16 %v5209, %v5208
    %v5250 = vpack.c.b16 %v5211, %v5210
    %v5251 = vpack.c.b16 %v5213, %v5212
    %v5252 = vpack.c.b16 %v5215, %v5214
    %v5253 = vpack.c.b16 %v5217, %v5216
    %v5254 = vpack.c.b16 %v5219, %v5218
    %v5255 = vpack.c.b16 %v5221, %v5220
    %v5256 = vpack.c.b16 %v5223, %v5222
    %v5257 = vpack.c.b16 %v5225, %v5224
    %v5258 = vpack.c.b16 %v5227, %v5226
    %v5259 = vpack.c.b16 %v5229, %v5228
    %v5260 = vpack.c.b16 %v5231, %v5230
    %v5261 = vpack.c.b16 %v5233, %v5232
    %v5262 = vpack.c.b16 %v5235, %v5234
    %v5263 = vpack.c.b16 %v5237, %v5236
    %v5264 = vpack.c.b16 %v5239, %v5238
    %v5265 = vpack.c.b16 %v5241, %v5240
    %5290 = vmatprep.subr.bf16.mxu0 0
    %5291 = vmatpush1.bf16.msra.mxu0 %v5242
    %5292 = vmatprep.subr.bf16.mxu0 0
    %5293 = vmatpush1.bf16.msra.mxu0 %v5243
    %5294 = vmatprep.subr.bf16.mxu0 0
    %5295 = vmatpush1.bf16.msra.mxu0 %v5244
    %5296 = vmatprep.subr.bf16.mxu0 0
    %5297 = vmatpush1.bf16.msra.mxu0 %v5245
    %5298 = vmatprep.subr.bf16.mxu0 0
    %5299 = vmatpush1.bf16.msra.mxu0 %v5246
    %5300 = vmatprep.subr.bf16.mxu0 0
    %5301 = vmatpush1.bf16.msra.mxu0 %v5247
    %5302 = vmatprep.subr.bf16.mxu0 0
    %5303 = vmatpush1.bf16.msra.mxu0 %v5248
    %5304 = vmatprep.subr.bf16.mxu0 0
    %5305 = vmatpush1.bf16.msra.mxu0 %v5249
    %5306 = vmatprep.subr.bf16.mxu0 0
    %5307 = vmatpush1.bf16.msra.mxu0 %v5250
    %5308 = vmatprep.subr.bf16.mxu0 0
    %5309 = vmatpush1.bf16.msra.mxu0 %v5251
    %5310 = vmatprep.subr.bf16.mxu0 0
    %5311 = vmatpush1.bf16.msra.mxu0 %v5252
    %5312 = vmatprep.subr.bf16.mxu0 0
    %5313 = vmatpush1.bf16.msra.mxu0 %v5253
    %5314 = vmatprep.subr.bf16.mxu0 0
    %5315 = vmatpush1.bf16.msra.mxu0 %v5254
    %5316 = vmatprep.subr.bf16.mxu0 0
    %5317 = vmatpush1.bf16.msra.mxu0 %v5255
    %5318 = vmatprep.subr.bf16.mxu0 0
    %5319 = vmatpush1.bf16.msra.mxu0 %v5256
    %5320 = vmatprep.subr.bf16.mxu0 0
    %5321 = vmatpush1.bf16.msra.mxu0 %v5257
    %5322 = vmatprep.mubr.bf16.mxu0 %v5068
    %5323 = vmatmul.mubr.bf16.gmra.mrb[0].mxu0 %v5067
    %v5324 = vpop.f32.mrb[0].mxu0
    %v5325 = vadd.f32 %v5144, %v5324
    %v5326 = vpop.f32.mrb[0].mxu0
    %v5327 = vpop.f32.mrb[0].mxu0
    %v5328 = vadd.f32 %v5144, %v5327
    %v5329 = vpop.f32.mrb[0].mxu0
    %5330 = vmatprep.mubr.bf16.mxu0 %v5071
    %5331 = vmatmul.mubr.bf16.gmra.mrb[0].mxu0 %v5070
    %v5332 = vpop.f32.mrb[0].mxu0
    %v5333 = vadd.f32 %v5144, %v5332
    %v5334 = vpop.f32.mrb[0].mxu0
    %v5335 = vpop.f32.mrb[0].mxu0
    %v5336 = vadd.f32 %v5144, %v5335
    %v5337 = vpop.f32.mrb[0].mxu0
    %5338 = vmatprep.mubr.bf16.mxu0 %v5074
    %5339 = vmatmul.mubr.bf16.gmra.mrb[0].mxu0 %v5073
    %v5340 = vpop.f32.mrb[0].mxu0
    %v5341 = vadd.f32 %v5144, %v5340
    %v5342 = vpop.f32.mrb[0].mxu0
    %v5343 = vpop.f32.mrb[0].mxu0
    %v5344 = vadd.f32 %v5144, %v5343
    %v5345 = vpop.f32.mrb[0].mxu0
    %5346 = vmatprep.mubr.bf16.mxu0 %v5077
    %5347 = vmatmul.mubr.bf16.gmra.mrb[0].mxu0 %v5076
    %v5348 = vpop.f32.mrb[0].mxu0
    %v5349 = vadd.f32 %v5144, %v5348
    %v5350 = vpop.f32.mrb[0].mxu0
    %v5351 = vpop.f32.mrb[0].mxu0
    %v5352 = vadd.f32 %v5144, %v5351
    %v5353 = vpop.f32.mrb[0].mxu0
    %5354 = vmatprep.mubr.bf16.mxu0 %v5080
    %5355 = vmatmul.mubr.bf16.gmra.mrb[0].mxu0 %v5079
    %v5356 = vpop.f32.mrb[0].mxu0
    %v5357 = vadd.f32 %v5144, %v5356
    %v5358 = vpop.f32.mrb[0].mxu0
    %v5359 = vpop.f32.mrb[0].mxu0
    %v5360 = vadd.f32 %v5144, %v5359
    %v5361 = vpop.f32.mrb[0].mxu0
    %5362 = vmatprep.mubr.bf16.mxu0 %v5083
    %5363 = vmatmul.mubr.bf16.gmra.mrb[0].mxu0 %v5082
    %v5364 = vpop.f32.mrb[0].mxu0
    %v5365 = vadd.f32 %v5144, %v5364
    %v5366 = vpop.f32.mrb[0].mxu0
    %v5367 = vpop.f32.mrb[0].mxu0
    %v5368 = vadd.f32 %v5144, %v5367
    %v5369 = vpop.f32.mrb[0].mxu0
    %5370 = vmatprep.mubr.bf16.mxu0 %v5086
    %5371 = vmatmul.mubr.bf16.gmra.mrb[0].mxu0 %v5085
    %v5372 = vpop.f32.mrb[0].mxu0
    %v5373 = vadd.f32 %v5144, %v5372
    %v5374 = vpop.f32.mrb[0].mxu0
    %v5375 = vpop.f32.mrb[0].mxu0
    %v5376 = vadd.f32 %v5144, %v5375
    %v5377 = vpop.f32.mrb[0].mxu0
    %5378 = vmatprep.mubr.bf16.mxu0 %v5089
    %5379 = vmatmul.mubr.bf16.gmra.mrb[0].mxu0 %v5088
    %v5380 = vpop.f32.mrb[0].mxu0
    %v5381 = vadd.f32 %v5144, %v5380
    %v5382 = vpop.f32.mrb[0].mxu0
    %v5383 = vpop.f32.mrb[0].mxu0
    %v5384 = vadd.f32 %v5144, %v5383
    %v5385 = vpop.f32.mrb[0].mxu0
    %5386 = vdwg.mxu0
    %5387 = vmatprep.subr.bf16.mxu0 0
    %5388 = vmatpush1.bf16.msra.mxu0 %v5258
    %5389 = vmatprep.subr.bf16.mxu0 0
    %5390 = vmatpush1.bf16.msra.mxu0 %v5259
    %5391 = vmatprep.subr.bf16.mxu0 0
    %5392 = vmatpush1.bf16.msra.mxu0 %v5260
    %5393 = vmatprep.subr.bf16.mxu0 0
    %5394 = vmatpush1.bf16.msra.mxu0 %v5261
    %5395 = vmatprep.subr.bf16.mxu0 0
    %5396 = vmatpush1.bf16.msra.mxu0 %v5262
    %5397 = vmatprep.subr.bf16.mxu0 0
    %5398 = vmatpush1.bf16.msra.mxu0 %v5263
    %5399 = vmatprep.subr.bf16.mxu0 0
    %5400 = vmatpush1.bf16.msra.mxu0 %v5264
    %5401 = vmatprep.subr.bf16.mxu0 0
    %5402 = vmatpush1.bf16.msra.mxu0 %v5265
    %5403 = vmatprep.subr.bf16.mxu0 0
    %5404 = vmatpush1.bf16.msra.mxu0 0
    %5405 = vmatprep.subr.bf16.mxu0 0
    %5406 = vmatpush1.bf16.msra.mxu0 0
    %5407 = vmatprep.subr.bf16.mxu0 0
    %5408 = vmatpush1.bf16.msra.mxu0 0
    %5409 = vmatprep.subr.bf16.mxu0 0
    %5410 = vmatpush1.bf16.msra.mxu0 0
    %5411 = vmatprep.subr.bf16.mxu0 0
    %5412 = vmatpush1.bf16.msra.mxu0 0
    %5413 = vmatprep.subr.bf16.mxu0 0
    %5414 = vmatpush1.bf16.msra.mxu0 0
    %5415 = vmatprep.subr.bf16.mxu0 0
    %5416 = vmatpush1.bf16.msra.mxu0 0
    %5417 = vmatprep.subr.bf16.mxu0 0
    %5418 = vmatpush1.bf16.msra.mxu0 0
    %5419 = vmatprep.mubr.bf16.mxu0 0
    %5420 = vmatmul.mubr.bf16.gmra.mrb[0].mxu0 %v5069
    %v5421 = vpop.f32.mrb[0].mxu0
    %v5422 = vadd.f32 %v5325, %v5421
    %v5423 = vpop.f32.mrb[0].mxu0
    %v5424 = vpop.f32.mrb[0].mxu0
    %v5425 = vadd.f32 %v5328, %v5424
    %v5426 = vpop.f32.mrb[0].mxu0
    %5427 = vmatprep.mubr.bf16.mxu0 0
    %5428 = vmatmul.mubr.bf16.gmra.mrb[0].mxu0 %v5072
    %v5429 = vpop.f32.mrb[0].mxu0
    %v5430 = vadd.f32 %v5333, %v5429
    %v5431 = vpop.f32.mrb[0].mxu0
    %v5432 = vpop.f32.mrb[0].mxu0
    %v5433 = vadd.f32 %v5336, %v5432
    %v5434 = vpop.f32.mrb[0].mxu0
    %5435 = vmatprep.mubr.bf16.mxu0 0
    %5436 = vmatmul.mubr.bf16.gmra.mrb[0].mxu0 %v5075
    %v5437 = vpop.f32.mrb[0].mxu0
    %v5438 = vadd.f32 %v5341, %v5437
    %v5439 = vpop.f32.mrb[0].mxu0
    %v5440 = vpop.f32.mrb[0].mxu0
    %v5441 = vadd.f32 %v5344, %v5440
    %v5442 = vpop.f32.mrb[0].mxu0
    %5443 = vmatprep.mubr.bf16.mxu0 0
    %5444 = vmatmul.mubr.bf16.gmra.mrb[0].mxu0 %v5078
    %v5445 = vpop.f32.mrb[0].mxu0
    %v5446 = vadd.f32 %v5349, %v5445
    %v5447 = vpop.f32.mrb[0].mxu0
    %v5448 = vpop.f32.mrb[0].mxu0
    %v5449 = vadd.f32 %v5352, %v5448
    %v5450 = vpop.f32.mrb[0].mxu0
    %5451 = vmatprep.mubr.bf16.mxu0 0
    %5452 = vmatmul.mubr.bf16.gmra.mrb[0].mxu0 %v5081
    %v5453 = vpop.f32.mrb[0].mxu0
    %v5454 = vadd.f32 %v5357, %v5453
    %v5455 = vpop.f32.mrb[0].mxu0
    %v5456 = vpop.f32.mrb[0].mxu0
    %v5457 = vadd.f32 %v5360, %v5456
    %v5458 = vpop.f32.mrb[0].mxu0
    %5459 = vmatprep.mubr.bf16.mxu0 0
    %5460 = vmatmul.mubr.bf16.gmra.mrb[0].mxu0 %v5084
    %v5461 = vpop.f32.mrb[0].mxu0
    %v5462 = vadd.f32 %v5365, %v5461
    %v5463 = vpop.f32.mrb[0].mxu0
    %v5464 = vpop.f32.mrb[0].mxu0
    %v5465 = vadd.f32 %v5368, %v5464
    %v5466 = vpop.f32.mrb[0].mxu0
    %5467 = vmatprep.mubr.bf16.mxu0 0
    %5468 = vmatmul.mubr.bf16.gmra.mrb[0].mxu0 %v5087
    %v5469 = vpop.f32.mrb[0].mxu0
    %v5470 = vadd.f32 %v5373, %v5469
    %v5471 = vpop.f32.mrb[0].mxu0
    %v5472 = vpop.f32.mrb[0].mxu0
    %v5473 = vadd.f32 %v5376, %v5472
    %v5474 = vpop.f32.mrb[0].mxu0
    %5475 = vmatprep.mubr.bf16.mxu0 0
    %5476 = vmatmul.mubr.bf16.gmra.mrb[0].mxu0 %v5090
    %v5477 = vpop.f32.mrb[0].mxu0
    %v5478 = vadd.f32 %v5381, %v5477
    %v5479 = vpop.f32.mrb[0].mxu0
    %v5480 = vpop.f32.mrb[0].mxu0
    %v5481 = vadd.f32 %v5384, %v5480
    %v5482 = vpop.f32.mrb[0].mxu0
    %5483 = vdwg.mxu0
    %v5484 = vpack.c.bf16 %v5425, %v5422
    %v5485 = vpack.c.bf16 %v5433, %v5430
    %v5486 = vpack.c.bf16 %v5441, %v5438
    %v5487 = vpack.c.bf16 %v5449, %v5446
    %v5488 = vpack.c.bf16 %v5457, %v5454
    %v5489 = vpack.c.bf16 %v5465, %v5462
    %v5490 = vpack.c.bf16 %v5473, %v5470
    %v5491 = vpack.c.bf16 %v5481, %v5478
    %v5492 = vld [vmem:[#allocation12] sm:$0xff]
    %v5493 = vld [vmem:[#allocation12 + $0x8] sm:$0xf]
    %v5494 = vld [vmem:[#allocation12 + $0xc] sm:$0xff]
    %v5495 = vld [vmem:[#allocation12 + $0x14] sm:$0xf]
    %v5496 = vld [vmem:[#allocation12 + $0x18] sm:$0xff]
    %v5497 = vld [vmem:[#allocation12 + $0x20] sm:$0xf]
    %v5498 = vld [vmem:[#allocation12 + $0x24] sm:$0xff]
    %v5499 = vld [vmem:[#allocation12 + $0x2c] sm:$0xf]
    %v5500 = vld [vmem:[#allocation12 + $0x30] sm:$0xff]
    %v5501 = vld [vmem:[#allocation12 + $0x38] sm:$0xf]
    %v5502 = vld [vmem:[#allocation12 + $0x3c] sm:$0xff]
    %v5503 = vld [vmem:[#allocation12 + $0x44] sm:$0xf]
    %v5504 = vld [vmem:[#allocation12 + $0x48] sm:$0xff]
    %v5505 = vld [vmem:[#allocation12 + $0x50] sm:$0xf]
    %v5506 = vld [vmem:[#allocation12 + $0x54] sm:$0xff]
    %v5507 = vld [vmem:[#allocation12 + $0x5c] sm:$0xf]
    %v5508 = vld [vmem:[#allocation12 + $0x60] sm:$0xff]
    %v5509 = vld [vmem:[#allocation12 + $0x68] sm:$0xf]
    %v5510 = vld [vmem:[#allocation12 + $0x6c] sm:$0xff]
    %v5511 = vld [vmem:[#allocation12 + $0x74] sm:$0xf]
    %v5512 = vld [vmem:[#allocation12 + $0x78] sm:$0xff]
    %v5513 = vld [vmem:[#allocation12 + $0x80] sm:$0xf]
    %v5514 = vld [vmem:[#allocation12 + $0x84] sm:$0xff]
    %v5515 = vld [vmem:[#allocation12 + $0x8c] sm:$0xf]
    %v5516 = vld [vmem:[#allocation12 + $0x90] sm:$0xff]
    %v5517 = vld [vmem:[#allocation12 + $0x98] sm:$0xf]
    %v5518 = vld [vmem:[#allocation12 + $0x9c] sm:$0xff]
    %v5519 = vld [vmem:[#allocation12 + $0xa4] sm:$0xf]
    %v5520 = vld [vmem:[#allocation12 + $0xa8] sm:$0xff]
    %v5521 = vld [vmem:[#allocation12 + $0xb0] sm:$0xf]
    %v5522 = vld [vmem:[#allocation12 + $0xb4] sm:$0xff]
    %v5523 = vld [vmem:[#allocation12 + $0xbc] sm:$0xf]
    %v5524 = vld [vmem:[#allocation13] sm:$0x7]
    %v5526 = vlaneseq
    %v5527 = vshrl.u32 %v5526, 7
    %v5528 = vsub.s32 0, %v5527
    %v5529 = vrot.slane %v5524, %v5528
    %v5530 = vlaneseq
    %v5531 = vshrl.u32 %v5530, 7
    %v5532 = vsub.s32 1, %v5531
    %v5533 = vrot.slane %v5524, %v5532
    %v5534 = vlaneseq
    %v5535 = vshrl.u32 %v5534, 7
    %v5536 = vsub.s32 2, %v5535
    %v5537 = vrot.slane %v5524, %v5536
    %v5573 = vunpack.c.l.b16 %v5492
    %v5574 = vunpack.c.h.b16 %v5492
    %v5575 = vunpack.c.l.b16 %v5493
    %v5576 = vunpack.c.l.b16 %v5494
    %v5577 = vunpack.c.h.b16 %v5494
    %v5578 = vunpack.c.l.b16 %v5495
    %v5579 = vunpack.c.l.b16 %v5496
    %v5580 = vunpack.c.h.b16 %v5496
    %v5581 = vunpack.c.l.b16 %v5497
    %v5582 = vunpack.c.l.b16 %v5498
    %v5583 = vunpack.c.h.b16 %v5498
    %v5584 = vunpack.c.l.b16 %v5499
    %v5585 = vunpack.c.l.b16 %v5500
    %v5586 = vunpack.c.h.b16 %v5500
    %v5587 = vunpack.c.l.b16 %v5501
    %v5588 = vunpack.c.l.b16 %v5502
    %v5589 = vunpack.c.h.b16 %v5502
    %v5590 = vunpack.c.l.b16 %v5503
    %v5591 = vunpack.c.l.b16 %v5504
    %v5592 = vunpack.c.h.b16 %v5504
    %v5593 = vunpack.c.l.b16 %v5505
    %v5594 = vunpack.c.l.b16 %v5506
    %v5595 = vunpack.c.h.b16 %v5506
    %v5596 = vunpack.c.l.b16 %v5507
    %v5597 = vunpack.c.l.b16 %v5508
    %v5598 = vunpack.c.h.b16 %v5508
    %v5599 = vunpack.c.l.b16 %v5509
    %v5600 = vunpack.c.l.b16 %v5510
    %v5601 = vunpack.c.h.b16 %v5510
    %v5602 = vunpack.c.l.b16 %v5511
    %v5603 = vunpack.c.l.b16 %v5512
    %v5604 = vunpack.c.h.b16 %v5512
    %v5605 = vunpack.c.l.b16 %v5513
    %v5606 = vunpack.c.l.b16 %v5514
    %v5607 = vunpack.c.h.b16 %v5514
    %v5608 = vunpack.c.l.b16 %v5515
    %v5609 = vunpack.c.l.b16 %v5516
    %v5610 = vunpack.c.h.b16 %v5516
    %v5611 = vunpack.c.l.b16 %v5517
    %v5612 = vunpack.c.l.b16 %v5518
    %v5613 = vunpack.c.h.b16 %v5518
    %v5614 = vunpack.c.l.b16 %v5519
    %v5615 = vunpack.c.l.b16 %v5520
    %v5616 = vunpack.c.h.b16 %v5520
    %v5617 = vunpack.c.l.b16 %v5521
    %v5618 = vunpack.c.l.b16 %v5522
    %v5619 = vunpack.c.h.b16 %v5522
    %v5620 = vunpack.c.l.b16 %v5523
    %v5621 = vpack.c.b16 %v5576, %v5573
    %v5622 = vpack.c.b16 %v5577, %v5574
    %v5623 = vpack.c.b16 %v5578, %v5575
    %v5624 = vpack.c.b16 %v5582, %v5579
    %v5625 = vpack.c.b16 %v5583, %v5580
    %v5626 = vpack.c.b16 %v5584, %v5581
    %v5627 = vpack.c.b16 %v5588, %v5585
    %v5628 = vpack.c.b16 %v5589, %v5586
    %v5629 = vpack.c.b16 %v5590, %v5587
    %v5630 = vpack.c.b16 %v5594, %v5591
    %v5631 = vpack.c.b16 %v5595, %v5592
    %v5632 = vpack.c.b16 %v5596, %v5593
    %v5633 = vpack.c.b16 %v5600, %v5597
    %v5634 = vpack.c.b16 %v5601, %v5598
    %v5635 = vpack.c.b16 %v5602, %v5599
    %v5636 = vpack.c.b16 %v5606, %v5603
    %v5637 = vpack.c.b16 %v5607, %v5604
    %v5638 = vpack.c.b16 %v5608, %v5605
    %v5639 = vpack.c.b16 %v5612, %v5609
    %v5640 = vpack.c.b16 %v5613, %v5610
    %v5641 = vpack.c.b16 %v5614, %v5611
    %v5642 = vpack.c.b16 %v5618, %v5615
    %v5643 = vpack.c.b16 %v5619, %v5616
    %v5644 = vpack.c.b16 %v5620, %v5617
    %5669 = vmatprep.subr.bf16.mxu0 %v5622
    %5670 = vmatpush1.bf16.msra.mxu0 %v5621
    %5671 = vmatprep.subr.bf16.mxu0 %v5625
    %5672 = vmatpush1.bf16.msra.mxu0 %v5624
    %5673 = vmatprep.subr.bf16.mxu0 %v5628
    %5674 = vmatpush1.bf16.msra.mxu0 %v5627
    %5675 = vmatprep.subr.bf16.mxu0 %v5631
    %5676 = vmatpush1.bf16.msra.mxu0 %v5630
    %5677 = vmatprep.subr.bf16.mxu0 %v5634
    %5678 = vmatpush1.bf16.msra.mxu0 %v5633
    %5679 = vmatprep.subr.bf16.mxu0 %v5637
    %5680 = vmatpush1.bf16.msra.mxu0 %v5636
    %5681 = vmatprep.subr.bf16.mxu0 %v5640
    %5682 = vmatpush1.bf16.msra.mxu0 %v5639
    %5683 = vmatprep.subr.bf16.mxu0 %v5643
    %5684 = vmatpush1.bf16.msra.mxu0 %v5642
    %5685 = vmatprep.subr.bf16.mxu0 0
    %5686 = vmatpush1.bf16.msra.mxu0 0
    %5687 = vmatprep.subr.bf16.mxu0 0
    %5688 = vmatpush1.bf16.msra.mxu0 0
    %5689 = vmatprep.subr.bf16.mxu0 0
    %5690 = vmatpush1.bf16.msra.mxu0 0
    %5691 = vmatprep.subr.bf16.mxu0 0
    %5692 = vmatpush1.bf16.msra.mxu0 0
    %5693 = vmatprep.subr.bf16.mxu0 0
    %5694 = vmatpush1.bf16.msra.mxu0 0
    %5695 = vmatprep.subr.bf16.mxu0 0
    %5696 = vmatpush1.bf16.msra.mxu0 0
    %5697 = vmatprep.subr.bf16.mxu0 0
    %5698 = vmatpush1.bf16.msra.mxu0 0
    %5699 = vmatprep.subr.bf16.mxu0 0
    %5700 = vmatpush1.bf16.msra.mxu0 0
    %5701 = vmatprep.mubr.bf16.mxu0 0
    %5702 = vmatmul.mubr.bf16.gmra.mrb[0].mxu0 %v5484
    %v5703 = vpop.f32.mrb[0].mxu0
    %v5704 = vadd.f32 %v5529, %v5703
    %v5705 = vpop.f32.mrb[0].mxu0
    %v5706 = vadd.f32 %v5533, %v5705
    %v5707 = vpop.f32.mrb[0].mxu0
    %v5708 = vadd.f32 %v5529, %v5707
    %v5709 = vpop.f32.mrb[0].mxu0
    %v5710 = vadd.f32 %v5533, %v5709
    %5711 = vmatprep.mubr.bf16.mxu0 0
    %5712 = vmatmul.mubr.bf16.gmra.mrb[0].mxu0 %v5485
    %v5713 = vpop.f32.mrb[0].mxu0
    %v5714 = vadd.f32 %v5529, %v5713
    %v5715 = vpop.f32.mrb[0].mxu0
    %v5716 = vadd.f32 %v5533, %v5715
    %v5717 = vpop.f32.mrb[0].mxu0
    %v5718 = vadd.f32 %v5529, %v5717
    %v5719 = vpop.f32.mrb[0].mxu0
    %v5720 = vadd.f32 %v5533, %v5719
    %5721 = vmatprep.mubr.bf16.mxu0 0
    %5722 = vmatmul.mubr.bf16.gmra.mrb[0].mxu0 %v5486
    %v5723 = vpop.f32.mrb[0].mxu0
    %v5724 = vadd.f32 %v5529, %v5723
    %v5725 = vpop.f32.mrb[0].mxu0
    %v5726 = vadd.f32 %v5533, %v5725
    %v5727 = vpop.f32.mrb[0].mxu0
    %v5728 = vadd.f32 %v5529, %v5727
    %v5729 = vpop.f32.mrb[0].mxu0
    %v5730 = vadd.f32 %v5533, %v5729
    %5731 = vmatprep.mubr.bf16.mxu0 0
    %5732 = vmatmul.mubr.bf16.gmra.mrb[0].mxu0 %v5487
    %v5733 = vpop.f32.mrb[0].mxu0
    %v5734 = vadd.f32 %v5529, %v5733
    %v5735 = vpop.f32.mrb[0].mxu0
    %v5736 = vadd.f32 %v5533, %v5735
    %v5737 = vpop.f32.mrb[0].mxu0
    %v5738 = vadd.f32 %v5529, %v5737
    %v5739 = vpop.f32.mrb[0].mxu0
    %v5740 = vadd.f32 %v5533, %v5739
    %5741 = vmatprep.mubr.bf16.mxu0 0
    %5742 = vmatmul.mubr.bf16.gmra.mrb[0].mxu0 %v5488
    %v5743 = vpop.f32.mrb[0].mxu0
    %v5744 = vadd.f32 %v5529, %v5743
    %v5745 = vpop.f32.mrb[0].mxu0
    %v5746 = vadd.f32 %v5533, %v5745
    %v5747 = vpop.f32.mrb[0].mxu0
    %v5748 = vadd.f32 %v5529, %v5747
    %v5749 = vpop.f32.mrb[0].mxu0
    %v5750 = vadd.f32 %v5533, %v5749
    %5751 = vmatprep.mubr.bf16.mxu0 0
    %5752 = vmatmul.mubr.bf16.gmra.mrb[0].mxu0 %v5489
    %v5753 = vpop.f32.mrb[0].mxu0
    %v5754 = vadd.f32 %v5529, %v5753
    %v5755 = vpop.f32.mrb[0].mxu0
    %v5756 = vadd.f32 %v5533, %v5755
    %v5757 = vpop.f32.mrb[0].mxu0
    %v5758 = vadd.f32 %v5529, %v5757
    %v5759 = vpop.f32.mrb[0].mxu0
    %v5760 = vadd.f32 %v5533, %v5759
    %5761 = vmatprep.mubr.bf16.mxu0 0
    %5762 = vmatmul.mubr.bf16.gmra.mrb[0].mxu0 %v5490
    %v5763 = vpop.f32.mrb[0].mxu0
    %v5764 = vadd.f32 %v5529, %v5763
    %v5765 = vpop.f32.mrb[0].mxu0
    %v5766 = vadd.f32 %v5533, %v5765
    %v5767 = vpop.f32.mrb[0].mxu0
    %v5768 = vadd.f32 %v5529, %v5767
    %v5769 = vpop.f32.mrb[0].mxu0
    %v5770 = vadd.f32 %v5533, %v5769
    %5771 = vmatprep.mubr.bf16.mxu0 0
    %5772 = vmatmul.mubr.bf16.gmra.mrb[0].mxu0 %v5491
    %v5773 = vpop.f32.mrb[0].mxu0
    %v5774 = vadd.f32 %v5529, %v5773
    %v5775 = vpop.f32.mrb[0].mxu0
    %v5776 = vadd.f32 %v5533, %v5775
    %v5777 = vpop.f32.mrb[0].mxu0
    %v5778 = vadd.f32 %v5529, %v5777
    %v5779 = vpop.f32.mrb[0].mxu0
    %v5780 = vadd.f32 %v5533, %v5779
    %5781 = vdwg.mxu0
    %5782 = vmatprep.subr.bf16.mxu0 0
    %5783 = vmatpush1.bf16.msra.mxu0 %v5623
    %5784 = vmatprep.subr.bf16.mxu0 0
    %5785 = vmatpush1.bf16.msra.mxu0 %v5626
    %5786 = vmatprep.subr.bf16.mxu0 0
    %5787 = vmatpush1.bf16.msra.mxu0 %v5629
    %5788 = vmatprep.subr.bf16.mxu0 0
    %5789 = vmatpush1.bf16.msra.mxu0 %v5632
    %5790 = vmatprep.subr.bf16.mxu0 0
    %5791 = vmatpush1.bf16.msra.mxu0 %v5635
    %5792 = vmatprep.subr.bf16.mxu0 0
    %5793 = vmatpush1.bf16.msra.mxu0 %v5638
    %5794 = vmatprep.subr.bf16.mxu0 0
    %5795 = vmatpush1.bf16.msra.mxu0 %v5641
    %5796 = vmatprep.subr.bf16.mxu0 0
    %5797 = vmatpush1.bf16.msra.mxu0 %v5644
    %5798 = vmatprep.subr.bf16.mxu0 0
    %5799 = vmatpush1.bf16.msra.mxu0 0
    %5800 = vmatprep.subr.bf16.mxu0 0
    %5801 = vmatpush1.bf16.msra.mxu0 0
    %5802 = vmatprep.subr.bf16.mxu0 0
    %5803 = vmatpush1.bf16.msra.mxu0 0
    %5804 = vmatprep.subr.bf16.mxu0 0
    %5805 = vmatpush1.bf16.msra.mxu0 0
    %5806 = vmatprep.subr.bf16.mxu0 0
    %5807 = vmatpush1.bf16.msra.mxu0 0
    %5808 = vmatprep.subr.bf16.mxu0 0
    %5809 = vmatpush1.bf16.msra.mxu0 0
    %5810 = vmatprep.subr.bf16.mxu0 0
    %5811 = vmatpush1.bf16.msra.mxu0 0
    %5812 = vmatprep.subr.bf16.mxu0 0
    %5813 = vmatpush1.bf16.msra.mxu0 0
    %5814 = vmatprep.mubr.bf16.mxu0 0
    %5815 = vmatmul.mubr.bf16.gmra.mrb[0].mxu0 %v5484
    %v5816 = vpop.f32.mrb[0].mxu0
    %v5817 = vadd.f32 %v5537, %v5816
    %v5818 = vpop.f32.mrb[0].mxu0
    %v5819 = vpop.f32.mrb[0].mxu0
    %v5820 = vadd.f32 %v5537, %v5819
    %v5821 = vpop.f32.mrb[0].mxu0
    %5822 = vmatprep.mubr.bf16.mxu0 0
    %5823 = vmatmul.mubr.bf16.gmra.mrb[0].mxu0 %v5485
    %v5824 = vpop.f32.mrb[0].mxu0
    %v5825 = vadd.f32 %v5537, %v5824
    %v5826 = vpop.f32.mrb[0].mxu0
    %v5827 = vpop.f32.mrb[0].mxu0
    %v5828 = vadd.f32 %v5537, %v5827
    %v5829 = vpop.f32.mrb[0].mxu0
    %5830 = vmatprep.mubr.bf16.mxu0 0
    %5831 = vmatmul.mubr.bf16.gmra.mrb[0].mxu0 %v5486
    %v5832 = vpop.f32.mrb[0].mxu0
    %v5833 = vadd.f32 %v5537, %v5832
    %v5834 = vpop.f32.mrb[0].mxu0
    %v5835 = vpop.f32.mrb[0].mxu0
    %v5836 = vadd.f32 %v5537, %v5835
    %v5837 = vpop.f32.mrb[0].mxu0
    %5838 = vmatprep.mubr.bf16.mxu0 0
    %5839 = vmatmul.mubr.bf16.gmra.mrb[0].mxu0 %v5487
    %v5840 = vpop.f32.mrb[0].mxu0
    %v5841 = vadd.f32 %v5537, %v5840
    %v5842 = vpop.f32.mrb[0].mxu0
    %v5843 = vpop.f32.mrb[0].mxu0
    %v5844 = vadd.f32 %v5537, %v5843
    %v5845 = vpop.f32.mrb[0].mxu0
    %5846 = vmatprep.mubr.bf16.mxu0 0
    %5847 = vmatmul.mubr.bf16.gmra.mrb[0].mxu0 %v5488
    %v5848 = vpop.f32.mrb[0].mxu0
    %v5849 = vadd.f32 %v5537, %v5848
    %v5850 = vpop.f32.mrb[0].mxu0
    %v5851 = vpop.f32.mrb[0].mxu0
    %v5852 = vadd.f32 %v5537, %v5851
    %v5853 = vpop.f32.mrb[0].mxu0
    %5854 = vmatprep.mubr.bf16.mxu0 0
    %5855 = vmatmul.mubr.bf16.gmra.mrb[0].mxu0 %v5489
    %v5856 = vpop.f32.mrb[0].mxu0
    %v5857 = vadd.f32 %v5537, %v5856
    %v5858 = vpop.f32.mrb[0].mxu0
    %v5859 = vpop.f32.mrb[0].mxu0
    %v5860 = vadd.f32 %v5537, %v5859
    %v5861 = vpop.f32.mrb[0].mxu0
    %5862 = vmatprep.mubr.bf16.mxu0 0
    %5863 = vmatmul.mubr.bf16.gmra.mrb[0].mxu0 %v5490
    %v5864 = vpop.f32.mrb[0].mxu0
    %v5865 = vadd.f32 %v5537, %v5864
    %v5866 = vpop.f32.mrb[0].mxu0
    %v5867 = vpop.f32.mrb[0].mxu0
    %v5868 = vadd.f32 %v5537, %v5867
    %v5869 = vpop.f32.mrb[0].mxu0
    %5870 = vmatprep.mubr.bf16.mxu0 0
    %5871 = vmatmul.mubr.bf16.gmra.mrb[0].mxu0 %v5491
    %v5872 = vpop.f32.mrb[0].mxu0
    %v5873 = vadd.f32 %v5537, %v5872
    %v5874 = vpop.f32.mrb[0].mxu0
    %v5875 = vpop.f32.mrb[0].mxu0
    %v5876 = vadd.f32 %v5537, %v5875
    %v5877 = vpop.f32.mrb[0].mxu0
    %5878 = vdwg.mxu0
    %v5879 = vmax.f32 %v5704, 0.0
    %v5880 = vmax.f32 %v5706, 0.0
    %v5881 = vmax.f32 %v5817, 0.0
    %v5882 = vmax.f32 %v5708, 0.0
    %v5883 = vmax.f32 %v5710, 0.0
    %v5884 = vmax.f32 %v5820, 0.0
    %v5885 = vmax.f32 %v5714, 0.0
    %v5886 = vmax.f32 %v5716, 0.0
    %v5887 = vmax.f32 %v5825, 0.0
    %v5888 = vmax.f32 %v5718, 0.0
    %v5889 = vmax.f32 %v5720, 0.0
    %v5890 = vmax.f32 %v5828, 0.0
    %v5891 = vmax.f32 %v5724, 0.0
    %v5892 = vmax.f32 %v5726, 0.0
    %v5893 = vmax.f32 %v5833, 0.0
    %v5894 = vmax.f32 %v5728, 0.0
    %v5895 = vmax.f32 %v5730, 0.0
    %v5896 = vmax.f32 %v5836, 0.0
    %v5897 = vmax.f32 %v5734, 0.0
    %v5898 = vmax.f32 %v5736, 0.0
    %v5899 = vmax.f32 %v5841, 0.0
    %v5900 = vmax.f32 %v5738, 0.0
    %v5901 = vmax.f32 %v5740, 0.0
    %v5902 = vmax.f32 %v5844, 0.0
    %v5903 = vmax.f32 %v5744, 0.0
    %v5904 = vmax.f32 %v5746, 0.0
    %v5905 = vmax.f32 %v5849, 0.0
    %v5906 = vmax.f32 %v5748, 0.0
    %v5907 = vmax.f32 %v5750, 0.0
    %v5908 = vmax.f32 %v5852, 0.0
    %v5909 = vmax.f32 %v5754, 0.0
    %v5910 = vmax.f32 %v5756, 0.0
    %v5911 = vmax.f32 %v5857, 0.0
    %v5912 = vmax.f32 %v5758, 0.0
    %v5913 = vmax.f32 %v5760, 0.0
    %v5914 = vmax.f32 %v5860, 0.0
    %v5915 = vmax.f32 %v5764, 0.0
    %v5916 = vmax.f32 %v5766, 0.0
    %v5917 = vmax.f32 %v5865, 0.0
    %v5918 = vmax.f32 %v5768, 0.0
    %v5919 = vmax.f32 %v5770, 0.0
    %v5920 = vmax.f32 %v5868, 0.0
    %v5921 = vmax.f32 %v5774, 0.0
    %v5922 = vmax.f32 %v5776, 0.0
    %v5923 = vmax.f32 %v5873, 0.0
    %v5924 = vmax.f32 %v5778, 0.0
    %v5925 = vmax.f32 %v5780, 0.0
    %v5926 = vmax.f32 %v5876, 0.0
    %v5927 = vpack.c.bf16 %v5882, %v5879
    %v5928 = vpack.c.bf16 %v5883, %v5880
    %v5929 = vpack.c.bf16 %v5884, %v5881
    %v5930 = vpack.c.bf16 %v5888, %v5885
    %v5931 = vpack.c.bf16 %v5889, %v5886
    %v5932 = vpack.c.bf16 %v5890, %v5887
    %v5933 = vpack.c.bf16 %v5894, %v5891
    %v5934 = vpack.c.bf16 %v5895, %v5892
    %v5935 = vpack.c.bf16 %v5896, %v5893
    %v5936 = vpack.c.bf16 %v5900, %v5897
    %v5937 = vpack.c.bf16 %v5901, %v5898
    %v5938 = vpack.c.bf16 %v5902, %v5899
    %v5939 = vpack.c.bf16 %v5906, %v5903
    %v5940 = vpack.c.bf16 %v5907, %v5904
    %v5941 = vpack.c.bf16 %v5908, %v5905
    %v5942 = vpack.c.bf16 %v5912, %v5909
    %v5943 = vpack.c.bf16 %v5913, %v5910
    %v5944 = vpack.c.bf16 %v5914, %v5911
    %v5945 = vpack.c.bf16 %v5918, %v5915
    %v5946 = vpack.c.bf16 %v5919, %v5916
    %v5947 = vpack.c.bf16 %v5920, %v5917
    %v5948 = vpack.c.bf16 %v5924, %v5921
    %v5949 = vpack.c.bf16 %v5925, %v5922
    %v5950 = vpack.c.bf16 %v5926, %v5923
    %v5951 = vld [vmem:[#allocation15] sm:$0xff]
    %v5952 = vld [vmem:[#allocation15 + $0x8] sm:$0xff]
    %v5953 = vld [vmem:[#allocation15 + $0x10] sm:$0xf]
    %v5954 = vld [vmem:[#allocation15 + $0x14] sm:$0xff]
    %v5955 = vld [vmem:[#allocation15 + $0x1c] sm:$0xff]
    %v5956 = vld [vmem:[#allocation15 + $0x24] sm:$0xf]
    %v5957 = vld [vmem:[#allocation15 + $0x28] sm:$0xff]
    %v5958 = vld [vmem:[#allocation15 + $0x30] sm:$0xff]
    %v5959 = vld [vmem:[#allocation15 + $0x38] sm:$0xf]
    %v5960 = vld [vmem:[#allocation15 + $0x3c] sm:$0xff]
    %v5961 = vld [vmem:[#allocation15 + $0x44] sm:$0xff]
    %v5962 = vld [vmem:[#allocation15 + $0x4c] sm:$0xf]
    %v5963 = vld [vmem:[#allocation15 + $0x50] sm:$0xff]
    %v5964 = vld [vmem:[#allocation15 + $0x58] sm:$0xff]
    %v5965 = vld [vmem:[#allocation15 + $0x60] sm:$0xf]
    %v5966 = vld [vmem:[#allocation15 + $0x64] sm:$0xff]
    %v5967 = vld [vmem:[#allocation15 + $0x6c] sm:$0xff]
    %v5968 = vld [vmem:[#allocation15 + $0x74] sm:$0xf]
    %v5969 = vld [vmem:[#allocation15 + $0x78] sm:$0xff]
    %v5970 = vld [vmem:[#allocation15 + $0x80] sm:$0xff]
    %v5971 = vld [vmem:[#allocation15 + $0x88] sm:$0xf]
    %v5972 = vld [vmem:[#allocation15 + $0x8c] sm:$0xff]
    %v5973 = vld [vmem:[#allocation15 + $0x94] sm:$0xff]
    %v5974 = vld [vmem:[#allocation15 + $0x9c] sm:$0xf]
    %v5975 = vld [vmem:[#allocation15 + $0xa0] sm:$0xff]
    %v5976 = vld [vmem:[#allocation15 + $0xa8] sm:$0xff]
    %v5977 = vld [vmem:[#allocation15 + $0xb0] sm:$0xf]
    %v5978 = vld [vmem:[#allocation15 + $0xb4] sm:$0xff]
    %v5979 = vld [vmem:[#allocation15 + $0xbc] sm:$0xff]
    %v5980 = vld [vmem:[#allocation15 + $0xc4] sm:$0xf]
    %v5981 = vld [vmem:[#allocation15 + $0xc8] sm:$0xff]
    %v5982 = vld [vmem:[#allocation15 + $0xd0] sm:$0xff]
    %v5983 = vld [vmem:[#allocation15 + $0xd8] sm:$0xf]
    %v5984 = vld [vmem:[#allocation15 + $0xdc] sm:$0xff]
    %v5985 = vld [vmem:[#allocation15 + $0xe4] sm:$0xff]
    %v5986 = vld [vmem:[#allocation15 + $0xec] sm:$0xf]
    %v5987 = vld [vmem:[#allocation15 + $0xf0] sm:$0xff]
    %v5988 = vld [vmem:[#allocation15 + $0xf8] sm:$0xff]
    %v5989 = vld [vmem:[#allocation15 + $0x100] sm:$0xf]
    %v5990 = vld [vmem:[#allocation15 + $0x104] sm:$0xff]
    %v5991 = vld [vmem:[#allocation15 + $0x10c] sm:$0xff]
    %v5992 = vld [vmem:[#allocation15 + $0x114] sm:$0xf]
    %v5993 = vld [vmem:[#allocation15 + $0x118] sm:$0xff]
    %v5994 = vld [vmem:[#allocation15 + $0x120] sm:$0xff]
    %v5995 = vld [vmem:[#allocation15 + $0x128] sm:$0xf]
    %v5996 = vld [vmem:[#allocation15 + $0x12c] sm:$0xff]
    %v5997 = vld [vmem:[#allocation15 + $0x134] sm:$0xff]
    %v5998 = vld [vmem:[#allocation15 + $0x13c] sm:$0xf]
    %v5999 = vld [vmem:[#allocation15 + $0x140] sm:$0xff]
    %v6000 = vld [vmem:[#allocation15 + $0x148] sm:$0xff]
    %v6001 = vld [vmem:[#allocation15 + $0x150] sm:$0xf]
    %v6002 = vld [vmem:[#allocation15 + $0x154] sm:$0xff]
    %v6003 = vld [vmem:[#allocation15 + $0x15c] sm:$0xff]
    %v6004 = vld [vmem:[#allocation15 + $0x164] sm:$0xf]
    %v6005 = vld [vmem:[#allocation15 + $0x168] sm:$0xff]
    %v6006 = vld [vmem:[#allocation15 + $0x170] sm:$0xff]
    %v6007 = vld [vmem:[#allocation15 + $0x178] sm:$0xf]
    %v6008 = vld [vmem:[#allocation15 + $0x17c] sm:$0xff]
    %v6009 = vld [vmem:[#allocation15 + $0x184] sm:$0xff]
    %v6010 = vld [vmem:[#allocation15 + $0x18c] sm:$0xf]
    %v6011 = vld [vmem:[#allocation15 + $0x190] sm:$0xff]
    %v6012 = vld [vmem:[#allocation15 + $0x198] sm:$0xff]
    %v6013 = vld [vmem:[#allocation15 + $0x1a0] sm:$0xf]
    %v6014 = vld [vmem:[#allocation15 + $0x1a4] sm:$0xff]
    %v6015 = vld [vmem:[#allocation15 + $0x1ac] sm:$0xff]
    %v6016 = vld [vmem:[#allocation15 + $0x1b4] sm:$0xf]
    %v6017 = vld [vmem:[#allocation15 + $0x1b8] sm:$0xff]
    %v6018 = vld [vmem:[#allocation15 + $0x1c0] sm:$0xff]
    %v6019 = vld [vmem:[#allocation15 + $0x1c8] sm:$0xf]
    %v6020 = vld [vmem:[#allocation15 + $0x1cc] sm:$0xff]
    %v6021 = vld [vmem:[#allocation15 + $0x1d4] sm:$0xff]
    %v6022 = vld [vmem:[#allocation15 + $0x1dc] sm:$0xf]
    %v6023 = vld [vmem:[#allocation15 + $0x1e0] sm:$0xff]
    %v6024 = vld [vmem:[#allocation15 + $0x1e8] sm:$0xff]
    %v6025 = vld [vmem:[#allocation15 + $0x1f0] sm:$0xf]
    %v6026 = vld [vmem:[#allocation15 + $0x1f4] sm:$0xff]
    %v6027 = vld [vmem:[#allocation15 + $0x1fc] sm:$0xff]
    %v6028 = vld [vmem:[#allocation15 + $0x204] sm:$0xf]
    %v6029 = vld [vmem:[#allocation15 + $0x208] sm:$0xff]
    %v6030 = vld [vmem:[#allocation15 + $0x210] sm:$0xff]
    %v6031 = vld [vmem:[#allocation15 + $0x218] sm:$0xf]
    %v6032 = vld [vmem:[#allocation15 + $0x21c] sm:$0xff]
    %v6033 = vld [vmem:[#allocation15 + $0x224] sm:$0xff]
    %v6034 = vld [vmem:[#allocation15 + $0x22c] sm:$0xf]
    %v6035 = vld [vmem:[#allocation15 + $0x230] sm:$0xff]
    %v6036 = vld [vmem:[#allocation15 + $0x238] sm:$0xff]
    %v6037 = vld [vmem:[#allocation15 + $0x240] sm:$0xf]
    %v6038 = vld [vmem:[#allocation15 + $0x244] sm:$0xff]
    %v6039 = vld [vmem:[#allocation15 + $0x24c] sm:$0xff]
    %v6040 = vld [vmem:[#allocation15 + $0x254] sm:$0xf]
    %v6041 = vld [vmem:[#allocation15 + $0x258] sm:$0xff]
    %v6042 = vld [vmem:[#allocation15 + $0x260] sm:$0xff]
    %v6043 = vld [vmem:[#allocation15 + $0x268] sm:$0xf]
    %v6044 = vld [vmem:[#allocation15 + $0x26c] sm:$0xff]
    %v6045 = vld [vmem:[#allocation15 + $0x274] sm:$0xff]
    %v6046 = vld [vmem:[#allocation15 + $0x27c] sm:$0xf]
    %v6047 = vld [vmem:[#allocation15 + $0x280] sm:$0xff]
    %v6048 = vld [vmem:[#allocation15 + $0x288] sm:$0xff]
    %v6049 = vld [vmem:[#allocation15 + $0x290] sm:$0xf]
    %v6050 = vld [vmem:[#allocation15 + $0x294] sm:$0xff]
    %v6051 = vld [vmem:[#allocation15 + $0x29c] sm:$0xff]
    %v6052 = vld [vmem:[#allocation15 + $0x2a4] sm:$0xf]
    %v6053 = vld [vmem:[#allocation15 + $0x2a8] sm:$0xff]
    %v6054 = vld [vmem:[#allocation15 + $0x2b0] sm:$0xff]
    %v6055 = vld [vmem:[#allocation15 + $0x2b8] sm:$0xf]
    %v6056 = vld [vmem:[#allocation15 + $0x2bc] sm:$0xff]
    %v6057 = vld [vmem:[#allocation15 + $0x2c4] sm:$0xff]
    %v6058 = vld [vmem:[#allocation15 + $0x2cc] sm:$0xf]
    %v6059 = vld [vmem:[#allocation15 + $0x2d0] sm:$0xff]
    %v6060 = vld [vmem:[#allocation15 + $0x2d8] sm:$0xff]
    %v6061 = vld [vmem:[#allocation15 + $0x2e0] sm:$0xf]
    %v6062 = vld [vmem:[#allocation15 + $0x2e4] sm:$0xff]
    %v6063 = vld [vmem:[#allocation15 + $0x2ec] sm:$0xff]
    %v6064 = vld [vmem:[#allocation15 + $0x2f4] sm:$0xf]
    %v6065 = vld [vmem:[#allocation15 + $0x2f8] sm:$0xff]
    %v6066 = vld [vmem:[#allocation15 + $0x300] sm:$0xff]
    %v6067 = vld [vmem:[#allocation15 + $0x308] sm:$0xf]
    %v6068 = vld [vmem:[#allocation15 + $0x30c] sm:$0xff]
    %v6069 = vld [vmem:[#allocation15 + $0x314] sm:$0xff]
    %v6070 = vld [vmem:[#allocation15 + $0x31c] sm:$0xf]
    %v6071 = vld [vmem:[#allocation15 + $0x320] sm:$0xff]
    %v6072 = vld [vmem:[#allocation15 + $0x328] sm:$0xff]
    %v6073 = vld [vmem:[#allocation15 + $0x330] sm:$0xf]
    %v6074 = vld [vmem:[#allocation15 + $0x334] sm:$0xff]
    %v6075 = vld [vmem:[#allocation15 + $0x33c] sm:$0xff]
    %v6076 = vld [vmem:[#allocation15 + $0x344] sm:$0xf]
    %v6077 = vld [vmem:[#allocation15 + $0x348] sm:$0xff]
    %v6078 = vld [vmem:[#allocation15 + $0x350] sm:$0xff]
    %v6079 = vld [vmem:[#allocation15 + $0x358] sm:$0xf]
    %v6080 = vld [vmem:[#allocation15 + $0x35c] sm:$0xff]
    %v6081 = vld [vmem:[#allocation15 + $0x364] sm:$0xff]
    %v6082 = vld [vmem:[#allocation15 + $0x36c] sm:$0xf]
    %v6083 = vld [vmem:[#allocation15 + $0x370] sm:$0xff]
    %v6084 = vld [vmem:[#allocation15 + $0x378] sm:$0xff]
    %v6085 = vld [vmem:[#allocation15 + $0x380] sm:$0xf]
    %v6086 = vld [vmem:[#allocation15 + $0x384] sm:$0xff]
    %v6087 = vld [vmem:[#allocation15 + $0x38c] sm:$0xff]
    %v6088 = vld [vmem:[#allocation15 + $0x394] sm:$0xf]
    %v6089 = vld [vmem:[#allocation15 + $0x398] sm:$0xff]
    %v6090 = vld [vmem:[#allocation15 + $0x3a0] sm:$0xff]
    %v6091 = vld [vmem:[#allocation15 + $0x3a8] sm:$0xf]
    %v6092 = vld [vmem:[#allocation15 + $0x3ac] sm:$0xff]
    %v6093 = vld [vmem:[#allocation15 + $0x3b4] sm:$0xff]
    %v6094 = vld [vmem:[#allocation15 + $0x3bc] sm:$0xf]
    %v6095 = vld [vmem:[#allocation16] sm:$0x1f]
    %v6097 = vlaneseq
    %v6098 = vshrl.u32 %v6097, 7
    %v6099 = vsub.s32 0, %v6098
    %v6100 = vrot.slane %v6095, %v6099
    %v6101 = vlaneseq
    %v6102 = vshrl.u32 %v6101, 7
    %v6103 = vsub.s32 1, %v6102
    %v6104 = vrot.slane %v6095, %v6103
    %v6105 = vlaneseq
    %v6106 = vshrl.u32 %v6105, 7
    %v6107 = vsub.s32 2, %v6106
    %v6108 = vrot.slane %v6095, %v6107
    %v6109 = vlaneseq
    %v6110 = vshrl.u32 %v6109, 7
    %v6111 = vsub.s32 3, %v6110
    %v6112 = vrot.slane %v6095, %v6111
    %v6113 = vlaneseq
    %v6114 = vshrl.u32 %v6113, 7
    %v6115 = vsub.s32 4, %v6114
    %v6116 = vrot.slane %v6095, %v6115
    %v6266 = vunpack.c.l.b16 %v5951
    %v6267 = vunpack.c.h.b16 %v5951
    %v6268 = vunpack.c.l.b16 %v5952
    %v6269 = vunpack.c.h.b16 %v5952
    %v6270 = vunpack.c.l.b16 %v5953
    %v6271 = vunpack.c.l.b16 %v5954
    %v6272 = vunpack.c.h.b16 %v5954
    %v6273 = vunpack.c.l.b16 %v5955
    %v6274 = vunpack.c.h.b16 %v5955
    %v6275 = vunpack.c.l.b16 %v5956
    %v6276 = vunpack.c.l.b16 %v5957
    %v6277 = vunpack.c.h.b16 %v5957
    %v6278 = vunpack.c.l.b16 %v5958
    %v6279 = vunpack.c.h.b16 %v5958
    %v6280 = vunpack.c.l.b16 %v5959
    %v6281 = vunpack.c.l.b16 %v5960
    %v6282 = vunpack.c.h.b16 %v5960
    %v6283 = vunpack.c.l.b16 %v5961
    %v6284 = vunpack.c.h.b16 %v5961
    %v6285 = vunpack.c.l.b16 %v5962
    %v6286 = vunpack.c.l.b16 %v5963
    %v6287 = vunpack.c.h.b16 %v5963
    %v6288 = vunpack.c.l.b16 %v5964
    %v6289 = vunpack.c.h.b16 %v5964
    %v6290 = vunpack.c.l.b16 %v5965
    %v6291 = vunpack.c.l.b16 %v5966
    %v6292 = vunpack.c.h.b16 %v5966
    %v6293 = vunpack.c.l.b16 %v5967
    %v6294 = vunpack.c.h.b16 %v5967
    %v6295 = vunpack.c.l.b16 %v5968
    %v6296 = vunpack.c.l.b16 %v5969
    %v6297 = vunpack.c.h.b16 %v5969
    %v6298 = vunpack.c.l.b16 %v5970
    %v6299 = vunpack.c.h.b16 %v5970
    %v6300 = vunpack.c.l.b16 %v5971
    %v6301 = vunpack.c.l.b16 %v5972
    %v6302 = vunpack.c.h.b16 %v5972
    %v6303 = vunpack.c.l.b16 %v5973
    %v6304 = vunpack.c.h.b16 %v5973
    %v6305 = vunpack.c.l.b16 %v5974
    %v6306 = vunpack.c.l.b16 %v5975
    %v6307 = vunpack.c.h.b16 %v5975
    %v6308 = vunpack.c.l.b16 %v5976
    %v6309 = vunpack.c.h.b16 %v5976
    %v6310 = vunpack.c.l.b16 %v5977
    %v6311 = vunpack.c.l.b16 %v5978
    %v6312 = vunpack.c.h.b16 %v5978
    %v6313 = vunpack.c.l.b16 %v5979
    %v6314 = vunpack.c.h.b16 %v5979
    %v6315 = vunpack.c.l.b16 %v5980
    %v6316 = vunpack.c.l.b16 %v5981
    %v6317 = vunpack.c.h.b16 %v5981
    %v6318 = vunpack.c.l.b16 %v5982
    %v6319 = vunpack.c.h.b16 %v5982
    %v6320 = vunpack.c.l.b16 %v5983
    %v6321 = vunpack.c.l.b16 %v5984
    %v6322 = vunpack.c.h.b16 %v5984
    %v6323 = vunpack.c.l.b16 %v5985
    %v6324 = vunpack.c.h.b16 %v5985
    %v6325 = vunpack.c.l.b16 %v5986
    %v6326 = vunpack.c.l.b16 %v5987
    %v6327 = vunpack.c.h.b16 %v5987
    %v6328 = vunpack.c.l.b16 %v5988
    %v6329 = vunpack.c.h.b16 %v5988
    %v6330 = vunpack.c.l.b16 %v5989
    %v6331 = vunpack.c.l.b16 %v5990
    %v6332 = vunpack.c.h.b16 %v5990
    %v6333 = vunpack.c.l.b16 %v5991
    %v6334 = vunpack.c.h.b16 %v5991
    %v6335 = vunpack.c.l.b16 %v5992
    %v6336 = vunpack.c.l.b16 %v5993
    %v6337 = vunpack.c.h.b16 %v5993
    %v6338 = vunpack.c.l.b16 %v5994
    %v6339 = vunpack.c.h.b16 %v5994
    %v6340 = vunpack.c.l.b16 %v5995
    %v6341 = vunpack.c.l.b16 %v5996
    %v6342 = vunpack.c.h.b16 %v5996
    %v6343 = vunpack.c.l.b16 %v5997
    %v6344 = vunpack.c.h.b16 %v5997
    %v6345 = vunpack.c.l.b16 %v5998
    %v6346 = vunpack.c.l.b16 %v5999
    %v6347 = vunpack.c.h.b16 %v5999
    %v6348 = vunpack.c.l.b16 %v6000
    %v6349 = vunpack.c.h.b16 %v6000
    %v6350 = vunpack.c.l.b16 %v6001
    %v6351 = vunpack.c.l.b16 %v6002
    %v6352 = vunpack.c.h.b16 %v6002
    %v6353 = vunpack.c.l.b16 %v6003
    %v6354 = vunpack.c.h.b16 %v6003
    %v6355 = vunpack.c.l.b16 %v6004
    %v6356 = vunpack.c.l.b16 %v6005
    %v6357 = vunpack.c.h.b16 %v6005
    %v6358 = vunpack.c.l.b16 %v6006
    %v6359 = vunpack.c.h.b16 %v6006
    %v6360 = vunpack.c.l.b16 %v6007
    %v6361 = vunpack.c.l.b16 %v6008
    %v6362 = vunpack.c.h.b16 %v6008
    %v6363 = vunpack.c.l.b16 %v6009
    %v6364 = vunpack.c.h.b16 %v6009
    %v6365 = vunpack.c.l.b16 %v6010
    %v6366 = vunpack.c.l.b16 %v6011
    %v6367 = vunpack.c.h.b16 %v6011
    %v6368 = vunpack.c.l.b16 %v6012
    %v6369 = vunpack.c.h.b16 %v6012
    %v6370 = vunpack.c.l.b16 %v6013
    %v6371 = vunpack.c.l.b16 %v6014
    %v6372 = vunpack.c.h.b16 %v6014
    %v6373 = vunpack.c.l.b16 %v6015
    %v6374 = vunpack.c.h.b16 %v6015
    %v6375 = vunpack.c.l.b16 %v6016
    %v6376 = vunpack.c.l.b16 %v6017
    %v6377 = vunpack.c.h.b16 %v6017
    %v6378 = vunpack.c.l.b16 %v6018
    %v6379 = vunpack.c.h.b16 %v6018
    %v6380 = vunpack.c.l.b16 %v6019
    %v6381 = vunpack.c.l.b16 %v6020
    %v6382 = vunpack.c.h.b16 %v6020
    %v6383 = vunpack.c.l.b16 %v6021
    %v6384 = vunpack.c.h.b16 %v6021
    %v6385 = vunpack.c.l.b16 %v6022
    %v6386 = vunpack.c.l.b16 %v6023
    %v6387 = vunpack.c.h.b16 %v6023
    %v6388 = vunpack.c.l.b16 %v6024
    %v6389 = vunpack.c.h.b16 %v6024
    %v6390 = vunpack.c.l.b16 %v6025
    %v6391 = vunpack.c.l.b16 %v6026
    %v6392 = vunpack.c.h.b16 %v6026
    %v6393 = vunpack.c.l.b16 %v6027
    %v6394 = vunpack.c.h.b16 %v6027
    %v6395 = vunpack.c.l.b16 %v6028
    %v6396 = vunpack.c.l.b16 %v6029
    %v6397 = vunpack.c.h.b16 %v6029
    %v6398 = vunpack.c.l.b16 %v6030
    %v6399 = vunpack.c.h.b16 %v6030
    %v6400 = vunpack.c.l.b16 %v6031
    %v6401 = vunpack.c.l.b16 %v6032
    %v6402 = vunpack.c.h.b16 %v6032
    %v6403 = vunpack.c.l.b16 %v6033
    %v6404 = vunpack.c.h.b16 %v6033
    %v6405 = vunpack.c.l.b16 %v6034
    %v6406 = vunpack.c.l.b16 %v6035
    %v6407 = vunpack.c.h.b16 %v6035
    %v6408 = vunpack.c.l.b16 %v6036
    %v6409 = vunpack.c.h.b16 %v6036
    %v6410 = vunpack.c.l.b16 %v6037
    %v6411 = vunpack.c.l.b16 %v6038
    %v6412 = vunpack.c.h.b16 %v6038
    %v6413 = vunpack.c.l.b16 %v6039
    %v6414 = vunpack.c.h.b16 %v6039
    %v6415 = vunpack.c.l.b16 %v6040
    %v6416 = vunpack.c.l.b16 %v6041
    %v6417 = vunpack.c.h.b16 %v6041
    %v6418 = vunpack.c.l.b16 %v6042
    %v6419 = vunpack.c.h.b16 %v6042
    %v6420 = vunpack.c.l.b16 %v6043
    %v6421 = vunpack.c.l.b16 %v6044
    %v6422 = vunpack.c.h.b16 %v6044
    %v6423 = vunpack.c.l.b16 %v6045
    %v6424 = vunpack.c.h.b16 %v6045
    %v6425 = vunpack.c.l.b16 %v6046
    %v6426 = vunpack.c.l.b16 %v6047
    %v6427 = vunpack.c.h.b16 %v6047
    %v6428 = vunpack.c.l.b16 %v6048
    %v6429 = vunpack.c.h.b16 %v6048
    %v6430 = vunpack.c.l.b16 %v6049
    %v6431 = vunpack.c.l.b16 %v6050
    %v6432 = vunpack.c.h.b16 %v6050
    %v6433 = vunpack.c.l.b16 %v6051
    %v6434 = vunpack.c.h.b16 %v6051
    %v6435 = vunpack.c.l.b16 %v6052
    %v6436 = vunpack.c.l.b16 %v6053
    %v6437 = vunpack.c.h.b16 %v6053
    %v6438 = vunpack.c.l.b16 %v6054
    %v6439 = vunpack.c.h.b16 %v6054
    %v6440 = vunpack.c.l.b16 %v6055
    %v6441 = vunpack.c.l.b16 %v6056
    %v6442 = vunpack.c.h.b16 %v6056
    %v6443 = vunpack.c.l.b16 %v6057
    %v6444 = vunpack.c.h.b16 %v6057
    %v6445 = vunpack.c.l.b16 %v6058
    %v6446 = vunpack.c.l.b16 %v6059
    %v6447 = vunpack.c.h.b16 %v6059
    %v6448 = vunpack.c.l.b16 %v6060
    %v6449 = vunpack.c.h.b16 %v6060
    %v6450 = vunpack.c.l.b16 %v6061
    %v6451 = vunpack.c.l.b16 %v6062
    %v6452 = vunpack.c.h.b16 %v6062
    %v6453 = vunpack.c.l.b16 %v6063
    %v6454 = vunpack.c.h.b16 %v6063
    %v6455 = vunpack.c.l.b16 %v6064
    %v6456 = vunpack.c.l.b16 %v6065
    %v6457 = vunpack.c.h.b16 %v6065
    %v6458 = vunpack.c.l.b16 %v6066
    %v6459 = vunpack.c.h.b16 %v6066
    %v6460 = vunpack.c.l.b16 %v6067
    %v6461 = vunpack.c.l.b16 %v6068
    %v6462 = vunpack.c.h.b16 %v6068
    %v6463 = vunpack.c.l.b16 %v6069
    %v6464 = vunpack.c.h.b16 %v6069
    %v6465 = vunpack.c.l.b16 %v6070
    %v6466 = vunpack.c.l.b16 %v6071
    %v6467 = vunpack.c.h.b16 %v6071
    %v6468 = vunpack.c.l.b16 %v6072
    %v6469 = vunpack.c.h.b16 %v6072
    %v6470 = vunpack.c.l.b16 %v6073
    %v6471 = vunpack.c.l.b16 %v6074
    %v6472 = vunpack.c.h.b16 %v6074
    %v6473 = vunpack.c.l.b16 %v6075
    %v6474 = vunpack.c.h.b16 %v6075
    %v6475 = vunpack.c.l.b16 %v6076
    %v6476 = vunpack.c.l.b16 %v6077
    %v6477 = vunpack.c.h.b16 %v6077
    %v6478 = vunpack.c.l.b16 %v6078
    %v6479 = vunpack.c.h.b16 %v6078
    %v6480 = vunpack.c.l.b16 %v6079
    %v6481 = vunpack.c.l.b16 %v6080
    %v6482 = vunpack.c.h.b16 %v6080
    %v6483 = vunpack.c.l.b16 %v6081
    %v6484 = vunpack.c.h.b16 %v6081
    %v6485 = vunpack.c.l.b16 %v6082
    %v6486 = vunpack.c.l.b16 %v6083
    %v6487 = vunpack.c.h.b16 %v6083
    %v6488 = vunpack.c.l.b16 %v6084
    %v6489 = vunpack.c.h.b16 %v6084
    %v6490 = vunpack.c.l.b16 %v6085
    %v6491 = vunpack.c.l.b16 %v6086
    %v6492 = vunpack.c.h.b16 %v6086
    %v6493 = vunpack.c.l.b16 %v6087
    %v6494 = vunpack.c.h.b16 %v6087
    %v6495 = vunpack.c.l.b16 %v6088
    %v6496 = vunpack.c.l.b16 %v6089
    %v6497 = vunpack.c.h.b16 %v6089
    %v6498 = vunpack.c.l.b16 %v6090
    %v6499 = vunpack.c.h.b16 %v6090
    %v6500 = vunpack.c.l.b16 %v6091
    %v6501 = vunpack.c.l.b16 %v6092
    %v6502 = vunpack.c.h.b16 %v6092
    %v6503 = vunpack.c.l.b16 %v6093
    %v6504 = vunpack.c.h.b16 %v6093
    %v6505 = vunpack.c.l.b16 %v6094
    %v6506 = vpack.c.b16 %v6271, %v6266
    %v6507 = vpack.c.b16 %v6272, %v6267
    %v6508 = vpack.c.b16 %v6273, %v6268
    %v6509 = vpack.c.b16 %v6274, %v6269
    %v6510 = vpack.c.b16 %v6275, %v6270
    %v6511 = vpack.c.b16 %v6281, %v6276
    %v6512 = vpack.c.b16 %v6282, %v6277
    %v6513 = vpack.c.b16 %v6283, %v6278
    %v6514 = vpack.c.b16 %v6284, %v6279
    %v6515 = vpack.c.b16 %v6285, %v6280
    %v6516 = vpack.c.b16 %v6291, %v6286
    %v6517 = vpack.c.b16 %v6292, %v6287
    %v6518 = vpack.c.b16 %v6293, %v6288
    %v6519 = vpack.c.b16 %v6294, %v6289
    %v6520 = vpack.c.b16 %v6295, %v6290
    %v6521 = vpack.c.b16 %v6301, %v6296
    %v6522 = vpack.c.b16 %v6302, %v6297
    %v6523 = vpack.c.b16 %v6303, %v6298
    %v6524 = vpack.c.b16 %v6304, %v6299
    %v6525 = vpack.c.b16 %v6305, %v6300
    %v6526 = vpack.c.b16 %v6311, %v6306
    %v6527 = vpack.c.b16 %v6312, %v6307
    %v6528 = vpack.c.b16 %v6313, %v6308
    %v6529 = vpack.c.b16 %v6314, %v6309
    %v6530 = vpack.c.b16 %v6315, %v6310
    %v6531 = vpack.c.b16 %v6321, %v6316
    %v6532 = vpack.c.b16 %v6322, %v6317
    %v6533 = vpack.c.b16 %v6323, %v6318
    %v6534 = vpack.c.b16 %v6324, %v6319
    %v6535 = vpack.c.b16 %v6325, %v6320
    %v6536 = vpack.c.b16 %v6331, %v6326
    %v6537 = vpack.c.b16 %v6332, %v6327
    %v6538 = vpack.c.b16 %v6333, %v6328
    %v6539 = vpack.c.b16 %v6334, %v6329
    %v6540 = vpack.c.b16 %v6335, %v6330
    %v6541 = vpack.c.b16 %v6341, %v6336
    %v6542 = vpack.c.b16 %v6342, %v6337
    %v6543 = vpack.c.b16 %v6343, %v6338
    %v6544 = vpack.c.b16 %v6344, %v6339
    %v6545 = vpack.c.b16 %v6345, %v6340
    %v6546 = vpack.c.b16 %v6351, %v6346
    %v6547 = vpack.c.b16 %v6352, %v6347
    %v6548 = vpack.c.b16 %v6353, %v6348
    %v6549 = vpack.c.b16 %v6354, %v6349
    %v6550 = vpack.c.b16 %v6355, %v6350
    %v6551 = vpack.c.b16 %v6361, %v6356
    %v6552 = vpack.c.b16 %v6362, %v6357
    %v6553 = vpack.c.b16 %v6363, %v6358
    %v6554 = vpack.c.b16 %v6364, %v6359
    %v6555 = vpack.c.b16 %v6365, %v6360
    %v6556 = vpack.c.b16 %v6371, %v6366
    %v6557 = vpack.c.b16 %v6372, %v6367
    %v6558 = vpack.c.b16 %v6373, %v6368
    %v6559 = vpack.c.b16 %v6374, %v6369
    %v6560 = vpack.c.b16 %v6375, %v6370
    %v6561 = vpack.c.b16 %v6381, %v6376
    %v6562 = vpack.c.b16 %v6382, %v6377
    %v6563 = vpack.c.b16 %v6383, %v6378
    %v6564 = vpack.c.b16 %v6384, %v6379
    %v6565 = vpack.c.b16 %v6385, %v6380
    %v6566 = vpack.c.b16 %v6391, %v6386
    %v6567 = vpack.c.b16 %v6392, %v6387
    %v6568 = vpack.c.b16 %v6393, %v6388
    %v6569 = vpack.c.b16 %v6394, %v6389
    %v6570 = vpack.c.b16 %v6395, %v6390
    %v6571 = vpack.c.b16 %v6401, %v6396
    %v6572 = vpack.c.b16 %v6402, %v6397
    %v6573 = vpack.c.b16 %v6403, %v6398
    %v6574 = vpack.c.b16 %v6404, %v6399
    %v6575 = vpack.c.b16 %v6405, %v6400
    %v6576 = vpack.c.b16 %v6411, %v6406
    %v6577 = vpack.c.b16 %v6412, %v6407
    %v6578 = vpack.c.b16 %v6413, %v6408
    %v6579 = vpack.c.b16 %v6414, %v6409
    %v6580 = vpack.c.b16 %v6415, %v6410
    %v6581 = vpack.c.b16 %v6421, %v6416
    %v6582 = vpack.c.b16 %v6422, %v6417
    %v6583 = vpack.c.b16 %v6423, %v6418
    %v6584 = vpack.c.b16 %v6424, %v6419
    %v6585 = vpack.c.b16 %v6425, %v6420
    %v6586 = vpack.c.b16 %v6431, %v6426
    %v6587 = vpack.c.b16 %v6432, %v6427
    %v6588 = vpack.c.b16 %v6433, %v6428
    %v6589 = vpack.c.b16 %v6434, %v6429
    %v6590 = vpack.c.b16 %v6435, %v6430
    %v6591 = vpack.c.b16 %v6441, %v6436
    %v6592 = vpack.c.b16 %v6442, %v6437
    %v6593 = vpack.c.b16 %v6443, %v6438
    %v6594 = vpack.c.b16 %v6444, %v6439
    %v6595 = vpack.c.b16 %v6445, %v6440
    %v6596 = vpack.c.b16 %v6451, %v6446
    %v6597 = vpack.c.b16 %v6452, %v6447
    %v6598 = vpack.c.b16 %v6453, %v6448
    %v6599 = vpack.c.b16 %v6454, %v6449
    %v6600 = vpack.c.b16 %v6455, %v6450
    %v6601 = vpack.c.b16 %v6461, %v6456
    %v6602 = vpack.c.b16 %v6462, %v6457
    %v6603 = vpack.c.b16 %v6463, %v6458
    %v6604 = vpack.c.b16 %v6464, %v6459
    %v6605 = vpack.c.b16 %v6465, %v6460
    %v6606 = vpack.c.b16 %v6471, %v6466
    %v6607 = vpack.c.b16 %v6472, %v6467
    %v6608 = vpack.c.b16 %v6473, %v6468
    %v6609 = vpack.c.b16 %v6474, %v6469
    %v6610 = vpack.c.b16 %v6475, %v6470
    %v6611 = vpack.c.b16 %v6481, %v6476
    %v6612 = vpack.c.b16 %v6482, %v6477
    %v6613 = vpack.c.b16 %v6483, %v6478
    %v6614 = vpack.c.b16 %v6484, %v6479
    %v6615 = vpack.c.b16 %v6485, %v6480
    %v6616 = vpack.c.b16 %v6491, %v6486
    %v6617 = vpack.c.b16 %v6492, %v6487
    %v6618 = vpack.c.b16 %v6493, %v6488
    %v6619 = vpack.c.b16 %v6494, %v6489
    %v6620 = vpack.c.b16 %v6495, %v6490
    %v6621 = vpack.c.b16 %v6501, %v6496
    %v6622 = vpack.c.b16 %v6502, %v6497
    %v6623 = vpack.c.b16 %v6503, %v6498
    %v6624 = vpack.c.b16 %v6504, %v6499
    %v6625 = vpack.c.b16 %v6505, %v6500
    %6746 = vmatprep.subr.bf16.mxu0 %v6507
    %6747 = vmatpush1.bf16.msra.mxu0 %v6506
    %6748 = vmatprep.subr.bf16.mxu0 %v6512
    %6749 = vmatpush1.bf16.msra.mxu0 %v6511
    %6750 = vmatprep.subr.bf16.mxu0 %v6517
    %6751 = vmatpush1.bf16.msra.mxu0 %v6516
    %6752 = vmatprep.subr.bf16.mxu0 %v6522
    %6753 = vmatpush1.bf16.msra.mxu0 %v6521
    %6754 = vmatprep.subr.bf16.mxu0 %v6527
    %6755 = vmatpush1.bf16.msra.mxu0 %v6526
    %6756 = vmatprep.subr.bf16.mxu0 %v6532
    %6757 = vmatpush1.bf16.msra.mxu0 %v6531
    %6758 = vmatprep.subr.bf16.mxu0 %v6537
    %6759 = vmatpush1.bf16.msra.mxu0 %v6536
    %6760 = vmatprep.subr.bf16.mxu0 %v6542
    %6761 = vmatpush1.bf16.msra.mxu0 %v6541
    %6762 = vmatprep.subr.bf16.mxu0 %v6547
    %6763 = vmatpush1.bf16.msra.mxu0 %v6546
    %6764 = vmatprep.subr.bf16.mxu0 %v6552
    %6765 = vmatpush1.bf16.msra.mxu0 %v6551
    %6766 = vmatprep.subr.bf16.mxu0 %v6557
    %6767 = vmatpush1.bf16.msra.mxu0 %v6556
    %6768 = vmatprep.subr.bf16.mxu0 %v6562
    %6769 = vmatpush1.bf16.msra.mxu0 %v6561
    %6770 = vmatprep.subr.bf16.mxu0 %v6567
    %6771 = vmatpush1.bf16.msra.mxu0 %v6566
    %6772 = vmatprep.subr.bf16.mxu0 %v6572
    %6773 = vmatpush1.bf16.msra.mxu0 %v6571
    %6774 = vmatprep.subr.bf16.mxu0 %v6577
    %6775 = vmatpush1.bf16.msra.mxu0 %v6576
    %6776 = vmatprep.subr.bf16.mxu0 %v6582
    %6777 = vmatpush1.bf16.msra.mxu0 %v6581
    %6778 = vmatprep.mubr.bf16.mxu0 %v5928
    %6779 = vmatmul.mubr.bf16.gmra.mrb[0].mxu0 %v5927
    %v6780 = vpop.f32.mrb[0].mxu0
    %v6781 = vadd.f32 %v6100, %v6780
    %v6782 = vpop.f32.mrb[0].mxu0
    %v6783 = vadd.f32 %v6104, %v6782
    %v6784 = vpop.f32.mrb[0].mxu0
    %v6785 = vadd.f32 %v6100, %v6784
    %v6786 = vpop.f32.mrb[0].mxu0
    %v6787 = vadd.f32 %v6104, %v6786
    %6788 = vmatprep.mubr.bf16.mxu0 %v5931
    %6789 = vmatmul.mubr.bf16.gmra.mrb[0].mxu0 %v5930
    %v6790 = vpop.f32.mrb[0].mxu0
    %v6791 = vadd.f32 %v6100, %v6790
    %v6792 = vpop.f32.mrb[0].mxu0
    %v6793 = vadd.f32 %v6104, %v6792
    %v6794 = vpop.f32.mrb[0].mxu0
    %v6795 = vadd.f32 %v6100, %v6794
    %v6796 = vpop.f32.mrb[0].mxu0
    %v6797 = vadd.f32 %v6104, %v6796
    %6798 = vmatprep.mubr.bf16.mxu0 %v5934
    %6799 = vmatmul.mubr.bf16.gmra.mrb[0].mxu0 %v5933
    %v6800 = vpop.f32.mrb[0].mxu0
    %v6801 = vadd.f32 %v6100, %v6800
    %v6802 = vpop.f32.mrb[0].mxu0
    %v6803 = vadd.f32 %v6104, %v6802
    %v6804 = vpop.f32.mrb[0].mxu0
    %v6805 = vadd.f32 %v6100, %v6804
    %v6806 = vpop.f32.mrb[0].mxu0
    %v6807 = vadd.f32 %v6104, %v6806
    %6808 = vmatprep.mubr.bf16.mxu0 %v5937
    %6809 = vmatmul.mubr.bf16.gmra.mrb[0].mxu0 %v5936
    %v6810 = vpop.f32.mrb[0].mxu0
    %v6811 = vadd.f32 %v6100, %v6810
    %v6812 = vpop.f32.mrb[0].mxu0
    %v6813 = vadd.f32 %v6104, %v6812
    %v6814 = vpop.f32.mrb[0].mxu0
    %v6815 = vadd.f32 %v6100, %v6814
    %v6816 = vpop.f32.mrb[0].mxu0
    %v6817 = vadd.f32 %v6104, %v6816
    %6818 = vmatprep.mubr.bf16.mxu0 %v5940
    %6819 = vmatmul.mubr.bf16.gmra.mrb[0].mxu0 %v5939
    %v6820 = vpop.f32.mrb[0].mxu0
    %v6821 = vadd.f32 %v6100, %v6820
    %v6822 = vpop.f32.mrb[0].mxu0
    %v6823 = vadd.f32 %v6104, %v6822
    %v6824 = vpop.f32.mrb[0].mxu0
    %v6825 = vadd.f32 %v6100, %v6824
    %v6826 = vpop.f32.mrb[0].mxu0
    %v6827 = vadd.f32 %v6104, %v6826
    %6828 = vmatprep.mubr.bf16.mxu0 %v5943
    %6829 = vmatmul.mubr.bf16.gmra.mrb[0].mxu0 %v5942
    %v6830 = vpop.f32.mrb[0].mxu0
    %v6831 = vadd.f32 %v6100, %v6830
    %v6832 = vpop.f32.mrb[0].mxu0
    %v6833 = vadd.f32 %v6104, %v6832
    %v6834 = vpop.f32.mrb[0].mxu0
    %v6835 = vadd.f32 %v6100, %v6834
    %v6836 = vpop.f32.mrb[0].mxu0
    %v6837 = vadd.f32 %v6104, %v6836
    %6838 = vmatprep.mubr.bf16.mxu0 %v5946
    %6839 = vmatmul.mubr.bf16.gmra.mrb[0].mxu0 %v5945
    %v6840 = vpop.f32.mrb[0].mxu0
    %v6841 = vadd.f32 %v6100, %v6840
    %v6842 = vpop.f32.mrb[0].mxu0
    %v6843 = vadd.f32 %v6104, %v6842
    %v6844 = vpop.f32.mrb[0].mxu0
    %v6845 = vadd.f32 %v6100, %v6844
    %v6846 = vpop.f32.mrb[0].mxu0
    %v6847 = vadd.f32 %v6104, %v6846
    %6848 = vmatprep.mubr.bf16.mxu0 %v5949
    %6849 = vmatmul.mubr.bf16.gmra.mrb[0].mxu0 %v5948
    %v6850 = vpop.f32.mrb[0].mxu0
    %v6851 = vadd.f32 %v6100, %v6850
    %v6852 = vpop.f32.mrb[0].mxu0
    %v6853 = vadd.f32 %v6104, %v6852
    %v6854 = vpop.f32.mrb[0].mxu0
    %v6855 = vadd.f32 %v6100, %v6854
    %v6856 = vpop.f32.mrb[0].mxu0
    %v6857 = vadd.f32 %v6104, %v6856
    %6858 = vdwg.mxu0
    %6859 = vmatprep.subr.bf16.mxu0 %v6587
    %6860 = vmatpush1.bf16.msra.mxu0 %v6586
    %6861 = vmatprep.subr.bf16.mxu0 %v6592
    %6862 = vmatpush1.bf16.msra.mxu0 %v6591
    %6863 = vmatprep.subr.bf16.mxu0 %v6597
    %6864 = vmatpush1.bf16.msra.mxu0 %v6596
    %6865 = vmatprep.subr.bf16.mxu0 %v6602
    %6866 = vmatpush1.bf16.msra.mxu0 %v6601
    %6867 = vmatprep.subr.bf16.mxu0 %v6607
    %6868 = vmatpush1.bf16.msra.mxu0 %v6606
    %6869 = vmatprep.subr.bf16.mxu0 %v6612
    %6870 = vmatpush1.bf16.msra.mxu0 %v6611
    %6871 = vmatprep.subr.bf16.mxu0 %v6617
    %6872 = vmatpush1.bf16.msra.mxu0 %v6616
    %6873 = vmatprep.subr.bf16.mxu0 %v6622
    %6874 = vmatpush1.bf16.msra.mxu0 %v6621
    %6875 = vmatprep.subr.bf16.mxu0 0
    %6876 = vmatpush1.bf16.msra.mxu0 0
    %6877 = vmatprep.subr.bf16.mxu0 0
    %6878 = vmatpush1.bf16.msra.mxu0 0
    %6879 = vmatprep.subr.bf16.mxu0 0
    %6880 = vmatpush1.bf16.msra.mxu0 0
    %6881 = vmatprep.subr.bf16.mxu0 0
    %6882 = vmatpush1.bf16.msra.mxu0 0
    %6883 = vmatprep.subr.bf16.mxu0 0
    %6884 = vmatpush1.bf16.msra.mxu0 0
    %6885 = vmatprep.subr.bf16.mxu0 0
    %6886 = vmatpush1.bf16.msra.mxu0 0
    %6887 = vmatprep.subr.bf16.mxu0 0
    %6888 = vmatpush1.bf16.msra.mxu0 0
    %6889 = vmatprep.subr.bf16.mxu0 0
    %6890 = vmatpush1.bf16.msra.mxu0 0
    %6891 = vmatprep.mubr.bf16.mxu0 0
    %6892 = vmatmul.mubr.bf16.gmra.mrb[0].mxu0 %v5929
    %v6893 = vpop.f32.mrb[0].mxu0
    %v6894 = vadd.f32 %v6781, %v6893
    %v6895 = vpop.f32.mrb[0].mxu0
    %v6896 = vadd.f32 %v6783, %v6895
    %v6897 = vpop.f32.mrb[0].mxu0
    %v6898 = vadd.f32 %v6785, %v6897
    %v6899 = vpop.f32.mrb[0].mxu0
    %v6900 = vadd.f32 %v6787, %v6899
    %6901 = vmatprep.mubr.bf16.mxu0 0
    %6902 = vmatmul.mubr.bf16.gmra.mrb[0].mxu0 %v5932
    %v6903 = vpop.f32.mrb[0].mxu0
    %v6904 = vadd.f32 %v6791, %v6903
    %v6905 = vpop.f32.mrb[0].mxu0
    %v6906 = vadd.f32 %v6793, %v6905
    %v6907 = vpop.f32.mrb[0].mxu0
    %v6908 = vadd.f32 %v6795, %v6907
    %v6909 = vpop.f32.mrb[0].mxu0
    %v6910 = vadd.f32 %v6797, %v6909
    %6911 = vmatprep.mubr.bf16.mxu0 0
    %6912 = vmatmul.mubr.bf16.gmra.mrb[0].mxu0 %v5935
    %v6913 = vpop.f32.mrb[0].mxu0
    %v6914 = vadd.f32 %v6801, %v6913
    %v6915 = vpop.f32.mrb[0].mxu0
    %v6916 = vadd.f32 %v6803, %v6915
    %v6917 = vpop.f32.mrb[0].mxu0
    %v6918 = vadd.f32 %v6805, %v6917
    %v6919 = vpop.f32.mrb[0].mxu0
    %v6920 = vadd.f32 %v6807, %v6919
    %6921 = vmatprep.mubr.bf16.mxu0 0
    %6922 = vmatmul.mubr.bf16.gmra.mrb[0].mxu0 %v5938
    %v6923 = vpop.f32.mrb[0].mxu0
    %v6924 = vadd.f32 %v6811, %v6923
    %v6925 = vpop.f32.mrb[0].mxu0
    %v6926 = vadd.f32 %v6813, %v6925
    %v6927 = vpop.f32.mrb[0].mxu0
    %v6928 = vadd.f32 %v6815, %v6927
    %v6929 = vpop.f32.mrb[0].mxu0
    %v6930 = vadd.f32 %v6817, %v6929
    %6931 = vmatprep.mubr.bf16.mxu0 0
    %6932 = vmatmul.mubr.bf16.gmra.mrb[0].mxu0 %v5941
    %v6933 = vpop.f32.mrb[0].mxu0
    %v6934 = vadd.f32 %v6821, %v6933
    %v6935 = vpop.f32.mrb[0].mxu0
    %v6936 = vadd.f32 %v6823, %v6935
    %v6937 = vpop.f32.mrb[0].mxu0
    %v6938 = vadd.f32 %v6825, %v6937
    %v6939 = vpop.f32.mrb[0].mxu0
    %v6940 = vadd.f32 %v6827, %v6939
    %6941 = vmatprep.mubr.bf16.mxu0 0
    %6942 = vmatmul.mubr.bf16.gmra.mrb[0].mxu0 %v5944
    %v6943 = vpop.f32.mrb[0].mxu0
    %v6944 = vadd.f32 %v6831, %v6943
    %v6945 = vpop.f32.mrb[0].mxu0
    %v6946 = vadd.f32 %v6833, %v6945
    %v6947 = vpop.f32.mrb[0].mxu0
    %v6948 = vadd.f32 %v6835, %v6947
    %v6949 = vpop.f32.mrb[0].mxu0
    %v6950 = vadd.f32 %v6837, %v6949
    %6951 = vmatprep.mubr.bf16.mxu0 0
    %6952 = vmatmul.mubr.bf16.gmra.mrb[0].mxu0 %v5947
    %v6953 = vpop.f32.mrb[0].mxu0
    %v6954 = vadd.f32 %v6841, %v6953
    %v6955 = vpop.f32.mrb[0].mxu0
    %v6956 = vadd.f32 %v6843, %v6955
    %v6957 = vpop.f32.mrb[0].mxu0
    %v6958 = vadd.f32 %v6845, %v6957
    %v6959 = vpop.f32.mrb[0].mxu0
    %v6960 = vadd.f32 %v6847, %v6959
    %6961 = vmatprep.mubr.bf16.mxu0 0
    %6962 = vmatmul.mubr.bf16.gmra.mrb[0].mxu0 %v5950
    %v6963 = vpop.f32.mrb[0].mxu0
    %v6964 = vadd.f32 %v6851, %v6963
    %v6965 = vpop.f32.mrb[0].mxu0
    %v6966 = vadd.f32 %v6853, %v6965
    %v6967 = vpop.f32.mrb[0].mxu0
    %v6968 = vadd.f32 %v6855, %v6967
    %v6969 = vpop.f32.mrb[0].mxu0
    %v6970 = vadd.f32 %v6857, %v6969
    %6971 = vdwg.mxu0
    %6972 = vmatprep.subr.bf16.mxu0 %v6509
    %6973 = vmatpush1.bf16.msra.mxu0 %v6508
    %6974 = vmatprep.subr.bf16.mxu0 %v6514
    %6975 = vmatpush1.bf16.msra.mxu0 %v6513
    %6976 = vmatprep.subr.bf16.mxu0 %v6519
    %6977 = vmatpush1.bf16.msra.mxu0 %v6518
    %6978 = vmatprep.subr.bf16.mxu0 %v6524
    %6979 = vmatpush1.bf16.msra.mxu0 %v6523
    %6980 = vmatprep.subr.bf16.mxu0 %v6529
    %6981 = vmatpush1.bf16.msra.mxu0 %v6528
    %6982 = vmatprep.subr.bf16.mxu0 %v6534
    %6983 = vmatpush1.bf16.msra.mxu0 %v6533
    %6984 = vmatprep.subr.bf16.mxu0 %v6539
    %6985 = vmatpush1.bf16.msra.mxu0 %v6538
    %6986 = vmatprep.subr.bf16.mxu0 %v6544
    %6987 = vmatpush1.bf16.msra.mxu0 %v6543
    %6988 = vmatprep.subr.bf16.mxu0 %v6549
    %6989 = vmatpush1.bf16.msra.mxu0 %v6548
    %6990 = vmatprep.subr.bf16.mxu0 %v6554
    %6991 = vmatpush1.bf16.msra.mxu0 %v6553
    %6992 = vmatprep.subr.bf16.mxu0 %v6559
    %6993 = vmatpush1.bf16.msra.mxu0 %v6558
    %6994 = vmatprep.subr.bf16.mxu0 %v6564
    %6995 = vmatpush1.bf16.msra.mxu0 %v6563
    %6996 = vmatprep.subr.bf16.mxu0 %v6569
    %6997 = vmatpush1.bf16.msra.mxu0 %v6568
    %6998 = vmatprep.subr.bf16.mxu0 %v6574
    %6999 = vmatpush1.bf16.msra.mxu0 %v6573
    %7000 = vmatprep.subr.bf16.mxu0 %v6579
    %7001 = vmatpush1.bf16.msra.mxu0 %v6578
    %7002 = vmatprep.subr.bf16.mxu0 %v6584
    %7003 = vmatpush1.bf16.msra.mxu0 %v6583
    %7004 = vmatprep.mubr.bf16.mxu0 %v5928
    %7005 = vmatmul.mubr.bf16.gmra.mrb[0].mxu0 %v5927
    %v7006 = vpop.f32.mrb[0].mxu0
    %v7007 = vadd.f32 %v6108, %v7006
    %v7008 = vpop.f32.mrb[0].mxu0
    %v7009 = vadd.f32 %v6112, %v7008
    %v7010 = vpop.f32.mrb[0].mxu0
    %v7011 = vadd.f32 %v6108, %v7010
    %v7012 = vpop.f32.mrb[0].mxu0
    %v7013 = vadd.f32 %v6112, %v7012
    %7014 = vmatprep.mubr.bf16.mxu0 %v5931
    %7015 = vmatmul.mubr.bf16.gmra.mrb[0].mxu0 %v5930
    %v7016 = vpop.f32.mrb[0].mxu0
    %v7017 = vadd.f32 %v6108, %v7016
    %v7018 = vpop.f32.mrb[0].mxu0
    %v7019 = vadd.f32 %v6112, %v7018
    %v7020 = vpop.f32.mrb[0].mxu0
    %v7021 = vadd.f32 %v6108, %v7020
    %v7022 = vpop.f32.mrb[0].mxu0
    %v7023 = vadd.f32 %v6112, %v7022
    %7024 = vmatprep.mubr.bf16.mxu0 %v5934
    %7025 = vmatmul.mubr.bf16.gmra.mrb[0].mxu0 %v5933
    %v7026 = vpop.f32.mrb[0].mxu0
    %v7027 = vadd.f32 %v6108, %v7026
    %v7028 = vpop.f32.mrb[0].mxu0
    %v7029 = vadd.f32 %v6112, %v7028
    %v7030 = vpop.f32.mrb[0].mxu0
    %v7031 = vadd.f32 %v6108, %v7030
    %v7032 = vpop.f32.mrb[0].mxu0
    %v7033 = vadd.f32 %v6112, %v7032
    %7034 = vmatprep.mubr.bf16.mxu0 %v5937
    %7035 = vmatmul.mubr.bf16.gmra.mrb[0].mxu0 %v5936
    %v7036 = vpop.f32.mrb[0].mxu0
    %v7037 = vadd.f32 %v6108, %v7036
    %v7038 = vpop.f32.mrb[0].mxu0
    %v7039 = vadd.f32 %v6112, %v7038
    %v7040 = vpop.f32.mrb[0].mxu0
    %v7041 = vadd.f32 %v6108, %v7040
    %v7042 = vpop.f32.mrb[0].mxu0
    %v7043 = vadd.f32 %v6112, %v7042
    %7044 = vmatprep.mubr.bf16.mxu0 %v5940
    %7045 = vmatmul.mubr.bf16.gmra.mrb[0].mxu0 %v5939
    %v7046 = vpop.f32.mrb[0].mxu0
    %v7047 = vadd.f32 %v6108, %v7046
    %v7048 = vpop.f32.mrb[0].mxu0
    %v7049 = vadd.f32 %v6112, %v7048
    %v7050 = vpop.f32.mrb[0].mxu0
    %v7051 = vadd.f32 %v6108, %v7050
    %v7052 = vpop.f32.mrb[0].mxu0
    %v7053 = vadd.f32 %v6112, %v7052
    %7054 = vmatprep.mubr.bf16.mxu0 %v5943
    %7055 = vmatmul.mubr.bf16.gmra.mrb[0].mxu0 %v5942
    %v7056 = vpop.f32.mrb[0].mxu0
    %v7057 = vadd.f32 %v6108, %v7056
    %v7058 = vpop.f32.mrb[0].mxu0
    %v7059 = vadd.f32 %v6112, %v7058
    %v7060 = vpop.f32.mrb[0].mxu0
    %v7061 = vadd.f32 %v6108, %v7060
    %v7062 = vpop.f32.mrb[0].mxu0
    %v7063 = vadd.f32 %v6112, %v7062
    %7064 = vmatprep.mubr.bf16.mxu0 %v5946
    %7065 = vmatmul.mubr.bf16.gmra.mrb[0].mxu0 %v5945
    %v7066 = vpop.f32.mrb[0].mxu0
    %v7067 = vadd.f32 %v6108, %v7066
    %v7068 = vpop.f32.mrb[0].mxu0
    %v7069 = vadd.f32 %v6112, %v7068
    %v7070 = vpop.f32.mrb[0].mxu0
    %v7071 = vadd.f32 %v6108, %v7070
    %v7072 = vpop.f32.mrb[0].mxu0
    %v7073 = vadd.f32 %v6112, %v7072
    %7074 = vmatprep.mubr.bf16.mxu0 %v5949
    %7075 = vmatmul.mubr.bf16.gmra.mrb[0].mxu0 %v5948
    %v7076 = vpop.f32.mrb[0].mxu0
    %v7077 = vadd.f32 %v6108, %v7076
    %v7078 = vpop.f32.mrb[0].mxu0
    %v7079 = vadd.f32 %v6112, %v7078
    %v7080 = vpop.f32.mrb[0].mxu0
    %v7081 = vadd.f32 %v6108, %v7080
    %v7082 = vpop.f32.mrb[0].mxu0
    %v7083 = vadd.f32 %v6112, %v7082
    %7084 = vdwg.mxu0
    %7085 = vmatprep.subr.bf16.mxu0 %v6589
    %7086 = vmatpush1.bf16.msra.mxu0 %v6588
    %7087 = vmatprep.subr.bf16.mxu0 %v6594
    %7088 = vmatpush1.bf16.msra.mxu0 %v6593
    %7089 = vmatprep.subr.bf16.mxu0 %v6599
    %7090 = vmatpush1.bf16.msra.mxu0 %v6598
    %7091 = vmatprep.subr.bf16.mxu0 %v6604
    %7092 = vmatpush1.bf16.msra.mxu0 %v6603
    %7093 = vmatprep.subr.bf16.mxu0 %v6609
    %7094 = vmatpush1.bf16.msra.mxu0 %v6608
    %7095 = vmatprep.subr.bf16.mxu0 %v6614
    %7096 = vmatpush1.bf16.msra.mxu0 %v6613
    %7097 = vmatprep.subr.bf16.mxu0 %v6619
    %7098 = vmatpush1.bf16.msra.mxu0 %v6618
    %7099 = vmatprep.subr.bf16.mxu0 %v6624
    %7100 = vmatpush1.bf16.msra.mxu0 %v6623
    %7101 = vmatprep.subr.bf16.mxu0 0
    %7102 = vmatpush1.bf16.msra.mxu0 0
    %7103 = vmatprep.subr.bf16.mxu0 0
    %7104 = vmatpush1.bf16.msra.mxu0 0
    %7105 = vmatprep.subr.bf16.mxu0 0
    %7106 = vmatpush1.bf16.msra.mxu0 0
    %7107 = vmatprep.subr.bf16.mxu0 0
    %7108 = vmatpush1.bf16.msra.mxu0 0
    %7109 = vmatprep.subr.bf16.mxu0 0
    %7110 = vmatpush1.bf16.msra.mxu0 0
    %7111 = vmatprep.subr.bf16.mxu0 0
    %7112 = vmatpush1.bf16.msra.mxu0 0
    %7113 = vmatprep.subr.bf16.mxu0 0
    %7114 = vmatpush1.bf16.msra.mxu0 0
    %7115 = vmatprep.subr.bf16.mxu0 0
    %7116 = vmatpush1.bf16.msra.mxu0 0
    %7117 = vmatprep.mubr.bf16.mxu0 0
    %7118 = vmatmul.mubr.bf16.gmra.mrb[0].mxu0 %v5929
    %v7119 = vpop.f32.mrb[0].mxu0
    %v7120 = vadd.f32 %v7007, %v7119
    %v7121 = vpop.f32.mrb[0].mxu0
    %v7122 = vadd.f32 %v7009, %v7121
    %v7123 = vpop.f32.mrb[0].mxu0
    %v7124 = vadd.f32 %v7011, %v7123
    %v7125 = vpop.f32.mrb[0].mxu0
    %v7126 = vadd.f32 %v7013, %v7125
    %7127 = vmatprep.mubr.bf16.mxu0 0
    %7128 = vmatmul.mubr.bf16.gmra.mrb[0].mxu0 %v5932
    %v7129 = vpop.f32.mrb[0].mxu0
    %v7130 = vadd.f32 %v7017, %v7129
    %v7131 = vpop.f32.mrb[0].mxu0
    %v7132 = vadd.f32 %v7019, %v7131
    %v7133 = vpop.f32.mrb[0].mxu0
    %v7134 = vadd.f32 %v7021, %v7133
    %v7135 = vpop.f32.mrb[0].mxu0
    %v7136 = vadd.f32 %v7023, %v7135
    %7137 = vmatprep.mubr.bf16.mxu0 0
    %7138 = vmatmul.mubr.bf16.gmra.mrb[0].mxu0 %v5935
    %v7139 = vpop.f32.mrb[0].mxu0
    %v7140 = vadd.f32 %v7027, %v7139
    %v7141 = vpop.f32.mrb[0].mxu0
    %v7142 = vadd.f32 %v7029, %v7141
    %v7143 = vpop.f32.mrb[0].mxu0
    %v7144 = vadd.f32 %v7031, %v7143
    %v7145 = vpop.f32.mrb[0].mxu0
    %v7146 = vadd.f32 %v7033, %v7145
    %7147 = vmatprep.mubr.bf16.mxu0 0
    %7148 = vmatmul.mubr.bf16.gmra.mrb[0].mxu0 %v5938
    %v7149 = vpop.f32.mrb[0].mxu0
    %v7150 = vadd.f32 %v7037, %v7149
    %v7151 = vpop.f32.mrb[0].mxu0
    %v7152 = vadd.f32 %v7039, %v7151
    %v7153 = vpop.f32.mrb[0].mxu0
    %v7154 = vadd.f32 %v7041, %v7153
    %v7155 = vpop.f32.mrb[0].mxu0
    %v7156 = vadd.f32 %v7043, %v7155
    %7157 = vmatprep.mubr.bf16.mxu0 0
    %7158 = vmatmul.mubr.bf16.gmra.mrb[0].mxu0 %v5941
    %v7159 = vpop.f32.mrb[0].mxu0
    %v7160 = vadd.f32 %v7047, %v7159
    %v7161 = vpop.f32.mrb[0].mxu0
    %v7162 = vadd.f32 %v7049, %v7161
    %v7163 = vpop.f32.mrb[0].mxu0
    %v7164 = vadd.f32 %v7051, %v7163
    %v7165 = vpop.f32.mrb[0].mxu0
    %v7166 = vadd.f32 %v7053, %v7165
    %7167 = vmatprep.mubr.bf16.mxu0 0
    %7168 = vmatmul.mubr.bf16.gmra.mrb[0].mxu0 %v5944
    %v7169 = vpop.f32.mrb[0].mxu0
    %v7170 = vadd.f32 %v7057, %v7169
    %v7171 = vpop.f32.mrb[0].mxu0
    %v7172 = vadd.f32 %v7059, %v7171
    %v7173 = vpop.f32.mrb[0].mxu0
    %v7174 = vadd.f32 %v7061, %v7173
    %v7175 = vpop.f32.mrb[0].mxu0
    %v7176 = vadd.f32 %v7063, %v7175
    %7177 = vmatprep.mubr.bf16.mxu0 0
    %7178 = vmatmul.mubr.bf16.gmra.mrb[0].mxu0 %v5947
    %v7179 = vpop.f32.mrb[0].mxu0
    %v7180 = vadd.f32 %v7067, %v7179
    %v7181 = vpop.f32.mrb[0].mxu0
    %v7182 = vadd.f32 %v7069, %v7181
    %v7183 = vpop.f32.mrb[0].mxu0
    %v7184 = vadd.f32 %v7071, %v7183
    %v7185 = vpop.f32.mrb[0].mxu0
    %v7186 = vadd.f32 %v7073, %v7185
    %7187 = vmatprep.mubr.bf16.mxu0 0
    %7188 = vmatmul.mubr.bf16.gmra.mrb[0].mxu0 %v5950
    %v7189 = vpop.f32.mrb[0].mxu0
    %v7190 = vadd.f32 %v7077, %v7189
    %v7191 = vpop.f32.mrb[0].mxu0
    %v7192 = vadd.f32 %v7079, %v7191
    %v7193 = vpop.f32.mrb[0].mxu0
    %v7194 = vadd.f32 %v7081, %v7193
    %v7195 = vpop.f32.mrb[0].mxu0
    %v7196 = vadd.f32 %v7083, %v7195
    %7197 = vdwg.mxu0
    %7198 = vmatprep.subr.bf16.mxu0 0
    %7199 = vmatpush1.bf16.msra.mxu0 %v6510
    %7200 = vmatprep.subr.bf16.mxu0 0
    %7201 = vmatpush1.bf16.msra.mxu0 %v6515
    %7202 = vmatprep.subr.bf16.mxu0 0
    %7203 = vmatpush1.bf16.msra.mxu0 %v6520
    %7204 = vmatprep.subr.bf16.mxu0 0
    %7205 = vmatpush1.bf16.msra.mxu0 %v6525
    %7206 = vmatprep.subr.bf16.mxu0 0
    %7207 = vmatpush1.bf16.msra.mxu0 %v6530
    %7208 = vmatprep.subr.bf16.mxu0 0
    %7209 = vmatpush1.bf16.msra.mxu0 %v6535
    %7210 = vmatprep.subr.bf16.mxu0 0
    %7211 = vmatpush1.bf16.msra.mxu0 %v6540
    %7212 = vmatprep.subr.bf16.mxu0 0
    %7213 = vmatpush1.bf16.msra.mxu0 %v6545
    %7214 = vmatprep.subr.bf16.mxu0 0
    %7215 = vmatpush1.bf16.msra.mxu0 %v6550
    %7216 = vmatprep.subr.bf16.mxu0 0
    %7217 = vmatpush1.bf16.msra.mxu0 %v6555
    %7218 = vmatprep.subr.bf16.mxu0 0
    %7219 = vmatpush1.bf16.msra.mxu0 %v6560
    %7220 = vmatprep.subr.bf16.mxu0 0
    %7221 = vmatpush1.bf16.msra.mxu0 %v6565
    %7222 = vmatprep.subr.bf16.mxu0 0
    %7223 = vmatpush1.bf16.msra.mxu0 %v6570
    %7224 = vmatprep.subr.bf16.mxu0 0
    %7225 = vmatpush1.bf16.msra.mxu0 %v6575
    %7226 = vmatprep.subr.bf16.mxu0 0
    %7227 = vmatpush1.bf16.msra.mxu0 %v6580
    %7228 = vmatprep.subr.bf16.mxu0 0
    %7229 = vmatpush1.bf16.msra.mxu0 %v6585
    %7230 = vmatprep.mubr.bf16.mxu0 %v5928
    %7231 = vmatmul.mubr.bf16.gmra.mrb[0].mxu0 %v5927
    %v7232 = vpop.f32.mrb[0].mxu0
    %v7233 = vadd.f32 %v6116, %v7232
    %v7234 = vpop.f32.mrb[0].mxu0
    %v7235 = vpop.f32.mrb[0].mxu0
    %v7236 = vadd.f32 %v6116, %v7235
    %v7237 = vpop.f32.mrb[0].mxu0
    %7238 = vmatprep.mubr.bf16.mxu0 %v5931
    %7239 = vmatmul.mubr.bf16.gmra.mrb[0].mxu0 %v5930
    %v7240 = vpop.f32.mrb[0].mxu0
    %v7241 = vadd.f32 %v6116, %v7240
    %v7242 = vpop.f32.mrb[0].mxu0
    %v7243 = vpop.f32.mrb[0].mxu0
    %v7244 = vadd.f32 %v6116, %v7243
    %v7245 = vpop.f32.mrb[0].mxu0
    %7246 = vmatprep.mubr.bf16.mxu0 %v5934
    %7247 = vmatmul.mubr.bf16.gmra.mrb[0].mxu0 %v5933
    %v7248 = vpop.f32.mrb[0].mxu0
    %v7249 = vadd.f32 %v6116, %v7248
    %v7250 = vpop.f32.mrb[0].mxu0
    %v7251 = vpop.f32.mrb[0].mxu0
    %v7252 = vadd.f32 %v6116, %v7251
    %v7253 = vpop.f32.mrb[0].mxu0
    %7254 = vmatprep.mubr.bf16.mxu0 %v5937
    %7255 = vmatmul.mubr.bf16.gmra.mrb[0].mxu0 %v5936
    %v7256 = vpop.f32.mrb[0].mxu0
    %v7257 = vadd.f32 %v6116, %v7256
    %v7258 = vpop.f32.mrb[0].mxu0
    %v7259 = vpop.f32.mrb[0].mxu0
    %v7260 = vadd.f32 %v6116, %v7259
    %v7261 = vpop.f32.mrb[0].mxu0
    %7262 = vmatprep.mubr.bf16.mxu0 %v5940
    %7263 = vmatmul.mubr.bf16.gmra.mrb[0].mxu0 %v5939
    %v7264 = vpop.f32.mrb[0].mxu0
    %v7265 = vadd.f32 %v6116, %v7264
    %v7266 = vpop.f32.mrb[0].mxu0
    %v7267 = vpop.f32.mrb[0].mxu0
    %v7268 = vadd.f32 %v6116, %v7267
    %v7269 = vpop.f32.mrb[0].mxu0
    %7270 = vmatprep.mubr.bf16.mxu0 %v5943
    %7271 = vmatmul.mubr.bf16.gmra.mrb[0].mxu0 %v5942
    %v7272 = vpop.f32.mrb[0].mxu0
    %v7273 = vadd.f32 %v6116, %v7272
    %v7274 = vpop.f32.mrb[0].mxu0
    %v7275 = vpop.f32.mrb[0].mxu0
    %v7276 = vadd.f32 %v6116, %v7275
    %v7277 = vpop.f32.mrb[0].mxu0
    %7278 = vmatprep.mubr.bf16.mxu0 %v5946
    %7279 = vmatmul.mubr.bf16.gmra.mrb[0].mxu0 %v5945
    %v7280 = vpop.f32.mrb[0].mxu0
    %v7281 = vadd.f32 %v6116, %v7280
    %v7282 = vpop.f32.mrb[0].mxu0
    %v7283 = vpop.f32.mrb[0].mxu0
    %v7284 = vadd.f32 %v6116, %v7283
    %v7285 = vpop.f32.mrb[0].mxu0
    %7286 = vmatprep.mubr.bf16.mxu0 %v5949
    %7287 = vmatmul.mubr.bf16.gmra.mrb[0].mxu0 %v5948
    %v7288 = vpop.f32.mrb[0].mxu0
    %v7289 = vadd.f32 %v6116, %v7288
    %v7290 = vpop.f32.mrb[0].mxu0
    %v7291 = vpop.f32.mrb[0].mxu0
    %v7292 = vadd.f32 %v6116, %v7291
    %v7293 = vpop.f32.mrb[0].mxu0
    %7294 = vdwg.mxu0
    %7295 = vmatprep.subr.bf16.mxu0 0
    %7296 = vmatpush1.bf16.msra.mxu0 %v6590
    %7297 = vmatprep.subr.bf16.mxu0 0
    %7298 = vmatpush1.bf16.msra.mxu0 %v6595
    %7299 = vmatprep.subr.bf16.mxu0 0
    %7300 = vmatpush1.bf16.msra.mxu0 %v6600
    %7301 = vmatprep.subr.bf16.mxu0 0
    %7302 = vmatpush1.bf16.msra.mxu0 %v6605
    %7303 = vmatprep.subr.bf16.mxu0 0
    %7304 = vmatpush1.bf16.msra.mxu0 %v6610
    %7305 = vmatprep.subr.bf16.mxu0 0
    %7306 = vmatpush1.bf16.msra.mxu0 %v6615
    %7307 = vmatprep.subr.bf16.mxu0 0
    %7308 = vmatpush1.bf16.msra.mxu0 %v6620
    %7309 = vmatprep.subr.bf16.mxu0 0
    %7310 = vmatpush1.bf16.msra.mxu0 %v6625
    %7311 = vmatprep.subr.bf16.mxu0 0
    %7312 = vmatpush1.bf16.msra.mxu0 0
    %7313 = vmatprep.subr.bf16.mxu0 0
    %7314 = vmatpush1.bf16.msra.mxu0 0
    %7315 = vmatprep.subr.bf16.mxu0 0
    %7316 = vmatpush1.bf16.msra.mxu0 0
    %7317 = vmatprep.subr.bf16.mxu0 0
    %7318 = vmatpush1.bf16.msra.mxu0 0
    %7319 = vmatprep.subr.bf16.mxu0 0
    %7320 = vmatpush1.bf16.msra.mxu0 0
    %7321 = vmatprep.subr.bf16.mxu0 0
    %7322 = vmatpush1.bf16.msra.mxu0 0
    %7323 = vmatprep.subr.bf16.mxu0 0
    %7324 = vmatpush1.bf16.msra.mxu0 0
    %7325 = vmatprep.subr.bf16.mxu0 0
    %7326 = vmatpush1.bf16.msra.mxu0 0
    %7327 = vmatprep.mubr.bf16.mxu0 0
    %7328 = vmatmul.mubr.bf16.gmra.mrb[0].mxu0 %v5929
    %v7329 = vpop.f32.mrb[0].mxu0
    %v7330 = vadd.f32 %v7233, %v7329
    %v7331 = vpop.f32.mrb[0].mxu0
    %v7332 = vpop.f32.mrb[0].mxu0
    %v7333 = vadd.f32 %v7236, %v7332
    %v7334 = vpop.f32.mrb[0].mxu0
    %7335 = vmatprep.mubr.bf16.mxu0 0
    %7336 = vmatmul.mubr.bf16.gmra.mrb[0].mxu0 %v5932
    %v7337 = vpop.f32.mrb[0].mxu0
    %v7338 = vadd.f32 %v7241, %v7337
    %v7339 = vpop.f32.mrb[0].mxu0
    %v7340 = vpop.f32.mrb[0].mxu0
    %v7341 = vadd.f32 %v7244, %v7340
    %v7342 = vpop.f32.mrb[0].mxu0
    %7343 = vmatprep.mubr.bf16.mxu0 0
    %7344 = vmatmul.mubr.bf16.gmra.mrb[0].mxu0 %v5935
    %v7345 = vpop.f32.mrb[0].mxu0
    %v7346 = vadd.f32 %v7249, %v7345
    %v7347 = vpop.f32.mrb[0].mxu0
    %v7348 = vpop.f32.mrb[0].mxu0
    %v7349 = vadd.f32 %v7252, %v7348
    %v7350 = vpop.f32.mrb[0].mxu0
    %7351 = vmatprep.mubr.bf16.mxu0 0
    %7352 = vmatmul.mubr.bf16.gmra.mrb[0].mxu0 %v5938
    %v7353 = vpop.f32.mrb[0].mxu0
    %v7354 = vadd.f32 %v7257, %v7353
    %v7355 = vpop.f32.mrb[0].mxu0
    %v7356 = vpop.f32.mrb[0].mxu0
    %v7357 = vadd.f32 %v7260, %v7356
    %v7358 = vpop.f32.mrb[0].mxu0
    %7359 = vmatprep.mubr.bf16.mxu0 0
    %7360 = vmatmul.mubr.bf16.gmra.mrb[0].mxu0 %v5941
    %v7361 = vpop.f32.mrb[0].mxu0
    %v7362 = vadd.f32 %v7265, %v7361
    %v7363 = vpop.f32.mrb[0].mxu0
    %v7364 = vpop.f32.mrb[0].mxu0
    %v7365 = vadd.f32 %v7268, %v7364
    %v7366 = vpop.f32.mrb[0].mxu0
    %7367 = vmatprep.mubr.bf16.mxu0 0
    %7368 = vmatmul.mubr.bf16.gmra.mrb[0].mxu0 %v5944
    %v7369 = vpop.f32.mrb[0].mxu0
    %v7370 = vadd.f32 %v7273, %v7369
    %v7371 = vpop.f32.mrb[0].mxu0
    %v7372 = vpop.f32.mrb[0].mxu0
    %v7373 = vadd.f32 %v7276, %v7372
    %v7374 = vpop.f32.mrb[0].mxu0
    %7375 = vmatprep.mubr.bf16.mxu0 0
    %7376 = vmatmul.mubr.bf16.gmra.mrb[0].mxu0 %v5947
    %v7377 = vpop.f32.mrb[0].mxu0
    %v7378 = vadd.f32 %v7281, %v7377
    %v7379 = vpop.f32.mrb[0].mxu0
    %v7380 = vpop.f32.mrb[0].mxu0
    %v7381 = vadd.f32 %v7284, %v7380
    %v7382 = vpop.f32.mrb[0].mxu0
    %7383 = vmatprep.mubr.bf16.mxu0 0
    %7384 = vmatmul.mubr.bf16.gmra.mrb[0].mxu0 %v5950
    %v7385 = vpop.f32.mrb[0].mxu0
    %v7386 = vadd.f32 %v7289, %v7385
    %v7387 = vpop.f32.mrb[0].mxu0
    %v7388 = vpop.f32.mrb[0].mxu0
    %v7389 = vadd.f32 %v7292, %v7388
    %v7390 = vpop.f32.mrb[0].mxu0
    %7391 = vdwg.mxu0
    %v7392 = vmax.f32 %v6894, 0.0
    %v7393 = vmax.f32 %v6896, 0.0
    %v7394 = vmax.f32 %v7120, 0.0
    %v7395 = vmax.f32 %v7122, 0.0
    %v7396 = vmax.f32 %v7330, 0.0
    %v7397 = vmax.f32 %v6898, 0.0
    %v7398 = vmax.f32 %v6900, 0.0
    %v7399 = vmax.f32 %v7124, 0.0
    %v7400 = vmax.f32 %v7126, 0.0
    %v7401 = vmax.f32 %v7333, 0.0
    %v7402 = vmax.f32 %v6904, 0.0
    %v7403 = vmax.f32 %v6906, 0.0
    %v7404 = vmax.f32 %v7130, 0.0
    %v7405 = vmax.f32 %v7132, 0.0
    %v7406 = vmax.f32 %v7338, 0.0
    %v7407 = vmax.f32 %v6908, 0.0
    %v7408 = vmax.f32 %v6910, 0.0
    %v7409 = vmax.f32 %v7134, 0.0
    %v7410 = vmax.f32 %v7136, 0.0
    %v7411 = vmax.f32 %v7341, 0.0
    %v7412 = vmax.f32 %v6914, 0.0
    %v7413 = vmax.f32 %v6916, 0.0
    %v7414 = vmax.f32 %v7140, 0.0
    %v7415 = vmax.f32 %v7142, 0.0
    %v7416 = vmax.f32 %v7346, 0.0
    %v7417 = vmax.f32 %v6918, 0.0
    %v7418 = vmax.f32 %v6920, 0.0
    %v7419 = vmax.f32 %v7144, 0.0
    %v7420 = vmax.f32 %v7146, 0.0
    %v7421 = vmax.f32 %v7349, 0.0
    %v7422 = vmax.f32 %v6924, 0.0
    %v7423 = vmax.f32 %v6926, 0.0
    %v7424 = vmax.f32 %v7150, 0.0
    %v7425 = vmax.f32 %v7152, 0.0
    %v7426 = vmax.f32 %v7354, 0.0
    %v7427 = vmax.f32 %v6928, 0.0
    %v7428 = vmax.f32 %v6930, 0.0
    %v7429 = vmax.f32 %v7154, 0.0
    %v7430 = vmax.f32 %v7156, 0.0
    %v7431 = vmax.f32 %v7357, 0.0
    %v7432 = vmax.f32 %v6934, 0.0
    %v7433 = vmax.f32 %v6936, 0.0
    %v7434 = vmax.f32 %v7160, 0.0
    %v7435 = vmax.f32 %v7162, 0.0
    %v7436 = vmax.f32 %v7362, 0.0
    %v7437 = vmax.f32 %v6938, 0.0
    %v7438 = vmax.f32 %v6940, 0.0
    %v7439 = vmax.f32 %v7164, 0.0
    %v7440 = vmax.f32 %v7166, 0.0
    %v7441 = vmax.f32 %v7365, 0.0
    %v7442 = vmax.f32 %v6944, 0.0
    %v7443 = vmax.f32 %v6946, 0.0
    %v7444 = vmax.f32 %v7170, 0.0
    %v7445 = vmax.f32 %v7172, 0.0
    %v7446 = vmax.f32 %v7370, 0.0
    %v7447 = vmax.f32 %v6948, 0.0
    %v7448 = vmax.f32 %v6950, 0.0
    %v7449 = vmax.f32 %v7174, 0.0
    %v7450 = vmax.f32 %v7176, 0.0
    %v7451 = vmax.f32 %v7373, 0.0
    %v7452 = vmax.f32 %v6954, 0.0
    %v7453 = vmax.f32 %v6956, 0.0
    %v7454 = vmax.f32 %v7180, 0.0
    %v7455 = vmax.f32 %v7182, 0.0
    %v7456 = vmax.f32 %v7378, 0.0
    %v7457 = vmax.f32 %v6958, 0.0
    %v7458 = vmax.f32 %v6960, 0.0
    %v7459 = vmax.f32 %v7184, 0.0
    %v7460 = vmax.f32 %v7186, 0.0
    %v7461 = vmax.f32 %v7381, 0.0
    %v7462 = vmax.f32 %v6964, 0.0
    %v7463 = vmax.f32 %v6966, 0.0
    %v7464 = vmax.f32 %v7190, 0.0
    %v7465 = vmax.f32 %v7192, 0.0
    %v7466 = vmax.f32 %v7386, 0.0
    %v7467 = vmax.f32 %v6968, 0.0
    %v7468 = vmax.f32 %v6970, 0.0
    %v7469 = vmax.f32 %v7194, 0.0
    %v7470 = vmax.f32 %v7196, 0.0
    %v7471 = vmax.f32 %v7389, 0.0
    %v7472 = vpack.c.bf16 %v7397, %v7392
    %v7473 = vpack.c.bf16 %v7398, %v7393
    %v7474 = vpack.c.bf16 %v7399, %v7394
    %v7475 = vpack.c.bf16 %v7400, %v7395
    %v7476 = vpack.c.bf16 %v7401, %v7396
    %v7477 = vpack.c.bf16 %v7407, %v7402
    %v7478 = vpack.c.bf16 %v7408, %v7403
    %v7479 = vpack.c.bf16 %v7409, %v7404
    %v7480 = vpack.c.bf16 %v7410, %v7405
    %v7481 = vpack.c.bf16 %v7411, %v7406
    %v7482 = vpack.c.bf16 %v7417, %v7412
    %v7483 = vpack.c.bf16 %v7418, %v7413
    %v7484 = vpack.c.bf16 %v7419, %v7414
    %v7485 = vpack.c.bf16 %v7420, %v7415
    %v7486 = vpack.c.bf16 %v7421, %v7416
    %v7487 = vpack.c.bf16 %v7427, %v7422
    %v7488 = vpack.c.bf16 %v7428, %v7423
    %v7489 = vpack.c.bf16 %v7429, %v7424
    %v7490 = vpack.c.bf16 %v7430, %v7425
    %v7491 = vpack.c.bf16 %v7431, %v7426
    %v7492 = vpack.c.bf16 %v7437, %v7432
    %v7493 = vpack.c.bf16 %v7438, %v7433
    %v7494 = vpack.c.bf16 %v7439, %v7434
    %v7495 = vpack.c.bf16 %v7440, %v7435
    %v7496 = vpack.c.bf16 %v7441, %v7436
    %v7497 = vpack.c.bf16 %v7447, %v7442
    %v7498 = vpack.c.bf16 %v7448, %v7443
    %v7499 = vpack.c.bf16 %v7449, %v7444
    %v7500 = vpack.c.bf16 %v7450, %v7445
    %v7501 = vpack.c.bf16 %v7451, %v7446
    %v7502 = vpack.c.bf16 %v7457, %v7452
    %v7503 = vpack.c.bf16 %v7458, %v7453
    %v7504 = vpack.c.bf16 %v7459, %v7454
    %v7505 = vpack.c.bf16 %v7460, %v7455
    %v7506 = vpack.c.bf16 %v7461, %v7456
    %v7507 = vpack.c.bf16 %v7467, %v7462
    %v7508 = vpack.c.bf16 %v7468, %v7463
    %v7509 = vpack.c.bf16 %v7469, %v7464
    %v7510 = vpack.c.bf16 %v7470, %v7465
    %v7511 = vpack.c.bf16 %v7471, %v7466
    %v7512 = vld [vmem:[#allocation18] sm:$0xff]
    %v7513 = vld [vmem:[#allocation18 + $0x8] sm:$0xff]
    %v7514 = vld [vmem:[#allocation18 + $0x10] sm:$0xff]
    %v7515 = vld [vmem:[#allocation18 + $0x18] sm:$0xf]
    %v7516 = vld [vmem:[#allocation18 + $0x1c] sm:$0xff]
    %v7517 = vld [vmem:[#allocation18 + $0x24] sm:$0xff]
    %v7518 = vld [vmem:[#allocation18 + $0x2c] sm:$0xff]
    %v7519 = vld [vmem:[#allocation18 + $0x34] sm:$0xf]
    %v7520 = vld [vmem:[#allocation18 + $0x38] sm:$0xff]
    %v7521 = vld [vmem:[#allocation18 + $0x40] sm:$0xff]
    %v7522 = vld [vmem:[#allocation18 + $0x48] sm:$0xff]
    %v7523 = vld [vmem:[#allocation18 + $0x50] sm:$0xf]
    %v7524 = vld [vmem:[#allocation18 + $0x54] sm:$0xff]
    %v7525 = vld [vmem:[#allocation18 + $0x5c] sm:$0xff]
    %v7526 = vld [vmem:[#allocation18 + $0x64] sm:$0xff]
    %v7527 = vld [vmem:[#allocation18 + $0x6c] sm:$0xf]
    %v7528 = vld [vmem:[#allocation18 + $0x70] sm:$0xff]
    %v7529 = vld [vmem:[#allocation18 + $0x78] sm:$0xff]
    %v7530 = vld [vmem:[#allocation18 + $0x80] sm:$0xff]
    %v7531 = vld [vmem:[#allocation18 + $0x88] sm:$0xf]
    %v7532 = vld [vmem:[#allocation18 + $0x8c] sm:$0xff]
    %v7533 = vld [vmem:[#allocation18 + $0x94] sm:$0xff]
    %v7534 = vld [vmem:[#allocation18 + $0x9c] sm:$0xff]
    %v7535 = vld [vmem:[#allocation18 + $0xa4] sm:$0xf]
    %v7536 = vld [vmem:[#allocation18 + $0xa8] sm:$0xff]
    %v7537 = vld [vmem:[#allocation18 + $0xb0] sm:$0xff]
    %v7538 = vld [vmem:[#allocation18 + $0xb8] sm:$0xff]
    %v7539 = vld [vmem:[#allocation18 + $0xc0] sm:$0xf]
    %v7540 = vld [vmem:[#allocation18 + $0xc4] sm:$0xff]
    %v7541 = vld [vmem:[#allocation18 + $0xcc] sm:$0xff]
    %v7542 = vld [vmem:[#allocation18 + $0xd4] sm:$0xff]
    %v7543 = vld [vmem:[#allocation18 + $0xdc] sm:$0xf]
    %v7544 = vld [vmem:[#allocation18 + $0xe0] sm:$0xff]
    %v7545 = vld [vmem:[#allocation18 + $0xe8] sm:$0xff]
    %v7546 = vld [vmem:[#allocation18 + $0xf0] sm:$0xff]
    %v7547 = vld [vmem:[#allocation18 + $0xf8] sm:$0xf]
    %v7548 = vld [vmem:[#allocation18 + $0xfc] sm:$0xff]
    %v7549 = vld [vmem:[#allocation18 + $0x104] sm:$0xff]
    %v7550 = vld [vmem:[#allocation18 + $0x10c] sm:$0xff]
    %v7551 = vld [vmem:[#allocation18 + $0x114] sm:$0xf]
    %v7552 = vld [vmem:[#allocation18 + $0x118] sm:$0xff]
    %v7553 = vld [vmem:[#allocation18 + $0x120] sm:$0xff]
    %v7554 = vld [vmem:[#allocation18 + $0x128] sm:$0xff]
    %v7555 = vld [vmem:[#allocation18 + $0x130] sm:$0xf]
    %v7556 = vld [vmem:[#allocation18 + $0x134] sm:$0xff]
    %v7557 = vld [vmem:[#allocation18 + $0x13c] sm:$0xff]
    %v7558 = vld [vmem:[#allocation18 + $0x144] sm:$0xff]
    %v7559 = vld [vmem:[#allocation18 + $0x14c] sm:$0xf]
    %v7560 = vld [vmem:[#allocation18 + $0x150] sm:$0xff]
    %v7561 = vld [vmem:[#allocation18 + $0x158] sm:$0xff]
    %v7562 = vld [vmem:[#allocation18 + $0x160] sm:$0xff]
    %v7563 = vld [vmem:[#allocation18 + $0x168] sm:$0xf]
    %v7564 = vld [vmem:[#allocation18 + $0x16c] sm:$0xff]
    %v7565 = vld [vmem:[#allocation18 + $0x174] sm:$0xff]
    %v7566 = vld [vmem:[#allocation18 + $0x17c] sm:$0xff]
    %v7567 = vld [vmem:[#allocation18 + $0x184] sm:$0xf]
    %v7568 = vld [vmem:[#allocation18 + $0x188] sm:$0xff]
    %v7569 = vld [vmem:[#allocation18 + $0x190] sm:$0xff]
    %v7570 = vld [vmem:[#allocation18 + $0x198] sm:$0xff]
    %v7571 = vld [vmem:[#allocation18 + $0x1a0] sm:$0xf]
    %v7572 = vld [vmem:[#allocation18 + $0x1a4] sm:$0xff]
    %v7573 = vld [vmem:[#allocation18 + $0x1ac] sm:$0xff]
    %v7574 = vld [vmem:[#allocation18 + $0x1b4] sm:$0xff]
    %v7575 = vld [vmem:[#allocation18 + $0x1bc] sm:$0xf]
    %v7576 = vld [vmem:[#allocation18 + $0x1c0] sm:$0xff]
    %v7577 = vld [vmem:[#allocation18 + $0x1c8] sm:$0xff]
    %v7578 = vld [vmem:[#allocation18 + $0x1d0] sm:$0xff]
    %v7579 = vld [vmem:[#allocation18 + $0x1d8] sm:$0xf]
    %v7580 = vld [vmem:[#allocation18 + $0x1dc] sm:$0xff]
    %v7581 = vld [vmem:[#allocation18 + $0x1e4] sm:$0xff]
    %v7582 = vld [vmem:[#allocation18 + $0x1ec] sm:$0xff]
    %v7583 = vld [vmem:[#allocation18 + $0x1f4] sm:$0xf]
    %v7584 = vld [vmem:[#allocation18 + $0x1f8] sm:$0xff]
    %v7585 = vld [vmem:[#allocation18 + $0x200] sm:$0xff]
    %v7586 = vld [vmem:[#allocation18 + $0x208] sm:$0xff]
    %v7587 = vld [vmem:[#allocation18 + $0x210] sm:$0xf]
    %v7588 = vld [vmem:[#allocation18 + $0x214] sm:$0xff]
    %v7589 = vld [vmem:[#allocation18 + $0x21c] sm:$0xff]
    %v7590 = vld [vmem:[#allocation18 + $0x224] sm:$0xff]
    %v7591 = vld [vmem:[#allocation18 + $0x22c] sm:$0xf]
    %v7592 = vld [vmem:[#allocation18 + $0x230] sm:$0xff]
    %v7593 = vld [vmem:[#allocation18 + $0x238] sm:$0xff]
    %v7594 = vld [vmem:[#allocation18 + $0x240] sm:$0xff]
    %v7595 = vld [vmem:[#allocation18 + $0x248] sm:$0xf]
    %v7596 = vld [vmem:[#allocation18 + $0x24c] sm:$0xff]
    %v7597 = vld [vmem:[#allocation18 + $0x254] sm:$0xff]
    %v7598 = vld [vmem:[#allocation18 + $0x25c] sm:$0xff]
    %v7599 = vld [vmem:[#allocation18 + $0x264] sm:$0xf]
    %v7600 = vld [vmem:[#allocation18 + $0x268] sm:$0xff]
    %v7601 = vld [vmem:[#allocation18 + $0x270] sm:$0xff]
    %v7602 = vld [vmem:[#allocation18 + $0x278] sm:$0xff]
    %v7603 = vld [vmem:[#allocation18 + $0x280] sm:$0xf]
    %v7604 = vld [vmem:[#allocation18 + $0x284] sm:$0xff]
    %v7605 = vld [vmem:[#allocation18 + $0x28c] sm:$0xff]
    %v7606 = vld [vmem:[#allocation18 + $0x294] sm:$0xff]
    %v7607 = vld [vmem:[#allocation18 + $0x29c] sm:$0xf]
    %v7608 = vld [vmem:[#allocation18 + $0x2a0] sm:$0xff]
    %v7609 = vld [vmem:[#allocation18 + $0x2a8] sm:$0xff]
    %v7610 = vld [vmem:[#allocation18 + $0x2b0] sm:$0xff]
    %v7611 = vld [vmem:[#allocation18 + $0x2b8] sm:$0xf]
    %v7612 = vld [vmem:[#allocation18 + $0x2bc] sm:$0xff]
    %v7613 = vld [vmem:[#allocation18 + $0x2c4] sm:$0xff]
    %v7614 = vld [vmem:[#allocation18 + $0x2cc] sm:$0xff]
    %v7615 = vld [vmem:[#allocation18 + $0x2d4] sm:$0xf]
    %v7616 = vld [vmem:[#allocation18 + $0x2d8] sm:$0xff]
    %v7617 = vld [vmem:[#allocation18 + $0x2e0] sm:$0xff]
    %v7618 = vld [vmem:[#allocation18 + $0x2e8] sm:$0xff]
    %v7619 = vld [vmem:[#allocation18 + $0x2f0] sm:$0xf]
    %v7620 = vld [vmem:[#allocation18 + $0x2f4] sm:$0xff]
    %v7621 = vld [vmem:[#allocation18 + $0x2fc] sm:$0xff]
    %v7622 = vld [vmem:[#allocation18 + $0x304] sm:$0xff]
    %v7623 = vld [vmem:[#allocation18 + $0x30c] sm:$0xf]
    %v7624 = vld [vmem:[#allocation18 + $0x310] sm:$0xff]
    %v7625 = vld [vmem:[#allocation18 + $0x318] sm:$0xff]
    %v7626 = vld [vmem:[#allocation18 + $0x320] sm:$0xff]
    %v7627 = vld [vmem:[#allocation18 + $0x328] sm:$0xf]
    %v7628 = vld [vmem:[#allocation18 + $0x32c] sm:$0xff]
    %v7629 = vld [vmem:[#allocation18 + $0x334] sm:$0xff]
    %v7630 = vld [vmem:[#allocation18 + $0x33c] sm:$0xff]
    %v7631 = vld [vmem:[#allocation18 + $0x344] sm:$0xf]
    %v7632 = vld [vmem:[#allocation18 + $0x348] sm:$0xff]
    %v7633 = vld [vmem:[#allocation18 + $0x350] sm:$0xff]
    %v7634 = vld [vmem:[#allocation18 + $0x358] sm:$0xff]
    %v7635 = vld [vmem:[#allocation18 + $0x360] sm:$0xf]
    %v7636 = vld [vmem:[#allocation18 + $0x364] sm:$0xff]
    %v7637 = vld [vmem:[#allocation18 + $0x36c] sm:$0xff]
    %v7638 = vld [vmem:[#allocation18 + $0x374] sm:$0xff]
    %v7639 = vld [vmem:[#allocation18 + $0x37c] sm:$0xf]
    %v7640 = vld [vmem:[#allocation18 + $0x380] sm:$0xff]
    %v7641 = vld [vmem:[#allocation18 + $0x388] sm:$0xff]
    %v7642 = vld [vmem:[#allocation18 + $0x390] sm:$0xff]
    %v7643 = vld [vmem:[#allocation18 + $0x398] sm:$0xf]
    %v7644 = vld [vmem:[#allocation18 + $0x39c] sm:$0xff]
    %v7645 = vld [vmem:[#allocation18 + $0x3a4] sm:$0xff]
    %v7646 = vld [vmem:[#allocation18 + $0x3ac] sm:$0xff]
    %v7647 = vld [vmem:[#allocation18 + $0x3b4] sm:$0xf]
    %v7648 = vld [vmem:[#allocation18 + $0x3b8] sm:$0xff]
    %v7649 = vld [vmem:[#allocation18 + $0x3c0] sm:$0xff]
    %v7650 = vld [vmem:[#allocation18 + $0x3c8] sm:$0xff]
    %v7651 = vld [vmem:[#allocation18 + $0x3d0] sm:$0xf]
    %v7652 = vld [vmem:[#allocation18 + $0x3d4] sm:$0xff]
    %v7653 = vld [vmem:[#allocation18 + $0x3dc] sm:$0xff]
    %v7654 = vld [vmem:[#allocation18 + $0x3e4] sm:$0xff]
    %v7655 = vld [vmem:[#allocation18 + $0x3ec] sm:$0xf]
    %v7656 = vld [vmem:[#allocation18 + $0x3f0] sm:$0xff]
    %v7657 = vld [vmem:[#allocation18 + $0x3f8] sm:$0xff]
    %v7658 = vld [vmem:[#allocation18 + $0x400] sm:$0xff]
    %v7659 = vld [vmem:[#allocation18 + $0x408] sm:$0xf]
    %v7660 = vld [vmem:[#allocation18 + $0x40c] sm:$0xff]
    %v7661 = vld [vmem:[#allocation18 + $0x414] sm:$0xff]
    %v7662 = vld [vmem:[#allocation18 + $0x41c] sm:$0xff]
    %v7663 = vld [vmem:[#allocation18 + $0x424] sm:$0xf]
    %v7664 = vld [vmem:[#allocation18 + $0x428] sm:$0xff]
    %v7665 = vld [vmem:[#allocation18 + $0x430] sm:$0xff]
    %v7666 = vld [vmem:[#allocation18 + $0x438] sm:$0xff]
    %v7667 = vld [vmem:[#allocation18 + $0x440] sm:$0xf]
    %v7668 = vld [vmem:[#allocation18 + $0x444] sm:$0xff]
    %v7669 = vld [vmem:[#allocation18 + $0x44c] sm:$0xff]
    %v7670 = vld [vmem:[#allocation18 + $0x454] sm:$0xff]
    %v7671 = vld [vmem:[#allocation18 + $0x45c] sm:$0xf]
    %v7672 = vld [vmem:[#allocation18 + $0x460] sm:$0xff]
    %v7673 = vld [vmem:[#allocation18 + $0x468] sm:$0xff]
    %v7674 = vld [vmem:[#allocation18 + $0x470] sm:$0xff]
    %v7675 = vld [vmem:[#allocation18 + $0x478] sm:$0xf]
    %v7676 = vld [vmem:[#allocation18 + $0x47c] sm:$0xff]
    %v7677 = vld [vmem:[#allocation18 + $0x484] sm:$0xff]
    %v7678 = vld [vmem:[#allocation18 + $0x48c] sm:$0xff]
    %v7679 = vld [vmem:[#allocation18 + $0x494] sm:$0xf]
    %v7680 = vld [vmem:[#allocation18 + $0x498] sm:$0xff]
    %v7681 = vld [vmem:[#allocation18 + $0x4a0] sm:$0xff]
    %v7682 = vld [vmem:[#allocation18 + $0x4a8] sm:$0xff]
    %v7683 = vld [vmem:[#allocation18 + $0x4b0] sm:$0xf]
    %v7684 = vld [vmem:[#allocation18 + $0x4b4] sm:$0xff]
    %v7685 = vld [vmem:[#allocation18 + $0x4bc] sm:$0xff]
    %v7686 = vld [vmem:[#allocation18 + $0x4c4] sm:$0xff]
    %v7687 = vld [vmem:[#allocation18 + $0x4cc] sm:$0xf]
    %v7688 = vld [vmem:[#allocation18 + $0x4d0] sm:$0xff]
    %v7689 = vld [vmem:[#allocation18 + $0x4d8] sm:$0xff]
    %v7690 = vld [vmem:[#allocation18 + $0x4e0] sm:$0xff]
    %v7691 = vld [vmem:[#allocation18 + $0x4e8] sm:$0xf]
    %v7692 = vld [vmem:[#allocation18 + $0x4ec] sm:$0xff]
    %v7693 = vld [vmem:[#allocation18 + $0x4f4] sm:$0xff]
    %v7694 = vld [vmem:[#allocation18 + $0x4fc] sm:$0xff]
    %v7695 = vld [vmem:[#allocation18 + $0x504] sm:$0xf]
    %v7696 = vld [vmem:[#allocation18 + $0x508] sm:$0xff]
    %v7697 = vld [vmem:[#allocation18 + $0x510] sm:$0xff]
    %v7698 = vld [vmem:[#allocation18 + $0x518] sm:$0xff]
    %v7699 = vld [vmem:[#allocation18 + $0x520] sm:$0xf]
    %v7700 = vld [vmem:[#allocation18 + $0x524] sm:$0xff]
    %v7701 = vld [vmem:[#allocation18 + $0x52c] sm:$0xff]
    %v7702 = vld [vmem:[#allocation18 + $0x534] sm:$0xff]
    %v7703 = vld [vmem:[#allocation18 + $0x53c] sm:$0xf]
    %v7704 = vld [vmem:[#allocation18 + $0x540] sm:$0xff]
    %v7705 = vld [vmem:[#allocation18 + $0x548] sm:$0xff]
    %v7706 = vld [vmem:[#allocation18 + $0x550] sm:$0xff]
    %v7707 = vld [vmem:[#allocation18 + $0x558] sm:$0xf]
    %v7708 = vld [vmem:[#allocation18 + $0x55c] sm:$0xff]
    %v7709 = vld [vmem:[#allocation18 + $0x564] sm:$0xff]
    %v7710 = vld [vmem:[#allocation18 + $0x56c] sm:$0xff]
    %v7711 = vld [vmem:[#allocation18 + $0x574] sm:$0xf]
    %v7712 = vld [vmem:[#allocation18 + $0x578] sm:$0xff]
    %v7713 = vld [vmem:[#allocation18 + $0x580] sm:$0xff]
    %v7714 = vld [vmem:[#allocation18 + $0x588] sm:$0xff]
    %v7715 = vld [vmem:[#allocation18 + $0x590] sm:$0xf]
    %v7716 = vld [vmem:[#allocation18 + $0x594] sm:$0xff]
    %v7717 = vld [vmem:[#allocation18 + $0x59c] sm:$0xff]
    %v7718 = vld [vmem:[#allocation18 + $0x5a4] sm:$0xff]
    %v7719 = vld [vmem:[#allocation18 + $0x5ac] sm:$0xf]
    %v7720 = vld [vmem:[#allocation18 + $0x5b0] sm:$0xff]
    %v7721 = vld [vmem:[#allocation18 + $0x5b8] sm:$0xff]
    %v7722 = vld [vmem:[#allocation18 + $0x5c0] sm:$0xff]
    %v7723 = vld [vmem:[#allocation18 + $0x5c8] sm:$0xf]
    %v7724 = vld [vmem:[#allocation18 + $0x5cc] sm:$0xff]
    %v7725 = vld [vmem:[#allocation18 + $0x5d4] sm:$0xff]
    %v7726 = vld [vmem:[#allocation18 + $0x5dc] sm:$0xff]
    %v7727 = vld [vmem:[#allocation18 + $0x5e4] sm:$0xf]
    %v7728 = vld [vmem:[#allocation18 + $0x5e8] sm:$0xff]
    %v7729 = vld [vmem:[#allocation18 + $0x5f0] sm:$0xff]
    %v7730 = vld [vmem:[#allocation18 + $0x5f8] sm:$0xff]
    %v7731 = vld [vmem:[#allocation18 + $0x600] sm:$0xf]
    %v7732 = vld [vmem:[#allocation18 + $0x604] sm:$0xff]
    %v7733 = vld [vmem:[#allocation18 + $0x60c] sm:$0xff]
    %v7734 = vld [vmem:[#allocation18 + $0x614] sm:$0xff]
    %v7735 = vld [vmem:[#allocation18 + $0x61c] sm:$0xf]
    %v7736 = vld [vmem:[#allocation18 + $0x620] sm:$0xff]
    %v7737 = vld [vmem:[#allocation18 + $0x628] sm:$0xff]
    %v7738 = vld [vmem:[#allocation18 + $0x630] sm:$0xff]
    %v7739 = vld [vmem:[#allocation18 + $0x638] sm:$0xf]
    %v7740 = vld [vmem:[#allocation18 + $0x63c] sm:$0xff]
    %v7741 = vld [vmem:[#allocation18 + $0x644] sm:$0xff]
    %v7742 = vld [vmem:[#allocation18 + $0x64c] sm:$0xff]
    %v7743 = vld [vmem:[#allocation18 + $0x654] sm:$0xf]
    %v7744 = vld [vmem:[#allocation18 + $0x658] sm:$0xff]
    %v7745 = vld [vmem:[#allocation18 + $0x660] sm:$0xff]
    %v7746 = vld [vmem:[#allocation18 + $0x668] sm:$0xff]
    %v7747 = vld [vmem:[#allocation18 + $0x670] sm:$0xf]
    %v7748 = vld [vmem:[#allocation18 + $0x674] sm:$0xff]
    %v7749 = vld [vmem:[#allocation18 + $0x67c] sm:$0xff]
    %v7750 = vld [vmem:[#allocation18 + $0x684] sm:$0xff]
    %v7751 = vld [vmem:[#allocation18 + $0x68c] sm:$0xf]
    %v7752 = vld [vmem:[#allocation18 + $0x690] sm:$0xff]
    %v7753 = vld [vmem:[#allocation18 + $0x698] sm:$0xff]
    %v7754 = vld [vmem:[#allocation18 + $0x6a0] sm:$0xff]
    %v7755 = vld [vmem:[#allocation18 + $0x6a8] sm:$0xf]
    %v7756 = vld [vmem:[#allocation18 + $0x6ac] sm:$0xff]
    %v7757 = vld [vmem:[#allocation18 + $0x6b4] sm:$0xff]
    %v7758 = vld [vmem:[#allocation18 + $0x6bc] sm:$0xff]
    %v7759 = vld [vmem:[#allocation18 + $0x6c4] sm:$0xf]
    %v7760 = vld [vmem:[#allocation18 + $0x6c8] sm:$0xff]
    %v7761 = vld [vmem:[#allocation18 + $0x6d0] sm:$0xff]
    %v7762 = vld [vmem:[#allocation18 + $0x6d8] sm:$0xff]
    %v7763 = vld [vmem:[#allocation18 + $0x6e0] sm:$0xf]
    %v7764 = vld [vmem:[#allocation18 + $0x6e4] sm:$0xff]
    %v7765 = vld [vmem:[#allocation18 + $0x6ec] sm:$0xff]
    %v7766 = vld [vmem:[#allocation18 + $0x6f4] sm:$0xff]
    %v7767 = vld [vmem:[#allocation18 + $0x6fc] sm:$0xf]
    %v7768 = vld [vmem:[#allocation18 + $0x700] sm:$0xff]
    %v7769 = vld [vmem:[#allocation18 + $0x708] sm:$0xff]
    %v7770 = vld [vmem:[#allocation18 + $0x710] sm:$0xff]
    %v7771 = vld [vmem:[#allocation18 + $0x718] sm:$0xf]
    %v7772 = vld [vmem:[#allocation18 + $0x71c] sm:$0xff]
    %v7773 = vld [vmem:[#allocation18 + $0x724] sm:$0xff]
    %v7774 = vld [vmem:[#allocation18 + $0x72c] sm:$0xff]
    %v7775 = vld [vmem:[#allocation18 + $0x734] sm:$0xf]
    %v7776 = vld [vmem:[#allocation18 + $0x738] sm:$0xff]
    %v7777 = vld [vmem:[#allocation18 + $0x740] sm:$0xff]
    %v7778 = vld [vmem:[#allocation18 + $0x748] sm:$0xff]
    %v7779 = vld [vmem:[#allocation18 + $0x750] sm:$0xf]
    %v7780 = vld [vmem:[#allocation18 + $0x754] sm:$0xff]
    %v7781 = vld [vmem:[#allocation18 + $0x75c] sm:$0xff]
    %v7782 = vld [vmem:[#allocation18 + $0x764] sm:$0xff]
    %v7783 = vld [vmem:[#allocation18 + $0x76c] sm:$0xf]
    %v7784 = vld [vmem:[#allocation18 + $0x770] sm:$0xff]
    %v7785 = vld [vmem:[#allocation18 + $0x778] sm:$0xff]
    %v7786 = vld [vmem:[#allocation18 + $0x780] sm:$0xff]
    %v7787 = vld [vmem:[#allocation18 + $0x788] sm:$0xf]
    %v7788 = vld [vmem:[#allocation18 + $0x78c] sm:$0xff]
    %v7789 = vld [vmem:[#allocation18 + $0x794] sm:$0xff]
    %v7790 = vld [vmem:[#allocation18 + $0x79c] sm:$0xff]
    %v7791 = vld [vmem:[#allocation18 + $0x7a4] sm:$0xf]
    %v7792 = vld [vmem:[#allocation18 + $0x7a8] sm:$0xff]
    %v7793 = vld [vmem:[#allocation18 + $0x7b0] sm:$0xff]
    %v7794 = vld [vmem:[#allocation18 + $0x7b8] sm:$0xff]
    %v7795 = vld [vmem:[#allocation18 + $0x7c0] sm:$0xf]
    %v7796 = vld [vmem:[#allocation18 + $0x7c4] sm:$0xff]
    %v7797 = vld [vmem:[#allocation18 + $0x7cc] sm:$0xff]
    %v7798 = vld [vmem:[#allocation18 + $0x7d4] sm:$0xff]
    %v7799 = vld [vmem:[#allocation18 + $0x7dc] sm:$0xf]
    %v7800 = vld [vmem:[#allocation18 + $0x7e0] sm:$0xff]
    %v7801 = vld [vmem:[#allocation18 + $0x7e8] sm:$0xff]
    %v7802 = vld [vmem:[#allocation18 + $0x7f0] sm:$0xff]
    %v7803 = vld [vmem:[#allocation18 + $0x7f8] sm:$0xf]
    %v7804 = vld [vmem:[#allocation18 + $0x7fc] sm:$0xff]
    %v7805 = vld [vmem:[#allocation18 + $0x804] sm:$0xff]
    %v7806 = vld [vmem:[#allocation18 + $0x80c] sm:$0xff]
    %v7807 = vld [vmem:[#allocation18 + $0x814] sm:$0xf]
    %v7808 = vld [vmem:[#allocation18 + $0x818] sm:$0xff]
    %v7809 = vld [vmem:[#allocation18 + $0x820] sm:$0xff]
    %v7810 = vld [vmem:[#allocation18 + $0x828] sm:$0xff]
    %v7811 = vld [vmem:[#allocation18 + $0x830] sm:$0xf]
    %v7812 = vld [vmem:[#allocation18 + $0x834] sm:$0xff]
    %v7813 = vld [vmem:[#allocation18 + $0x83c] sm:$0xff]
    %v7814 = vld [vmem:[#allocation18 + $0x844] sm:$0xff]
    %v7815 = vld [vmem:[#allocation18 + $0x84c] sm:$0xf]
    %v7816 = vld [vmem:[#allocation18 + $0x850] sm:$0xff]
    %v7817 = vld [vmem:[#allocation18 + $0x858] sm:$0xff]
    %v7818 = vld [vmem:[#allocation18 + $0x860] sm:$0xff]
    %v7819 = vld [vmem:[#allocation18 + $0x868] sm:$0xf]
    %v7820 = vld [vmem:[#allocation18 + $0x86c] sm:$0xff]
    %v7821 = vld [vmem:[#allocation18 + $0x874] sm:$0xff]
    %v7822 = vld [vmem:[#allocation18 + $0x87c] sm:$0xff]
    %v7823 = vld [vmem:[#allocation18 + $0x884] sm:$0xf]
    %v7824 = vld [vmem:[#allocation18 + $0x888] sm:$0xff]
    %v7825 = vld [vmem:[#allocation18 + $0x890] sm:$0xff]
    %v7826 = vld [vmem:[#allocation18 + $0x898] sm:$0xff]
    %v7827 = vld [vmem:[#allocation18 + $0x8a0] sm:$0xf]
    %v7828 = vld [vmem:[#allocation18 + $0x8a4] sm:$0xff]
    %v7829 = vld [vmem:[#allocation18 + $0x8ac] sm:$0xff]
    %v7830 = vld [vmem:[#allocation18 + $0x8b4] sm:$0xff]
    %v7831 = vld [vmem:[#allocation18 + $0x8bc] sm:$0xf]
    %v7832 = vld [vmem:[#allocation19] sm:$0xff]
    %v7834 = vlaneseq
    %v7835 = vshrl.u32 %v7834, 7
    %v7836 = vsub.s32 0, %v7835
    %v7837 = vrot.slane %v7832, %v7836
    %v7838 = vlaneseq
    %v7839 = vshrl.u32 %v7838, 7
    %v7840 = vsub.s32 1, %v7839
    %v7841 = vrot.slane %v7832, %v7840
    %v7842 = vlaneseq
    %v7843 = vshrl.u32 %v7842, 7
    %v7844 = vsub.s32 2, %v7843
    %v7845 = vrot.slane %v7832, %v7844
    %v7846 = vlaneseq
    %v7847 = vshrl.u32 %v7846, 7
    %v7848 = vsub.s32 3, %v7847
    %v7849 = vrot.slane %v7832, %v7848
    %v7850 = vlaneseq
    %v7851 = vshrl.u32 %v7850, 7
    %v7852 = vsub.s32 4, %v7851
    %v7853 = vrot.slane %v7832, %v7852
    %v7854 = vlaneseq
    %v7855 = vshrl.u32 %v7854, 7
    %v7856 = vsub.s32 5, %v7855
    %v7857 = vrot.slane %v7832, %v7856
    %v7858 = vlaneseq
    %v7859 = vshrl.u32 %v7858, 7
    %v7860 = vsub.s32 6, %v7859
    %v7861 = vrot.slane %v7832, %v7860
    %v8189 = vunpack.c.l.b16 %v7512
    %v8190 = vunpack.c.h.b16 %v7512
    %v8191 = vunpack.c.l.b16 %v7513
    %v8192 = vunpack.c.h.b16 %v7513
    %v8193 = vunpack.c.l.b16 %v7514
    %v8194 = vunpack.c.h.b16 %v7514
    %v8195 = vunpack.c.l.b16 %v7515
    %v8196 = vunpack.c.l.b16 %v7516
    %v8197 = vunpack.c.h.b16 %v7516
    %v8198 = vunpack.c.l.b16 %v7517
    %v8199 = vunpack.c.h.b16 %v7517
    %v8200 = vunpack.c.l.b16 %v7518
    %v8201 = vunpack.c.h.b16 %v7518
    %v8202 = vunpack.c.l.b16 %v7519
    %v8203 = vunpack.c.l.b16 %v7520
    %v8204 = vunpack.c.h.b16 %v7520
    %v8205 = vunpack.c.l.b16 %v7521
    %v8206 = vunpack.c.h.b16 %v7521
    %v8207 = vunpack.c.l.b16 %v7522
    %v8208 = vunpack.c.h.b16 %v7522
    %v8209 = vunpack.c.l.b16 %v7523
    %v8210 = vunpack.c.l.b16 %v7524
    %v8211 = vunpack.c.h.b16 %v7524
    %v8212 = vunpack.c.l.b16 %v7525
    %v8213 = vunpack.c.h.b16 %v7525
    %v8214 = vunpack.c.l.b16 %v7526
    %v8215 = vunpack.c.h.b16 %v7526
    %v8216 = vunpack.c.l.b16 %v7527
    %v8217 = vunpack.c.l.b16 %v7528
    %v8218 = vunpack.c.h.b16 %v7528
    %v8219 = vunpack.c.l.b16 %v7529
    %v8220 = vunpack.c.h.b16 %v7529
    %v8221 = vunpack.c.l.b16 %v7530
    %v8222 = vunpack.c.h.b16 %v7530
    %v8223 = vunpack.c.l.b16 %v7531
    %v8224 = vunpack.c.l.b16 %v7532
    %v8225 = vunpack.c.h.b16 %v7532
    %v8226 = vunpack.c.l.b16 %v7533
    %v8227 = vunpack.c.h.b16 %v7533
    %v8228 = vunpack.c.l.b16 %v7534
    %v8229 = vunpack.c.h.b16 %v7534
    %v8230 = vunpack.c.l.b16 %v7535
    %v8231 = vunpack.c.l.b16 %v7536
    %v8232 = vunpack.c.h.b16 %v7536
    %v8233 = vunpack.c.l.b16 %v7537
    %v8234 = vunpack.c.h.b16 %v7537
    %v8235 = vunpack.c.l.b16 %v7538
    %v8236 = vunpack.c.h.b16 %v7538
    %v8237 = vunpack.c.l.b16 %v7539
    %v8238 = vunpack.c.l.b16 %v7540
    %v8239 = vunpack.c.h.b16 %v7540
    %v8240 = vunpack.c.l.b16 %v7541
    %v8241 = vunpack.c.h.b16 %v7541
    %v8242 = vunpack.c.l.b16 %v7542
    %v8243 = vunpack.c.h.b16 %v7542
    %v8244 = vunpack.c.l.b16 %v7543
    %v8245 = vunpack.c.l.b16 %v7544
    %v8246 = vunpack.c.h.b16 %v7544
    %v8247 = vunpack.c.l.b16 %v7545
    %v8248 = vunpack.c.h.b16 %v7545
    %v8249 = vunpack.c.l.b16 %v7546
    %v8250 = vunpack.c.h.b16 %v7546
    %v8251 = vunpack.c.l.b16 %v7547
    %v8252 = vunpack.c.l.b16 %v7548
    %v8253 = vunpack.c.h.b16 %v7548
    %v8254 = vunpack.c.l.b16 %v7549
    %v8255 = vunpack.c.h.b16 %v7549
    %v8256 = vunpack.c.l.b16 %v7550
    %v8257 = vunpack.c.h.b16 %v7550
    %v8258 = vunpack.c.l.b16 %v7551
    %v8259 = vunpack.c.l.b16 %v7552
    %v8260 = vunpack.c.h.b16 %v7552
    %v8261 = vunpack.c.l.b16 %v7553
    %v8262 = vunpack.c.h.b16 %v7553
    %v8263 = vunpack.c.l.b16 %v7554
    %v8264 = vunpack.c.h.b16 %v7554
    %v8265 = vunpack.c.l.b16 %v7555
    %v8266 = vunpack.c.l.b16 %v7556
    %v8267 = vunpack.c.h.b16 %v7556
    %v8268 = vunpack.c.l.b16 %v7557
    %v8269 = vunpack.c.h.b16 %v7557
    %v8270 = vunpack.c.l.b16 %v7558
    %v8271 = vunpack.c.h.b16 %v7558
    %v8272 = vunpack.c.l.b16 %v7559
    %v8273 = vunpack.c.l.b16 %v7560
    %v8274 = vunpack.c.h.b16 %v7560
    %v8275 = vunpack.c.l.b16 %v7561
    %v8276 = vunpack.c.h.b16 %v7561
    %v8277 = vunpack.c.l.b16 %v7562
    %v8278 = vunpack.c.h.b16 %v7562
    %v8279 = vunpack.c.l.b16 %v7563
    %v8280 = vunpack.c.l.b16 %v7564
    %v8281 = vunpack.c.h.b16 %v7564
    %v8282 = vunpack.c.l.b16 %v7565
    %v8283 = vunpack.c.h.b16 %v7565
    %v8284 = vunpack.c.l.b16 %v7566
    %v8285 = vunpack.c.h.b16 %v7566
    %v8286 = vunpack.c.l.b16 %v7567
    %v8287 = vunpack.c.l.b16 %v7568
    %v8288 = vunpack.c.h.b16 %v7568
    %v8289 = vunpack.c.l.b16 %v7569
    %v8290 = vunpack.c.h.b16 %v7569
    %v8291 = vunpack.c.l.b16 %v7570
    %v8292 = vunpack.c.h.b16 %v7570
    %v8293 = vunpack.c.l.b16 %v7571
    %v8294 = vunpack.c.l.b16 %v7572
    %v8295 = vunpack.c.h.b16 %v7572
    %v8296 = vunpack.c.l.b16 %v7573
    %v8297 = vunpack.c.h.b16 %v7573
    %v8298 = vunpack.c.l.b16 %v7574
    %v8299 = vunpack.c.h.b16 %v7574
    %v8300 = vunpack.c.l.b16 %v7575
    %v8301 = vunpack.c.l.b16 %v7576
    %v8302 = vunpack.c.h.b16 %v7576
    %v8303 = vunpack.c.l.b16 %v7577
    %v8304 = vunpack.c.h.b16 %v7577
    %v8305 = vunpack.c.l.b16 %v7578
    %v8306 = vunpack.c.h.b16 %v7578
    %v8307 = vunpack.c.l.b16 %v7579
    %v8308 = vunpack.c.l.b16 %v7580
    %v8309 = vunpack.c.h.b16 %v7580
    %v8310 = vunpack.c.l.b16 %v7581
    %v8311 = vunpack.c.h.b16 %v7581
    %v8312 = vunpack.c.l.b16 %v7582
    %v8313 = vunpack.c.h.b16 %v7582
    %v8314 = vunpack.c.l.b16 %v7583
    %v8315 = vunpack.c.l.b16 %v7584
    %v8316 = vunpack.c.h.b16 %v7584
    %v8317 = vunpack.c.l.b16 %v7585
    %v8318 = vunpack.c.h.b16 %v7585
    %v8319 = vunpack.c.l.b16 %v7586
    %v8320 = vunpack.c.h.b16 %v7586
    %v8321 = vunpack.c.l.b16 %v7587
    %v8322 = vunpack.c.l.b16 %v7588
    %v8323 = vunpack.c.h.b16 %v7588
    %v8324 = vunpack.c.l.b16 %v7589
    %v8325 = vunpack.c.h.b16 %v7589
    %v8326 = vunpack.c.l.b16 %v7590
    %v8327 = vunpack.c.h.b16 %v7590
    %v8328 = vunpack.c.l.b16 %v7591
    %v8329 = vunpack.c.l.b16 %v7592
    %v8330 = vunpack.c.h.b16 %v7592
    %v8331 = vunpack.c.l.b16 %v7593
    %v8332 = vunpack.c.h.b16 %v7593
    %v8333 = vunpack.c.l.b16 %v7594
    %v8334 = vunpack.c.h.b16 %v7594
    %v8335 = vunpack.c.l.b16 %v7595
    %v8336 = vunpack.c.l.b16 %v7596
    %v8337 = vunpack.c.h.b16 %v7596
    %v8338 = vunpack.c.l.b16 %v7597
    %v8339 = vunpack.c.h.b16 %v7597
    %v8340 = vunpack.c.l.b16 %v7598
    %v8341 = vunpack.c.h.b16 %v7598
    %v8342 = vunpack.c.l.b16 %v7599
    %v8343 = vunpack.c.l.b16 %v7600
    %v8344 = vunpack.c.h.b16 %v7600
    %v8345 = vunpack.c.l.b16 %v7601
    %v8346 = vunpack.c.h.b16 %v7601
    %v8347 = vunpack.c.l.b16 %v7602
    %v8348 = vunpack.c.h.b16 %v7602
    %v8349 = vunpack.c.l.b16 %v7603
    %v8350 = vunpack.c.l.b16 %v7604
    %v8351 = vunpack.c.h.b16 %v7604
    %v8352 = vunpack.c.l.b16 %v7605
    %v8353 = vunpack.c.h.b16 %v7605
    %v8354 = vunpack.c.l.b16 %v7606
    %v8355 = vunpack.c.h.b16 %v7606
    %v8356 = vunpack.c.l.b16 %v7607
    %v8357 = vunpack.c.l.b16 %v7608
    %v8358 = vunpack.c.h.b16 %v7608
    %v8359 = vunpack.c.l.b16 %v7609
    %v8360 = vunpack.c.h.b16 %v7609
    %v8361 = vunpack.c.l.b16 %v7610
    %v8362 = vunpack.c.h.b16 %v7610
    %v8363 = vunpack.c.l.b16 %v7611
    %v8364 = vunpack.c.l.b16 %v7612
    %v8365 = vunpack.c.h.b16 %v7612
    %v8366 = vunpack.c.l.b16 %v7613
    %v8367 = vunpack.c.h.b16 %v7613
    %v8368 = vunpack.c.l.b16 %v7614
    %v8369 = vunpack.c.h.b16 %v7614
    %v8370 = vunpack.c.l.b16 %v7615
    %v8371 = vunpack.c.l.b16 %v7616
    %v8372 = vunpack.c.h.b16 %v7616
    %v8373 = vunpack.c.l.b16 %v7617
    %v8374 = vunpack.c.h.b16 %v7617
    %v8375 = vunpack.c.l.b16 %v7618
    %v8376 = vunpack.c.h.b16 %v7618
    %v8377 = vunpack.c.l.b16 %v7619
    %v8378 = vunpack.c.l.b16 %v7620
    %v8379 = vunpack.c.h.b16 %v7620
    %v8380 = vunpack.c.l.b16 %v7621
    %v8381 = vunpack.c.h.b16 %v7621
    %v8382 = vunpack.c.l.b16 %v7622
    %v8383 = vunpack.c.h.b16 %v7622
    %v8384 = vunpack.c.l.b16 %v7623
    %v8385 = vunpack.c.l.b16 %v7624
    %v8386 = vunpack.c.h.b16 %v7624
    %v8387 = vunpack.c.l.b16 %v7625
    %v8388 = vunpack.c.h.b16 %v7625
    %v8389 = vunpack.c.l.b16 %v7626
    %v8390 = vunpack.c.h.b16 %v7626
    %v8391 = vunpack.c.l.b16 %v7627
    %v8392 = vunpack.c.l.b16 %v7628
    %v8393 = vunpack.c.h.b16 %v7628
    %v8394 = vunpack.c.l.b16 %v7629
    %v8395 = vunpack.c.h.b16 %v7629
    %v8396 = vunpack.c.l.b16 %v7630
    %v8397 = vunpack.c.h.b16 %v7630
    %v8398 = vunpack.c.l.b16 %v7631
    %v8399 = vunpack.c.l.b16 %v7632
    %v8400 = vunpack.c.h.b16 %v7632
    %v8401 = vunpack.c.l.b16 %v7633
    %v8402 = vunpack.c.h.b16 %v7633
    %v8403 = vunpack.c.l.b16 %v7634
    %v8404 = vunpack.c.h.b16 %v7634
    %v8405 = vunpack.c.l.b16 %v7635
    %v8406 = vunpack.c.l.b16 %v7636
    %v8407 = vunpack.c.h.b16 %v7636
    %v8408 = vunpack.c.l.b16 %v7637
    %v8409 = vunpack.c.h.b16 %v7637
    %v8410 = vunpack.c.l.b16 %v7638
    %v8411 = vunpack.c.h.b16 %v7638
    %v8412 = vunpack.c.l.b16 %v7639
    %v8413 = vunpack.c.l.b16 %v7640
    %v8414 = vunpack.c.h.b16 %v7640
    %v8415 = vunpack.c.l.b16 %v7641
    %v8416 = vunpack.c.h.b16 %v7641
    %v8417 = vunpack.c.l.b16 %v7642
    %v8418 = vunpack.c.h.b16 %v7642
    %v8419 = vunpack.c.l.b16 %v7643
    %v8420 = vunpack.c.l.b16 %v7644
    %v8421 = vunpack.c.h.b16 %v7644
    %v8422 = vunpack.c.l.b16 %v7645
    %v8423 = vunpack.c.h.b16 %v7645
    %v8424 = vunpack.c.l.b16 %v7646
    %v8425 = vunpack.c.h.b16 %v7646
    %v8426 = vunpack.c.l.b16 %v7647
    %v8427 = vunpack.c.l.b16 %v7648
    %v8428 = vunpack.c.h.b16 %v7648
    %v8429 = vunpack.c.l.b16 %v7649
    %v8430 = vunpack.c.h.b16 %v7649
    %v8431 = vunpack.c.l.b16 %v7650
    %v8432 = vunpack.c.h.b16 %v7650
    %v8433 = vunpack.c.l.b16 %v7651
    %v8434 = vunpack.c.l.b16 %v7652
    %v8435 = vunpack.c.h.b16 %v7652
    %v8436 = vunpack.c.l.b16 %v7653
    %v8437 = vunpack.c.h.b16 %v7653
    %v8438 = vunpack.c.l.b16 %v7654
    %v8439 = vunpack.c.h.b16 %v7654
    %v8440 = vunpack.c.l.b16 %v7655
    %v8441 = vunpack.c.l.b16 %v7656
    %v8442 = vunpack.c.h.b16 %v7656
    %v8443 = vunpack.c.l.b16 %v7657
    %v8444 = vunpack.c.h.b16 %v7657
    %v8445 = vunpack.c.l.b16 %v7658
    %v8446 = vunpack.c.h.b16 %v7658
    %v8447 = vunpack.c.l.b16 %v7659
    %v8448 = vunpack.c.l.b16 %v7660
    %v8449 = vunpack.c.h.b16 %v7660
    %v8450 = vunpack.c.l.b16 %v7661
    %v8451 = vunpack.c.h.b16 %v7661
    %v8452 = vunpack.c.l.b16 %v7662
    %v8453 = vunpack.c.h.b16 %v7662
    %v8454 = vunpack.c.l.b16 %v7663
    %v8455 = vunpack.c.l.b16 %v7664
    %v8456 = vunpack.c.h.b16 %v7664
    %v8457 = vunpack.c.l.b16 %v7665
    %v8458 = vunpack.c.h.b16 %v7665
    %v8459 = vunpack.c.l.b16 %v7666
    %v8460 = vunpack.c.h.b16 %v7666
    %v8461 = vunpack.c.l.b16 %v7667
    %v8462 = vunpack.c.l.b16 %v7668
    %v8463 = vunpack.c.h.b16 %v7668
    %v8464 = vunpack.c.l.b16 %v7669
    %v8465 = vunpack.c.h.b16 %v7669
    %v8466 = vunpack.c.l.b16 %v7670
    %v8467 = vunpack.c.h.b16 %v7670
    %v8468 = vunpack.c.l.b16 %v7671
    %v8469 = vunpack.c.l.b16 %v7672
    %v8470 = vunpack.c.h.b16 %v7672
    %v8471 = vunpack.c.l.b16 %v7673
    %v8472 = vunpack.c.h.b16 %v7673
    %v8473 = vunpack.c.l.b16 %v7674
    %v8474 = vunpack.c.h.b16 %v7674
    %v8475 = vunpack.c.l.b16 %v7675
    %v8476 = vunpack.c.l.b16 %v7676
    %v8477 = vunpack.c.h.b16 %v7676
    %v8478 = vunpack.c.l.b16 %v7677
    %v8479 = vunpack.c.h.b16 %v7677
    %v8480 = vunpack.c.l.b16 %v7678
    %v8481 = vunpack.c.h.b16 %v7678
    %v8482 = vunpack.c.l.b16 %v7679
    %v8483 = vunpack.c.l.b16 %v7680
    %v8484 = vunpack.c.h.b16 %v7680
    %v8485 = vunpack.c.l.b16 %v7681
    %v8486 = vunpack.c.h.b16 %v7681
    %v8487 = vunpack.c.l.b16 %v7682
    %v8488 = vunpack.c.h.b16 %v7682
    %v8489 = vunpack.c.l.b16 %v7683
    %v8490 = vunpack.c.l.b16 %v7684
    %v8491 = vunpack.c.h.b16 %v7684
    %v8492 = vunpack.c.l.b16 %v7685
    %v8493 = vunpack.c.h.b16 %v7685
    %v8494 = vunpack.c.l.b16 %v7686
    %v8495 = vunpack.c.h.b16 %v7686
    %v8496 = vunpack.c.l.b16 %v7687
    %v8497 = vunpack.c.l.b16 %v7688
    %v8498 = vunpack.c.h.b16 %v7688
    %v8499 = vunpack.c.l.b16 %v7689
    %v8500 = vunpack.c.h.b16 %v7689
    %v8501 = vunpack.c.l.b16 %v7690
    %v8502 = vunpack.c.h.b16 %v7690
    %v8503 = vunpack.c.l.b16 %v7691
    %v8504 = vunpack.c.l.b16 %v7692
    %v8505 = vunpack.c.h.b16 %v7692
    %v8506 = vunpack.c.l.b16 %v7693
    %v8507 = vunpack.c.h.b16 %v7693
    %v8508 = vunpack.c.l.b16 %v7694
    %v8509 = vunpack.c.h.b16 %v7694
    %v8510 = vunpack.c.l.b16 %v7695
    %v8511 = vunpack.c.l.b16 %v7696
    %v8512 = vunpack.c.h.b16 %v7696
    %v8513 = vunpack.c.l.b16 %v7697
    %v8514 = vunpack.c.h.b16 %v7697
    %v8515 = vunpack.c.l.b16 %v7698
    %v8516 = vunpack.c.h.b16 %v7698
    %v8517 = vunpack.c.l.b16 %v7699
    %v8518 = vunpack.c.l.b16 %v7700
    %v8519 = vunpack.c.h.b16 %v7700
    %v8520 = vunpack.c.l.b16 %v7701
    %v8521 = vunpack.c.h.b16 %v7701
    %v8522 = vunpack.c.l.b16 %v7702
    %v8523 = vunpack.c.h.b16 %v7702
    %v8524 = vunpack.c.l.b16 %v7703
    %v8525 = vunpack.c.l.b16 %v7704
    %v8526 = vunpack.c.h.b16 %v7704
    %v8527 = vunpack.c.l.b16 %v7705
    %v8528 = vunpack.c.h.b16 %v7705
    %v8529 = vunpack.c.l.b16 %v7706
    %v8530 = vunpack.c.h.b16 %v7706
    %v8531 = vunpack.c.l.b16 %v7707
    %v8532 = vunpack.c.l.b16 %v7708
    %v8533 = vunpack.c.h.b16 %v7708
    %v8534 = vunpack.c.l.b16 %v7709
    %v8535 = vunpack.c.h.b16 %v7709
    %v8536 = vunpack.c.l.b16 %v7710
    %v8537 = vunpack.c.h.b16 %v7710
    %v8538 = vunpack.c.l.b16 %v7711
    %v8539 = vunpack.c.l.b16 %v7712
    %v8540 = vunpack.c.h.b16 %v7712
    %v8541 = vunpack.c.l.b16 %v7713
    %v8542 = vunpack.c.h.b16 %v7713
    %v8543 = vunpack.c.l.b16 %v7714
    %v8544 = vunpack.c.h.b16 %v7714
    %v8545 = vunpack.c.l.b16 %v7715
    %v8546 = vunpack.c.l.b16 %v7716
    %v8547 = vunpack.c.h.b16 %v7716
    %v8548 = vunpack.c.l.b16 %v7717
    %v8549 = vunpack.c.h.b16 %v7717
    %v8550 = vunpack.c.l.b16 %v7718
    %v8551 = vunpack.c.h.b16 %v7718
    %v8552 = vunpack.c.l.b16 %v7719
    %v8553 = vunpack.c.l.b16 %v7720
    %v8554 = vunpack.c.h.b16 %v7720
    %v8555 = vunpack.c.l.b16 %v7721
    %v8556 = vunpack.c.h.b16 %v7721
    %v8557 = vunpack.c.l.b16 %v7722
    %v8558 = vunpack.c.h.b16 %v7722
    %v8559 = vunpack.c.l.b16 %v7723
    %v8560 = vunpack.c.l.b16 %v7724
    %v8561 = vunpack.c.h.b16 %v7724
    %v8562 = vunpack.c.l.b16 %v7725
    %v8563 = vunpack.c.h.b16 %v7725
    %v8564 = vunpack.c.l.b16 %v7726
    %v8565 = vunpack.c.h.b16 %v7726
    %v8566 = vunpack.c.l.b16 %v7727
    %v8567 = vunpack.c.l.b16 %v7728
    %v8568 = vunpack.c.h.b16 %v7728
    %v8569 = vunpack.c.l.b16 %v7729
    %v8570 = vunpack.c.h.b16 %v7729
    %v8571 = vunpack.c.l.b16 %v7730
    %v8572 = vunpack.c.h.b16 %v7730
    %v8573 = vunpack.c.l.b16 %v7731
    %v8574 = vunpack.c.l.b16 %v7732
    %v8575 = vunpack.c.h.b16 %v7732
    %v8576 = vunpack.c.l.b16 %v7733
    %v8577 = vunpack.c.h.b16 %v7733
    %v8578 = vunpack.c.l.b16 %v7734
    %v8579 = vunpack.c.h.b16 %v7734
    %v8580 = vunpack.c.l.b16 %v7735
    %v8581 = vunpack.c.l.b16 %v7736
    %v8582 = vunpack.c.h.b16 %v7736
    %v8583 = vunpack.c.l.b16 %v7737
    %v8584 = vunpack.c.h.b16 %v7737
    %v8585 = vunpack.c.l.b16 %v7738
    %v8586 = vunpack.c.h.b16 %v7738
    %v8587 = vunpack.c.l.b16 %v7739
    %v8588 = vunpack.c.l.b16 %v7740
    %v8589 = vunpack.c.h.b16 %v7740
    %v8590 = vunpack.c.l.b16 %v7741
    %v8591 = vunpack.c.h.b16 %v7741
    %v8592 = vunpack.c.l.b16 %v7742
    %v8593 = vunpack.c.h.b16 %v7742
    %v8594 = vunpack.c.l.b16 %v7743
    %v8595 = vunpack.c.l.b16 %v7744
    %v8596 = vunpack.c.h.b16 %v7744
    %v8597 = vunpack.c.l.b16 %v7745
    %v8598 = vunpack.c.h.b16 %v7745
    %v8599 = vunpack.c.l.b16 %v7746
    %v8600 = vunpack.c.h.b16 %v7746
    %v8601 = vunpack.c.l.b16 %v7747
    %v8602 = vunpack.c.l.b16 %v7748
    %v8603 = vunpack.c.h.b16 %v7748
    %v8604 = vunpack.c.l.b16 %v7749
    %v8605 = vunpack.c.h.b16 %v7749
    %v8606 = vunpack.c.l.b16 %v7750
    %v8607 = vunpack.c.h.b16 %v7750
    %v8608 = vunpack.c.l.b16 %v7751
    %v8609 = vunpack.c.l.b16 %v7752
    %v8610 = vunpack.c.h.b16 %v7752
    %v8611 = vunpack.c.l.b16 %v7753
    %v8612 = vunpack.c.h.b16 %v7753
    %v8613 = vunpack.c.l.b16 %v7754
    %v8614 = vunpack.c.h.b16 %v7754
    %v8615 = vunpack.c.l.b16 %v7755
    %v8616 = vunpack.c.l.b16 %v7756
    %v8617 = vunpack.c.h.b16 %v7756
    %v8618 = vunpack.c.l.b16 %v7757
    %v8619 = vunpack.c.h.b16 %v7757
    %v8620 = vunpack.c.l.b16 %v7758
    %v8621 = vunpack.c.h.b16 %v7758
    %v8622 = vunpack.c.l.b16 %v7759
    %v8623 = vunpack.c.l.b16 %v7760
    %v8624 = vunpack.c.h.b16 %v7760
    %v8625 = vunpack.c.l.b16 %v7761
    %v8626 = vunpack.c.h.b16 %v7761
    %v8627 = vunpack.c.l.b16 %v7762
    %v8628 = vunpack.c.h.b16 %v7762
    %v8629 = vunpack.c.l.b16 %v7763
    %v8630 = vunpack.c.l.b16 %v7764
    %v8631 = vunpack.c.h.b16 %v7764
    %v8632 = vunpack.c.l.b16 %v7765
    %v8633 = vunpack.c.h.b16 %v7765
    %v8634 = vunpack.c.l.b16 %v7766
    %v8635 = vunpack.c.h.b16 %v7766
    %v8636 = vunpack.c.l.b16 %v7767
    %v8637 = vunpack.c.l.b16 %v7768
    %v8638 = vunpack.c.h.b16 %v7768
    %v8639 = vunpack.c.l.b16 %v7769
    %v8640 = vunpack.c.h.b16 %v7769
    %v8641 = vunpack.c.l.b16 %v7770
    %v8642 = vunpack.c.h.b16 %v7770
    %v8643 = vunpack.c.l.b16 %v7771
    %v8644 = vunpack.c.l.b16 %v7772
    %v8645 = vunpack.c.h.b16 %v7772
    %v8646 = vunpack.c.l.b16 %v7773
    %v8647 = vunpack.c.h.b16 %v7773
    %v8648 = vunpack.c.l.b16 %v7774
    %v8649 = vunpack.c.h.b16 %v7774
    %v8650 = vunpack.c.l.b16 %v7775
    %v8651 = vunpack.c.l.b16 %v7776
    %v8652 = vunpack.c.h.b16 %v7776
    %v8653 = vunpack.c.l.b16 %v7777
    %v8654 = vunpack.c.h.b16 %v7777
    %v8655 = vunpack.c.l.b16 %v7778
    %v8656 = vunpack.c.h.b16 %v7778
    %v8657 = vunpack.c.l.b16 %v7779
    %v8658 = vunpack.c.l.b16 %v7780
    %v8659 = vunpack.c.h.b16 %v7780
    %v8660 = vunpack.c.l.b16 %v7781
    %v8661 = vunpack.c.h.b16 %v7781
    %v8662 = vunpack.c.l.b16 %v7782
    %v8663 = vunpack.c.h.b16 %v7782
    %v8664 = vunpack.c.l.b16 %v7783
    %v8665 = vunpack.c.l.b16 %v7784
    %v8666 = vunpack.c.h.b16 %v7784
    %v8667 = vunpack.c.l.b16 %v7785
    %v8668 = vunpack.c.h.b16 %v7785
    %v8669 = vunpack.c.l.b16 %v7786
    %v8670 = vunpack.c.h.b16 %v7786
    %v8671 = vunpack.c.l.b16 %v7787
    %v8672 = vunpack.c.l.b16 %v7788
    %v8673 = vunpack.c.h.b16 %v7788
    %v8674 = vunpack.c.l.b16 %v7789
    %v8675 = vunpack.c.h.b16 %v7789
    %v8676 = vunpack.c.l.b16 %v7790
    %v8677 = vunpack.c.h.b16 %v7790
    %v8678 = vunpack.c.l.b16 %v7791
    %v8679 = vunpack.c.l.b16 %v7792
    %v8680 = vunpack.c.h.b16 %v7792
    %v8681 = vunpack.c.l.b16 %v7793
    %v8682 = vunpack.c.h.b16 %v7793
    %v8683 = vunpack.c.l.b16 %v7794
    %v8684 = vunpack.c.h.b16 %v7794
    %v8685 = vunpack.c.l.b16 %v7795
    %v8686 = vunpack.c.l.b16 %v7796
    %v8687 = vunpack.c.h.b16 %v7796
    %v8688 = vunpack.c.l.b16 %v7797
    %v8689 = vunpack.c.h.b16 %v7797
    %v8690 = vunpack.c.l.b16 %v7798
    %v8691 = vunpack.c.h.b16 %v7798
    %v8692 = vunpack.c.l.b16 %v7799
    %v8693 = vunpack.c.l.b16 %v7800
    %v8694 = vunpack.c.h.b16 %v7800
    %v8695 = vunpack.c.l.b16 %v7801
    %v8696 = vunpack.c.h.b16 %v7801
    %v8697 = vunpack.c.l.b16 %v7802
    %v8698 = vunpack.c.h.b16 %v7802
    %v8699 = vunpack.c.l.b16 %v7803
    %v8700 = vunpack.c.l.b16 %v7804
    %v8701 = vunpack.c.h.b16 %v7804
    %v8702 = vunpack.c.l.b16 %v7805
    %v8703 = vunpack.c.h.b16 %v7805
    %v8704 = vunpack.c.l.b16 %v7806
    %v8705 = vunpack.c.h.b16 %v7806
    %v8706 = vunpack.c.l.b16 %v7807
    %v8707 = vunpack.c.l.b16 %v7808
    %v8708 = vunpack.c.h.b16 %v7808
    %v8709 = vunpack.c.l.b16 %v7809
    %v8710 = vunpack.c.h.b16 %v7809
    %v8711 = vunpack.c.l.b16 %v7810
    %v8712 = vunpack.c.h.b16 %v7810
    %v8713 = vunpack.c.l.b16 %v7811
    %v8714 = vunpack.c.l.b16 %v7812
    %v8715 = vunpack.c.h.b16 %v7812
    %v8716 = vunpack.c.l.b16 %v7813
    %v8717 = vunpack.c.h.b16 %v7813
    %v8718 = vunpack.c.l.b16 %v7814
    %v8719 = vunpack.c.h.b16 %v7814
    %v8720 = vunpack.c.l.b16 %v7815
    %v8721 = vunpack.c.l.b16 %v7816
    %v8722 = vunpack.c.h.b16 %v7816
    %v8723 = vunpack.c.l.b16 %v7817
    %v8724 = vunpack.c.h.b16 %v7817
    %v8725 = vunpack.c.l.b16 %v7818
    %v8726 = vunpack.c.h.b16 %v7818
    %v8727 = vunpack.c.l.b16 %v7819
    %v8728 = vunpack.c.l.b16 %v7820
    %v8729 = vunpack.c.h.b16 %v7820
    %v8730 = vunpack.c.l.b16 %v7821
    %v8731 = vunpack.c.h.b16 %v7821
    %v8732 = vunpack.c.l.b16 %v7822
    %v8733 = vunpack.c.h.b16 %v7822
    %v8734 = vunpack.c.l.b16 %v7823
    %v8735 = vunpack.c.l.b16 %v7824
    %v8736 = vunpack.c.h.b16 %v7824
    %v8737 = vunpack.c.l.b16 %v7825
    %v8738 = vunpack.c.h.b16 %v7825
    %v8739 = vunpack.c.l.b16 %v7826
    %v8740 = vunpack.c.h.b16 %v7826
    %v8741 = vunpack.c.l.b16 %v7827
    %v8742 = vunpack.c.l.b16 %v7828
    %v8743 = vunpack.c.h.b16 %v7828
    %v8744 = vunpack.c.l.b16 %v7829
    %v8745 = vunpack.c.h.b16 %v7829
    %v8746 = vunpack.c.l.b16 %v7830
    %v8747 = vunpack.c.h.b16 %v7830
    %v8748 = vunpack.c.l.b16 %v7831
    %v8749 = vpack.c.b16 %v8196, %v8189
    %v8750 = vpack.c.b16 %v8197, %v8190
    %v8751 = vpack.c.b16 %v8198, %v8191
    %v8752 = vpack.c.b16 %v8199, %v8192
    %v8753 = vpack.c.b16 %v8200, %v8193
    %v8754 = vpack.c.b16 %v8201, %v8194
    %v8755 = vpack.c.b16 %v8202, %v8195
    %v8756 = vpack.c.b16 %v8210, %v8203
    %v8757 = vpack.c.b16 %v8211, %v8204
    %v8758 = vpack.c.b16 %v8212, %v8205
    %v8759 = vpack.c.b16 %v8213, %v8206
    %v8760 = vpack.c.b16 %v8214, %v8207
    %v8761 = vpack.c.b16 %v8215, %v8208
    %v8762 = vpack.c.b16 %v8216, %v8209
    %v8763 = vpack.c.b16 %v8224, %v8217
    %v8764 = vpack.c.b16 %v8225, %v8218
    %v8765 = vpack.c.b16 %v8226, %v8219
    %v8766 = vpack.c.b16 %v8227, %v8220
    %v8767 = vpack.c.b16 %v8228, %v8221
    %v8768 = vpack.c.b16 %v8229, %v8222
    %v8769 = vpack.c.b16 %v8230, %v8223
    %v8770 = vpack.c.b16 %v8238, %v8231
    %v8771 = vpack.c.b16 %v8239, %v8232
    %v8772 = vpack.c.b16 %v8240, %v8233
    %v8773 = vpack.c.b16 %v8241, %v8234
    %v8774 = vpack.c.b16 %v8242, %v8235
    %v8775 = vpack.c.b16 %v8243, %v8236
    %v8776 = vpack.c.b16 %v8244, %v8237
    %v8777 = vpack.c.b16 %v8252, %v8245
    %v8778 = vpack.c.b16 %v8253, %v8246
    %v8779 = vpack.c.b16 %v8254, %v8247
    %v8780 = vpack.c.b16 %v8255, %v8248
    %v8781 = vpack.c.b16 %v8256, %v8249
    %v8782 = vpack.c.b16 %v8257, %v8250
    %v8783 = vpack.c.b16 %v8258, %v8251
    %v8784 = vpack.c.b16 %v8266, %v8259
    %v8785 = vpack.c.b16 %v8267, %v8260
    %v8786 = vpack.c.b16 %v8268, %v8261
    %v8787 = vpack.c.b16 %v8269, %v8262
    %v8788 = vpack.c.b16 %v8270, %v8263
    %v8789 = vpack.c.b16 %v8271, %v8264
    %v8790 = vpack.c.b16 %v8272, %v8265
    %v8791 = vpack.c.b16 %v8280, %v8273
    %v8792 = vpack.c.b16 %v8281, %v8274
    %v8793 = vpack.c.b16 %v8282, %v8275
    %v8794 = vpack.c.b16 %v8283, %v8276
    %v8795 = vpack.c.b16 %v8284, %v8277
    %v8796 = vpack.c.b16 %v8285, %v8278
    %v8797 = vpack.c.b16 %v8286, %v8279
    %v8798 = vpack.c.b16 %v8294, %v8287
    %v8799 = vpack.c.b16 %v8295, %v8288
    %v8800 = vpack.c.b16 %v8296, %v8289
    %v8801 = vpack.c.b16 %v8297, %v8290
    %v8802 = vpack.c.b16 %v8298, %v8291
    %v8803 = vpack.c.b16 %v8299, %v8292
    %v8804 = vpack.c.b16 %v8300, %v8293
    %v8805 = vpack.c.b16 %v8308, %v8301
    %v8806 = vpack.c.b16 %v8309, %v8302
    %v8807 = vpack.c.b16 %v8310, %v8303
    %v8808 = vpack.c.b16 %v8311, %v8304
    %v8809 = vpack.c.b16 %v8312, %v8305
    %v8810 = vpack.c.b16 %v8313, %v8306
    %v8811 = vpack.c.b16 %v8314, %v8307
    %v8812 = vpack.c.b16 %v8322, %v8315
    %v8813 = vpack.c.b16 %v8323, %v8316
    %v8814 = vpack.c.b16 %v8324, %v8317
    %v8815 = vpack.c.b16 %v8325, %v8318
    %v8816 = vpack.c.b16 %v8326, %v8319
    %v8817 = vpack.c.b16 %v8327, %v8320
    %v8818 = vpack.c.b16 %v8328, %v8321
    %v8819 = vpack.c.b16 %v8336, %v8329
    %v8820 = vpack.c.b16 %v8337, %v8330
    %v8821 = vpack.c.b16 %v8338, %v8331
    %v8822 = vpack.c.b16 %v8339, %v8332
    %v8823 = vpack.c.b16 %v8340, %v8333
    %v8824 = vpack.c.b16 %v8341, %v8334
    %v8825 = vpack.c.b16 %v8342, %v8335
    %v8826 = vpack.c.b16 %v8350, %v8343
    %v8827 = vpack.c.b16 %v8351, %v8344
    %v8828 = vpack.c.b16 %v8352, %v8345
    %v8829 = vpack.c.b16 %v8353, %v8346
    %v8830 = vpack.c.b16 %v8354, %v8347
    %v8831 = vpack.c.b16 %v8355, %v8348
    %v8832 = vpack.c.b16 %v8356, %v8349
    %v8833 = vpack.c.b16 %v8364, %v8357
    %v8834 = vpack.c.b16 %v8365, %v8358
    %v8835 = vpack.c.b16 %v8366, %v8359
    %v8836 = vpack.c.b16 %v8367, %v8360
    %v8837 = vpack.c.b16 %v8368, %v8361
    %v8838 = vpack.c.b16 %v8369, %v8362
    %v8839 = vpack.c.b16 %v8370, %v8363
    %v8840 = vpack.c.b16 %v8378, %v8371
    %v8841 = vpack.c.b16 %v8379, %v8372
    %v8842 = vpack.c.b16 %v8380, %v8373
    %v8843 = vpack.c.b16 %v8381, %v8374
    %v8844 = vpack.c.b16 %v8382, %v8375
    %v8845 = vpack.c.b16 %v8383, %v8376
    %v8846 = vpack.c.b16 %v8384, %v8377
    %v8847 = vpack.c.b16 %v8392, %v8385
    %v8848 = vpack.c.b16 %v8393, %v8386
    %v8849 = vpack.c.b16 %v8394, %v8387
    %v8850 = vpack.c.b16 %v8395, %v8388
    %v8851 = vpack.c.b16 %v8396, %v8389
    %v8852 = vpack.c.b16 %v8397, %v8390
    %v8853 = vpack.c.b16 %v8398, %v8391
    %v8854 = vpack.c.b16 %v8406, %v8399
    %v8855 = vpack.c.b16 %v8407, %v8400
    %v8856 = vpack.c.b16 %v8408, %v8401
    %v8857 = vpack.c.b16 %v8409, %v8402
    %v8858 = vpack.c.b16 %v8410, %v8403
    %v8859 = vpack.c.b16 %v8411, %v8404
    %v8860 = vpack.c.b16 %v8412, %v8405
    %v8861 = vpack.c.b16 %v8420, %v8413
    %v8862 = vpack.c.b16 %v8421, %v8414
    %v8863 = vpack.c.b16 %v8422, %v8415
    %v8864 = vpack.c.b16 %v8423, %v8416
    %v8865 = vpack.c.b16 %v8424, %v8417
    %v8866 = vpack.c.b16 %v8425, %v8418
    %v8867 = vpack.c.b16 %v8426, %v8419
    %v8868 = vpack.c.b16 %v8434, %v8427
    %v8869 = vpack.c.b16 %v8435, %v8428
    %v8870 = vpack.c.b16 %v8436, %v8429
    %v8871 = vpack.c.b16 %v8437, %v8430
    %v8872 = vpack.c.b16 %v8438, %v8431
    %v8873 = vpack.c.b16 %v8439, %v8432
    %v8874 = vpack.c.b16 %v8440, %v8433
    %v8875 = vpack.c.b16 %v8448, %v8441
    %v8876 = vpack.c.b16 %v8449, %v8442
    %v8877 = vpack.c.b16 %v8450, %v8443
    %v8878 = vpack.c.b16 %v8451, %v8444
    %v8879 = vpack.c.b16 %v8452, %v8445
    %v8880 = vpack.c.b16 %v8453, %v8446
    %v8881 = vpack.c.b16 %v8454, %v8447
    %v8882 = vpack.c.b16 %v8462, %v8455
    %v8883 = vpack.c.b16 %v8463, %v8456
    %v8884 = vpack.c.b16 %v8464, %v8457
    %v8885 = vpack.c.b16 %v8465, %v8458
    %v8886 = vpack.c.b16 %v8466, %v8459
    %v8887 = vpack.c.b16 %v8467, %v8460
    %v8888 = vpack.c.b16 %v8468, %v8461
    %v8889 = vpack.c.b16 %v8476, %v8469
    %v8890 = vpack.c.b16 %v8477, %v8470
    %v8891 = vpack.c.b16 %v8478, %v8471
    %v8892 = vpack.c.b16 %v8479, %v8472
    %v8893 = vpack.c.b16 %v8480, %v8473
    %v8894 = vpack.c.b16 %v8481, %v8474
    %v8895 = vpack.c.b16 %v8482, %v8475
    %v8896 = vpack.c.b16 %v8490, %v8483
    %v8897 = vpack.c.b16 %v8491, %v8484
    %v8898 = vpack.c.b16 %v8492, %v8485
    %v8899 = vpack.c.b16 %v8493, %v8486
    %v8900 = vpack.c.b16 %v8494, %v8487
    %v8901 = vpack.c.b16 %v8495, %v8488
    %v8902 = vpack.c.b16 %v8496, %v8489
    %v8903 = vpack.c.b16 %v8504, %v8497
    %v8904 = vpack.c.b16 %v8505, %v8498
    %v8905 = vpack.c.b16 %v8506, %v8499
    %v8906 = vpack.c.b16 %v8507, %v8500
    %v8907 = vpack.c.b16 %v8508, %v8501
    %v8908 = vpack.c.b16 %v8509, %v8502
    %v8909 = vpack.c.b16 %v8510, %v8503
    %v8910 = vpack.c.b16 %v8518, %v8511
    %v8911 = vpack.c.b16 %v8519, %v8512
    %v8912 = vpack.c.b16 %v8520, %v8513
    %v8913 = vpack.c.b16 %v8521, %v8514
    %v8914 = vpack.c.b16 %v8522, %v8515
    %v8915 = vpack.c.b16 %v8523, %v8516
    %v8916 = vpack.c.b16 %v8524, %v8517
    %v8917 = vpack.c.b16 %v8532, %v8525
    %v8918 = vpack.c.b16 %v8533, %v8526
    %v8919 = vpack.c.b16 %v8534, %v8527
    %v8920 = vpack.c.b16 %v8535, %v8528
    %v8921 = vpack.c.b16 %v8536, %v8529
    %v8922 = vpack.c.b16 %v8537, %v8530
    %v8923 = vpack.c.b16 %v8538, %v8531
    %v8924 = vpack.c.b16 %v8546, %v8539
    %v8925 = vpack.c.b16 %v8547, %v8540
    %v8926 = vpack.c.b16 %v8548, %v8541
    %v8927 = vpack.c.b16 %v8549, %v8542
    %v8928 = vpack.c.b16 %v8550, %v8543
    %v8929 = vpack.c.b16 %v8551, %v8544
    %v8930 = vpack.c.b16 %v8552, %v8545
    %v8931 = vpack.c.b16 %v8560, %v8553
    %v8932 = vpack.c.b16 %v8561, %v8554
    %v8933 = vpack.c.b16 %v8562, %v8555
    %v8934 = vpack.c.b16 %v8563, %v8556
    %v8935 = vpack.c.b16 %v8564, %v8557
    %v8936 = vpack.c.b16 %v8565, %v8558
    %v8937 = vpack.c.b16 %v8566, %v8559
    %v8938 = vpack.c.b16 %v8574, %v8567
    %v8939 = vpack.c.b16 %v8575, %v8568
    %v8940 = vpack.c.b16 %v8576, %v8569
    %v8941 = vpack.c.b16 %v8577, %v8570
    %v8942 = vpack.c.b16 %v8578, %v8571
    %v8943 = vpack.c.b16 %v8579, %v8572
    %v8944 = vpack.c.b16 %v8580, %v8573
    %v8945 = vpack.c.b16 %v8588, %v8581
    %v8946 = vpack.c.b16 %v8589, %v8582
    %v8947 = vpack.c.b16 %v8590, %v8583
    %v8948 = vpack.c.b16 %v8591, %v8584
    %v8949 = vpack.c.b16 %v8592, %v8585
    %v8950 = vpack.c.b16 %v8593, %v8586
    %v8951 = vpack.c.b16 %v8594, %v8587
    %v8952 = vpack.c.b16 %v8602, %v8595
    %v8953 = vpack.c.b16 %v8603, %v8596
    %v8954 = vpack.c.b16 %v8604, %v8597
    %v8955 = vpack.c.b16 %v8605, %v8598
    %v8956 = vpack.c.b16 %v8606, %v8599
    %v8957 = vpack.c.b16 %v8607, %v8600
    %v8958 = vpack.c.b16 %v8608, %v8601
    %v8959 = vpack.c.b16 %v8616, %v8609
    %v8960 = vpack.c.b16 %v8617, %v8610
    %v8961 = vpack.c.b16 %v8618, %v8611
    %v8962 = vpack.c.b16 %v8619, %v8612
    %v8963 = vpack.c.b16 %v8620, %v8613
    %v8964 = vpack.c.b16 %v8621, %v8614
    %v8965 = vpack.c.b16 %v8622, %v8615
    %v8966 = vpack.c.b16 %v8630, %v8623
    %v8967 = vpack.c.b16 %v8631, %v8624
    %v8968 = vpack.c.b16 %v8632, %v8625
    %v8969 = vpack.c.b16 %v8633, %v8626
    %v8970 = vpack.c.b16 %v8634, %v8627
    %v8971 = vpack.c.b16 %v8635, %v8628
    %v8972 = vpack.c.b16 %v8636, %v8629
    %v8973 = vpack.c.b16 %v8644, %v8637
    %v8974 = vpack.c.b16 %v8645, %v8638
    %v8975 = vpack.c.b16 %v8646, %v8639
    %v8976 = vpack.c.b16 %v8647, %v8640
    %v8977 = vpack.c.b16 %v8648, %v8641
    %v8978 = vpack.c.b16 %v8649, %v8642
    %v8979 = vpack.c.b16 %v8650, %v8643
    %v8980 = vpack.c.b16 %v8658, %v8651
    %v8981 = vpack.c.b16 %v8659, %v8652
    %v8982 = vpack.c.b16 %v8660, %v8653
    %v8983 = vpack.c.b16 %v8661, %v8654
    %v8984 = vpack.c.b16 %v8662, %v8655
    %v8985 = vpack.c.b16 %v8663, %v8656
    %v8986 = vpack.c.b16 %v8664, %v8657
    %v8987 = vpack.c.b16 %v8672, %v8665
    %v8988 = vpack.c.b16 %v8673, %v8666
    %v8989 = vpack.c.b16 %v8674, %v8667
    %v8990 = vpack.c.b16 %v8675, %v8668
    %v8991 = vpack.c.b16 %v8676, %v8669
    %v8992 = vpack.c.b16 %v8677, %v8670
    %v8993 = vpack.c.b16 %v8678, %v8671
    %v8994 = vpack.c.b16 %v8686, %v8679
    %v8995 = vpack.c.b16 %v8687, %v8680
    %v8996 = vpack.c.b16 %v8688, %v8681
    %v8997 = vpack.c.b16 %v8689, %v8682
    %v8998 = vpack.c.b16 %v8690, %v8683
    %v8999 = vpack.c.b16 %v8691, %v8684
    %v9000 = vpack.c.b16 %v8692, %v8685
    %v9001 = vpack.c.b16 %v8700, %v8693
    %v9002 = vpack.c.b16 %v8701, %v8694
    %v9003 = vpack.c.b16 %v8702, %v8695
    %v9004 = vpack.c.b16 %v8703, %v8696
    %v9005 = vpack.c.b16 %v8704, %v8697
    %v9006 = vpack.c.b16 %v8705, %v8698
    %v9007 = vpack.c.b16 %v8706, %v8699
    %v9008 = vpack.c.b16 %v8714, %v8707
    %v9009 = vpack.c.b16 %v8715, %v8708
    %v9010 = vpack.c.b16 %v8716, %v8709
    %v9011 = vpack.c.b16 %v8717, %v8710
    %v9012 = vpack.c.b16 %v8718, %v8711
    %v9013 = vpack.c.b16 %v8719, %v8712
    %v9014 = vpack.c.b16 %v8720, %v8713
    %v9015 = vpack.c.b16 %v8728, %v8721
    %v9016 = vpack.c.b16 %v8729, %v8722
    %v9017 = vpack.c.b16 %v8730, %v8723
    %v9018 = vpack.c.b16 %v8731, %v8724
    %v9019 = vpack.c.b16 %v8732, %v8725
    %v9020 = vpack.c.b16 %v8733, %v8726
    %v9021 = vpack.c.b16 %v8734, %v8727
    %v9022 = vpack.c.b16 %v8742, %v8735
    %v9023 = vpack.c.b16 %v8743, %v8736
    %v9024 = vpack.c.b16 %v8744, %v8737
    %v9025 = vpack.c.b16 %v8745, %v8738
    %v9026 = vpack.c.b16 %v8746, %v8739
    %v9027 = vpack.c.b16 %v8747, %v8740
    %v9028 = vpack.c.b16 %v8748, %v8741
    %9309 = vmatprep.subr.bf16.mxu0 %v8750
    %9310 = vmatpush1.bf16.msra.mxu0 %v8749
    %9311 = vmatprep.subr.bf16.mxu0 %v8757
    %9312 = vmatpush1.bf16.msra.mxu0 %v8756
    %9313 = vmatprep.subr.bf16.mxu0 %v8764
    %9314 = vmatpush1.bf16.msra.mxu0 %v8763
    %9315 = vmatprep.subr.bf16.mxu0 %v8771
    %9316 = vmatpush1.bf16.msra.mxu0 %v8770
    %9317 = vmatprep.subr.bf16.mxu0 %v8778
    %9318 = vmatpush1.bf16.msra.mxu0 %v8777
    %9319 = vmatprep.subr.bf16.mxu0 %v8785
    %9320 = vmatpush1.bf16.msra.mxu0 %v8784
    %9321 = vmatprep.subr.bf16.mxu0 %v8792
    %9322 = vmatpush1.bf16.msra.mxu0 %v8791
    %9323 = vmatprep.subr.bf16.mxu0 %v8799
    %9324 = vmatpush1.bf16.msra.mxu0 %v8798
    %9325 = vmatprep.subr.bf16.mxu0 %v8806
    %9326 = vmatpush1.bf16.msra.mxu0 %v8805
    %9327 = vmatprep.subr.bf16.mxu0 %v8813
    %9328 = vmatpush1.bf16.msra.mxu0 %v8812
    %9329 = vmatprep.subr.bf16.mxu0 %v8820
    %9330 = vmatpush1.bf16.msra.mxu0 %v8819
    %9331 = vmatprep.subr.bf16.mxu0 %v8827
    %9332 = vmatpush1.bf16.msra.mxu0 %v8826
    %9333 = vmatprep.subr.bf16.mxu0 %v8834
    %9334 = vmatpush1.bf16.msra.mxu0 %v8833
    %9335 = vmatprep.subr.bf16.mxu0 %v8841
    %9336 = vmatpush1.bf16.msra.mxu0 %v8840
    %9337 = vmatprep.subr.bf16.mxu0 %v8848
    %9338 = vmatpush1.bf16.msra.mxu0 %v8847
    %9339 = vmatprep.subr.bf16.mxu0 %v8855
    %9340 = vmatpush1.bf16.msra.mxu0 %v8854
    %9341 = vmatprep.mubr.bf16.mxu0 %v7473
    %9342 = vmatmul.mubr.bf16.gmra.mrb[0].mxu0 %v7472
    %v9343 = vpop.f32.mrb[0].mxu0
    %v9344 = vadd.f32 %v7837, %v9343
    %v9345 = vpop.f32.mrb[0].mxu0
    %v9346 = vadd.f32 %v7841, %v9345
    %v9347 = vpop.f32.mrb[0].mxu0
    %v9348 = vadd.f32 %v7837, %v9347
    %v9349 = vpop.f32.mrb[0].mxu0
    %v9350 = vadd.f32 %v7841, %v9349
    %9351 = vmatprep.mubr.bf16.mxu0 %v7478
    %9352 = vmatmul.mubr.bf16.gmra.mrb[0].mxu0 %v7477
    %v9353 = vpop.f32.mrb[0].mxu0
    %v9354 = vadd.f32 %v7837, %v9353
    %v9355 = vpop.f32.mrb[0].mxu0
    %v9356 = vadd.f32 %v7841, %v9355
    %v9357 = vpop.f32.mrb[0].mxu0
    %v9358 = vadd.f32 %v7837, %v9357
    %v9359 = vpop.f32.mrb[0].mxu0
    %v9360 = vadd.f32 %v7841, %v9359
    %9361 = vmatprep.mubr.bf16.mxu0 %v7483
    %9362 = vmatmul.mubr.bf16.gmra.mrb[0].mxu0 %v7482
    %v9363 = vpop.f32.mrb[0].mxu0
    %v9364 = vadd.f32 %v7837, %v9363
    %v9365 = vpop.f32.mrb[0].mxu0
    %v9366 = vadd.f32 %v7841, %v9365
    %v9367 = vpop.f32.mrb[0].mxu0
    %v9368 = vadd.f32 %v7837, %v9367
    %v9369 = vpop.f32.mrb[0].mxu0
    %v9370 = vadd.f32 %v7841, %v9369
    %9371 = vmatprep.mubr.bf16.mxu0 %v7488
    %9372 = vmatmul.mubr.bf16.gmra.mrb[0].mxu0 %v7487
    %v9373 = vpop.f32.mrb[0].mxu0
    %v9374 = vadd.f32 %v7837, %v9373
    %v9375 = vpop.f32.mrb[0].mxu0
    %v9376 = vadd.f32 %v7841, %v9375
    %v9377 = vpop.f32.mrb[0].mxu0
    %v9378 = vadd.f32 %v7837, %v9377
    %v9379 = vpop.f32.mrb[0].mxu0
    %v9380 = vadd.f32 %v7841, %v9379
    %9381 = vmatprep.mubr.bf16.mxu0 %v7493
    %9382 = vmatmul.mubr.bf16.gmra.mrb[0].mxu0 %v7492
    %v9383 = vpop.f32.mrb[0].mxu0
    %v9384 = vadd.f32 %v7837, %v9383
    %v9385 = vpop.f32.mrb[0].mxu0
    %v9386 = vadd.f32 %v7841, %v9385
    %v9387 = vpop.f32.mrb[0].mxu0
    %v9388 = vadd.f32 %v7837, %v9387
    %v9389 = vpop.f32.mrb[0].mxu0
    %v9390 = vadd.f32 %v7841, %v9389
    %9391 = vmatprep.mubr.bf16.mxu0 %v7498
    %9392 = vmatmul.mubr.bf16.gmra.mrb[0].mxu0 %v7497
    %v9393 = vpop.f32.mrb[0].mxu0
    %v9394 = vadd.f32 %v7837, %v9393
    %v9395 = vpop.f32.mrb[0].mxu0
    %v9396 = vadd.f32 %v7841, %v9395
    %v9397 = vpop.f32.mrb[0].mxu0
    %v9398 = vadd.f32 %v7837, %v9397
    %v9399 = vpop.f32.mrb[0].mxu0
    %v9400 = vadd.f32 %v7841, %v9399
    %9401 = vmatprep.mubr.bf16.mxu0 %v7503
    %9402 = vmatmul.mubr.bf16.gmra.mrb[0].mxu0 %v7502
    %v9403 = vpop.f32.mrb[0].mxu0
    %v9404 = vadd.f32 %v7837, %v9403
    %v9405 = vpop.f32.mrb[0].mxu0
    %v9406 = vadd.f32 %v7841, %v9405
    %v9407 = vpop.f32.mrb[0].mxu0
    %v9408 = vadd.f32 %v7837, %v9407
    %v9409 = vpop.f32.mrb[0].mxu0
    %v9410 = vadd.f32 %v7841, %v9409
    %9411 = vmatprep.mubr.bf16.mxu0 %v7508
    %9412 = vmatmul.mubr.bf16.gmra.mrb[0].mxu0 %v7507
    %v9413 = vpop.f32.mrb[0].mxu0
    %v9414 = vadd.f32 %v7837, %v9413
    %v9415 = vpop.f32.mrb[0].mxu0
    %v9416 = vadd.f32 %v7841, %v9415
    %v9417 = vpop.f32.mrb[0].mxu0
    %v9418 = vadd.f32 %v7837, %v9417
    %v9419 = vpop.f32.mrb[0].mxu0
    %v9420 = vadd.f32 %v7841, %v9419
    %9421 = vdwg.mxu0
    %9422 = vmatprep.subr.bf16.mxu0 %v8862
    %9423 = vmatpush1.bf16.msra.mxu0 %v8861
    %9424 = vmatprep.subr.bf16.mxu0 %v8869
    %9425 = vmatpush1.bf16.msra.mxu0 %v8868
    %9426 = vmatprep.subr.bf16.mxu0 %v8876
    %9427 = vmatpush1.bf16.msra.mxu0 %v8875
    %9428 = vmatprep.subr.bf16.mxu0 %v8883
    %9429 = vmatpush1.bf16.msra.mxu0 %v8882
    %9430 = vmatprep.subr.bf16.mxu0 %v8890
    %9431 = vmatpush1.bf16.msra.mxu0 %v8889
    %9432 = vmatprep.subr.bf16.mxu0 %v8897
    %9433 = vmatpush1.bf16.msra.mxu0 %v8896
    %9434 = vmatprep.subr.bf16.mxu0 %v8904
    %9435 = vmatpush1.bf16.msra.mxu0 %v8903
    %9436 = vmatprep.subr.bf16.mxu0 %v8911
    %9437 = vmatpush1.bf16.msra.mxu0 %v8910
    %9438 = vmatprep.subr.bf16.mxu0 %v8918
    %9439 = vmatpush1.bf16.msra.mxu0 %v8917
    %9440 = vmatprep.subr.bf16.mxu0 %v8925
    %9441 = vmatpush1.bf16.msra.mxu0 %v8924
    %9442 = vmatprep.subr.bf16.mxu0 %v8932
    %9443 = vmatpush1.bf16.msra.mxu0 %v8931
    %9444 = vmatprep.subr.bf16.mxu0 %v8939
    %9445 = vmatpush1.bf16.msra.mxu0 %v8938
    %9446 = vmatprep.subr.bf16.mxu0 %v8946
    %9447 = vmatpush1.bf16.msra.mxu0 %v8945
    %9448 = vmatprep.subr.bf16.mxu0 %v8953
    %9449 = vmatpush1.bf16.msra.mxu0 %v8952
    %9450 = vmatprep.subr.bf16.mxu0 %v8960
    %9451 = vmatpush1.bf16.msra.mxu0 %v8959
    %9452 = vmatprep.subr.bf16.mxu0 %v8967
    %9453 = vmatpush1.bf16.msra.mxu0 %v8966
    %9454 = vmatprep.mubr.bf16.mxu0 %v7475
    %9455 = vmatmul.mubr.bf16.gmra.mrb[0].mxu0 %v7474
    %v9456 = vpop.f32.mrb[0].mxu0
    %v9457 = vadd.f32 %v9344, %v9456
    %v9458 = vpop.f32.mrb[0].mxu0
    %v9459 = vadd.f32 %v9346, %v9458
    %v9460 = vpop.f32.mrb[0].mxu0
    %v9461 = vadd.f32 %v9348, %v9460
    %v9462 = vpop.f32.mrb[0].mxu0
    %v9463 = vadd.f32 %v9350, %v9462
    %9464 = vmatprep.mubr.bf16.mxu0 %v7480
    %9465 = vmatmul.mubr.bf16.gmra.mrb[0].mxu0 %v7479
    %v9466 = vpop.f32.mrb[0].mxu0
    %v9467 = vadd.f32 %v9354, %v9466
    %v9468 = vpop.f32.mrb[0].mxu0
    %v9469 = vadd.f32 %v9356, %v9468
    %v9470 = vpop.f32.mrb[0].mxu0
    %v9471 = vadd.f32 %v9358, %v9470
    %v9472 = vpop.f32.mrb[0].mxu0
    %v9473 = vadd.f32 %v9360, %v9472
    %9474 = vmatprep.mubr.bf16.mxu0 %v7485
    %9475 = vmatmul.mubr.bf16.gmra.mrb[0].mxu0 %v7484
    %v9476 = vpop.f32.mrb[0].mxu0
    %v9477 = vadd.f32 %v9364, %v9476
    %v9478 = vpop.f32.mrb[0].mxu0
    %v9479 = vadd.f32 %v9366, %v9478
    %v9480 = vpop.f32.mrb[0].mxu0
    %v9481 = vadd.f32 %v9368, %v9480
    %v9482 = vpop.f32.mrb[0].mxu0
    %v9483 = vadd.f32 %v9370, %v9482
    %9484 = vmatprep.mubr.bf16.mxu0 %v7490
    %9485 = vmatmul.mubr.bf16.gmra.mrb[0].mxu0 %v7489
    %v9486 = vpop.f32.mrb[0].mxu0
    %v9487 = vadd.f32 %v9374, %v9486
    %v9488 = vpop.f32.mrb[0].mxu0
    %v9489 = vadd.f32 %v9376, %v9488
    %v9490 = vpop.f32.mrb[0].mxu0
    %v9491 = vadd.f32 %v9378, %v9490
    %v9492 = vpop.f32.mrb[0].mxu0
    %v9493 = vadd.f32 %v9380, %v9492
    %9494 = vmatprep.mubr.bf16.mxu0 %v7495
    %9495 = vmatmul.mubr.bf16.gmra.mrb[0].mxu0 %v7494
    %v9496 = vpop.f32.mrb[0].mxu0
    %v9497 = vadd.f32 %v9384, %v9496
    %v9498 = vpop.f32.mrb[0].mxu0
    %v9499 = vadd.f32 %v9386, %v9498
    %v9500 = vpop.f32.mrb[0].mxu0
    %v9501 = vadd.f32 %v9388, %v9500
    %v9502 = vpop.f32.mrb[0].mxu0
    %v9503 = vadd.f32 %v9390, %v9502
    %9504 = vmatprep.mubr.bf16.mxu0 %v7500
    %9505 = vmatmul.mubr.bf16.gmra.mrb[0].mxu0 %v7499
    %v9506 = vpop.f32.mrb[0].mxu0
    %v9507 = vadd.f32 %v9394, %v9506
    %v9508 = vpop.f32.mrb[0].mxu0
    %v9509 = vadd.f32 %v9396, %v9508
    %v9510 = vpop.f32.mrb[0].mxu0
    %v9511 = vadd.f32 %v9398, %v9510
    %v9512 = vpop.f32.mrb[0].mxu0
    %v9513 = vadd.f32 %v9400, %v9512
    %9514 = vmatprep.mubr.bf16.mxu0 %v7505
    %9515 = vmatmul.mubr.bf16.gmra.mrb[0].mxu0 %v7504
    %v9516 = vpop.f32.mrb[0].mxu0
    %v9517 = vadd.f32 %v9404, %v9516
    %v9518 = vpop.f32.mrb[0].mxu0
    %v9519 = vadd.f32 %v9406, %v9518
    %v9520 = vpop.f32.mrb[0].mxu0
    %v9521 = vadd.f32 %v9408, %v9520
    %v9522 = vpop.f32.mrb[0].mxu0
    %v9523 = vadd.f32 %v9410, %v9522
    %9524 = vmatprep.mubr.bf16.mxu0 %v7510
    %9525 = vmatmul.mubr.bf16.gmra.mrb[0].mxu0 %v7509
    %v9526 = vpop.f32.mrb[0].mxu0
    %v9527 = vadd.f32 %v9414, %v9526
    %v9528 = vpop.f32.mrb[0].mxu0
    %v9529 = vadd.f32 %v9416, %v9528
    %v9530 = vpop.f32.mrb[0].mxu0
    %v9531 = vadd.f32 %v9418, %v9530
    %v9532 = vpop.f32.mrb[0].mxu0
    %v9533 = vadd.f32 %v9420, %v9532
    %9534 = vdwg.mxu0
    %9535 = vmatprep.subr.bf16.mxu0 %v8974
    %9536 = vmatpush1.bf16.msra.mxu0 %v8973
    %9537 = vmatprep.subr.bf16.mxu0 %v8981
    %9538 = vmatpush1.bf16.msra.mxu0 %v8980
    %9539 = vmatprep.subr.bf16.mxu0 %v8988
    %9540 = vmatpush1.bf16.msra.mxu0 %v8987
    %9541 = vmatprep.subr.bf16.mxu0 %v8995
    %9542 = vmatpush1.bf16.msra.mxu0 %v8994
    %9543 = vmatprep.subr.bf16.mxu0 %v9002
    %9544 = vmatpush1.bf16.msra.mxu0 %v9001
    %9545 = vmatprep.subr.bf16.mxu0 %v9009
    %9546 = vmatpush1.bf16.msra.mxu0 %v9008
    %9547 = vmatprep.subr.bf16.mxu0 %v9016
    %9548 = vmatpush1.bf16.msra.mxu0 %v9015
    %9549 = vmatprep.subr.bf16.mxu0 %v9023
    %9550 = vmatpush1.bf16.msra.mxu0 %v9022
    %9551 = vmatprep.subr.bf16.mxu0 0
    %9552 = vmatpush1.bf16.msra.mxu0 0
    %9553 = vmatprep.subr.bf16.mxu0 0
    %9554 = vmatpush1.bf16.msra.mxu0 0
    %9555 = vmatprep.subr.bf16.mxu0 0
    %9556 = vmatpush1.bf16.msra.mxu0 0
    %9557 = vmatprep.subr.bf16.mxu0 0
    %9558 = vmatpush1.bf16.msra.mxu0 0
    %9559 = vmatprep.subr.bf16.mxu0 0
    %9560 = vmatpush1.bf16.msra.mxu0 0
    %9561 = vmatprep.subr.bf16.mxu0 0
    %9562 = vmatpush1.bf16.msra.mxu0 0
    %9563 = vmatprep.subr.bf16.mxu0 0
    %9564 = vmatpush1.bf16.msra.mxu0 0
    %9565 = vmatprep.subr.bf16.mxu0 0
    %9566 = vmatpush1.bf16.msra.mxu0 0
    %9567 = vmatprep.mubr.bf16.mxu0 0
    %9568 = vmatmul.mubr.bf16.gmra.mrb[0].mxu0 %v7476
    %v9569 = vpop.f32.mrb[0].mxu0
    %v9570 = vadd.f32 %v9457, %v9569
    %v9571 = vpop.f32.mrb[0].mxu0
    %v9572 = vadd.f32 %v9459, %v9571
    %v9573 = vpop.f32.mrb[0].mxu0
    %v9574 = vadd.f32 %v9461, %v9573
    %v9575 = vpop.f32.mrb[0].mxu0
    %v9576 = vadd.f32 %v9463, %v9575
    %9577 = vmatprep.mubr.bf16.mxu0 0
    %9578 = vmatmul.mubr.bf16.gmra.mrb[0].mxu0 %v7481
    %v9579 = vpop.f32.mrb[0].mxu0
    %v9580 = vadd.f32 %v9467, %v9579
    %v9581 = vpop.f32.mrb[0].mxu0
    %v9582 = vadd.f32 %v9469, %v9581
    %v9583 = vpop.f32.mrb[0].mxu0
    %v9584 = vadd.f32 %v9471, %v9583
    %v9585 = vpop.f32.mrb[0].mxu0
    %v9586 = vadd.f32 %v9473, %v9585
    %9587 = vmatprep.mubr.bf16.mxu0 0
    %9588 = vmatmul.mubr.bf16.gmra.mrb[0].mxu0 %v7486
    %v9589 = vpop.f32.mrb[0].mxu0
    %v9590 = vadd.f32 %v9477, %v9589
    %v9591 = vpop.f32.mrb[0].mxu0
    %v9592 = vadd.f32 %v9479, %v9591
    %v9593 = vpop.f32.mrb[0].mxu0
    %v9594 = vadd.f32 %v9481, %v9593
    %v9595 = vpop.f32.mrb[0].mxu0
    %v9596 = vadd.f32 %v9483, %v9595
    %9597 = vmatprep.mubr.bf16.mxu0 0
    %9598 = vmatmul.mubr.bf16.gmra.mrb[0].mxu0 %v7491
    %v9599 = vpop.f32.mrb[0].mxu0
    %v9600 = vadd.f32 %v9487, %v9599
    %v9601 = vpop.f32.mrb[0].mxu0
    %v9602 = vadd.f32 %v9489, %v9601
    %v9603 = vpop.f32.mrb[0].mxu0
    %v9604 = vadd.f32 %v9491, %v9603
    %v9605 = vpop.f32.mrb[0].mxu0
    %v9606 = vadd.f32 %v9493, %v9605
    %9607 = vmatprep.mubr.bf16.mxu0 0
    %9608 = vmatmul.mubr.bf16.gmra.mrb[0].mxu0 %v7496
    %v9609 = vpop.f32.mrb[0].mxu0
    %v9610 = vadd.f32 %v9497, %v9609
    %v9611 = vpop.f32.mrb[0].mxu0
    %v9612 = vadd.f32 %v9499, %v9611
    %v9613 = vpop.f32.mrb[0].mxu0
    %v9614 = vadd.f32 %v9501, %v9613
    %v9615 = vpop.f32.mrb[0].mxu0
    %v9616 = vadd.f32 %v9503, %v9615
    %9617 = vmatprep.mubr.bf16.mxu0 0
    %9618 = vmatmul.mubr.bf16.gmra.mrb[0].mxu0 %v7501
    %v9619 = vpop.f32.mrb[0].mxu0
    %v9620 = vadd.f32 %v9507, %v9619
    %v9621 = vpop.f32.mrb[0].mxu0
    %v9622 = vadd.f32 %v9509, %v9621
    %v9623 = vpop.f32.mrb[0].mxu0
    %v9624 = vadd.f32 %v9511, %v9623
    %v9625 = vpop.f32.mrb[0].mxu0
    %v9626 = vadd.f32 %v9513, %v9625
    %9627 = vmatprep.mubr.bf16.mxu0 0
    %9628 = vmatmul.mubr.bf16.gmra.mrb[0].mxu0 %v7506
    %v9629 = vpop.f32.mrb[0].mxu0
    %v9630 = vadd.f32 %v9517, %v9629
    %v9631 = vpop.f32.mrb[0].mxu0
    %v9632 = vadd.f32 %v9519, %v9631
    %v9633 = vpop.f32.mrb[0].mxu0
    %v9634 = vadd.f32 %v9521, %v9633
    %v9635 = vpop.f32.mrb[0].mxu0
    %v9636 = vadd.f32 %v9523, %v9635
    %9637 = vmatprep.mubr.bf16.mxu0 0
    %9638 = vmatmul.mubr.bf16.gmra.mrb[0].mxu0 %v7511
    %v9639 = vpop.f32.mrb[0].mxu0
    %v9640 = vadd.f32 %v9527, %v9639
    %v9641 = vpop.f32.mrb[0].mxu0
    %v9642 = vadd.f32 %v9529, %v9641
    %v9643 = vpop.f32.mrb[0].mxu0
    %v9644 = vadd.f32 %v9531, %v9643
    %v9645 = vpop.f32.mrb[0].mxu0
    %v9646 = vadd.f32 %v9533, %v9645
    %9647 = vdwg.mxu0
    %9648 = vmatprep.subr.bf16.mxu0 %v8752
    %9649 = vmatpush1.bf16.msra.mxu0 %v8751
    %9650 = vmatprep.subr.bf16.mxu0 %v8759
    %9651 = vmatpush1.bf16.msra.mxu0 %v8758
    %9652 = vmatprep.subr.bf16.mxu0 %v8766
    %9653 = vmatpush1.bf16.msra.mxu0 %v8765
    %9654 = vmatprep.subr.bf16.mxu0 %v8773
    %9655 = vmatpush1.bf16.msra.mxu0 %v8772
    %9656 = vmatprep.subr.bf16.mxu0 %v8780
    %9657 = vmatpush1.bf16.msra.mxu0 %v8779
    %9658 = vmatprep.subr.bf16.mxu0 %v8787
    %9659 = vmatpush1.bf16.msra.mxu0 %v8786
    %9660 = vmatprep.subr.bf16.mxu0 %v8794
    %9661 = vmatpush1.bf16.msra.mxu0 %v8793
    %9662 = vmatprep.subr.bf16.mxu0 %v8801
    %9663 = vmatpush1.bf16.msra.mxu0 %v8800
    %9664 = vmatprep.subr.bf16.mxu0 %v8808
    %9665 = vmatpush1.bf16.msra.mxu0 %v8807
    %9666 = vmatprep.subr.bf16.mxu0 %v8815
    %9667 = vmatpush1.bf16.msra.mxu0 %v8814
    %9668 = vmatprep.subr.bf16.mxu0 %v8822
    %9669 = vmatpush1.bf16.msra.mxu0 %v8821
    %9670 = vmatprep.subr.bf16.mxu0 %v8829
    %9671 = vmatpush1.bf16.msra.mxu0 %v8828
    %9672 = vmatprep.subr.bf16.mxu0 %v8836
    %9673 = vmatpush1.bf16.msra.mxu0 %v8835
    %9674 = vmatprep.subr.bf16.mxu0 %v8843
    %9675 = vmatpush1.bf16.msra.mxu0 %v8842
    %9676 = vmatprep.subr.bf16.mxu0 %v8850
    %9677 = vmatpush1.bf16.msra.mxu0 %v8849
    %9678 = vmatprep.subr.bf16.mxu0 %v8857
    %9679 = vmatpush1.bf16.msra.mxu0 %v8856
    %9680 = vmatprep.mubr.bf16.mxu0 %v7473
    %9681 = vmatmul.mubr.bf16.gmra.mrb[0].mxu0 %v7472
    %v9682 = vpop.f32.mrb[0].mxu0
    %v9683 = vadd.f32 %v7845, %v9682
    %v9684 = vpop.f32.mrb[0].mxu0
    %v9685 = vadd.f32 %v7849, %v9684
    %v9686 = vpop.f32.mrb[0].mxu0
    %v9687 = vadd.f32 %v7845, %v9686
    %v9688 = vpop.f32.mrb[0].mxu0
    %v9689 = vadd.f32 %v7849, %v9688
    %9690 = vmatprep.mubr.bf16.mxu0 %v7478
    %9691 = vmatmul.mubr.bf16.gmra.mrb[0].mxu0 %v7477
    %v9692 = vpop.f32.mrb[0].mxu0
    %v9693 = vadd.f32 %v7845, %v9692
    %v9694 = vpop.f32.mrb[0].mxu0
    %v9695 = vadd.f32 %v7849, %v9694
    %v9696 = vpop.f32.mrb[0].mxu0
    %v9697 = vadd.f32 %v7845, %v9696
    %v9698 = vpop.f32.mrb[0].mxu0
    %v9699 = vadd.f32 %v7849, %v9698
    %9700 = vmatprep.mubr.bf16.mxu0 %v7483
    %9701 = vmatmul.mubr.bf16.gmra.mrb[0].mxu0 %v7482
    %v9702 = vpop.f32.mrb[0].mxu0
    %v9703 = vadd.f32 %v7845, %v9702
    %v9704 = vpop.f32.mrb[0].mxu0
    %v9705 = vadd.f32 %v7849, %v9704
    %v9706 = vpop.f32.mrb[0].mxu0
    %v9707 = vadd.f32 %v7845, %v9706
    %v9708 = vpop.f32.mrb[0].mxu0
    %v9709 = vadd.f32 %v7849, %v9708
    %9710 = vmatprep.mubr.bf16.mxu0 %v7488
    %9711 = vmatmul.mubr.bf16.gmra.mrb[0].mxu0 %v7487
    %v9712 = vpop.f32.mrb[0].mxu0
    %v9713 = vadd.f32 %v7845, %v9712
    %v9714 = vpop.f32.mrb[0].mxu0
    %v9715 = vadd.f32 %v7849, %v9714
    %v9716 = vpop.f32.mrb[0].mxu0
    %v9717 = vadd.f32 %v7845, %v9716
    %v9718 = vpop.f32.mrb[0].mxu0
    %v9719 = vadd.f32 %v7849, %v9718
    %9720 = vmatprep.mubr.bf16.mxu0 %v7493
    %9721 = vmatmul.mubr.bf16.gmra.mrb[0].mxu0 %v7492
    %v9722 = vpop.f32.mrb[0].mxu0
    %v9723 = vadd.f32 %v7845, %v9722
    %v9724 = vpop.f32.mrb[0].mxu0
    %v9725 = vadd.f32 %v7849, %v9724
    %v9726 = vpop.f32.mrb[0].mxu0
    %v9727 = vadd.f32 %v7845, %v9726
    %v9728 = vpop.f32.mrb[0].mxu0
    %v9729 = vadd.f32 %v7849, %v9728
    %9730 = vmatprep.mubr.bf16.mxu0 %v7498
    %9731 = vmatmul.mubr.bf16.gmra.mrb[0].mxu0 %v7497
    %v9732 = vpop.f32.mrb[0].mxu0
    %v9733 = vadd.f32 %v7845, %v9732
    %v9734 = vpop.f32.mrb[0].mxu0
    %v9735 = vadd.f32 %v7849, %v9734
    %v9736 = vpop.f32.mrb[0].mxu0
    %v9737 = vadd.f32 %v7845, %v9736
    %v9738 = vpop.f32.mrb[0].mxu0
    %v9739 = vadd.f32 %v7849, %v9738
    %9740 = vmatprep.mubr.bf16.mxu0 %v7503
    %9741 = vmatmul.mubr.bf16.gmra.mrb[0].mxu0 %v7502
    %v9742 = vpop.f32.mrb[0].mxu0
    %v9743 = vadd.f32 %v7845, %v9742
    %v9744 = vpop.f32.mrb[0].mxu0
    %v9745 = vadd.f32 %v7849, %v9744
    %v9746 = vpop.f32.mrb[0].mxu0
    %v9747 = vadd.f32 %v7845, %v9746
    %v9748 = vpop.f32.mrb[0].mxu0
    %v9749 = vadd.f32 %v7849, %v9748
    %9750 = vmatprep.mubr.bf16.mxu0 %v7508
    %9751 = vmatmul.mubr.bf16.gmra.mrb[0].mxu0 %v7507
    %v9752 = vpop.f32.mrb[0].mxu0
    %v9753 = vadd.f32 %v7845, %v9752
    %v9754 = vpop.f32.mrb[0].mxu0
    %v9755 = vadd.f32 %v7849, %v9754
    %v9756 = vpop.f32.mrb[0].mxu0
    %v9757 = vadd.f32 %v7845, %v9756
    %v9758 = vpop.f32.mrb[0].mxu0
    %v9759 = vadd.f32 %v7849, %v9758
    %9760 = vdwg.mxu0
    %9761 = vmatprep.subr.bf16.mxu0 %v8864
    %9762 = vmatpush1.bf16.msra.mxu0 %v8863
    %9763 = vmatprep.subr.bf16.mxu0 %v8871
    %9764 = vmatpush1.bf16.msra.mxu0 %v8870
    %9765 = vmatprep.subr.bf16.mxu0 %v8878
    %9766 = vmatpush1.bf16.msra.mxu0 %v8877
    %9767 = vmatprep.subr.bf16.mxu0 %v8885
    %9768 = vmatpush1.bf16.msra.mxu0 %v8884
    %9769 = vmatprep.subr.bf16.mxu0 %v8892
    %9770 = vmatpush1.bf16.msra.mxu0 %v8891
    %9771 = vmatprep.subr.bf16.mxu0 %v8899
    %9772 = vmatpush1.bf16.msra.mxu0 %v8898
    %9773 = vmatprep.subr.bf16.mxu0 %v8906
    %9774 = vmatpush1.bf16.msra.mxu0 %v8905
    %9775 = vmatprep.subr.bf16.mxu0 %v8913
    %9776 = vmatpush1.bf16.msra.mxu0 %v8912
    %9777 = vmatprep.subr.bf16.mxu0 %v8920
    %9778 = vmatpush1.bf16.msra.mxu0 %v8919
    %9779 = vmatprep.subr.bf16.mxu0 %v8927
    %9780 = vmatpush1.bf16.msra.mxu0 %v8926
    %9781 = vmatprep.subr.bf16.mxu0 %v8934
    %9782 = vmatpush1.bf16.msra.mxu0 %v8933
    %9783 = vmatprep.subr.bf16.mxu0 %v8941
    %9784 = vmatpush1.bf16.msra.mxu0 %v8940
    %9785 = vmatprep.subr.bf16.mxu0 %v8948
    %9786 = vmatpush1.bf16.msra.mxu0 %v8947
    %9787 = vmatprep.subr.bf16.mxu0 %v8955
    %9788 = vmatpush1.bf16.msra.mxu0 %v8954
    %9789 = vmatprep.subr.bf16.mxu0 %v8962
    %9790 = vmatpush1.bf16.msra.mxu0 %v8961
    %9791 = vmatprep.subr.bf16.mxu0 %v8969
    %9792 = vmatpush1.bf16.msra.mxu0 %v8968
    %9793 = vmatprep.mubr.bf16.mxu0 %v7475
    %9794 = vmatmul.mubr.bf16.gmra.mrb[0].mxu0 %v7474
    %v9795 = vpop.f32.mrb[0].mxu0
    %v9796 = vadd.f32 %v9683, %v9795
    %v9797 = vpop.f32.mrb[0].mxu0
    %v9798 = vadd.f32 %v9685, %v9797
    %v9799 = vpop.f32.mrb[0].mxu0
    %v9800 = vadd.f32 %v9687, %v9799
    %v9801 = vpop.f32.mrb[0].mxu0
    %v9802 = vadd.f32 %v9689, %v9801
    %9803 = vmatprep.mubr.bf16.mxu0 %v7480
    %9804 = vmatmul.mubr.bf16.gmra.mrb[0].mxu0 %v7479
    %v9805 = vpop.f32.mrb[0].mxu0
    %v9806 = vadd.f32 %v9693, %v9805
    %v9807 = vpop.f32.mrb[0].mxu0
    %v9808 = vadd.f32 %v9695, %v9807
    %v9809 = vpop.f32.mrb[0].mxu0
    %v9810 = vadd.f32 %v9697, %v9809
    %v9811 = vpop.f32.mrb[0].mxu0
    %v9812 = vadd.f32 %v9699, %v9811
    %9813 = vmatprep.mubr.bf16.mxu0 %v7485
    %9814 = vmatmul.mubr.bf16.gmra.mrb[0].mxu0 %v7484
    %v9815 = vpop.f32.mrb[0].mxu0
    %v9816 = vadd.f32 %v9703, %v9815
    %v9817 = vpop.f32.mrb[0].mxu0
    %v9818 = vadd.f32 %v9705, %v9817
    %v9819 = vpop.f32.mrb[0].mxu0
    %v9820 = vadd.f32 %v9707, %v9819
    %v9821 = vpop.f32.mrb[0].mxu0
    %v9822 = vadd.f32 %v9709, %v9821
    %9823 = vmatprep.mubr.bf16.mxu0 %v7490
    %9824 = vmatmul.mubr.bf16.gmra.mrb[0].mxu0 %v7489
    %v9825 = vpop.f32.mrb[0].mxu0
    %v9826 = vadd.f32 %v9713, %v9825
    %v9827 = vpop.f32.mrb[0].mxu0
    %v9828 = vadd.f32 %v9715, %v9827
    %v9829 = vpop.f32.mrb[0].mxu0
    %v9830 = vadd.f32 %v9717, %v9829
    %v9831 = vpop.f32.mrb[0].mxu0
    %v9832 = vadd.f32 %v9719, %v9831
    %9833 = vmatprep.mubr.bf16.mxu0 %v7495
    %9834 = vmatmul.mubr.bf16.gmra.mrb[0].mxu0 %v7494
    %v9835 = vpop.f32.mrb[0].mxu0
    %v9836 = vadd.f32 %v9723, %v9835
    %v9837 = vpop.f32.mrb[0].mxu0
    %v9838 = vadd.f32 %v9725, %v9837
    %v9839 = vpop.f32.mrb[0].mxu0
    %v9840 = vadd.f32 %v9727, %v9839
    %v9841 = vpop.f32.mrb[0].mxu0
    %v9842 = vadd.f32 %v9729, %v9841
    %9843 = vmatprep.mubr.bf16.mxu0 %v7500
    %9844 = vmatmul.mubr.bf16.gmra.mrb[0].mxu0 %v7499
    %v9845 = vpop.f32.mrb[0].mxu0
    %v9846 = vadd.f32 %v9733, %v9845
    %v9847 = vpop.f32.mrb[0].mxu0
    %v9848 = vadd.f32 %v9735, %v9847
    %v9849 = vpop.f32.mrb[0].mxu0
    %v9850 = vadd.f32 %v9737, %v9849
    %v9851 = vpop.f32.mrb[0].mxu0
    %v9852 = vadd.f32 %v9739, %v9851
    %9853 = vmatprep.mubr.bf16.mxu0 %v7505
    %9854 = vmatmul.mubr.bf16.gmra.mrb[0].mxu0 %v7504
    %v9855 = vpop.f32.mrb[0].mxu0
    %v9856 = vadd.f32 %v9743, %v9855
    %v9857 = vpop.f32.mrb[0].mxu0
    %v9858 = vadd.f32 %v9745, %v9857
    %v9859 = vpop.f32.mrb[0].mxu0
    %v9860 = vadd.f32 %v9747, %v9859
    %v9861 = vpop.f32.mrb[0].mxu0
    %v9862 = vadd.f32 %v9749, %v9861
    %9863 = vmatprep.mubr.bf16.mxu0 %v7510
    %9864 = vmatmul.mubr.bf16.gmra.mrb[0].mxu0 %v7509
    %v9865 = vpop.f32.mrb[0].mxu0
    %v9866 = vadd.f32 %v9753, %v9865
    %v9867 = vpop.f32.mrb[0].mxu0
    %v9868 = vadd.f32 %v9755, %v9867
    %v9869 = vpop.f32.mrb[0].mxu0
    %v9870 = vadd.f32 %v9757, %v9869
    %v9871 = vpop.f32.mrb[0].mxu0
    %v9872 = vadd.f32 %v9759, %v9871
    %9873 = vdwg.mxu0
    %9874 = vmatprep.subr.bf16.mxu0 %v8976
    %9875 = vmatpush1.bf16.msra.mxu0 %v8975
    %9876 = vmatprep.subr.bf16.mxu0 %v8983
    %9877 = vmatpush1.bf16.msra.mxu0 %v8982
    %9878 = vmatprep.subr.bf16.mxu0 %v8990
    %9879 = vmatpush1.bf16.msra.mxu0 %v8989
    %9880 = vmatprep.subr.bf16.mxu0 %v8997
    %9881 = vmatpush1.bf16.msra.mxu0 %v8996
    %9882 = vmatprep.subr.bf16.mxu0 %v9004
    %9883 = vmatpush1.bf16.msra.mxu0 %v9003
    %9884 = vmatprep.subr.bf16.mxu0 %v9011
    %9885 = vmatpush1.bf16.msra.mxu0 %v9010
    %9886 = vmatprep.subr.bf16.mxu0 %v9018
    %9887 = vmatpush1.bf16.msra.mxu0 %v9017
    %9888 = vmatprep.subr.bf16.mxu0 %v9025
    %9889 = vmatpush1.bf16.msra.mxu0 %v9024
    %9890 = vmatprep.subr.bf16.mxu0 0
    %9891 = vmatpush1.bf16.msra.mxu0 0
    %9892 = vmatprep.subr.bf16.mxu0 0
    %9893 = vmatpush1.bf16.msra.mxu0 0
    %9894 = vmatprep.subr.bf16.mxu0 0
    %9895 = vmatpush1.bf16.msra.mxu0 0
    %9896 = vmatprep.subr.bf16.mxu0 0
    %9897 = vmatpush1.bf16.msra.mxu0 0
    %9898 = vmatprep.subr.bf16.mxu0 0
    %9899 = vmatpush1.bf16.msra.mxu0 0
    %9900 = vmatprep.subr.bf16.mxu0 0
    %9901 = vmatpush1.bf16.msra.mxu0 0
    %9902 = vmatprep.subr.bf16.mxu0 0
    %9903 = vmatpush1.bf16.msra.mxu0 0
    %9904 = vmatprep.subr.bf16.mxu0 0
    %9905 = vmatpush1.bf16.msra.mxu0 0
    %9906 = vmatprep.mubr.bf16.mxu0 0
    %9907 = vmatmul.mubr.bf16.gmra.mrb[0].mxu0 %v7476
    %v9908 = vpop.f32.mrb[0].mxu0
    %v9909 = vadd.f32 %v9796, %v9908
    %v9910 = vpop.f32.mrb[0].mxu0
    %v9911 = vadd.f32 %v9798, %v9910
    %v9912 = vpop.f32.mrb[0].mxu0
    %v9913 = vadd.f32 %v9800, %v9912
    %v9914 = vpop.f32.mrb[0].mxu0
    %v9915 = vadd.f32 %v9802, %v9914
    %9916 = vmatprep.mubr.bf16.mxu0 0
    %9917 = vmatmul.mubr.bf16.gmra.mrb[0].mxu0 %v7481
    %v9918 = vpop.f32.mrb[0].mxu0
    %v9919 = vadd.f32 %v9806, %v9918
    %v9920 = vpop.f32.mrb[0].mxu0
    %v9921 = vadd.f32 %v9808, %v9920
    %v9922 = vpop.f32.mrb[0].mxu0
    %v9923 = vadd.f32 %v9810, %v9922
    %v9924 = vpop.f32.mrb[0].mxu0
    %v9925 = vadd.f32 %v9812, %v9924
    %9926 = vmatprep.mubr.bf16.mxu0 0
    %9927 = vmatmul.mubr.bf16.gmra.mrb[0].mxu0 %v7486
    %v9928 = vpop.f32.mrb[0].mxu0
    %v9929 = vadd.f32 %v9816, %v9928
    %v9930 = vpop.f32.mrb[0].mxu0
    %v9931 = vadd.f32 %v9818, %v9930
    %v9932 = vpop.f32.mrb[0].mxu0
    %v9933 = vadd.f32 %v9820, %v9932
    %v9934 = vpop.f32.mrb[0].mxu0
    %v9935 = vadd.f32 %v9822, %v9934
    %9936 = vmatprep.mubr.bf16.mxu0 0
    %9937 = vmatmul.mubr.bf16.gmra.mrb[0].mxu0 %v7491
    %v9938 = vpop.f32.mrb[0].mxu0
    %v9939 = vadd.f32 %v9826, %v9938
    %v9940 = vpop.f32.mrb[0].mxu0
    %v9941 = vadd.f32 %v9828, %v9940
    %v9942 = vpop.f32.mrb[0].mxu0
    %v9943 = vadd.f32 %v9830, %v9942
    %v9944 = vpop.f32.mrb[0].mxu0
    %v9945 = vadd.f32 %v9832, %v9944
    %9946 = vmatprep.mubr.bf16.mxu0 0
    %9947 = vmatmul.mubr.bf16.gmra.mrb[0].mxu0 %v7496
    %v9948 = vpop.f32.mrb[0].mxu0
    %v9949 = vadd.f32 %v9836, %v9948
    %v9950 = vpop.f32.mrb[0].mxu0
    %v9951 = vadd.f32 %v9838, %v9950
    %v9952 = vpop.f32.mrb[0].mxu0
    %v9953 = vadd.f32 %v9840, %v9952
    %v9954 = vpop.f32.mrb[0].mxu0
    %v9955 = vadd.f32 %v9842, %v9954
    %9956 = vmatprep.mubr.bf16.mxu0 0
    %9957 = vmatmul.mubr.bf16.gmra.mrb[0].mxu0 %v7501
    %v9958 = vpop.f32.mrb[0].mxu0
    %v9959 = vadd.f32 %v9846, %v9958
    %v9960 = vpop.f32.mrb[0].mxu0
    %v9961 = vadd.f32 %v9848, %v9960
    %v9962 = vpop.f32.mrb[0].mxu0
    %v9963 = vadd.f32 %v9850, %v9962
    %v9964 = vpop.f32.mrb[0].mxu0
    %v9965 = vadd.f32 %v9852, %v9964
    %9966 = vmatprep.mubr.bf16.mxu0 0
    %9967 = vmatmul.mubr.bf16.gmra.mrb[0].mxu0 %v7506
    %v9968 = vpop.f32.mrb[0].mxu0
    %v9969 = vadd.f32 %v9856, %v9968
    %v9970 = vpop.f32.mrb[0].mxu0
    %v9971 = vadd.f32 %v9858, %v9970
    %v9972 = vpop.f32.mrb[0].mxu0
    %v9973 = vadd.f32 %v9860, %v9972
    %v9974 = vpop.f32.mrb[0].mxu0
    %v9975 = vadd.f32 %v9862, %v9974
    %9976 = vmatprep.mubr.bf16.mxu0 0
    %9977 = vmatmul.mubr.bf16.gmra.mrb[0].mxu0 %v7511
    %v9978 = vpop.f32.mrb[0].mxu0
    %v9979 = vadd.f32 %v9866, %v9978
    %v9980 = vpop.f32.mrb[0].mxu0
    %v9981 = vadd.f32 %v9868, %v9980
    %v9982 = vpop.f32.mrb[0].mxu0
    %v9983 = vadd.f32 %v9870, %v9982
    %v9984 = vpop.f32.mrb[0].mxu0
    %v9985 = vadd.f32 %v9872, %v9984
    %9986 = vdwg.mxu0
    %9987 = vmatprep.subr.bf16.mxu0 %v8754
    %9988 = vmatpush1.bf16.msra.mxu0 %v8753
    %9989 = vmatprep.subr.bf16.mxu0 %v8761
    %9990 = vmatpush1.bf16.msra.mxu0 %v8760
    %9991 = vmatprep.subr.bf16.mxu0 %v8768
    %9992 = vmatpush1.bf16.msra.mxu0 %v8767
    %9993 = vmatprep.subr.bf16.mxu0 %v8775
    %9994 = vmatpush1.bf16.msra.mxu0 %v8774
    %9995 = vmatprep.subr.bf16.mxu0 %v8782
    %9996 = vmatpush1.bf16.msra.mxu0 %v8781
    %9997 = vmatprep.subr.bf16.mxu0 %v8789
    %9998 = vmatpush1.bf16.msra.mxu0 %v8788
    %9999 = vmatprep.subr.bf16.mxu0 %v8796
    %10000 = vmatpush1.bf16.msra.mxu0 %v8795
    %10001 = vmatprep.subr.bf16.mxu0 %v8803
    %10002 = vmatpush1.bf16.msra.mxu0 %v8802
    %10003 = vmatprep.subr.bf16.mxu0 %v8810
    %10004 = vmatpush1.bf16.msra.mxu0 %v8809
    %10005 = vmatprep.subr.bf16.mxu0 %v8817
    %10006 = vmatpush1.bf16.msra.mxu0 %v8816
    %10007 = vmatprep.subr.bf16.mxu0 %v8824
    %10008 = vmatpush1.bf16.msra.mxu0 %v8823
    %10009 = vmatprep.subr.bf16.mxu0 %v8831
    %10010 = vmatpush1.bf16.msra.mxu0 %v8830
    %10011 = vmatprep.subr.bf16.mxu0 %v8838
    %10012 = vmatpush1.bf16.msra.mxu0 %v8837
    %10013 = vmatprep.subr.bf16.mxu0 %v8845
    %10014 = vmatpush1.bf16.msra.mxu0 %v8844
    %10015 = vmatprep.subr.bf16.mxu0 %v8852
    %10016 = vmatpush1.bf16.msra.mxu0 %v8851
    %10017 = vmatprep.subr.bf16.mxu0 %v8859
    %10018 = vmatpush1.bf16.msra.mxu0 %v8858
    %10019 = vmatprep.mubr.bf16.mxu0 %v7473
    %10020 = vmatmul.mubr.bf16.gmra.mrb[0].mxu0 %v7472
    %v10021 = vpop.f32.mrb[0].mxu0
    %v10022 = vadd.f32 %v7853, %v10021
    %v10023 = vpop.f32.mrb[0].mxu0
    %v10024 = vadd.f32 %v7857, %v10023
    %v10025 = vpop.f32.mrb[0].mxu0
    %v10026 = vadd.f32 %v7853, %v10025
    %v10027 = vpop.f32.mrb[0].mxu0
    %v10028 = vadd.f32 %v7857, %v10027
    %10029 = vmatprep.mubr.bf16.mxu0 %v7478
    %10030 = vmatmul.mubr.bf16.gmra.mrb[0].mxu0 %v7477
    %v10031 = vpop.f32.mrb[0].mxu0
    %v10032 = vadd.f32 %v7853, %v10031
    %v10033 = vpop.f32.mrb[0].mxu0
    %v10034 = vadd.f32 %v7857, %v10033
    %v10035 = vpop.f32.mrb[0].mxu0
    %v10036 = vadd.f32 %v7853, %v10035
    %v10037 = vpop.f32.mrb[0].mxu0
    %v10038 = vadd.f32 %v7857, %v10037
    %10039 = vmatprep.mubr.bf16.mxu0 %v7483
    %10040 = vmatmul.mubr.bf16.gmra.mrb[0].mxu0 %v7482
    %v10041 = vpop.f32.mrb[0].mxu0
    %v10042 = vadd.f32 %v7853, %v10041
    %v10043 = vpop.f32.mrb[0].mxu0
    %v10044 = vadd.f32 %v7857, %v10043
    %v10045 = vpop.f32.mrb[0].mxu0
    %v10046 = vadd.f32 %v7853, %v10045
    %v10047 = vpop.f32.mrb[0].mxu0
    %v10048 = vadd.f32 %v7857, %v10047
    %10049 = vmatprep.mubr.bf16.mxu0 %v7488
    %10050 = vmatmul.mubr.bf16.gmra.mrb[0].mxu0 %v7487
    %v10051 = vpop.f32.mrb[0].mxu0
    %v10052 = vadd.f32 %v7853, %v10051
    %v10053 = vpop.f32.mrb[0].mxu0
    %v10054 = vadd.f32 %v7857, %v10053
    %v10055 = vpop.f32.mrb[0].mxu0
    %v10056 = vadd.f32 %v7853, %v10055
    %v10057 = vpop.f32.mrb[0].mxu0
    %v10058 = vadd.f32 %v7857, %v10057
    %10059 = vmatprep.mubr.bf16.mxu0 %v7493
    %10060 = vmatmul.mubr.bf16.gmra.mrb[0].mxu0 %v7492
    %v10061 = vpop.f32.mrb[0].mxu0
    %v10062 = vadd.f32 %v7853, %v10061
    %v10063 = vpop.f32.mrb[0].mxu0
    %v10064 = vadd.f32 %v7857, %v10063
    %v10065 = vpop.f32.mrb[0].mxu0
    %v10066 = vadd.f32 %v7853, %v10065
    %v10067 = vpop.f32.mrb[0].mxu0
    %v10068 = vadd.f32 %v7857, %v10067
    %10069 = vmatprep.mubr.bf16.mxu0 %v7498
    %10070 = vmatmul.mubr.bf16.gmra.mrb[0].mxu0 %v7497
    %v10071 = vpop.f32.mrb[0].mxu0
    %v10072 = vadd.f32 %v7853, %v10071
    %v10073 = vpop.f32.mrb[0].mxu0
    %v10074 = vadd.f32 %v7857, %v10073
    %v10075 = vpop.f32.mrb[0].mxu0
    %v10076 = vadd.f32 %v7853, %v10075
    %v10077 = vpop.f32.mrb[0].mxu0
    %v10078 = vadd.f32 %v7857, %v10077
    %10079 = vmatprep.mubr.bf16.mxu0 %v7503
    %10080 = vmatmul.mubr.bf16.gmra.mrb[0].mxu0 %v7502
    %v10081 = vpop.f32.mrb[0].mxu0
    %v10082 = vadd.f32 %v7853, %v10081
    %v10083 = vpop.f32.mrb[0].mxu0
    %v10084 = vadd.f32 %v7857, %v10083
    %v10085 = vpop.f32.mrb[0].mxu0
    %v10086 = vadd.f32 %v7853, %v10085
    %v10087 = vpop.f32.mrb[0].mxu0
    %v10088 = vadd.f32 %v7857, %v10087
    %10089 = vmatprep.mubr.bf16.mxu0 %v7508
    %10090 = vmatmul.mubr.bf16.gmra.mrb[0].mxu0 %v7507
    %v10091 = vpop.f32.mrb[0].mxu0
    %v10092 = vadd.f32 %v7853, %v10091
    %v10093 = vpop.f32.mrb[0].mxu0
    %v10094 = vadd.f32 %v7857, %v10093
    %v10095 = vpop.f32.mrb[0].mxu0
    %v10096 = vadd.f32 %v7853, %v10095
    %v10097 = vpop.f32.mrb[0].mxu0
    %v10098 = vadd.f32 %v7857, %v10097
    %10099 = vdwg.mxu0
    %10100 = vmatprep.subr.bf16.mxu0 %v8866
    %10101 = vmatpush1.bf16.msra.mxu0 %v8865
    %10102 = vmatprep.subr.bf16.mxu0 %v8873
    %10103 = vmatpush1.bf16.msra.mxu0 %v8872
    %10104 = vmatprep.subr.bf16.mxu0 %v8880
    %10105 = vmatpush1.bf16.msra.mxu0 %v8879
    %10106 = vmatprep.subr.bf16.mxu0 %v8887
    %10107 = vmatpush1.bf16.msra.mxu0 %v8886
    %10108 = vmatprep.subr.bf16.mxu0 %v8894
    %10109 = vmatpush1.bf16.msra.mxu0 %v8893
    %10110 = vmatprep.subr.bf16.mxu0 %v8901
    %10111 = vmatpush1.bf16.msra.mxu0 %v8900
    %10112 = vmatprep.subr.bf16.mxu0 %v8908
    %10113 = vmatpush1.bf16.msra.mxu0 %v8907
    %10114 = vmatprep.subr.bf16.mxu0 %v8915
    %10115 = vmatpush1.bf16.msra.mxu0 %v8914
    %10116 = vmatprep.subr.bf16.mxu0 %v8922
    %10117 = vmatpush1.bf16.msra.mxu0 %v8921
    %10118 = vmatprep.subr.bf16.mxu0 %v8929
    %10119 = vmatpush1.bf16.msra.mxu0 %v8928
    %10120 = vmatprep.subr.bf16.mxu0 %v8936
    %10121 = vmatpush1.bf16.msra.mxu0 %v8935
    %10122 = vmatprep.subr.bf16.mxu0 %v8943
    %10123 = vmatpush1.bf16.msra.mxu0 %v8942
    %10124 = vmatprep.subr.bf16.mxu0 %v8950
    %10125 = vmatpush1.bf16.msra.mxu0 %v8949
    %10126 = vmatprep.subr.bf16.mxu0 %v8957
    %10127 = vmatpush1.bf16.msra.mxu0 %v8956
    %10128 = vmatprep.subr.bf16.mxu0 %v8964
    %10129 = vmatpush1.bf16.msra.mxu0 %v8963
    %10130 = vmatprep.subr.bf16.mxu0 %v8971
    %10131 = vmatpush1.bf16.msra.mxu0 %v8970
    %10132 = vmatprep.mubr.bf16.mxu0 %v7475
    %10133 = vmatmul.mubr.bf16.gmra.mrb[0].mxu0 %v7474
    %v10134 = vpop.f32.mrb[0].mxu0
    %v10135 = vadd.f32 %v10022, %v10134
    %v10136 = vpop.f32.mrb[0].mxu0
    %v10137 = vadd.f32 %v10024, %v10136
    %v10138 = vpop.f32.mrb[0].mxu0
    %v10139 = vadd.f32 %v10026, %v10138
    %v10140 = vpop.f32.mrb[0].mxu0
    %v10141 = vadd.f32 %v10028, %v10140
    %10142 = vmatprep.mubr.bf16.mxu0 %v7480
    %10143 = vmatmul.mubr.bf16.gmra.mrb[0].mxu0 %v7479
    %v10144 = vpop.f32.mrb[0].mxu0
    %v10145 = vadd.f32 %v10032, %v10144
    %v10146 = vpop.f32.mrb[0].mxu0
    %v10147 = vadd.f32 %v10034, %v10146
    %v10148 = vpop.f32.mrb[0].mxu0
    %v10149 = vadd.f32 %v10036, %v10148
    %v10150 = vpop.f32.mrb[0].mxu0
    %v10151 = vadd.f32 %v10038, %v10150
    %10152 = vmatprep.mubr.bf16.mxu0 %v7485
    %10153 = vmatmul.mubr.bf16.gmra.mrb[0].mxu0 %v7484
    %v10154 = vpop.f32.mrb[0].mxu0
    %v10155 = vadd.f32 %v10042, %v10154
    %v10156 = vpop.f32.mrb[0].mxu0
    %v10157 = vadd.f32 %v10044, %v10156
    %v10158 = vpop.f32.mrb[0].mxu0
    %v10159 = vadd.f32 %v10046, %v10158
    %v10160 = vpop.f32.mrb[0].mxu0
    %v10161 = vadd.f32 %v10048, %v10160
    %10162 = vmatprep.mubr.bf16.mxu0 %v7490
    %10163 = vmatmul.mubr.bf16.gmra.mrb[0].mxu0 %v7489
    %v10164 = vpop.f32.mrb[0].mxu0
    %v10165 = vadd.f32 %v10052, %v10164
    %v10166 = vpop.f32.mrb[0].mxu0
    %v10167 = vadd.f32 %v10054, %v10166
    %v10168 = vpop.f32.mrb[0].mxu0
    %v10169 = vadd.f32 %v10056, %v10168
    %v10170 = vpop.f32.mrb[0].mxu0
    %v10171 = vadd.f32 %v10058, %v10170
    %10172 = vmatprep.mubr.bf16.mxu0 %v7495
    %10173 = vmatmul.mubr.bf16.gmra.mrb[0].mxu0 %v7494
    %v10174 = vpop.f32.mrb[0].mxu0
    %v10175 = vadd.f32 %v10062, %v10174
    %v10176 = vpop.f32.mrb[0].mxu0
    %v10177 = vadd.f32 %v10064, %v10176
    %v10178 = vpop.f32.mrb[0].mxu0
    %v10179 = vadd.f32 %v10066, %v10178
    %v10180 = vpop.f32.mrb[0].mxu0
    %v10181 = vadd.f32 %v10068, %v10180
    %10182 = vmatprep.mubr.bf16.mxu0 %v7500
    %10183 = vmatmul.mubr.bf16.gmra.mrb[0].mxu0 %v7499
    %v10184 = vpop.f32.mrb[0].mxu0
    %v10185 = vadd.f32 %v10072, %v10184
    %v10186 = vpop.f32.mrb[0].mxu0
    %v10187 = vadd.f32 %v10074, %v10186
    %v10188 = vpop.f32.mrb[0].mxu0
    %v10189 = vadd.f32 %v10076, %v10188
    %v10190 = vpop.f32.mrb[0].mxu0
    %v10191 = vadd.f32 %v10078, %v10190
    %10192 = vmatprep.mubr.bf16.mxu0 %v7505
    %10193 = vmatmul.mubr.bf16.gmra.mrb[0].mxu0 %v7504
    %v10194 = vpop.f32.mrb[0].mxu0
    %v10195 = vadd.f32 %v10082, %v10194
    %v10196 = vpop.f32.mrb[0].mxu0
    %v10197 = vadd.f32 %v10084, %v10196
    %v10198 = vpop.f32.mrb[0].mxu0
    %v10199 = vadd.f32 %v10086, %v10198
    %v10200 = vpop.f32.mrb[0].mxu0
    %v10201 = vadd.f32 %v10088, %v10200
    %10202 = vmatprep.mubr.bf16.mxu0 %v7510
    %10203 = vmatmul.mubr.bf16.gmra.mrb[0].mxu0 %v7509
    %v10204 = vpop.f32.mrb[0].mxu0
    %v10205 = vadd.f32 %v10092, %v10204
    %v10206 = vpop.f32.mrb[0].mxu0
    %v10207 = vadd.f32 %v10094, %v10206
    %v10208 = vpop.f32.mrb[0].mxu0
    %v10209 = vadd.f32 %v10096, %v10208
    %v10210 = vpop.f32.mrb[0].mxu0
    %v10211 = vadd.f32 %v10098, %v10210
    %10212 = vdwg.mxu0
    %10213 = vmatprep.subr.bf16.mxu0 %v8978
    %10214 = vmatpush1.bf16.msra.mxu0 %v8977
    %10215 = vmatprep.subr.bf16.mxu0 %v8985
    %10216 = vmatpush1.bf16.msra.mxu0 %v8984
    %10217 = vmatprep.subr.bf16.mxu0 %v8992
    %10218 = vmatpush1.bf16.msra.mxu0 %v8991
    %10219 = vmatprep.subr.bf16.mxu0 %v8999
    %10220 = vmatpush1.bf16.msra.mxu0 %v8998
    %10221 = vmatprep.subr.bf16.mxu0 %v9006
    %10222 = vmatpush1.bf16.msra.mxu0 %v9005
    %10223 = vmatprep.subr.bf16.mxu0 %v9013
    %10224 = vmatpush1.bf16.msra.mxu0 %v9012
    %10225 = vmatprep.subr.bf16.mxu0 %v9020
    %10226 = vmatpush1.bf16.msra.mxu0 %v9019
    %10227 = vmatprep.subr.bf16.mxu0 %v9027
    %10228 = vmatpush1.bf16.msra.mxu0 %v9026
    %10229 = vmatprep.subr.bf16.mxu0 0
    %10230 = vmatpush1.bf16.msra.mxu0 0
    %10231 = vmatprep.subr.bf16.mxu0 0
    %10232 = vmatpush1.bf16.msra.mxu0 0
    %10233 = vmatprep.subr.bf16.mxu0 0
    %10234 = vmatpush1.bf16.msra.mxu0 0
    %10235 = vmatprep.subr.bf16.mxu0 0
    %10236 = vmatpush1.bf16.msra.mxu0 0
    %10237 = vmatprep.subr.bf16.mxu0 0
    %10238 = vmatpush1.bf16.msra.mxu0 0
    %10239 = vmatprep.subr.bf16.mxu0 0
    %10240 = vmatpush1.bf16.msra.mxu0 0
    %10241 = vmatprep.subr.bf16.mxu0 0
    %10242 = vmatpush1.bf16.msra.mxu0 0
    %10243 = vmatprep.subr.bf16.mxu0 0
    %10244 = vmatpush1.bf16.msra.mxu0 0
    %10245 = vmatprep.mubr.bf16.mxu0 0
    %10246 = vmatmul.mubr.bf16.gmra.mrb[0].mxu0 %v7476
    %v10247 = vpop.f32.mrb[0].mxu0
    %v10248 = vadd.f32 %v10135, %v10247
    %v10249 = vpop.f32.mrb[0].mxu0
    %v10250 = vadd.f32 %v10137, %v10249
    %v10251 = vpop.f32.mrb[0].mxu0
    %v10252 = vadd.f32 %v10139, %v10251
    %v10253 = vpop.f32.mrb[0].mxu0
    %v10254 = vadd.f32 %v10141, %v10253
    %10255 = vmatprep.mubr.bf16.mxu0 0
    %10256 = vmatmul.mubr.bf16.gmra.mrb[0].mxu0 %v7481
    %v10257 = vpop.f32.mrb[0].mxu0
    %v10258 = vadd.f32 %v10145, %v10257
    %v10259 = vpop.f32.mrb[0].mxu0
    %v10260 = vadd.f32 %v10147, %v10259
    %v10261 = vpop.f32.mrb[0].mxu0
    %v10262 = vadd.f32 %v10149, %v10261
    %v10263 = vpop.f32.mrb[0].mxu0
    %v10264 = vadd.f32 %v10151, %v10263
    %10265 = vmatprep.mubr.bf16.mxu0 0
    %10266 = vmatmul.mubr.bf16.gmra.mrb[0].mxu0 %v7486
    %v10267 = vpop.f32.mrb[0].mxu0
    %v10268 = vadd.f32 %v10155, %v10267
    %v10269 = vpop.f32.mrb[0].mxu0
    %v10270 = vadd.f32 %v10157, %v10269
    %v10271 = vpop.f32.mrb[0].mxu0
    %v10272 = vadd.f32 %v10159, %v10271
    %v10273 = vpop.f32.mrb[0].mxu0
    %v10274 = vadd.f32 %v10161, %v10273
    %10275 = vmatprep.mubr.bf16.mxu0 0
    %10276 = vmatmul.mubr.bf16.gmra.mrb[0].mxu0 %v7491
    %v10277 = vpop.f32.mrb[0].mxu0
    %v10278 = vadd.f32 %v10165, %v10277
    %v10279 = vpop.f32.mrb[0].mxu0
    %v10280 = vadd.f32 %v10167, %v10279
    %v10281 = vpop.f32.mrb[0].mxu0
    %v10282 = vadd.f32 %v10169, %v10281
    %v10283 = vpop.f32.mrb[0].mxu0
    %v10284 = vadd.f32 %v10171, %v10283
    %10285 = vmatprep.mubr.bf16.mxu0 0
    %10286 = vmatmul.mubr.bf16.gmra.mrb[0].mxu0 %v7496
    %v10287 = vpop.f32.mrb[0].mxu0
    %v10288 = vadd.f32 %v10175, %v10287
    %v10289 = vpop.f32.mrb[0].mxu0
    %v10290 = vadd.f32 %v10177, %v10289
    %v10291 = vpop.f32.mrb[0].mxu0
    %v10292 = vadd.f32 %v10179, %v10291
    %v10293 = vpop.f32.mrb[0].mxu0
    %v10294 = vadd.f32 %v10181, %v10293
    %10295 = vmatprep.mubr.bf16.mxu0 0
    %10296 = vmatmul.mubr.bf16.gmra.mrb[0].mxu0 %v7501
    %v10297 = vpop.f32.mrb[0].mxu0
    %v10298 = vadd.f32 %v10185, %v10297
    %v10299 = vpop.f32.mrb[0].mxu0
    %v10300 = vadd.f32 %v10187, %v10299
    %v10301 = vpop.f32.mrb[0].mxu0
    %v10302 = vadd.f32 %v10189, %v10301
    %v10303 = vpop.f32.mrb[0].mxu0
    %v10304 = vadd.f32 %v10191, %v10303
    %10305 = vmatprep.mubr.bf16.mxu0 0
    %10306 = vmatmul.mubr.bf16.gmra.mrb[0].mxu0 %v7506
    %v10307 = vpop.f32.mrb[0].mxu0
    %v10308 = vadd.f32 %v10195, %v10307
    %v10309 = vpop.f32.mrb[0].mxu0
    %v10310 = vadd.f32 %v10197, %v10309
    %v10311 = vpop.f32.mrb[0].mxu0
    %v10312 = vadd.f32 %v10199, %v10311
    %v10313 = vpop.f32.mrb[0].mxu0
    %v10314 = vadd.f32 %v10201, %v10313
    %10315 = vmatprep.mubr.bf16.mxu0 0
    %10316 = vmatmul.mubr.bf16.gmra.mrb[0].mxu0 %v7511
    %v10317 = vpop.f32.mrb[0].mxu0
    %v10318 = vadd.f32 %v10205, %v10317
    %v10319 = vpop.f32.mrb[0].mxu0
    %v10320 = vadd.f32 %v10207, %v10319
    %v10321 = vpop.f32.mrb[0].mxu0
    %v10322 = vadd.f32 %v10209, %v10321
    %v10323 = vpop.f32.mrb[0].mxu0
    %v10324 = vadd.f32 %v10211, %v10323
    %10325 = vdwg.mxu0
    %10326 = vmatprep.subr.bf16.mxu0 0
    %10327 = vmatpush1.bf16.msra.mxu0 %v8755
    %10328 = vmatprep.subr.bf16.mxu0 0
    %10329 = vmatpush1.bf16.msra.mxu0 %v8762
    %10330 = vmatprep.subr.bf16.mxu0 0
    %10331 = vmatpush1.bf16.msra.mxu0 %v8769
    %10332 = vmatprep.subr.bf16.mxu0 0
    %10333 = vmatpush1.bf16.msra.mxu0 %v8776
    %10334 = vmatprep.subr.bf16.mxu0 0
    %10335 = vmatpush1.bf16.msra.mxu0 %v8783
    %10336 = vmatprep.subr.bf16.mxu0 0
    %10337 = vmatpush1.bf16.msra.mxu0 %v8790
    %10338 = vmatprep.subr.bf16.mxu0 0
    %10339 = vmatpush1.bf16.msra.mxu0 %v8797
    %10340 = vmatprep.subr.bf16.mxu0 0
    %10341 = vmatpush1.bf16.msra.mxu0 %v8804
    %10342 = vmatprep.subr.bf16.mxu0 0
    %10343 = vmatpush1.bf16.msra.mxu0 %v8811
    %10344 = vmatprep.subr.bf16.mxu0 0
    %10345 = vmatpush1.bf16.msra.mxu0 %v8818
    %10346 = vmatprep.subr.bf16.mxu0 0
    %10347 = vmatpush1.bf16.msra.mxu0 %v8825
    %10348 = vmatprep.subr.bf16.mxu0 0
    %10349 = vmatpush1.bf16.msra.mxu0 %v8832
    %10350 = vmatprep.subr.bf16.mxu0 0
    %10351 = vmatpush1.bf16.msra.mxu0 %v8839
    %10352 = vmatprep.subr.bf16.mxu0 0
    %10353 = vmatpush1.bf16.msra.mxu0 %v8846
    %10354 = vmatprep.subr.bf16.mxu0 0
    %10355 = vmatpush1.bf16.msra.mxu0 %v8853
    %10356 = vmatprep.subr.bf16.mxu0 0
    %10357 = vmatpush1.bf16.msra.mxu0 %v8860
    %10358 = vmatprep.mubr.bf16.mxu0 %v7473
    %10359 = vmatmul.mubr.bf16.gmra.mrb[0].mxu0 %v7472
    %v10360 = vpop.f32.mrb[0].mxu0
    %v10361 = vadd.f32 %v7861, %v10360
    %v10362 = vpop.f32.mrb[0].mxu0
    %v10363 = vpop.f32.mrb[0].mxu0
    %v10364 = vadd.f32 %v7861, %v10363
    %v10365 = vpop.f32.mrb[0].mxu0
    %10366 = vmatprep.mubr.bf16.mxu0 %v7478
    %10367 = vmatmul.mubr.bf16.gmra.mrb[0].mxu0 %v7477
    %v10368 = vpop.f32.mrb[0].mxu0
    %v10369 = vadd.f32 %v7861, %v10368
    %v10370 = vpop.f32.mrb[0].mxu0
    %v10371 = vpop.f32.mrb[0].mxu0
    %v10372 = vadd.f32 %v7861, %v10371
    %v10373 = vpop.f32.mrb[0].mxu0
    %10374 = vmatprep.mubr.bf16.mxu0 %v7483
    %10375 = vmatmul.mubr.bf16.gmra.mrb[0].mxu0 %v7482
    %v10376 = vpop.f32.mrb[0].mxu0
    %v10377 = vadd.f32 %v7861, %v10376
    %v10378 = vpop.f32.mrb[0].mxu0
    %v10379 = vpop.f32.mrb[0].mxu0
    %v10380 = vadd.f32 %v7861, %v10379
    %v10381 = vpop.f32.mrb[0].mxu0
    %10382 = vmatprep.mubr.bf16.mxu0 %v7488
    %10383 = vmatmul.mubr.bf16.gmra.mrb[0].mxu0 %v7487
    %v10384 = vpop.f32.mrb[0].mxu0
    %v10385 = vadd.f32 %v7861, %v10384
    %v10386 = vpop.f32.mrb[0].mxu0
    %v10387 = vpop.f32.mrb[0].mxu0
    %v10388 = vadd.f32 %v7861, %v10387
    %v10389 = vpop.f32.mrb[0].mxu0
    %10390 = vmatprep.mubr.bf16.mxu0 %v7493
    %10391 = vmatmul.mubr.bf16.gmra.mrb[0].mxu0 %v7492
    %v10392 = vpop.f32.mrb[0].mxu0
    %v10393 = vadd.f32 %v7861, %v10392
    %v10394 = vpop.f32.mrb[0].mxu0
    %v10395 = vpop.f32.mrb[0].mxu0
    %v10396 = vadd.f32 %v7861, %v10395
    %v10397 = vpop.f32.mrb[0].mxu0
    %10398 = vmatprep.mubr.bf16.mxu0 %v7498
    %10399 = vmatmul.mubr.bf16.gmra.mrb[0].mxu0 %v7497
    %v10400 = vpop.f32.mrb[0].mxu0
    %v10401 = vadd.f32 %v7861, %v10400
    %v10402 = vpop.f32.mrb[0].mxu0
    %v10403 = vpop.f32.mrb[0].mxu0
    %v10404 = vadd.f32 %v7861, %v10403
    %v10405 = vpop.f32.mrb[0].mxu0
    %10406 = vmatprep.mubr.bf16.mxu0 %v7503
    %10407 = vmatmul.mubr.bf16.gmra.mrb[0].mxu0 %v7502
    %v10408 = vpop.f32.mrb[0].mxu0
    %v10409 = vadd.f32 %v7861, %v10408
    %v10410 = vpop.f32.mrb[0].mxu0
    %v10411 = vpop.f32.mrb[0].mxu0
    %v10412 = vadd.f32 %v7861, %v10411
    %v10413 = vpop.f32.mrb[0].mxu0
    %10414 = vmatprep.mubr.bf16.mxu0 %v7508
    %10415 = vmatmul.mubr.bf16.gmra.mrb[0].mxu0 %v7507
    %v10416 = vpop.f32.mrb[0].mxu0
    %v10417 = vadd.f32 %v7861, %v10416
    %v10418 = vpop.f32.mrb[0].mxu0
    %v10419 = vpop.f32.mrb[0].mxu0
    %v10420 = vadd.f32 %v7861, %v10419
    %v10421 = vpop.f32.mrb[0].mxu0
    %10422 = vdwg.mxu0
    %10423 = vmatprep.subr.bf16.mxu0 0
    %10424 = vmatpush1.bf16.msra.mxu0 %v8867
    %10425 = vmatprep.subr.bf16.mxu0 0
    %10426 = vmatpush1.bf16.msra.mxu0 %v8874
    %10427 = vmatprep.subr.bf16.mxu0 0
    %10428 = vmatpush1.bf16.msra.mxu0 %v8881
    %10429 = vmatprep.subr.bf16.mxu0 0
    %10430 = vmatpush1.bf16.msra.mxu0 %v8888
    %10431 = vmatprep.subr.bf16.mxu0 0
    %10432 = vmatpush1.bf16.msra.mxu0 %v8895
    %10433 = vmatprep.subr.bf16.mxu0 0
    %10434 = vmatpush1.bf16.msra.mxu0 %v8902
    %10435 = vmatprep.subr.bf16.mxu0 0
    %10436 = vmatpush1.bf16.msra.mxu0 %v8909
    %10437 = vmatprep.subr.bf16.mxu0 0
    %10438 = vmatpush1.bf16.msra.mxu0 %v8916
    %10439 = vmatprep.subr.bf16.mxu0 0
    %10440 = vmatpush1.bf16.msra.mxu0 %v8923
    %10441 = vmatprep.subr.bf16.mxu0 0
    %10442 = vmatpush1.bf16.msra.mxu0 %v8930
    %10443 = vmatprep.subr.bf16.mxu0 0
    %10444 = vmatpush1.bf16.msra.mxu0 %v8937
    %10445 = vmatprep.subr.bf16.mxu0 0
    %10446 = vmatpush1.bf16.msra.mxu0 %v8944
    %10447 = vmatprep.subr.bf16.mxu0 0
    %10448 = vmatpush1.bf16.msra.mxu0 %v8951
    %10449 = vmatprep.subr.bf16.mxu0 0
    %10450 = vmatpush1.bf16.msra.mxu0 %v8958
    %10451 = vmatprep.subr.bf16.mxu0 0
    %10452 = vmatpush1.bf16.msra.mxu0 %v8965
    %10453 = vmatprep.subr.bf16.mxu0 0
    %10454 = vmatpush1.bf16.msra.mxu0 %v8972
    %10455 = vmatprep.mubr.bf16.mxu0 %v7475
    %10456 = vmatmul.mubr.bf16.gmra.mrb[0].mxu0 %v7474
    %v10457 = vpop.f32.mrb[0].mxu0
    %v10458 = vadd.f32 %v10361, %v10457
    %v10459 = vpop.f32.mrb[0].mxu0
    %v10460 = vpop.f32.mrb[0].mxu0
    %v10461 = vadd.f32 %v10364, %v10460
    %v10462 = vpop.f32.mrb[0].mxu0
    %10463 = vmatprep.mubr.bf16.mxu0 %v7480
    %10464 = vmatmul.mubr.bf16.gmra.mrb[0].mxu0 %v7479
    %v10465 = vpop.f32.mrb[0].mxu0
    %v10466 = vadd.f32 %v10369, %v10465
    %v10467 = vpop.f32.mrb[0].mxu0
    %v10468 = vpop.f32.mrb[0].mxu0
    %v10469 = vadd.f32 %v10372, %v10468
    %v10470 = vpop.f32.mrb[0].mxu0
    %10471 = vmatprep.mubr.bf16.mxu0 %v7485
    %10472 = vmatmul.mubr.bf16.gmra.mrb[0].mxu0 %v7484
    %v10473 = vpop.f32.mrb[0].mxu0
    %v10474 = vadd.f32 %v10377, %v10473
    %v10475 = vpop.f32.mrb[0].mxu0
    %v10476 = vpop.f32.mrb[0].mxu0
    %v10477 = vadd.f32 %v10380, %v10476
    %v10478 = vpop.f32.mrb[0].mxu0
    %10479 = vmatprep.mubr.bf16.mxu0 %v7490
    %10480 = vmatmul.mubr.bf16.gmra.mrb[0].mxu0 %v7489
    %v10481 = vpop.f32.mrb[0].mxu0
    %v10482 = vadd.f32 %v10385, %v10481
    %v10483 = vpop.f32.mrb[0].mxu0
    %v10484 = vpop.f32.mrb[0].mxu0
    %v10485 = vadd.f32 %v10388, %v10484
    %v10486 = vpop.f32.mrb[0].mxu0
    %10487 = vmatprep.mubr.bf16.mxu0 %v7495
    %10488 = vmatmul.mubr.bf16.gmra.mrb[0].mxu0 %v7494
    %v10489 = vpop.f32.mrb[0].mxu0
    %v10490 = vadd.f32 %v10393, %v10489
    %v10491 = vpop.f32.mrb[0].mxu0
    %v10492 = vpop.f32.mrb[0].mxu0
    %v10493 = vadd.f32 %v10396, %v10492
    %v10494 = vpop.f32.mrb[0].mxu0
    %10495 = vmatprep.mubr.bf16.mxu0 %v7500
    %10496 = vmatmul.mubr.bf16.gmra.mrb[0].mxu0 %v7499
    %v10497 = vpop.f32.mrb[0].mxu0
    %v10498 = vadd.f32 %v10401, %v10497
    %v10499 = vpop.f32.mrb[0].mxu0
    %v10500 = vpop.f32.mrb[0].mxu0
    %v10501 = vadd.f32 %v10404, %v10500
    %v10502 = vpop.f32.mrb[0].mxu0
    %10503 = vmatprep.mubr.bf16.mxu0 %v7505
    %10504 = vmatmul.mubr.bf16.gmra.mrb[0].mxu0 %v7504
    %v10505 = vpop.f32.mrb[0].mxu0
    %v10506 = vadd.f32 %v10409, %v10505
    %v10507 = vpop.f32.mrb[0].mxu0
    %v10508 = vpop.f32.mrb[0].mxu0
    %v10509 = vadd.f32 %v10412, %v10508
    %v10510 = vpop.f32.mrb[0].mxu0
    %10511 = vmatprep.mubr.bf16.mxu0 %v7510
    %10512 = vmatmul.mubr.bf16.gmra.mrb[0].mxu0 %v7509
    %v10513 = vpop.f32.mrb[0].mxu0
    %v10514 = vadd.f32 %v10417, %v10513
    %v10515 = vpop.f32.mrb[0].mxu0
    %v10516 = vpop.f32.mrb[0].mxu0
    %v10517 = vadd.f32 %v10420, %v10516
    %v10518 = vpop.f32.mrb[0].mxu0
    %10519 = vdwg.mxu0
    %10520 = vmatprep.subr.bf16.mxu0 0
    %10521 = vmatpush1.bf16.msra.mxu0 %v8979
    %10522 = vmatprep.subr.bf16.mxu0 0
    %10523 = vmatpush1.bf16.msra.mxu0 %v8986
    %10524 = vmatprep.subr.bf16.mxu0 0
    %10525 = vmatpush1.bf16.msra.mxu0 %v8993
    %10526 = vmatprep.subr.bf16.mxu0 0
    %10527 = vmatpush1.bf16.msra.mxu0 %v9000
    %10528 = vmatprep.subr.bf16.mxu0 0
    %10529 = vmatpush1.bf16.msra.mxu0 %v9007
    %10530 = vmatprep.subr.bf16.mxu0 0
    %10531 = vmatpush1.bf16.msra.mxu0 %v9014
    %10532 = vmatprep.subr.bf16.mxu0 0
    %10533 = vmatpush1.bf16.msra.mxu0 %v9021
    %10534 = vmatprep.subr.bf16.mxu0 0
    %10535 = vmatpush1.bf16.msra.mxu0 %v9028
    %10536 = vmatprep.subr.bf16.mxu0 0
    %10537 = vmatpush1.bf16.msra.mxu0 0
    %10538 = vmatprep.subr.bf16.mxu0 0
    %10539 = vmatpush1.bf16.msra.mxu0 0
    %10540 = vmatprep.subr.bf16.mxu0 0
    %10541 = vmatpush1.bf16.msra.mxu0 0
    %10542 = vmatprep.subr.bf16.mxu0 0
    %10543 = vmatpush1.bf16.msra.mxu0 0
    %10544 = vmatprep.subr.bf16.mxu0 0
    %10545 = vmatpush1.bf16.msra.mxu0 0
    %10546 = vmatprep.subr.bf16.mxu0 0
    %10547 = vmatpush1.bf16.msra.mxu0 0
    %10548 = vmatprep.subr.bf16.mxu0 0
    %10549 = vmatpush1.bf16.msra.mxu0 0
    %10550 = vmatprep.subr.bf16.mxu0 0
    %10551 = vmatpush1.bf16.msra.mxu0 0
    %10552 = vmatprep.mubr.bf16.mxu0 0
    %10553 = vmatmul.mubr.bf16.gmra.mrb[0].mxu0 %v7476
    %v10554 = vpop.f32.mrb[0].mxu0
    %v10555 = vadd.f32 %v10458, %v10554
    %v10556 = vpop.f32.mrb[0].mxu0
    %v10557 = vpop.f32.mrb[0].mxu0
    %v10558 = vadd.f32 %v10461, %v10557
    %v10559 = vpop.f32.mrb[0].mxu0
    %10560 = vmatprep.mubr.bf16.mxu0 0
    %10561 = vmatmul.mubr.bf16.gmra.mrb[0].mxu0 %v7481
    %v10562 = vpop.f32.mrb[0].mxu0
    %v10563 = vadd.f32 %v10466, %v10562
    %v10564 = vpop.f32.mrb[0].mxu0
    %v10565 = vpop.f32.mrb[0].mxu0
    %v10566 = vadd.f32 %v10469, %v10565
    %v10567 = vpop.f32.mrb[0].mxu0
    %10568 = vmatprep.mubr.bf16.mxu0 0
    %10569 = vmatmul.mubr.bf16.gmra.mrb[0].mxu0 %v7486
    %v10570 = vpop.f32.mrb[0].mxu0
    %v10571 = vadd.f32 %v10474, %v10570
    %v10572 = vpop.f32.mrb[0].mxu0
    %v10573 = vpop.f32.mrb[0].mxu0
    %v10574 = vadd.f32 %v10477, %v10573
    %v10575 = vpop.f32.mrb[0].mxu0
    %10576 = vmatprep.mubr.bf16.mxu0 0
    %10577 = vmatmul.mubr.bf16.gmra.mrb[0].mxu0 %v7491
    %v10578 = vpop.f32.mrb[0].mxu0
    %v10579 = vadd.f32 %v10482, %v10578
    %v10580 = vpop.f32.mrb[0].mxu0
    %v10581 = vpop.f32.mrb[0].mxu0
    %v10582 = vadd.f32 %v10485, %v10581
    %v10583 = vpop.f32.mrb[0].mxu0
    %10584 = vmatprep.mubr.bf16.mxu0 0
    %10585 = vmatmul.mubr.bf16.gmra.mrb[0].mxu0 %v7496
    %v10586 = vpop.f32.mrb[0].mxu0
    %v10587 = vadd.f32 %v10490, %v10586
    %v10588 = vpop.f32.mrb[0].mxu0
    %v10589 = vpop.f32.mrb[0].mxu0
    %v10590 = vadd.f32 %v10493, %v10589
    %v10591 = vpop.f32.mrb[0].mxu0
    %10592 = vmatprep.mubr.bf16.mxu0 0
    %10593 = vmatmul.mubr.bf16.gmra.mrb[0].mxu0 %v7501
    %v10594 = vpop.f32.mrb[0].mxu0
    %v10595 = vadd.f32 %v10498, %v10594
    %v10596 = vpop.f32.mrb[0].mxu0
    %v10597 = vpop.f32.mrb[0].mxu0
    %v10598 = vadd.f32 %v10501, %v10597
    %v10599 = vpop.f32.mrb[0].mxu0
    %10600 = vmatprep.mubr.bf16.mxu0 0
    %10601 = vmatmul.mubr.bf16.gmra.mrb[0].mxu0 %v7506
    %v10602 = vpop.f32.mrb[0].mxu0
    %v10603 = vadd.f32 %v10506, %v10602
    %v10604 = vpop.f32.mrb[0].mxu0
    %v10605 = vpop.f32.mrb[0].mxu0
    %v10606 = vadd.f32 %v10509, %v10605
    %v10607 = vpop.f32.mrb[0].mxu0
    %10608 = vmatprep.mubr.bf16.mxu0 0
    %10609 = vmatmul.mubr.bf16.gmra.mrb[0].mxu0 %v7511
    %v10610 = vpop.f32.mrb[0].mxu0
    %v10611 = vadd.f32 %v10514, %v10610
    %v10612 = vpop.f32.mrb[0].mxu0
    %v10613 = vpop.f32.mrb[0].mxu0
    %v10614 = vadd.f32 %v10517, %v10613
    %v10615 = vpop.f32.mrb[0].mxu0
    %10616 = vdwg.mxu0
    %10617 = vst [vmem:[%s13] sm:$0xff] %v9570
    %10618 = vst [vmem:[%s13 + $0x8] sm:$0xff] %v9572
    %10619 = vst [vmem:[%s13 + $0x10] sm:$0xff] %v9909
    %10620 = vst [vmem:[%s13 + $0x18] sm:$0xff] %v9911
    %10621 = vst [vmem:[%s13 + $0x20] sm:$0xff] %v10248
    %10622 = vst [vmem:[%s13 + $0x28] sm:$0xff] %v10250
    %10623 = vst [vmem:[%s13 + $0x30] sm:$0xff] %v10555
    %10624 = vst [vmem:[%s13 + $0x38] sm:$0xff] %v9574
    %10625 = vst [vmem:[%s13 + $0x40] sm:$0xff] %v9576
    %10626 = vst [vmem:[%s13 + $0x48] sm:$0xff] %v9913
    %10627 = vst [vmem:[%s13 + $0x50] sm:$0xff] %v9915
    %10628 = vst [vmem:[%s13 + $0x58] sm:$0xff] %v10252
    %10629 = vst [vmem:[%s13 + $0x60] sm:$0xff] %v10254
    %10630 = vst [vmem:[%s13 + $0x68] sm:$0xff] %v10558
    %10631 = vst [vmem:[%s13 + $0x70] sm:$0xff] %v9580
    %10632 = vst [vmem:[%s13 + $0x78] sm:$0xff] %v9582
    %10633 = vst [vmem:[%s13 + $0x80] sm:$0xff] %v9919
    %10634 = vst [vmem:[%s13 + $0x88] sm:$0xff] %v9921
    %10635 = vst [vmem:[%s13 + $0x90] sm:$0xff] %v10258
    %10636 = vst [vmem:[%s13 + $0x98] sm:$0xff] %v10260
    %10637 = vst [vmem:[%s13 + $0xa0] sm:$0xff] %v10563
    %10638 = vst [vmem:[%s13 + $0xa8] sm:$0xff] %v9584
    %10639 = vst [vmem:[%s13 + $0xb0] sm:$0xff] %v9586
    %10640 = vst [vmem:[%s13 + $0xb8] sm:$0xff] %v9923
    %10641 = vst [vmem:[%s13 + $0xc0] sm:$0xff] %v9925
    %10642 = vst [vmem:[%s13 + $0xc8] sm:$0xff] %v10262
    %10643 = vst [vmem:[%s13 + $0xd0] sm:$0xff] %v10264
    %10644 = vst [vmem:[%s13 + $0xd8] sm:$0xff] %v10566
    %10645 = vst [vmem:[%s13 + $0xe0] sm:$0xff] %v9590
    %10646 = vst [vmem:[%s13 + $0xe8] sm:$0xff] %v9592
    %10647 = vst [vmem:[%s13 + $0xf0] sm:$0xff] %v9929
    %10648 = vst [vmem:[%s13 + $0xf8] sm:$0xff] %v9931
    %10649 = vst [vmem:[%s13 + $0x100] sm:$0xff] %v10268
    %10650 = vst [vmem:[%s13 + $0x108] sm:$0xff] %v10270
    %10651 = vst [vmem:[%s13 + $0x110] sm:$0xff] %v10571
    %10652 = vst [vmem:[%s13 + $0x118] sm:$0xff] %v9594
    %10653 = vst [vmem:[%s13 + $0x120] sm:$0xff] %v9596
    %10654 = vst [vmem:[%s13 + $0x128] sm:$0xff] %v9933
    %10655 = vst [vmem:[%s13 + $0x130] sm:$0xff] %v9935
    %10656 = vst [vmem:[%s13 + $0x138] sm:$0xff] %v10272
    %10657 = vst [vmem:[%s13 + $0x140] sm:$0xff] %v10274
    %10658 = vst [vmem:[%s13 + $0x148] sm:$0xff] %v10574
    %10659 = vst [vmem:[%s13 + $0x150] sm:$0xff] %v9600
    %10660 = vst [vmem:[%s13 + $0x158] sm:$0xff] %v9602
    %10661 = vst [vmem:[%s13 + $0x160] sm:$0xff] %v9939
    %10662 = vst [vmem:[%s13 + $0x168] sm:$0xff] %v9941
    %10663 = vst [vmem:[%s13 + $0x170] sm:$0xff] %v10278
    %10664 = vst [vmem:[%s13 + $0x178] sm:$0xff] %v10280
    %10665 = vst [vmem:[%s13 + $0x180] sm:$0xff] %v10579
    %10666 = vst [vmem:[%s13 + $0x188] sm:$0xff] %v9604
    %10667 = vst [vmem:[%s13 + $0x190] sm:$0xff] %v9606
    %10668 = vst [vmem:[%s13 + $0x198] sm:$0xff] %v9943
    %10669 = vst [vmem:[%s13 + $0x1a0] sm:$0xff] %v9945
    %10670 = vst [vmem:[%s13 + $0x1a8] sm:$0xff] %v10282
    %10671 = vst [vmem:[%s13 + $0x1b0] sm:$0xff] %v10284
    %10672 = vst [vmem:[%s13 + $0x1b8] sm:$0xff] %v10582
    %10673 = vst [vmem:[%s13 + $0x1c0] sm:$0xff] %v9610
    %10674 = vst [vmem:[%s13 + $0x1c8] sm:$0xff] %v9612
    %10675 = vst [vmem:[%s13 + $0x1d0] sm:$0xff] %v9949
    %10676 = vst [vmem:[%s13 + $0x1d8] sm:$0xff] %v9951
    %10677 = vst [vmem:[%s13 + $0x1e0] sm:$0xff] %v10288
    %10678 = vst [vmem:[%s13 + $0x1e8] sm:$0xff] %v10290
    %10679 = vst [vmem:[%s13 + $0x1f0] sm:$0xff] %v10587
    %10680 = vst [vmem:[%s13 + $0x1f8] sm:$0xff] %v9614
    %10681 = vst [vmem:[%s13 + $0x200] sm:$0xff] %v9616
    %10682 = vst [vmem:[%s13 + $0x208] sm:$0xff] %v9953
    %10683 = vst [vmem:[%s13 + $0x210] sm:$0xff] %v9955
    %10684 = vst [vmem:[%s13 + $0x218] sm:$0xff] %v10292
    %10685 = vst [vmem:[%s13 + $0x220] sm:$0xff] %v10294
    %10686 = vst [vmem:[%s13 + $0x228] sm:$0xff] %v10590
    %10687 = vst [vmem:[%s13 + $0x230] sm:$0xff] %v9620
    %10688 = vst [vmem:[%s13 + $0x238] sm:$0xff] %v9622
    %10689 = vst [vmem:[%s13 + $0x240] sm:$0xff] %v9959
    %10690 = vst [vmem:[%s13 + $0x248] sm:$0xff] %v9961
    %10691 = vst [vmem:[%s13 + $0x250] sm:$0xff] %v10298
    %10692 = vst [vmem:[%s13 + $0x258] sm:$0xff] %v10300
    %10693 = vst [vmem:[%s13 + $0x260] sm:$0xff] %v10595
    %10694 = vst [vmem:[%s13 + $0x268] sm:$0xff] %v9624
    %10695 = vst [vmem:[%s13 + $0x270] sm:$0xff] %v9626
    %10696 = vst [vmem:[%s13 + $0x278] sm:$0xff] %v9963
    %10697 = vst [vmem:[%s13 + $0x280] sm:$0xff] %v9965
    %10698 = vst [vmem:[%s13 + $0x288] sm:$0xff] %v10302
    %10699 = vst [vmem:[%s13 + $0x290] sm:$0xff] %v10304
    %10700 = vst [vmem:[%s13 + $0x298] sm:$0xff] %v10598
    %10701 = vst [vmem:[%s13 + $0x2a0] sm:$0xff] %v9630
    %10702 = vst [vmem:[%s13 + $0x2a8] sm:$0xff] %v9632
    %10703 = vst [vmem:[%s13 + $0x2b0] sm:$0xff] %v9969
    %10704 = vst [vmem:[%s13 + $0x2b8] sm:$0xff] %v9971
    %10705 = vst [vmem:[%s13 + $0x2c0] sm:$0xff] %v10308
    %10706 = vst [vmem:[%s13 + $0x2c8] sm:$0xff] %v10310
    %10707 = vst [vmem:[%s13 + $0x2d0] sm:$0xff] %v10603
    %10708 = vst [vmem:[%s13 + $0x2d8] sm:$0xff] %v9634
    %10709 = vst [vmem:[%s13 + $0x2e0] sm:$0xff] %v9636
    %10710 = vst [vmem:[%s13 + $0x2e8] sm:$0xff] %v9973
    %10711 = vst [vmem:[%s13 + $0x2f0] sm:$0xff] %v9975
    %10712 = vst [vmem:[%s13 + $0x2f8] sm:$0xff] %v10312
    %10713 = vst [vmem:[%s13 + $0x300] sm:$0xff] %v10314
    %10714 = vst [vmem:[%s13 + $0x308] sm:$0xff] %v10606
    %10715 = vst [vmem:[%s13 + $0x310] sm:$0xff] %v9640
    %10716 = vst [vmem:[%s13 + $0x318] sm:$0xff] %v9642
    %10717 = vst [vmem:[%s13 + $0x320] sm:$0xff] %v9979
    %10718 = vst [vmem:[%s13 + $0x328] sm:$0xff] %v9981
    %10719 = vst [vmem:[%s13 + $0x330] sm:$0xff] %v10318
    %10720 = vst [vmem:[%s13 + $0x338] sm:$0xff] %v10320
    %10721 = vst [vmem:[%s13 + $0x340] sm:$0xff] %v10611
    %10722 = vst [vmem:[%s13 + $0x348] sm:$0xff] %v9644
    %10723 = vst [vmem:[%s13 + $0x350] sm:$0xff] %v9646
    %10724 = vst [vmem:[%s13 + $0x358] sm:$0xff] %v9983
    %10725 = vst [vmem:[%s13 + $0x360] sm:$0xff] %v9985
    %10726 = vst [vmem:[%s13 + $0x368] sm:$0xff] %v10322
    %10727 = vst [vmem:[%s13 + $0x370] sm:$0xff] %v10324
    %10728 = vst [vmem:[%s13 + $0x378] sm:$0xff] %v10614
    // Predicated region
    $region102: #{mnist_autoencoder_forward.1} parent=1 // pred_check
      _
    $region103: #{mnist_autoencoder_forward.1} parent=1 // pred_check_branch
      %10730 = sbr.rel (0) target = $region105
    $region104: #{mnist_autoencoder_forward.1} parent=1 // pred_region
      _
    $region105: #{mnist_autoencoder_forward.1} parent=1 // pred_fallthru
      _
    // Predicated region
    $region106: #{mnist_autoencoder_forward.1} parent=1 // pred_check
      _
    $region107: #{mnist_autoencoder_forward.1} parent=1 // pred_check_branch
      %10732 = sbr.rel (0) target = $region109
    $region108: #{mnist_autoencoder_forward.1} parent=1 // pred_region
      _
    $region109: #{mnist_autoencoder_forward.1} parent=1 // pred_fallthru
      _
    %10733 = vsyncpa [#allocation3], 1
    %10734 = vsyncpa [#allocation5], 1
    %10735 = vsyncpa [#allocation8], 1
    %10736 = vsyncpa [#allocation11], 1
    %10737 = vsyncpa [#allocation14], 1
    %10738 = vsyncpa [#allocation17], 1
    %10739 = vsyncpa [#allocation20], 1

</llo_original>
